<compile_context>
chip_gen: v7x
topology: tpu7x:2x2x1
jax: 0.10.0
libtpu: 0.0.40
codegen_flags: <defaults>
</compile_context>

<pallas_src>
import functools

import numpy as np

import jax
import jax.numpy as jnp
from jax.experimental import pallas as pl
from jax.experimental.pallas import tpu as pltpu

EPS = 1e-5

# (kind, kernel, stride, pad, Cin, Cout) — mirrors the PyTorch module.
LAYERS = (
    ("conv",  4, 2, 1, 1,  8),    # conv1  + norm1  + relu
    ("conv",  4, 2, 1, 8,  16),   # conv2  + norm2  + relu
    ("conv",  2, 2, 1, 16, 32),   # conv3  + norm3  + relu
    ("convt", 3, 2, 1, 32, 16),   # convt1 + normt1 + relu
    ("convt", 4, 2, 1, 16, 8),    # convt2 + normt2 + relu
    ("convt", 4, 2, 1, 8,  1),    # convt3 + tanh   (normt3 unused)
)


def _spatial_chain(h, w):
    """Per-boundary (H, W, C) including the input; all static Python ints."""
    sizes = [(h, w, LAYERS[0][4])]
    for kind, k, s, p, _, co in LAYERS:
        hh, ww, _ = sizes[-1]
        if kind == "conv":
            hh, ww = (hh + 2 * p - k) // s + 1, (ww + 2 * p - k) // s + 1
        else:
            hh, ww = (hh - 1) * s - 2 * p + k, (ww - 1) * s - 2 * p + k
        sizes.append((hh, ww, co))
    return sizes


# ----------------------------------------------------------------------------
# The fused kernel
# ----------------------------------------------------------------------------
def _bn_relu(y, g, gt, gamma, beta_b, inv_m):
    """Train-mode BatchNorm2d (biased batch stats over all N*H*W positions) +
    ReLU on a lane-flattened [N, H*W*C] f32 layer output.  `g`/`gt` are 0/1
    channel group-sum / broadcast matrices; gamma is folded into the rsqrt
    before broadcasting; beta_b is the pre-broadcast [1, H*W*C] shift."""
    s1 = jnp.sum(y, axis=0, keepdims=True)                                 # [1, L]
    mean_c = jnp.dot(s1, g, preferred_element_type=jnp.float32) * inv_m    # [1, C]
    mean_b = jnp.dot(mean_c, gt, preferred_element_type=jnp.float32)       # [1, L]
    yc = y - mean_b
    s2 = jnp.sum(yc * yc, axis=0, keepdims=True)                           # centered
    var_c = jnp.dot(s2, g, preferred_element_type=jnp.float32) * inv_m     # biased
    scale_c = jax.lax.rsqrt(var_c + EPS) * gamma                           # gamma fold
    scale_b = jnp.dot(scale_c, gt, preferred_element_type=jnp.float32)     # [1, L]
    return jnp.maximum(yc * scale_b + beta_b, 0.0)


def _generator_kernel(x_ref, *refs, inv_ms):
    # refs layout: 5 x (W, G, Gt, gamma, beta_b) for the conv(T)+BN+ReLU
    # layers, then W for the final convT layer, then the output ref.
    o_ref = refs[-1]
    x = x_ref[...]                                          # [N, H0*W0*C0] bf16
    for l in range(5):
        w, g, gt, gamma, beta_b = refs[5 * l:5 * l + 5]
        # Conv / ConvT == one bf16 MXU matmul against the block-Toeplitz
        # weight (conv bias skipped: train-mode BN mean subtraction cancels
        # any per-channel constant exactly).
        y = jnp.dot(x, w[...], preferred_element_type=jnp.float32)
        x = _bn_relu(y, g[...], gt[...], gamma[...], beta_b[...],
                     inv_ms[l]).astype(jnp.bfloat16)
    y = jnp.dot(x, refs[25][...], preferred_element_type=jnp.float32)
    o_ref[...] = jnp.tanh(y)                                # [N, Hout*Wout] f32


# ----------------------------------------------------------------------------
# Wrapper
# ----------------------------------------------------------------------------
def _vmem_spec():
    return pl.BlockSpec(memory_space=pltpu.MemorySpace.VMEM)


def generator_forward(pp, x):
    """x: [N, 1, H, W] NCHW f32 (PyTorch interface) -> [N, 1, Hout, Wout] f32."""
    n, c0, h, w = x.shape
    sizes = _spatial_chain(h, w)
    # Cin == 1, so the NCHW flatten equals the (h, w, c) lane order the
    # Toeplitz matrices expect; one reshape + bf16 cast is the only entry glue.
    x_flat = x.reshape(n, h * w * c0).astype(jnp.bfloat16)

    inv_ms = tuple(1.0 / float(n * hh * ww) for hh, ww, _ in sizes[1:6])
    args = [x_flat]
    for l in range(5):
        args += [pp[f"w{l}"], pp[f"G{l}"], pp[f"Gt{l}"],
                 pp[f"gamma{l}"], pp[f"betab{l}"]]
    args.append(pp["w5"])

    ho, wo, co = sizes[-1]
    out = pl.pallas_call(
        functools.partial(_generator_kernel, inv_ms=inv_ms),
        out_shape=jax.ShapeDtypeStruct((n, ho * wo * co), jnp.float32),
        in_specs=[_vmem_spec()] * len(args),
        out_specs=_vmem_spec(),
    )(*args)
    # Lane order inside the kernel is (h, w, c) -> NHWC, then back to NCHW.
    return jnp.transpose(out.reshape(n, ho, wo, co), (0, 3, 1, 2))


# ----------------------------------------------------------------------------
# Parameters
# ----------------------------------------------------------------------------
def init_params(key):
    """Raw parameters mirroring the PyTorch module (PyTorch default init)."""
    ks = jax.random.split(key, 9)

    def u(k, shape, fan_in):
        bound = 1.0 / float(fan_in) ** 0.5
        return jax.random.uniform(k, shape, jnp.float32, -bound, bound)

    p = {}
    # Conv2d: weight [Cout, Cin, kh, kw], bias [Cout].  Biases are kept for
    # module fidelity but are mathematically dead in the forward: train-mode
    # BatchNorm's mean subtraction cancels any per-channel constant.
    p["w1"], p["b1"] = u(ks[0], (8, 1, 4, 4), 16), u(ks[1], (8,), 16)
    p["w2"], p["b2"] = u(ks[2], (16, 8, 4, 4), 128), u(ks[3], (16,), 128)
    p["w3"], p["b3"] = u(ks[4], (32, 16, 2, 2), 64), u(ks[5], (32,), 64)
    # ConvTranspose2d: weight [Cin, Cout, kh, kw], bias=False.
    p["wt1"] = u(ks[6], (32, 16, 3, 3), 16 * 9)
    p["wt2"] = u(ks[7], (16, 8, 4, 4), 8 * 16)
    p["wt3"] = u(ks[8], (8, 1, 4, 4), 1 * 16)
    # BatchNorm2d affine params (PyTorch default gamma=1, beta=0).
    for name, c in (("1", 8), ("2", 16), ("3", 32), ("t1", 16), ("t2", 8)):
        p["g" + name] = jnp.ones((c,), jnp.float32)
        p["beta" + name] = jnp.zeros((c,), jnp.float32)
    return p


def prepare_params(p, image_hw=(16, 16)):
    """One-time, host-side prep (pure layout work hoisted out of the forward):

      * every Conv2d / ConvTranspose2d is lowered to a dense block-Toeplitz
        matrix [Hin*Win*Cin, Hout*Wout*Cout] over the (h, w, c)-lane-flattened
        activation.  H/W zero padding and the convT stride-2 zero-dilation /
        output crop are folded into the matrix (no pad / dilate / im2col at
        run time), stored bf16 for the MXU.
      * per-BN 0/1 channel group-sum (G) and broadcast (Gt) matrices, the
        gamma row, and the pre-broadcast beta row, all f32.

    The matrices are specialized to the input resolution `image_hw`.
    """
    h0, w0 = image_hw
    sizes = _spatial_chain(h0, w0)
    raw_w = [p["w1"], p["w2"], p["w3"], p["wt1"], p["wt2"], p["wt3"]]
    bn_names = ("1", "2", "3", "t1", "t2")

    pp = {}
    for l, (kind, k, s, pad, cin, cout) in enumerate(LAYERS):
        hin, win, _ = sizes[l]
        hout, wout, _ = sizes[l + 1]
        wt = np.asarray(raw_w[l], np.float32)
        m = np.zeros((hin * win * cin, hout * wout * cout), np.float32)
        if kind == "conv":
            # Conv2d weight [Cout, Cin, k, k]:
            #   out[ho,wo,co] += x[s*ho+i-p, s*wo+j-p, ci] * w[co, ci, i, j]
            for ho in range(hout):
                for wo in range(wout):
                    col = (ho * wout + wo) * cout
                    for i in range(k):
                        hi = s * ho + i - pad
                        if hi < 0 or hi >= hin:
                            continue
                        for j in range(k):
                            wi = s * wo + j - pad
                            if wi < 0 or wi >= win:
                                continue
                            row = (hi * win + wi) * cin
                            m[row:row + cin, col:col + cout] += wt[:, :, i, j].T
        else:
            # ConvTranspose2d weight [Cin, Cout, k, k]:
            #   out[s*hi+i-p, s*wi+j-p, co] += x[hi, wi, ci] * w[ci, co, i, j]
            # (out-of-range taps are exactly PyTorch's implicit output crop).
            for hi in range(hin):
                for wi in range(win):
                    row = (hi * win + wi) * cin
                    for i in range(k):
                        ho = s * hi + i - pad
                        if ho < 0 or ho >= hout:
                            continue
                        for j in range(k):
                            wo = s * wi + j - pad
                            if wo < 0 or wo >= wout:
                                continue
                            col = (ho * wout + wo) * cout
                            m[row:row + cin, col:col + cout] += wt[:, :, i, j]
        pp[f"w{l}"] = jnp.asarray(m, jnp.bfloat16)

    for l, name in enumerate(bn_names):
        hout, wout, c = sizes[l + 1]
        hw = hout * wout
        g = np.tile(np.eye(c, dtype=np.float32), (hw, 1))          # [HW*C, C]
        gamma = np.asarray(p["g" + name], np.float32)
        beta = np.asarray(p["beta" + name], np.float32)
        pp[f"G{l}"] = jnp.asarray(g)
        pp[f"Gt{l}"] = jnp.asarray(g.T)
        pp[f"gamma{l}"] = jnp.asarray(gamma.reshape(1, c))
        pp[f"betab{l}"] = jnp.asarray(np.tile(beta, hw).reshape(1, hw * c))
    return pp


# ----------------------------------------------------------------------------
if __name__ == "__main__":
    key = jax.random.PRNGKey(0)
    kx, kp = jax.random.split(key)
    # Small MNIST-like input: batch=2, 1 channel, 16x16 spatial (NCHW).
    x = jax.random.normal(kx, (2, 1, 16, 16), jnp.float32)

    params = init_params(kp)
    prepped = prepare_params(params, image_hw=(16, 16))   # one-time, host side
    fwd = jax.jit(generator_forward)

    y = jax.block_until_ready(fwd(prepped, x))

    # Spatial trace: 16 -> 8 -> 4 -> 3 -> 5 -> 10 -> 20
    assert y.shape == (2, 1, 20, 20), y.shape
    assert y.dtype == jnp.float32
    assert bool(jnp.all(jnp.isfinite(y)))
    print("KERNEL_OK")
</pallas_src>

<mosaic_0001>
module attributes {stable_mosaic.version = 11 : i64} {
  func.func @_generator_kernel(%arg0: memref<2x256xbf16, #tpu.memory_space<vmem>>, %arg1: memref<256x512xbf16, #tpu.memory_space<vmem>>, %arg2: memref<512x8xf32, #tpu.memory_space<vmem>>, %arg3: memref<8x512xf32, #tpu.memory_space<vmem>>, %arg4: memref<1x8xf32, #tpu.memory_space<vmem>>, %arg5: memref<1x512xf32, #tpu.memory_space<vmem>>, %arg6: memref<512x256xbf16, #tpu.memory_space<vmem>>, %arg7: memref<256x16xf32, #tpu.memory_space<vmem>>, %arg8: memref<16x256xf32, #tpu.memory_space<vmem>>, %arg9: memref<1x16xf32, #tpu.memory_space<vmem>>, %arg10: memref<1x256xf32, #tpu.memory_space<vmem>>, %arg11: memref<256x288xbf16, #tpu.memory_space<vmem>>, %arg12: memref<288x32xf32, #tpu.memory_space<vmem>>, %arg13: memref<32x288xf32, #tpu.memory_space<vmem>>, %arg14: memref<1x32xf32, #tpu.memory_space<vmem>>, %arg15: memref<1x288xf32, #tpu.memory_space<vmem>>, %arg16: memref<288x400xbf16, #tpu.memory_space<vmem>>, %arg17: memref<400x16xf32, #tpu.memory_space<vmem>>, %arg18: memref<16x400xf32, #tpu.memory_space<vmem>>, %arg19: memref<1x16xf32, #tpu.memory_space<vmem>>, %arg20: memref<1x400xf32, #tpu.memory_space<vmem>>, %arg21: memref<400x800xbf16, #tpu.memory_space<vmem>>, %arg22: memref<800x8xf32, #tpu.memory_space<vmem>>, %arg23: memref<8x800xf32, #tpu.memory_space<vmem>>, %arg24: memref<1x8xf32, #tpu.memory_space<vmem>>, %arg25: memref<1x800xf32, #tpu.memory_space<vmem>>, %arg26: memref<800x400xbf16, #tpu.memory_space<vmem>>, %arg27: memref<2x400xf32, #tpu.memory_space<vmem>>) attributes {dimension_semantics = [], scalar_prefetch = 0 : i64, scratch_operands = 0 : i64, tpu.core_type = #tpu.core_type<tc>} {
    %c0 = arith.constant 0 : index
    %c0_0 = arith.constant 0 : index
    %0 = vector.load %arg0[%c0, %c0_0] : memref<2x256xbf16, #tpu.memory_space<vmem>>, vector<2x256xbf16>
    %c0_1 = arith.constant 0 : index
    %c0_2 = arith.constant 0 : index
    %1 = vector.load %arg1[%c0_1, %c0_2] : memref<256x512xbf16, #tpu.memory_space<vmem>>, vector<256x512xbf16>
    %cst = arith.constant dense<0.000000e+00> : vector<2x512xf32>
    %2 = tpu.matmul %0, %1, %cst {dimension_numbers = #tpu.dot_dimension_numbers<[1], [0], [0], [1], [0, 0, 1, 1], [], []>} : vector<2x256xbf16>, vector<256x512xbf16>, vector<2x512xf32> -> vector<2x512xf32>
    %c0_3 = arith.constant 0 : index
    %c0_4 = arith.constant 0 : index
    %3 = vector.load %arg2[%c0_3, %c0_4] : memref<512x8xf32, #tpu.memory_space<vmem>>, vector<512x8xf32>
    %c0_5 = arith.constant 0 : index
    %c0_6 = arith.constant 0 : index
    %4 = vector.load %arg3[%c0_5, %c0_6] : memref<8x512xf32, #tpu.memory_space<vmem>>, vector<8x512xf32>
    %c0_7 = arith.constant 0 : index
    %c0_8 = arith.constant 0 : index
    %5 = vector.load %arg4[%c0_7, %c0_8] : memref<1x8xf32, #tpu.memory_space<vmem>>, vector<1x8xf32>
    %c0_9 = arith.constant 0 : index
    %c0_10 = arith.constant 0 : index
    %6 = vector.load %arg5[%c0_9, %c0_10] : memref<1x512xf32, #tpu.memory_space<vmem>>, vector<1x512xf32>
    %cst_11 = arith.constant dense<0.000000e+00> : vector<512xf32>
    %7 = vector.multi_reduction <add>, %2, %cst_11 [0] : vector<2x512xf32> to vector<512xf32>
    %8 = vector.shape_cast %7 : vector<512xf32> to vector<1x512xf32>
    %cst_12 = arith.constant dense<0.000000e+00> : vector<1x8xf32>
    %9 = tpu.matmul %8, %3, %cst_12 {dimension_numbers = #tpu.dot_dimension_numbers<[1], [0], [0], [1], [0, 0, 1, 1], [], []>} : vector<1x512xf32>, vector<512x8xf32>, vector<1x8xf32> -> vector<1x8xf32>
    %cst_13 = arith.constant 7.812500e-03 : f32
    %10 = vector.broadcast %cst_13 : f32 to vector<1x8xf32>
    %11 = arith.mulf %9, %10 : vector<1x8xf32>
    %cst_14 = arith.constant dense<0.000000e+00> : vector<1x512xf32>
    %12 = tpu.matmul %11, %4, %cst_14 {dimension_numbers = #tpu.dot_dimension_numbers<[1], [0], [0], [1], [0, 0, 1, 1], [], []>} : vector<1x8xf32>, vector<8x512xf32>, vector<1x512xf32> -> vector<1x512xf32>
    %13 = vector.broadcast %12 : vector<1x512xf32> to vector<2x512xf32>
    %14 = arith.subf %2, %13 : vector<2x512xf32>
    %15 = arith.mulf %14, %14 : vector<2x512xf32>
    %cst_15 = arith.constant dense<0.000000e+00> : vector<512xf32>
    %16 = vector.multi_reduction <add>, %15, %cst_15 [0] : vector<2x512xf32> to vector<512xf32>
    %17 = vector.shape_cast %16 : vector<512xf32> to vector<1x512xf32>
    %cst_16 = arith.constant dense<0.000000e+00> : vector<1x8xf32>
    %18 = tpu.matmul %17, %3, %cst_16 {dimension_numbers = #tpu.dot_dimension_numbers<[1], [0], [0], [1], [0, 0, 1, 1], [], []>} : vector<1x512xf32>, vector<512x8xf32>, vector<1x8xf32> -> vector<1x8xf32>
    %cst_17 = arith.constant 7.812500e-03 : f32
    %19 = vector.broadcast %cst_17 : f32 to vector<1x8xf32>
    %20 = arith.mulf %18, %19 : vector<1x8xf32>
    %cst_18 = arith.constant 9.99999974E-6 : f32
    %21 = vector.broadcast %cst_18 : f32 to vector<1x8xf32>
    %22 = arith.addf %20, %21 : vector<1x8xf32>
    %23 = math.rsqrt %22 : vector<1x8xf32>
    %24 = arith.mulf %23, %5 : vector<1x8xf32>
    %cst_19 = arith.constant dense<0.000000e+00> : vector<1x512xf32>
    %25 = tpu.matmul %24, %4, %cst_19 {dimension_numbers = #tpu.dot_dimension_numbers<[1], [0], [0], [1], [0, 0, 1, 1], [], []>} : vector<1x8xf32>, vector<8x512xf32>, vector<1x512xf32> -> vector<1x512xf32>
    %26 = vector.broadcast %25 : vector<1x512xf32> to vector<2x512xf32>
    %27 = arith.mulf %14, %26 : vector<2x512xf32>
    %28 = vector.broadcast %6 : vector<1x512xf32> to vector<2x512xf32>
    %29 = arith.addf %27, %28 : vector<2x512xf32>
    %cst_20 = arith.constant 0.000000e+00 : f32
    %30 = vector.broadcast %cst_20 : f32 to vector<2x512xf32>
    %31 = arith.maximumf %29, %30 : vector<2x512xf32>
    %32 = arith.truncf %31 : vector<2x512xf32> to vector<2x512xbf16>
    %c0_21 = arith.constant 0 : index
    %c0_22 = arith.constant 0 : index
    %33 = vector.load %arg6[%c0_21, %c0_22] : memref<512x256xbf16, #tpu.memory_space<vmem>>, vector<512x256xbf16>
    %cst_23 = arith.constant dense<0.000000e+00> : vector<2x256xf32>
    %34 = tpu.matmul %32, %33, %cst_23 {dimension_numbers = #tpu.dot_dimension_numbers<[1], [0], [0], [1], [0, 0, 1, 1], [], []>} : vector<2x512xbf16>, vector<512x256xbf16>, vector<2x256xf32> -> vector<2x256xf32>
    %c0_24 = arith.constant 0 : index
    %c0_25 = arith.constant 0 : index
    %35 = vector.load %arg7[%c0_24, %c0_25] : memref<256x16xf32, #tpu.memory_space<vmem>>, vector<256x16xf32>
    %c0_26 = arith.constant 0 : index
    %c0_27 = arith.constant 0 : index
    %36 = vector.load %arg8[%c0_26, %c0_27] : memref<16x256xf32, #tpu.memory_space<vmem>>, vector<16x256xf32>
    %c0_28 = arith.constant 0 : index
    %c0_29 = arith.constant 0 : index
    %37 = vector.load %arg9[%c0_28, %c0_29] : memref<1x16xf32, #tpu.memory_space<vmem>>, vector<1x16xf32>
    %c0_30 = arith.constant 0 : index
    %c0_31 = arith.constant 0 : index
    %38 = vector.load %arg10[%c0_30, %c0_31] : memref<1x256xf32, #tpu.memory_space<vmem>>, vector<1x256xf32>
    %cst_32 = arith.constant dense<0.000000e+00> : vector<256xf32>
    %39 = vector.multi_reduction <add>, %34, %cst_32 [0] : vector<2x256xf32> to vector<256xf32>
    %40 = vector.shape_cast %39 : vector<256xf32> to vector<1x256xf32>
    %cst_33 = arith.constant dense<0.000000e+00> : vector<1x16xf32>
    %41 = tpu.matmul %40, %35, %cst_33 {dimension_numbers = #tpu.dot_dimension_numbers<[1], [0], [0], [1], [0, 0, 1, 1], [], []>} : vector<1x256xf32>, vector<256x16xf32>, vector<1x16xf32> -> vector<1x16xf32>
    %cst_34 = arith.constant 3.125000e-02 : f32
    %42 = vector.broadcast %cst_34 : f32 to vector<1x16xf32>
    %43 = arith.mulf %41, %42 : vector<1x16xf32>
    %cst_35 = arith.constant dense<0.000000e+00> : vector<1x256xf32>
    %44 = tpu.matmul %43, %36, %cst_35 {dimension_numbers = #tpu.dot_dimension_numbers<[1], [0], [0], [1], [0, 0, 1, 1], [], []>} : vector<1x16xf32>, vector<16x256xf32>, vector<1x256xf32> -> vector<1x256xf32>
    %45 = vector.broadcast %44 : vector<1x256xf32> to vector<2x256xf32>
    %46 = arith.subf %34, %45 : vector<2x256xf32>
    %47 = arith.mulf %46, %46 : vector<2x256xf32>
    %cst_36 = arith.constant dense<0.000000e+00> : vector<256xf32>
    %48 = vector.multi_reduction <add>, %47, %cst_36 [0] : vector<2x256xf32> to vector<256xf32>
    %49 = vector.shape_cast %48 : vector<256xf32> to vector<1x256xf32>
    %cst_37 = arith.constant dense<0.000000e+00> : vector<1x16xf32>
    %50 = tpu.matmul %49, %35, %cst_37 {dimension_numbers = #tpu.dot_dimension_numbers<[1], [0], [0], [1], [0, 0, 1, 1], [], []>} : vector<1x256xf32>, vector<256x16xf32>, vector<1x16xf32> -> vector<1x16xf32>
    %cst_38 = arith.constant 3.125000e-02 : f32
    %51 = vector.broadcast %cst_38 : f32 to vector<1x16xf32>
    %52 = arith.mulf %50, %51 : vector<1x16xf32>
    %cst_39 = arith.constant 9.99999974E-6 : f32
    %53 = vector.broadcast %cst_39 : f32 to vector<1x16xf32>
    %54 = arith.addf %52, %53 : vector<1x16xf32>
    %55 = math.rsqrt %54 : vector<1x16xf32>
    %56 = arith.mulf %55, %37 : vector<1x16xf32>
    %cst_40 = arith.constant dense<0.000000e+00> : vector<1x256xf32>
    %57 = tpu.matmul %56, %36, %cst_40 {dimension_numbers = #tpu.dot_dimension_numbers<[1], [0], [0], [1], [0, 0, 1, 1], [], []>} : vector<1x16xf32>, vector<16x256xf32>, vector<1x256xf32> -> vector<1x256xf32>
    %58 = vector.broadcast %57 : vector<1x256xf32> to vector<2x256xf32>
    %59 = arith.mulf %46, %58 : vector<2x256xf32>
    %60 = vector.broadcast %38 : vector<1x256xf32> to vector<2x256xf32>
    %61 = arith.addf %59, %60 : vector<2x256xf32>
    %cst_41 = arith.constant 0.000000e+00 : f32
    %62 = vector.broadcast %cst_41 : f32 to vector<2x256xf32>
    %63 = arith.maximumf %61, %62 : vector<2x256xf32>
    %64 = arith.truncf %63 : vector<2x256xf32> to vector<2x256xbf16>
    %c0_42 = arith.constant 0 : index
    %c0_43 = arith.constant 0 : index
    %65 = vector.load %arg11[%c0_42, %c0_43] : memref<256x288xbf16, #tpu.memory_space<vmem>>, vector<256x288xbf16>
    %cst_44 = arith.constant dense<0.000000e+00> : vector<2x288xf32>
    %66 = tpu.matmul %64, %65, %cst_44 {dimension_numbers = #tpu.dot_dimension_numbers<[1], [0], [0], [1], [0, 0, 1, 1], [], []>} : vector<2x256xbf16>, vector<256x288xbf16>, vector<2x288xf32> -> vector<2x288xf32>
    %c0_45 = arith.constant 0 : index
    %c0_46 = arith.constant 0 : index
    %67 = vector.load %arg12[%c0_45, %c0_46] : memref<288x32xf32, #tpu.memory_space<vmem>>, vector<288x32xf32>
    %c0_47 = arith.constant 0 : index
    %c0_48 = arith.constant 0 : index
    %68 = vector.load %arg13[%c0_47, %c0_48] : memref<32x288xf32, #tpu.memory_space<vmem>>, vector<32x288xf32>
    %c0_49 = arith.constant 0 : index
    %c0_50 = arith.constant 0 : index
    %69 = vector.load %arg14[%c0_49, %c0_50] : memref<1x32xf32, #tpu.memory_space<vmem>>, vector<1x32xf32>
    %c0_51 = arith.constant 0 : index
    %c0_52 = arith.constant 0 : index
    %70 = vector.load %arg15[%c0_51, %c0_52] : memref<1x288xf32, #tpu.memory_space<vmem>>, vector<1x288xf32>
    %cst_53 = arith.constant dense<0.000000e+00> : vector<288xf32>
    %71 = vector.multi_reduction <add>, %66, %cst_53 [0] : vector<2x288xf32> to vector<288xf32>
    %72 = vector.shape_cast %71 : vector<288xf32> to vector<1x288xf32>
    %cst_54 = arith.constant dense<0.000000e+00> : vector<1x32xf32>
    %73 = tpu.matmul %72, %67, %cst_54 {dimension_numbers = #tpu.dot_dimension_numbers<[1], [0], [0], [1], [0, 0, 1, 1], [], []>} : vector<1x288xf32>, vector<288x32xf32>, vector<1x32xf32> -> vector<1x32xf32>
    %cst_55 = arith.constant 0.055555556 : f32
    %74 = vector.broadcast %cst_55 : f32 to vector<1x32xf32>
    %75 = arith.mulf %73, %74 : vector<1x32xf32>
    %cst_56 = arith.constant dense<0.000000e+00> : vector<1x288xf32>
    %76 = tpu.matmul %75, %68, %cst_56 {dimension_numbers = #tpu.dot_dimension_numbers<[1], [0], [0], [1], [0, 0, 1, 1], [], []>} : vector<1x32xf32>, vector<32x288xf32>, vector<1x288xf32> -> vector<1x288xf32>
    %77 = vector.broadcast %76 : vector<1x288xf32> to vector<2x288xf32>
    %78 = arith.subf %66, %77 : vector<2x288xf32>
    %79 = arith.mulf %78, %78 : vector<2x288xf32>
    %cst_57 = arith.constant dense<0.000000e+00> : vector<288xf32>
    %80 = vector.multi_reduction <add>, %79, %cst_57 [0] : vector<2x288xf32> to vector<288xf32>
    %81 = vector.shape_cast %80 : vector<288xf32> to vector<1x288xf32>
    %cst_58 = arith.constant dense<0.000000e+00> : vector<1x32xf32>
    %82 = tpu.matmul %81, %67, %cst_58 {dimension_numbers = #tpu.dot_dimension_numbers<[1], [0], [0], [1], [0, 0, 1, 1], [], []>} : vector<1x288xf32>, vector<288x32xf32>, vector<1x32xf32> -> vector<1x32xf32>
    %cst_59 = arith.constant 0.055555556 : f32
    %83 = vector.broadcast %cst_59 : f32 to vector<1x32xf32>
    %84 = arith.mulf %82, %83 : vector<1x32xf32>
    %cst_60 = arith.constant 9.99999974E-6 : f32
    %85 = vector.broadcast %cst_60 : f32 to vector<1x32xf32>
    %86 = arith.addf %84, %85 : vector<1x32xf32>
    %87 = math.rsqrt %86 : vector<1x32xf32>
    %88 = arith.mulf %87, %69 : vector<1x32xf32>
    %cst_61 = arith.constant dense<0.000000e+00> : vector<1x288xf32>
    %89 = tpu.matmul %88, %68, %cst_61 {dimension_numbers = #tpu.dot_dimension_numbers<[1], [0], [0], [1], [0, 0, 1, 1], [], []>} : vector<1x32xf32>, vector<32x288xf32>, vector<1x288xf32> -> vector<1x288xf32>
    %90 = vector.broadcast %89 : vector<1x288xf32> to vector<2x288xf32>
    %91 = arith.mulf %78, %90 : vector<2x288xf32>
    %92 = vector.broadcast %70 : vector<1x288xf32> to vector<2x288xf32>
    %93 = arith.addf %91, %92 : vector<2x288xf32>
    %cst_62 = arith.constant 0.000000e+00 : f32
    %94 = vector.broadcast %cst_62 : f32 to vector<2x288xf32>
    %95 = arith.maximumf %93, %94 : vector<2x288xf32>
    %96 = arith.truncf %95 : vector<2x288xf32> to vector<2x288xbf16>
    %c0_63 = arith.constant 0 : index
    %c0_64 = arith.constant 0 : index
    %97 = vector.load %arg16[%c0_63, %c0_64] : memref<288x400xbf16, #tpu.memory_space<vmem>>, vector<288x400xbf16>
    %cst_65 = arith.constant dense<0.000000e+00> : vector<2x400xf32>
    %98 = tpu.matmul %96, %97, %cst_65 {dimension_numbers = #tpu.dot_dimension_numbers<[1], [0], [0], [1], [0, 0, 1, 1], [], []>} : vector<2x288xbf16>, vector<288x400xbf16>, vector<2x400xf32> -> vector<2x400xf32>
    %c0_66 = arith.constant 0 : index
    %c0_67 = arith.constant 0 : index
    %99 = vector.load %arg17[%c0_66, %c0_67] : memref<400x16xf32, #tpu.memory_space<vmem>>, vector<400x16xf32>
    %c0_68 = arith.constant 0 : index
    %c0_69 = arith.constant 0 : index
    %100 = vector.load %arg18[%c0_68, %c0_69] : memref<16x400xf32, #tpu.memory_space<vmem>>, vector<16x400xf32>
    %c0_70 = arith.constant 0 : index
    %c0_71 = arith.constant 0 : index
    %101 = vector.load %arg19[%c0_70, %c0_71] : memref<1x16xf32, #tpu.memory_space<vmem>>, vector<1x16xf32>
    %c0_72 = arith.constant 0 : index
    %c0_73 = arith.constant 0 : index
    %102 = vector.load %arg20[%c0_72, %c0_73] : memref<1x400xf32, #tpu.memory_space<vmem>>, vector<1x400xf32>
    %cst_74 = arith.constant dense<0.000000e+00> : vector<400xf32>
    %103 = vector.multi_reduction <add>, %98, %cst_74 [0] : vector<2x400xf32> to vector<400xf32>
    %104 = vector.shape_cast %103 : vector<400xf32> to vector<1x400xf32>
    %cst_75 = arith.constant dense<0.000000e+00> : vector<1x16xf32>
    %105 = tpu.matmul %104, %99, %cst_75 {dimension_numbers = #tpu.dot_dimension_numbers<[1], [0], [0], [1], [0, 0, 1, 1], [], []>} : vector<1x400xf32>, vector<400x16xf32>, vector<1x16xf32> -> vector<1x16xf32>
    %cst_76 = arith.constant 2.000000e-02 : f32
    %106 = vector.broadcast %cst_76 : f32 to vector<1x16xf32>
    %107 = arith.mulf %105, %106 : vector<1x16xf32>
    %cst_77 = arith.constant dense<0.000000e+00> : vector<1x400xf32>
    %108 = tpu.matmul %107, %100, %cst_77 {dimension_numbers = #tpu.dot_dimension_numbers<[1], [0], [0], [1], [0, 0, 1, 1], [], []>} : vector<1x16xf32>, vector<16x400xf32>, vector<1x400xf32> -> vector<1x400xf32>
    %109 = vector.broadcast %108 : vector<1x400xf32> to vector<2x400xf32>
    %110 = arith.subf %98, %109 : vector<2x400xf32>
    %111 = arith.mulf %110, %110 : vector<2x400xf32>
    %cst_78 = arith.constant dense<0.000000e+00> : vector<400xf32>
    %112 = vector.multi_reduction <add>, %111, %cst_78 [0] : vector<2x400xf32> to vector<400xf32>
    %113 = vector.shape_cast %112 : vector<400xf32> to vector<1x400xf32>
    %cst_79 = arith.constant dense<0.000000e+00> : vector<1x16xf32>
    %114 = tpu.matmul %113, %99, %cst_79 {dimension_numbers = #tpu.dot_dimension_numbers<[1], [0], [0], [1], [0, 0, 1, 1], [], []>} : vector<1x400xf32>, vector<400x16xf32>, vector<1x16xf32> -> vector<1x16xf32>
    %cst_80 = arith.constant 2.000000e-02 : f32
    %115 = vector.broadcast %cst_80 : f32 to vector<1x16xf32>
    %116 = arith.mulf %114, %115 : vector<1x16xf32>
    %cst_81 = arith.constant 9.99999974E-6 : f32
    %117 = vector.broadcast %cst_81 : f32 to vector<1x16xf32>
    %118 = arith.addf %116, %117 : vector<1x16xf32>
    %119 = math.rsqrt %118 : vector<1x16xf32>
    %120 = arith.mulf %119, %101 : vector<1x16xf32>
    %cst_82 = arith.constant dense<0.000000e+00> : vector<1x400xf32>
    %121 = tpu.matmul %120, %100, %cst_82 {dimension_numbers = #tpu.dot_dimension_numbers<[1], [0], [0], [1], [0, 0, 1, 1], [], []>} : vector<1x16xf32>, vector<16x400xf32>, vector<1x400xf32> -> vector<1x400xf32>
    %122 = vector.broadcast %121 : vector<1x400xf32> to vector<2x400xf32>
    %123 = arith.mulf %110, %122 : vector<2x400xf32>
    %124 = vector.broadcast %102 : vector<1x400xf32> to vector<2x400xf32>
    %125 = arith.addf %123, %124 : vector<2x400xf32>
    %cst_83 = arith.constant 0.000000e+00 : f32
    %126 = vector.broadcast %cst_83 : f32 to vector<2x400xf32>
    %127 = arith.maximumf %125, %126 : vector<2x400xf32>
    %128 = arith.truncf %127 : vector<2x400xf32> to vector<2x400xbf16>
    %c0_84 = arith.constant 0 : index
    %c0_85 = arith.constant 0 : index
    %129 = vector.load %arg21[%c0_84, %c0_85] : memref<400x800xbf16, #tpu.memory_space<vmem>>, vector<400x800xbf16>
    %cst_86 = arith.constant dense<0.000000e+00> : vector<2x800xf32>
    %130 = tpu.matmul %128, %129, %cst_86 {dimension_numbers = #tpu.dot_dimension_numbers<[1], [0], [0], [1], [0, 0, 1, 1], [], []>} : vector<2x400xbf16>, vector<400x800xbf16>, vector<2x800xf32> -> vector<2x800xf32>
    %c0_87 = arith.constant 0 : index
    %c0_88 = arith.constant 0 : index
    %131 = vector.load %arg22[%c0_87, %c0_88] : memref<800x8xf32, #tpu.memory_space<vmem>>, vector<800x8xf32>
    %c0_89 = arith.constant 0 : index
    %c0_90 = arith.constant 0 : index
    %132 = vector.load %arg23[%c0_89, %c0_90] : memref<8x800xf32, #tpu.memory_space<vmem>>, vector<8x800xf32>
    %c0_91 = arith.constant 0 : index
    %c0_92 = arith.constant 0 : index
    %133 = vector.load %arg24[%c0_91, %c0_92] : memref<1x8xf32, #tpu.memory_space<vmem>>, vector<1x8xf32>
    %c0_93 = arith.constant 0 : index
    %c0_94 = arith.constant 0 : index
    %134 = vector.load %arg25[%c0_93, %c0_94] : memref<1x800xf32, #tpu.memory_space<vmem>>, vector<1x800xf32>
    %cst_95 = arith.constant dense<0.000000e+00> : vector<800xf32>
    %135 = vector.multi_reduction <add>, %130, %cst_95 [0] : vector<2x800xf32> to vector<800xf32>
    %136 = vector.shape_cast %135 : vector<800xf32> to vector<1x800xf32>
    %cst_96 = arith.constant dense<0.000000e+00> : vector<1x8xf32>
    %137 = tpu.matmul %136, %131, %cst_96 {dimension_numbers = #tpu.dot_dimension_numbers<[1], [0], [0], [1], [0, 0, 1, 1], [], []>} : vector<1x800xf32>, vector<800x8xf32>, vector<1x8xf32> -> vector<1x8xf32>
    %cst_97 = arith.constant 5.000000e-03 : f32
    %138 = vector.broadcast %cst_97 : f32 to vector<1x8xf32>
    %139 = arith.mulf %137, %138 : vector<1x8xf32>
    %cst_98 = arith.constant dense<0.000000e+00> : vector<1x800xf32>
    %140 = tpu.matmul %139, %132, %cst_98 {dimension_numbers = #tpu.dot_dimension_numbers<[1], [0], [0], [1], [0, 0, 1, 1], [], []>} : vector<1x8xf32>, vector<8x800xf32>, vector<1x800xf32> -> vector<1x800xf32>
    %141 = vector.broadcast %140 : vector<1x800xf32> to vector<2x800xf32>
    %142 = arith.subf %130, %141 : vector<2x800xf32>
    %143 = arith.mulf %142, %142 : vector<2x800xf32>
    %cst_99 = arith.constant dense<0.000000e+00> : vector<800xf32>
    %144 = vector.multi_reduction <add>, %143, %cst_99 [0] : vector<2x800xf32> to vector<800xf32>
    %145 = vector.shape_cast %144 : vector<800xf32> to vector<1x800xf32>
    %cst_100 = arith.constant dense<0.000000e+00> : vector<1x8xf32>
    %146 = tpu.matmul %145, %131, %cst_100 {dimension_numbers = #tpu.dot_dimension_numbers<[1], [0], [0], [1], [0, 0, 1, 1], [], []>} : vector<1x800xf32>, vector<800x8xf32>, vector<1x8xf32> -> vector<1x8xf32>
    %cst_101 = arith.constant 5.000000e-03 : f32
    %147 = vector.broadcast %cst_101 : f32 to vector<1x8xf32>
    %148 = arith.mulf %146, %147 : vector<1x8xf32>
    %cst_102 = arith.constant 9.99999974E-6 : f32
    %149 = vector.broadcast %cst_102 : f32 to vector<1x8xf32>
    %150 = arith.addf %148, %149 : vector<1x8xf32>
    %151 = math.rsqrt %150 : vector<1x8xf32>
    %152 = arith.mulf %151, %133 : vector<1x8xf32>
    %cst_103 = arith.constant dense<0.000000e+00> : vector<1x800xf32>
    %153 = tpu.matmul %152, %132, %cst_103 {dimension_numbers = #tpu.dot_dimension_numbers<[1], [0], [0], [1], [0, 0, 1, 1], [], []>} : vector<1x8xf32>, vector<8x800xf32>, vector<1x800xf32> -> vector<1x800xf32>
    %154 = vector.broadcast %153 : vector<1x800xf32> to vector<2x800xf32>
    %155 = arith.mulf %142, %154 : vector<2x800xf32>
    %156 = vector.broadcast %134 : vector<1x800xf32> to vector<2x800xf32>
    %157 = arith.addf %155, %156 : vector<2x800xf32>
    %cst_104 = arith.constant 0.000000e+00 : f32
    %158 = vector.broadcast %cst_104 : f32 to vector<2x800xf32>
    %159 = arith.maximumf %157, %158 : vector<2x800xf32>
    %160 = arith.truncf %159 : vector<2x800xf32> to vector<2x800xbf16>
    %c0_105 = arith.constant 0 : index
    %c0_106 = arith.constant 0 : index
    %161 = vector.load %arg26[%c0_105, %c0_106] : memref<800x400xbf16, #tpu.memory_space<vmem>>, vector<800x400xbf16>
    %cst_107 = arith.constant dense<0.000000e+00> : vector<2x400xf32>
    %162 = tpu.matmul %160, %161, %cst_107 {dimension_numbers = #tpu.dot_dimension_numbers<[1], [0], [0], [1], [0, 0, 1, 1], [], []>} : vector<2x800xbf16>, vector<800x400xbf16>, vector<2x400xf32> -> vector<2x400xf32>
    %163 = math.tanh %162 : vector<2x400xf32>
    %c0_108 = arith.constant 0 : index
    %c0_109 = arith.constant 0 : index
    %164 = vector.load %arg27[%c0_108, %c0_109] : memref<2x400xf32, #tpu.memory_space<vmem>>, vector<2x400xf32>
    tpu.vector_store %arg27[%c0_108, %c0_109], %163 {strides = array<i32>} : memref<2x400xf32, #tpu.memory_space<vmem>>, vector<2x400xf32>,
    return
  }
}

</mosaic_0001>

<llo_original>
// kernel: generator_forward.1
$region0: #{generator_forward.1}
  #allocation0 [shape = 'u32[]', space=smem, size = 0x4, offset = 0x4, fixed_abs, tag = 'smem constant byte address 0x4 - core index']
  #allocation1 [shape = 'u32[144,128]{1,0:T(1,128)}', space=vmem, size = 0x12000, scoped, tag = 'internal scratch']
  %s0 = inlined_call_operand.vmem [shape: bf16[2,256], index: 0, kind: input, shape index: {}]
  %s1 = inlined_call_operand.vmem [shape: bf16[256,512], index: 1, kind: input, shape index: {}]
  %s2 = inlined_call_operand.vmem [shape: f32[512,8], index: 2, kind: input, shape index: {}]
  %s3 = inlined_call_operand.vmem [shape: f32[8,512], index: 3, kind: input, shape index: {}]
  %s4 = inlined_call_operand.vmem [shape: f32[1,8], index: 4, kind: input, shape index: {}]
  %s5 = inlined_call_operand.vmem [shape: f32[1,512], index: 5, kind: input, shape index: {}]
  %s6 = inlined_call_operand.vmem [shape: bf16[512,256], index: 6, kind: input, shape index: {}]
  %s7 = inlined_call_operand.vmem [shape: f32[256,16], index: 7, kind: input, shape index: {}]
  %s8 = inlined_call_operand.vmem [shape: f32[16,256], index: 8, kind: input, shape index: {}]
  %s9 = inlined_call_operand.vmem [shape: f32[1,16], index: 9, kind: input, shape index: {}]
  %s10 = inlined_call_operand.vmem [shape: f32[1,256], index: 10, kind: input, shape index: {}]
  %s11 = inlined_call_operand.vmem [shape: bf16[256,288], index: 11, kind: input, shape index: {}]
  %s12 = inlined_call_operand.vmem [shape: f32[288,32], index: 12, kind: input, shape index: {}]
  %s13 = inlined_call_operand.vmem [shape: f32[32,288], index: 13, kind: input, shape index: {}]
  %s14 = inlined_call_operand.vmem [shape: f32[1,32], index: 14, kind: input, shape index: {}]
  %s15 = inlined_call_operand.vmem [shape: f32[1,288], index: 15, kind: input, shape index: {}]
  %s16 = inlined_call_operand.vmem [shape: bf16[288,400], index: 16, kind: input, shape index: {}]
  %s17 = inlined_call_operand.vmem [shape: f32[400,16], index: 17, kind: input, shape index: {}]
  %s18 = inlined_call_operand.vmem [shape: f32[16,400], index: 18, kind: input, shape index: {}]
  %s19 = inlined_call_operand.vmem [shape: f32[1,16], index: 19, kind: input, shape index: {}]
  %s20 = inlined_call_operand.vmem [shape: f32[1,400], index: 20, kind: input, shape index: {}]
  %s21 = inlined_call_operand.vmem [shape: bf16[400,800], index: 21, kind: input, shape index: {}]
  %s22 = inlined_call_operand.vmem [shape: f32[800,8], index: 22, kind: input, shape index: {}]
  %s23 = inlined_call_operand.vmem [shape: f32[8,800], index: 23, kind: input, shape index: {}]
  %s24 = inlined_call_operand.vmem [shape: f32[1,8], index: 24, kind: input, shape index: {}]
  %s25 = inlined_call_operand.vmem [shape: f32[1,800], index: 25, kind: input, shape index: {}]
  %s26 = inlined_call_operand.vmem [shape: bf16[800,400], index: 26, kind: input, shape index: {}]
  %s27 = inlined_call_operand.vmem [shape: f32[2,400], index: 27, kind: output, shape index: {}]
  %s28 = sld [smem:[#allocation0]]
  $region118: #{generator_forward.1} parent=0
    _
  %s30 = ssub.s32 1, %s28
  %s31 = scalar_select 0, %s30, %s28
  // Predicated region
  $region2: #{generator_forward.1} parent=0 // pred_check
    _
  $region3: #{generator_forward.1} parent=0 // pred_check_branch
    %33 = sbr.rel (0) target = $region5
  $region4: #{generator_forward.1} parent=0 // pred_region
    _
  $region5: #{generator_forward.1} parent=0 // pred_fallthru
    _
  // Predicated region
  $region6: #{generator_forward.1} parent=0 // pred_check
    _
  $region7: #{generator_forward.1} parent=0 // pred_check_branch
    %35 = sbr.rel (0) target = $region9
  $region8: #{generator_forward.1} parent=0 // pred_region
    _
  $region9: #{generator_forward.1} parent=0 // pred_fallthru
    _
  // Predicated region
  $region10: #{generator_forward.1} parent=0 // pred_check
    _
  $region11: #{generator_forward.1} parent=0 // pred_check_branch
    %37 = sbr.rel (0) target = $region13
  $region12: #{generator_forward.1} parent=0 // pred_region
    _
  $region13: #{generator_forward.1} parent=0 // pred_fallthru
    _
  // Predicated region
  $region14: #{generator_forward.1} parent=0 // pred_check
    _
  $region15: #{generator_forward.1} parent=0 // pred_check_branch
    %39 = sbr.rel (0) target = $region17
  $region16: #{generator_forward.1} parent=0 // pred_region
    _
  $region17: #{generator_forward.1} parent=0 // pred_fallthru
    _
  // Predicated region
  $region18: #{generator_forward.1} parent=0 // pred_check
    _
  $region19: #{generator_forward.1} parent=0 // pred_check_branch
    %41 = sbr.rel (0) target = $region21
  $region20: #{generator_forward.1} parent=0 // pred_region
    _
  $region21: #{generator_forward.1} parent=0 // pred_fallthru
    _
  // Predicated region
  $region22: #{generator_forward.1} parent=0 // pred_check
    _
  $region23: #{generator_forward.1} parent=0 // pred_check_branch
    %43 = sbr.rel (0) target = $region25
  $region24: #{generator_forward.1} parent=0 // pred_region
    _
  $region25: #{generator_forward.1} parent=0 // pred_fallthru
    _
  // Predicated region
  $region26: #{generator_forward.1} parent=0 // pred_check
    _
  $region27: #{generator_forward.1} parent=0 // pred_check_branch
    %45 = sbr.rel (0) target = $region29
  $region28: #{generator_forward.1} parent=0 // pred_region
    _
  $region29: #{generator_forward.1} parent=0 // pred_fallthru
    _
  // Predicated region
  $region30: #{generator_forward.1} parent=0 // pred_check
    _
  $region31: #{generator_forward.1} parent=0 // pred_check_branch
    %47 = sbr.rel (0) target = $region33
  $region32: #{generator_forward.1} parent=0 // pred_region
    _
  $region33: #{generator_forward.1} parent=0 // pred_fallthru
    _
  // Predicated region
  $region34: #{generator_forward.1} parent=0 // pred_check
    _
  $region35: #{generator_forward.1} parent=0 // pred_check_branch
    %49 = sbr.rel (0) target = $region37
  $region36: #{generator_forward.1} parent=0 // pred_region
    _
  $region37: #{generator_forward.1} parent=0 // pred_fallthru
    _
  // Predicated region
  $region38: #{generator_forward.1} parent=0 // pred_check
    _
  $region39: #{generator_forward.1} parent=0 // pred_check_branch
    %51 = sbr.rel (0) target = $region41
  $region40: #{generator_forward.1} parent=0 // pred_region
    _
  $region41: #{generator_forward.1} parent=0 // pred_fallthru
    _
  // Predicated region
  $region42: #{generator_forward.1} parent=0 // pred_check
    _
  $region43: #{generator_forward.1} parent=0 // pred_check_branch
    %53 = sbr.rel (0) target = $region45
  $region44: #{generator_forward.1} parent=0 // pred_region
    _
  $region45: #{generator_forward.1} parent=0 // pred_fallthru
    _
  // Predicated region
  $region46: #{generator_forward.1} parent=0 // pred_check
    _
  $region47: #{generator_forward.1} parent=0 // pred_check_branch
    %55 = sbr.rel (0) target = $region49
  $region48: #{generator_forward.1} parent=0 // pred_region
    _
  $region49: #{generator_forward.1} parent=0 // pred_fallthru
    _
  // Predicated region
  $region50: #{generator_forward.1} parent=0 // pred_check
    _
  $region51: #{generator_forward.1} parent=0 // pred_check_branch
    %57 = sbr.rel (0) target = $region53
  $region52: #{generator_forward.1} parent=0 // pred_region
    _
  $region53: #{generator_forward.1} parent=0 // pred_fallthru
    _
  // Predicated region
  $region54: #{generator_forward.1} parent=0 // pred_check
    _
  $region55: #{generator_forward.1} parent=0 // pred_check_branch
    %59 = sbr.rel (0) target = $region57
  $region56: #{generator_forward.1} parent=0 // pred_region
    _
  $region57: #{generator_forward.1} parent=0 // pred_fallthru
    _
  // Predicated region
  $region58: #{generator_forward.1} parent=0 // pred_check
    _
  $region59: #{generator_forward.1} parent=0 // pred_check_branch
    %61 = sbr.rel (0) target = $region61
  $region60: #{generator_forward.1} parent=0 // pred_region
    _
  $region61: #{generator_forward.1} parent=0 // pred_fallthru
    _
  // Predicated region
  $region62: #{generator_forward.1} parent=0 // pred_check
    _
  $region63: #{generator_forward.1} parent=0 // pred_check_branch
    %63 = sbr.rel (0) target = $region65
  $region64: #{generator_forward.1} parent=0 // pred_region
    _
  $region65: #{generator_forward.1} parent=0 // pred_fallthru
    _
  // Predicated region
  $region66: #{generator_forward.1} parent=0 // pred_check
    _
  $region67: #{generator_forward.1} parent=0 // pred_check_branch
    %65 = sbr.rel (0) target = $region69
  $region68: #{generator_forward.1} parent=0 // pred_region
    _
  $region69: #{generator_forward.1} parent=0 // pred_fallthru
    _
  // Predicated region
  $region70: #{generator_forward.1} parent=0 // pred_check
    _
  $region71: #{generator_forward.1} parent=0 // pred_check_branch
    %67 = sbr.rel (0) target = $region73
  $region72: #{generator_forward.1} parent=0 // pred_region
    _
  $region73: #{generator_forward.1} parent=0 // pred_fallthru
    _
  // Predicated region
  $region74: #{generator_forward.1} parent=0 // pred_check
    _
  $region75: #{generator_forward.1} parent=0 // pred_check_branch
    %69 = sbr.rel (0) target = $region77
  $region76: #{generator_forward.1} parent=0 // pred_region
    _
  $region77: #{generator_forward.1} parent=0 // pred_fallthru
    _
  // Predicated region
  $region78: #{generator_forward.1} parent=0 // pred_check
    _
  $region79: #{generator_forward.1} parent=0 // pred_check_branch
    %71 = sbr.rel (0) target = $region81
  $region80: #{generator_forward.1} parent=0 // pred_region
    _
  $region81: #{generator_forward.1} parent=0 // pred_fallthru
    _
  // Predicated region
  $region82: #{generator_forward.1} parent=0 // pred_check
    _
  $region83: #{generator_forward.1} parent=0 // pred_check_branch
    %73 = sbr.rel (0) target = $region85
  $region84: #{generator_forward.1} parent=0 // pred_region
    _
  $region85: #{generator_forward.1} parent=0 // pred_fallthru
    _
  // Predicated region
  $region86: #{generator_forward.1} parent=0 // pred_check
    _
  $region87: #{generator_forward.1} parent=0 // pred_check_branch
    %75 = sbr.rel (0) target = $region89
  $region88: #{generator_forward.1} parent=0 // pred_region
    _
  $region89: #{generator_forward.1} parent=0 // pred_fallthru
    _
  // Predicated region
  $region90: #{generator_forward.1} parent=0 // pred_check
    _
  $region91: #{generator_forward.1} parent=0 // pred_check_branch
    %77 = sbr.rel (0) target = $region93
  $region92: #{generator_forward.1} parent=0 // pred_region
    _
  $region93: #{generator_forward.1} parent=0 // pred_fallthru
    _
  // Predicated region
  $region94: #{generator_forward.1} parent=0 // pred_check
    _
  $region95: #{generator_forward.1} parent=0 // pred_check_branch
    %79 = sbr.rel (0) target = $region97
  $region96: #{generator_forward.1} parent=0 // pred_region
    _
  $region97: #{generator_forward.1} parent=0 // pred_fallthru
    _
  // Predicated region
  $region98: #{generator_forward.1} parent=0 // pred_check
    _
  $region99: #{generator_forward.1} parent=0 // pred_check_branch
    %81 = sbr.rel (0) target = $region101
  $region100: #{generator_forward.1} parent=0 // pred_region
    _
  $region101: #{generator_forward.1} parent=0 // pred_fallthru
    _
  // Predicated region
  $region102: #{generator_forward.1} parent=0 // pred_check
    _
  $region103: #{generator_forward.1} parent=0 // pred_check_branch
    %83 = sbr.rel (0) target = $region105
  $region104: #{generator_forward.1} parent=0 // pred_region
    _
  $region105: #{generator_forward.1} parent=0 // pred_fallthru
    _
  // Predicated region
  $region106: #{generator_forward.1} parent=0 // pred_check
    _
  $region107: #{generator_forward.1} parent=0 // pred_check_branch
    %85 = sbr.rel (0) target = $region109
  $region108: #{generator_forward.1} parent=0 // pred_region
    _
  $region109: #{generator_forward.1} parent=0 // pred_fallthru
    _
  %v87 = vld [vmem:[%s0] sm:$0x3]
  %v88 = vld [vmem:[%s1] sm:$0xff]
  %v89 = vld [vmem:[%s1 + $0x8] sm:$0xff]
  %v90 = vld [vmem:[%s1 + $0x10] sm:$0xff]
  %v91 = vld [vmem:[%s1 + $0x18] sm:$0xff]
  %v92 = vld [vmem:[%s1 + $0x20] sm:$0xff]
  %v93 = vld [vmem:[%s1 + $0x28] sm:$0xff]
  %v94 = vld [vmem:[%s1 + $0x30] sm:$0xff]
  %v95 = vld [vmem:[%s1 + $0x38] sm:$0xff]
  %v96 = vld [vmem:[%s1 + $0x40] sm:$0xff]
  %v97 = vld [vmem:[%s1 + $0x48] sm:$0xff]
  %v98 = vld [vmem:[%s1 + $0x50] sm:$0xff]
  %v99 = vld [vmem:[%s1 + $0x58] sm:$0xff]
  %v100 = vld [vmem:[%s1 + $0x60] sm:$0xff]
  %v101 = vld [vmem:[%s1 + $0x68] sm:$0xff]
  %v102 = vld [vmem:[%s1 + $0x70] sm:$0xff]
  %v103 = vld [vmem:[%s1 + $0x78] sm:$0xff]
  %v104 = vld [vmem:[%s1 + $0x80] sm:$0xff]
  %v105 = vld [vmem:[%s1 + $0x88] sm:$0xff]
  %v106 = vld [vmem:[%s1 + $0x90] sm:$0xff]
  %v107 = vld [vmem:[%s1 + $0x98] sm:$0xff]
  %v108 = vld [vmem:[%s1 + $0xa0] sm:$0xff]
  %v109 = vld [vmem:[%s1 + $0xa8] sm:$0xff]
  %v110 = vld [vmem:[%s1 + $0xb0] sm:$0xff]
  %v111 = vld [vmem:[%s1 + $0xb8] sm:$0xff]
  %v112 = vld [vmem:[%s1 + $0xc0] sm:$0xff]
  %v113 = vld [vmem:[%s1 + $0xc8] sm:$0xff]
  %v114 = vld [vmem:[%s1 + $0xd0] sm:$0xff]
  %v115 = vld [vmem:[%s1 + $0xd8] sm:$0xff]
  %v116 = vld [vmem:[%s1 + $0xe0] sm:$0xff]
  %v117 = vld [vmem:[%s1 + $0xe8] sm:$0xff]
  %v118 = vld [vmem:[%s1 + $0xf0] sm:$0xff]
  %v119 = vld [vmem:[%s1 + $0xf8] sm:$0xff]
  %v120 = vld [vmem:[%s1 + $0x100] sm:$0xff]
  %v121 = vld [vmem:[%s1 + $0x108] sm:$0xff]
  %v122 = vld [vmem:[%s1 + $0x110] sm:$0xff]
  %v123 = vld [vmem:[%s1 + $0x118] sm:$0xff]
  %v124 = vld [vmem:[%s1 + $0x120] sm:$0xff]
  %v125 = vld [vmem:[%s1 + $0x128] sm:$0xff]
  %v126 = vld [vmem:[%s1 + $0x130] sm:$0xff]
  %v127 = vld [vmem:[%s1 + $0x138] sm:$0xff]
  %v128 = vld [vmem:[%s1 + $0x140] sm:$0xff]
  %v129 = vld [vmem:[%s1 + $0x148] sm:$0xff]
  %v130 = vld [vmem:[%s1 + $0x150] sm:$0xff]
  %v131 = vld [vmem:[%s1 + $0x158] sm:$0xff]
  %v132 = vld [vmem:[%s1 + $0x160] sm:$0xff]
  %v133 = vld [vmem:[%s1 + $0x168] sm:$0xff]
  %v134 = vld [vmem:[%s1 + $0x170] sm:$0xff]
  %v135 = vld [vmem:[%s1 + $0x178] sm:$0xff]
  %v136 = vld [vmem:[%s1 + $0x180] sm:$0xff]
  %v137 = vld [vmem:[%s1 + $0x188] sm:$0xff]
  %v138 = vld [vmem:[%s1 + $0x190] sm:$0xff]
  %v139 = vld [vmem:[%s1 + $0x198] sm:$0xff]
  %v140 = vld [vmem:[%s1 + $0x1a0] sm:$0xff]
  %v141 = vld [vmem:[%s1 + $0x1a8] sm:$0xff]
  %v142 = vld [vmem:[%s1 + $0x1b0] sm:$0xff]
  %v143 = vld [vmem:[%s1 + $0x1b8] sm:$0xff]
  %v144 = vld [vmem:[%s1 + $0x1c0] sm:$0xff]
  %v145 = vld [vmem:[%s1 + $0x1c8] sm:$0xff]
  %v146 = vld [vmem:[%s1 + $0x1d0] sm:$0xff]
  %v147 = vld [vmem:[%s1 + $0x1d8] sm:$0xff]
  %v148 = vld [vmem:[%s1 + $0x1e0] sm:$0xff]
  %v149 = vld [vmem:[%s1 + $0x1e8] sm:$0xff]
  %v150 = vld [vmem:[%s1 + $0x1f0] sm:$0xff]
  %v151 = vld [vmem:[%s1 + $0x1f8] sm:$0xff]
  %v154 = vunpack.c.l.s4 1966171168
  %v155 = vunpack.c.0.s8 %v154
  %v156 = vlaneseq
  %v157 = vshrl.u32 %v156, 7
  %v158 = vsub.s32 %v155, %v157
  %v159 = vrot.slane %v87, %v158
  %v160 = vcombine.high %v159, %v159
  %v162 = vunpack.c.l.s4 1966171168
  %v163 = vunpack.c.0.s8 %v162
  %v164 = vlaneseq
  %v165 = vshrl.u32 %v164, 7
  %v166 = vsub.s32 %v163, %v165
  %v167 = vrot.slane %v159, %v166
  %v169 = vunpack.c.l.s4 1966171168
  %v170 = vunpack.c.0.s8 %v169
  %v171 = vlaneseq
  %v172 = vshrl.u32 %v171, 7
  %v173 = vsub.s32 %v170, %v172
  %v174 = vrot.slane %v160, %v173
  %v241 = vunpack.c.l.b16 %v88
  %v242 = vunpack.c.h.b16 %v88
  %v243 = vunpack.c.l.b16 %v89
  %v244 = vunpack.c.h.b16 %v89
  %v245 = vunpack.c.l.b16 %v90
  %v246 = vunpack.c.h.b16 %v90
  %v247 = vunpack.c.l.b16 %v91
  %v248 = vunpack.c.h.b16 %v91
  %v249 = vunpack.c.l.b16 %v92
  %v250 = vunpack.c.h.b16 %v92
  %v251 = vunpack.c.l.b16 %v93
  %v252 = vunpack.c.h.b16 %v93
  %v253 = vunpack.c.l.b16 %v94
  %v254 = vunpack.c.h.b16 %v94
  %v255 = vunpack.c.l.b16 %v95
  %v256 = vunpack.c.h.b16 %v95
  %v257 = vunpack.c.l.b16 %v96
  %v258 = vunpack.c.h.b16 %v96
  %v259 = vunpack.c.l.b16 %v97
  %v260 = vunpack.c.h.b16 %v97
  %v261 = vunpack.c.l.b16 %v98
  %v262 = vunpack.c.h.b16 %v98
  %v263 = vunpack.c.l.b16 %v99
  %v264 = vunpack.c.h.b16 %v99
  %v265 = vunpack.c.l.b16 %v100
  %v266 = vunpack.c.h.b16 %v100
  %v267 = vunpack.c.l.b16 %v101
  %v268 = vunpack.c.h.b16 %v101
  %v269 = vunpack.c.l.b16 %v102
  %v270 = vunpack.c.h.b16 %v102
  %v271 = vunpack.c.l.b16 %v103
  %v272 = vunpack.c.h.b16 %v103
  %v273 = vunpack.c.l.b16 %v104
  %v274 = vunpack.c.h.b16 %v104
  %v275 = vunpack.c.l.b16 %v105
  %v276 = vunpack.c.h.b16 %v105
  %v277 = vunpack.c.l.b16 %v106
  %v278 = vunpack.c.h.b16 %v106
  %v279 = vunpack.c.l.b16 %v107
  %v280 = vunpack.c.h.b16 %v107
  %v281 = vunpack.c.l.b16 %v108
  %v282 = vunpack.c.h.b16 %v108
  %v283 = vunpack.c.l.b16 %v109
  %v284 = vunpack.c.h.b16 %v109
  %v285 = vunpack.c.l.b16 %v110
  %v286 = vunpack.c.h.b16 %v110
  %v287 = vunpack.c.l.b16 %v111
  %v288 = vunpack.c.h.b16 %v111
  %v289 = vunpack.c.l.b16 %v112
  %v290 = vunpack.c.h.b16 %v112
  %v291 = vunpack.c.l.b16 %v113
  %v292 = vunpack.c.h.b16 %v113
  %v293 = vunpack.c.l.b16 %v114
  %v294 = vunpack.c.h.b16 %v114
  %v295 = vunpack.c.l.b16 %v115
  %v296 = vunpack.c.h.b16 %v115
  %v297 = vunpack.c.l.b16 %v116
  %v298 = vunpack.c.h.b16 %v116
  %v299 = vunpack.c.l.b16 %v117
  %v300 = vunpack.c.h.b16 %v117
  %v301 = vunpack.c.l.b16 %v118
  %v302 = vunpack.c.h.b16 %v118
  %v303 = vunpack.c.l.b16 %v119
  %v304 = vunpack.c.h.b16 %v119
  %v305 = vunpack.c.l.b16 %v120
  %v306 = vunpack.c.h.b16 %v120
  %v307 = vunpack.c.l.b16 %v121
  %v308 = vunpack.c.h.b16 %v121
  %v309 = vunpack.c.l.b16 %v122
  %v310 = vunpack.c.h.b16 %v122
  %v311 = vunpack.c.l.b16 %v123
  %v312 = vunpack.c.h.b16 %v123
  %v313 = vunpack.c.l.b16 %v124
  %v314 = vunpack.c.h.b16 %v124
  %v315 = vunpack.c.l.b16 %v125
  %v316 = vunpack.c.h.b16 %v125
  %v317 = vunpack.c.l.b16 %v126
  %v318 = vunpack.c.h.b16 %v126
  %v319 = vunpack.c.l.b16 %v127
  %v320 = vunpack.c.h.b16 %v127
  %v321 = vunpack.c.l.b16 %v128
  %v322 = vunpack.c.h.b16 %v128
  %v323 = vunpack.c.l.b16 %v129
  %v324 = vunpack.c.h.b16 %v129
  %v325 = vunpack.c.l.b16 %v130
  %v326 = vunpack.c.h.b16 %v130
  %v327 = vunpack.c.l.b16 %v131
  %v328 = vunpack.c.h.b16 %v131
  %v329 = vunpack.c.l.b16 %v132
  %v330 = vunpack.c.h.b16 %v132
  %v331 = vunpack.c.l.b16 %v133
  %v332 = vunpack.c.h.b16 %v133
  %v333 = vunpack.c.l.b16 %v134
  %v334 = vunpack.c.h.b16 %v134
  %v335 = vunpack.c.l.b16 %v135
  %v336 = vunpack.c.h.b16 %v135
  %v337 = vunpack.c.l.b16 %v136
  %v338 = vunpack.c.h.b16 %v136
  %v339 = vunpack.c.l.b16 %v137
  %v340 = vunpack.c.h.b16 %v137
  %v341 = vunpack.c.l.b16 %v138
  %v342 = vunpack.c.h.b16 %v138
  %v343 = vunpack.c.l.b16 %v139
  %v344 = vunpack.c.h.b16 %v139
  %v345 = vunpack.c.l.b16 %v140
  %v346 = vunpack.c.h.b16 %v140
  %v347 = vunpack.c.l.b16 %v141
  %v348 = vunpack.c.h.b16 %v141
  %v349 = vunpack.c.l.b16 %v142
  %v350 = vunpack.c.h.b16 %v142
  %v351 = vunpack.c.l.b16 %v143
  %v352 = vunpack.c.h.b16 %v143
  %v353 = vunpack.c.l.b16 %v144
  %v354 = vunpack.c.h.b16 %v144
  %v355 = vunpack.c.l.b16 %v145
  %v356 = vunpack.c.h.b16 %v145
  %v357 = vunpack.c.l.b16 %v146
  %v358 = vunpack.c.h.b16 %v146
  %v359 = vunpack.c.l.b16 %v147
  %v360 = vunpack.c.h.b16 %v147
  %v361 = vunpack.c.l.b16 %v148
  %v362 = vunpack.c.h.b16 %v148
  %v363 = vunpack.c.l.b16 %v149
  %v364 = vunpack.c.h.b16 %v149
  %v365 = vunpack.c.l.b16 %v150
  %v366 = vunpack.c.h.b16 %v150
  %v367 = vunpack.c.l.b16 %v151
  %v368 = vunpack.c.h.b16 %v151
  %v369 = vpack.c.b16 %v245, %v241
  %v370 = vpack.c.b16 %v246, %v242
  %v371 = vpack.c.b16 %v247, %v243
  %v372 = vpack.c.b16 %v248, %v244
  %v373 = vpack.c.b16 %v253, %v249
  %v374 = vpack.c.b16 %v254, %v250
  %v375 = vpack.c.b16 %v255, %v251
  %v376 = vpack.c.b16 %v256, %v252
  %v377 = vpack.c.b16 %v261, %v257
  %v378 = vpack.c.b16 %v262, %v258
  %v379 = vpack.c.b16 %v263, %v259
  %v380 = vpack.c.b16 %v264, %v260
  %v381 = vpack.c.b16 %v269, %v265
  %v382 = vpack.c.b16 %v270, %v266
  %v383 = vpack.c.b16 %v271, %v267
  %v384 = vpack.c.b16 %v272, %v268
  %v385 = vpack.c.b16 %v277, %v273
  %v386 = vpack.c.b16 %v278, %v274
  %v387 = vpack.c.b16 %v279, %v275
  %v388 = vpack.c.b16 %v280, %v276
  %v389 = vpack.c.b16 %v285, %v281
  %v390 = vpack.c.b16 %v286, %v282
  %v391 = vpack.c.b16 %v287, %v283
  %v392 = vpack.c.b16 %v288, %v284
  %v393 = vpack.c.b16 %v293, %v289
  %v394 = vpack.c.b16 %v294, %v290
  %v395 = vpack.c.b16 %v295, %v291
  %v396 = vpack.c.b16 %v296, %v292
  %v397 = vpack.c.b16 %v301, %v297
  %v398 = vpack.c.b16 %v302, %v298
  %v399 = vpack.c.b16 %v303, %v299
  %v400 = vpack.c.b16 %v304, %v300
  %v401 = vpack.c.b16 %v309, %v305
  %v402 = vpack.c.b16 %v310, %v306
  %v403 = vpack.c.b16 %v311, %v307
  %v404 = vpack.c.b16 %v312, %v308
  %v405 = vpack.c.b16 %v317, %v313
  %v406 = vpack.c.b16 %v318, %v314
  %v407 = vpack.c.b16 %v319, %v315
  %v408 = vpack.c.b16 %v320, %v316
  %v409 = vpack.c.b16 %v325, %v321
  %v410 = vpack.c.b16 %v326, %v322
  %v411 = vpack.c.b16 %v327, %v323
  %v412 = vpack.c.b16 %v328, %v324
  %v413 = vpack.c.b16 %v333, %v329
  %v414 = vpack.c.b16 %v334, %v330
  %v415 = vpack.c.b16 %v335, %v331
  %v416 = vpack.c.b16 %v336, %v332
  %v417 = vpack.c.b16 %v341, %v337
  %v418 = vpack.c.b16 %v342, %v338
  %v419 = vpack.c.b16 %v343, %v339
  %v420 = vpack.c.b16 %v344, %v340
  %v421 = vpack.c.b16 %v349, %v345
  %v422 = vpack.c.b16 %v350, %v346
  %v423 = vpack.c.b16 %v351, %v347
  %v424 = vpack.c.b16 %v352, %v348
  %v425 = vpack.c.b16 %v357, %v353
  %v426 = vpack.c.b16 %v358, %v354
  %v427 = vpack.c.b16 %v359, %v355
  %v428 = vpack.c.b16 %v360, %v356
  %v429 = vpack.c.b16 %v365, %v361
  %v430 = vpack.c.b16 %v366, %v362
  %v431 = vpack.c.b16 %v367, %v363
  %v432 = vpack.c.b16 %v368, %v364
  %497 = vmatprep.subr.bf16.mxu0 %v370
  %498 = vmatpush1.bf16.msra.mxu0 %v369
  %499 = vmatprep.subr.bf16.mxu0 %v374
  %500 = vmatpush1.bf16.msra.mxu0 %v373
  %501 = vmatprep.subr.bf16.mxu0 %v378
  %502 = vmatpush1.bf16.msra.mxu0 %v377
  %503 = vmatprep.subr.bf16.mxu0 %v382
  %504 = vmatpush1.bf16.msra.mxu0 %v381
  %505 = vmatprep.subr.bf16.mxu0 %v386
  %506 = vmatpush1.bf16.msra.mxu0 %v385
  %507 = vmatprep.subr.bf16.mxu0 %v390
  %508 = vmatpush1.bf16.msra.mxu0 %v389
  %509 = vmatprep.subr.bf16.mxu0 %v394
  %510 = vmatpush1.bf16.msra.mxu0 %v393
  %511 = vmatprep.subr.bf16.mxu0 %v398
  %512 = vmatpush1.bf16.msra.mxu0 %v397
  %513 = vmatprep.subr.bf16.mxu0 %v402
  %514 = vmatpush1.bf16.msra.mxu0 %v401
  %515 = vmatprep.subr.bf16.mxu0 %v406
  %516 = vmatpush1.bf16.msra.mxu0 %v405
  %517 = vmatprep.subr.bf16.mxu0 %v410
  %518 = vmatpush1.bf16.msra.mxu0 %v409
  %519 = vmatprep.subr.bf16.mxu0 %v414
  %520 = vmatpush1.bf16.msra.mxu0 %v413
  %521 = vmatprep.subr.bf16.mxu0 %v418
  %522 = vmatpush1.bf16.msra.mxu0 %v417
  %523 = vmatprep.subr.bf16.mxu0 %v422
  %524 = vmatpush1.bf16.msra.mxu0 %v421
  %525 = vmatprep.subr.bf16.mxu0 %v426
  %526 = vmatpush1.bf16.msra.mxu0 %v425
  %527 = vmatprep.subr.bf16.mxu0 %v430
  %528 = vmatpush1.bf16.msra.mxu0 %v429
  %529 = vmatprep.mubr.bf16.mxu0 %v174
  %530 = vmatmul.mubr.bf16.gmra.mrb[0].mxu0 %v167
  %v531 = vpop.f32.mrb[0].mxu0
  %v532 = vadd.f32 0.0, %v531
  %v533 = vpop.f32.mrb[0].mxu0
  %v534 = vadd.f32 0.0, %v533
  %v535 = vpop.f32.mrb[0].mxu0
  %v536 = vpop.f32.mrb[0].mxu0
  %537 = vdwg.mxu0
  %538 = vmatprep.subr.bf16.mxu0 %v372
  %539 = vmatpush1.bf16.msra.mxu0 %v371
  %540 = vmatprep.subr.bf16.mxu0 %v376
  %541 = vmatpush1.bf16.msra.mxu0 %v375
  %542 = vmatprep.subr.bf16.mxu0 %v380
  %543 = vmatpush1.bf16.msra.mxu0 %v379
  %544 = vmatprep.subr.bf16.mxu0 %v384
  %545 = vmatpush1.bf16.msra.mxu0 %v383
  %546 = vmatprep.subr.bf16.mxu0 %v388
  %547 = vmatpush1.bf16.msra.mxu0 %v387
  %548 = vmatprep.subr.bf16.mxu0 %v392
  %549 = vmatpush1.bf16.msra.mxu0 %v391
  %550 = vmatprep.subr.bf16.mxu0 %v396
  %551 = vmatpush1.bf16.msra.mxu0 %v395
  %552 = vmatprep.subr.bf16.mxu0 %v400
  %553 = vmatpush1.bf16.msra.mxu0 %v399
  %554 = vmatprep.subr.bf16.mxu0 %v404
  %555 = vmatpush1.bf16.msra.mxu0 %v403
  %556 = vmatprep.subr.bf16.mxu0 %v408
  %557 = vmatpush1.bf16.msra.mxu0 %v407
  %558 = vmatprep.subr.bf16.mxu0 %v412
  %559 = vmatpush1.bf16.msra.mxu0 %v411
  %560 = vmatprep.subr.bf16.mxu0 %v416
  %561 = vmatpush1.bf16.msra.mxu0 %v415
  %562 = vmatprep.subr.bf16.mxu0 %v420
  %563 = vmatpush1.bf16.msra.mxu0 %v419
  %564 = vmatprep.subr.bf16.mxu0 %v424
  %565 = vmatpush1.bf16.msra.mxu0 %v423
  %566 = vmatprep.subr.bf16.mxu0 %v428
  %567 = vmatpush1.bf16.msra.mxu0 %v427
  %568 = vmatprep.subr.bf16.mxu0 %v432
  %569 = vmatpush1.bf16.msra.mxu0 %v431
  %570 = vmatprep.mubr.bf16.mxu0 %v174
  %571 = vmatmul.mubr.bf16.gmra.mrb[0].mxu0 %v167
  %v572 = vpop.f32.mrb[0].mxu0
  %v573 = vadd.f32 0.0, %v572
  %v574 = vpop.f32.mrb[0].mxu0
  %v575 = vadd.f32 0.0, %v574
  %v576 = vpop.f32.mrb[0].mxu0
  %v577 = vpop.f32.mrb[0].mxu0
  %578 = vdwg.mxu0
  %v579 = vld [vmem:[%s2] sm:$0xff]
  %v580 = vld [vmem:[%s2 + $0x8] sm:$0xff]
  %v581 = vld [vmem:[%s2 + $0x10] sm:$0xff]
  %v582 = vld [vmem:[%s2 + $0x18] sm:$0xff]
  %v583 = vld [vmem:[%s2 + $0x20] sm:$0xff]
  %v584 = vld [vmem:[%s2 + $0x28] sm:$0xff]
  %v585 = vld [vmem:[%s2 + $0x30] sm:$0xff]
  %v586 = vld [vmem:[%s2 + $0x38] sm:$0xff]
  %v587 = vld [vmem:[%s2 + $0x40] sm:$0xff]
  %v588 = vld [vmem:[%s2 + $0x48] sm:$0xff]
  %v589 = vld [vmem:[%s2 + $0x50] sm:$0xff]
  %v590 = vld [vmem:[%s2 + $0x58] sm:$0xff]
  %v591 = vld [vmem:[%s2 + $0x60] sm:$0xff]
  %v592 = vld [vmem:[%s2 + $0x68] sm:$0xff]
  %v593 = vld [vmem:[%s2 + $0x70] sm:$0xff]
  %v594 = vld [vmem:[%s2 + $0x78] sm:$0xff]
  %v595 = vld [vmem:[%s2 + $0x80] sm:$0xff]
  %v596 = vld [vmem:[%s2 + $0x88] sm:$0xff]
  %v597 = vld [vmem:[%s2 + $0x90] sm:$0xff]
  %v598 = vld [vmem:[%s2 + $0x98] sm:$0xff]
  %v599 = vld [vmem:[%s2 + $0xa0] sm:$0xff]
  %v600 = vld [vmem:[%s2 + $0xa8] sm:$0xff]
  %v601 = vld [vmem:[%s2 + $0xb0] sm:$0xff]
  %v602 = vld [vmem:[%s2 + $0xb8] sm:$0xff]
  %v603 = vld [vmem:[%s2 + $0xc0] sm:$0xff]
  %v604 = vld [vmem:[%s2 + $0xc8] sm:$0xff]
  %v605 = vld [vmem:[%s2 + $0xd0] sm:$0xff]
  %v606 = vld [vmem:[%s2 + $0xd8] sm:$0xff]
  %v607 = vld [vmem:[%s2 + $0xe0] sm:$0xff]
  %v608 = vld [vmem:[%s2 + $0xe8] sm:$0xff]
  %v609 = vld [vmem:[%s2 + $0xf0] sm:$0xff]
  %v610 = vld [vmem:[%s2 + $0xf8] sm:$0xff]
  %v611 = vld [vmem:[%s2 + $0x100] sm:$0xff]
  %v612 = vld [vmem:[%s2 + $0x108] sm:$0xff]
  %v613 = vld [vmem:[%s2 + $0x110] sm:$0xff]
  %v614 = vld [vmem:[%s2 + $0x118] sm:$0xff]
  %v615 = vld [vmem:[%s2 + $0x120] sm:$0xff]
  %v616 = vld [vmem:[%s2 + $0x128] sm:$0xff]
  %v617 = vld [vmem:[%s2 + $0x130] sm:$0xff]
  %v618 = vld [vmem:[%s2 + $0x138] sm:$0xff]
  %v619 = vld [vmem:[%s2 + $0x140] sm:$0xff]
  %v620 = vld [vmem:[%s2 + $0x148] sm:$0xff]
  %v621 = vld [vmem:[%s2 + $0x150] sm:$0xff]
  %v622 = vld [vmem:[%s2 + $0x158] sm:$0xff]
  %v623 = vld [vmem:[%s2 + $0x160] sm:$0xff]
  %v624 = vld [vmem:[%s2 + $0x168] sm:$0xff]
  %v625 = vld [vmem:[%s2 + $0x170] sm:$0xff]
  %v626 = vld [vmem:[%s2 + $0x178] sm:$0xff]
  %v627 = vld [vmem:[%s2 + $0x180] sm:$0xff]
  %v628 = vld [vmem:[%s2 + $0x188] sm:$0xff]
  %v629 = vld [vmem:[%s2 + $0x190] sm:$0xff]
  %v630 = vld [vmem:[%s2 + $0x198] sm:$0xff]
  %v631 = vld [vmem:[%s2 + $0x1a0] sm:$0xff]
  %v632 = vld [vmem:[%s2 + $0x1a8] sm:$0xff]
  %v633 = vld [vmem:[%s2 + $0x1b0] sm:$0xff]
  %v634 = vld [vmem:[%s2 + $0x1b8] sm:$0xff]
  %v635 = vld [vmem:[%s2 + $0x1c0] sm:$0xff]
  %v636 = vld [vmem:[%s2 + $0x1c8] sm:$0xff]
  %v637 = vld [vmem:[%s2 + $0x1d0] sm:$0xff]
  %v638 = vld [vmem:[%s2 + $0x1d8] sm:$0xff]
  %v639 = vld [vmem:[%s2 + $0x1e0] sm:$0xff]
  %v640 = vld [vmem:[%s2 + $0x1e8] sm:$0xff]
  %v641 = vld [vmem:[%s2 + $0x1f0] sm:$0xff]
  %v642 = vld [vmem:[%s2 + $0x1f8] sm:$0xff]
  %v643 = vld [vmem:[%s3] sm:$0xff]
  %v644 = vld [vmem:[%s3 + $0x8] sm:$0xff]
  %v645 = vld [vmem:[%s3 + $0x10] sm:$0xff]
  %v646 = vld [vmem:[%s3 + $0x18] sm:$0xff]
  %v647 = vld [vmem:[%s4] sm:$0x1]
  %v648 = vld [vmem:[%s5] sm:$0xf]
  %vm649 = vcmask 1041408
  %v650 = vsel %vm649, %v532, 0.0
  %v651 = vrot.slane %v650, 4
  %v652 = vadd.f32 %v650, %v651
  %v653 = vrot.slane %v652, 2
  %v654 = vadd.f32 %v652, %v653
  %v655 = vrot.slane %v654, 1
  %v656 = vadd.f32 %v654, %v655
  %v657 = vsel %vm649, %v534, 0.0
  %v658 = vrot.slane %v657, 4
  %v659 = vadd.f32 %v657, %v658
  %v660 = vrot.slane %v659, 2
  %v661 = vadd.f32 %v659, %v660
  %v662 = vrot.slane %v661, 1
  %v663 = vadd.f32 %v661, %v662
  %v664 = vsel %vm649, %v573, 0.0
  %v665 = vrot.slane %v664, 4
  %v666 = vadd.f32 %v664, %v665
  %v667 = vrot.slane %v666, 2
  %v668 = vadd.f32 %v666, %v667
  %v669 = vrot.slane %v668, 1
  %v670 = vadd.f32 %v668, %v669
  %v671 = vsel %vm649, %v575, 0.0
  %v672 = vrot.slane %v671, 4
  %v673 = vadd.f32 %v671, %v672
  %v674 = vrot.slane %v673, 2
  %v675 = vadd.f32 %v673, %v674
  %v676 = vrot.slane %v675, 1
  %v677 = vadd.f32 %v675, %v676
  %678 = vmatprep.subr.mxu0 0.0
  %679 = vmatpush1.msra.mxu0 %v579
  %680 = vmatprep.subr.mxu0 0.0
  %681 = vmatpush1.msra.mxu0 %v580
  %682 = vmatprep.subr.mxu0 0.0
  %683 = vmatpush1.msra.mxu0 %v581
  %684 = vmatprep.subr.mxu0 0.0
  %685 = vmatpush1.msra.mxu0 %v582
  %686 = vmatprep.subr.mxu0 0.0
  %687 = vmatpush1.msra.mxu0 %v583
  %688 = vmatprep.subr.mxu0 0.0
  %689 = vmatpush1.msra.mxu0 %v584
  %690 = vmatprep.subr.mxu0 0.0
  %691 = vmatpush1.msra.mxu0 %v585
  %692 = vmatprep.subr.mxu0 0.0
  %693 = vmatpush1.msra.mxu0 %v586
  %694 = vmatprep.subr.mxu0 0.0
  %695 = vmatpush1.msra.mxu0 %v587
  %696 = vmatprep.subr.mxu0 0.0
  %697 = vmatpush1.msra.mxu0 %v588
  %698 = vmatprep.subr.mxu0 0.0
  %699 = vmatpush1.msra.mxu0 %v589
  %700 = vmatprep.subr.mxu0 0.0
  %701 = vmatpush1.msra.mxu0 %v590
  %702 = vmatprep.subr.mxu0 0.0
  %703 = vmatpush1.msra.mxu0 %v591
  %704 = vmatprep.subr.mxu0 0.0
  %705 = vmatpush1.msra.mxu0 %v592
  %706 = vmatprep.subr.mxu0 0.0
  %707 = vmatpush1.msra.mxu0 %v593
  %708 = vmatprep.subr.mxu0 0.0
  %709 = vmatpush1.msra.mxu0 %v594
  %710 = vmatprep.subr.mxu0 0.0
  %711 = vmatpush1.msra.mxu0 %v595
  %712 = vmatprep.subr.mxu0 0.0
  %713 = vmatpush1.msra.mxu0 %v596
  %714 = vmatprep.subr.mxu0 0.0
  %715 = vmatpush1.msra.mxu0 %v597
  %716 = vmatprep.subr.mxu0 0.0
  %717 = vmatpush1.msra.mxu0 %v598
  %718 = vmatprep.subr.mxu0 0.0
  %719 = vmatpush1.msra.mxu0 %v599
  %720 = vmatprep.subr.mxu0 0.0
  %721 = vmatpush1.msra.mxu0 %v600
  %722 = vmatprep.subr.mxu0 0.0
  %723 = vmatpush1.msra.mxu0 %v601
  %724 = vmatprep.subr.mxu0 0.0
  %725 = vmatpush1.msra.mxu0 %v602
  %726 = vmatprep.subr.mxu0 0.0
  %727 = vmatpush1.msra.mxu0 %v603
  %728 = vmatprep.subr.mxu0 0.0
  %729 = vmatpush1.msra.mxu0 %v604
  %730 = vmatprep.subr.mxu0 0.0
  %731 = vmatpush1.msra.mxu0 %v605
  %732 = vmatprep.subr.mxu0 0.0
  %733 = vmatpush1.msra.mxu0 %v606
  %734 = vmatprep.subr.mxu0 0.0
  %735 = vmatpush1.msra.mxu0 %v607
  %736 = vmatprep.subr.mxu0 0.0
  %737 = vmatpush1.msra.mxu0 %v608
  %738 = vmatprep.subr.mxu0 0.0
  %739 = vmatpush1.msra.mxu0 %v609
  %740 = vmatprep.subr.mxu0 0.0
  %741 = vmatpush1.msra.mxu0 %v610
  %742 = vmatprep.mubr.f32.mxu0 %v663
  %743 = vmatmul.mubr.f32.gmra.mrb[0].mxu0 %v656
  %v744 = vpop.f32.mrb[0].mxu0
  %v745 = vadd.f32 0.0, %v744
  %v746 = vpop.f32.mrb[0].mxu0
  %747 = vdwg.mxu0
  %748 = vmatprep.subr.mxu0 0.0
  %749 = vmatpush1.msra.mxu0 %v611
  %750 = vmatprep.subr.mxu0 0.0
  %751 = vmatpush1.msra.mxu0 %v612
  %752 = vmatprep.subr.mxu0 0.0
  %753 = vmatpush1.msra.mxu0 %v613
  %754 = vmatprep.subr.mxu0 0.0
  %755 = vmatpush1.msra.mxu0 %v614
  %756 = vmatprep.subr.mxu0 0.0
  %757 = vmatpush1.msra.mxu0 %v615
  %758 = vmatprep.subr.mxu0 0.0
  %759 = vmatpush1.msra.mxu0 %v616
  %760 = vmatprep.subr.mxu0 0.0
  %761 = vmatpush1.msra.mxu0 %v617
  %762 = vmatprep.subr.mxu0 0.0
  %763 = vmatpush1.msra.mxu0 %v618
  %764 = vmatprep.subr.mxu0 0.0
  %765 = vmatpush1.msra.mxu0 %v619
  %766 = vmatprep.subr.mxu0 0.0
  %767 = vmatpush1.msra.mxu0 %v620
  %768 = vmatprep.subr.mxu0 0.0
  %769 = vmatpush1.msra.mxu0 %v621
  %770 = vmatprep.subr.mxu0 0.0
  %771 = vmatpush1.msra.mxu0 %v622
  %772 = vmatprep.subr.mxu0 0.0
  %773 = vmatpush1.msra.mxu0 %v623
  %774 = vmatprep.subr.mxu0 0.0
  %775 = vmatpush1.msra.mxu0 %v624
  %776 = vmatprep.subr.mxu0 0.0
  %777 = vmatpush1.msra.mxu0 %v625
  %778 = vmatprep.subr.mxu0 0.0
  %779 = vmatpush1.msra.mxu0 %v626
  %780 = vmatprep.subr.mxu0 0.0
  %781 = vmatpush1.msra.mxu0 %v627
  %782 = vmatprep.subr.mxu0 0.0
  %783 = vmatpush1.msra.mxu0 %v628
  %784 = vmatprep.subr.mxu0 0.0
  %785 = vmatpush1.msra.mxu0 %v629
  %786 = vmatprep.subr.mxu0 0.0
  %787 = vmatpush1.msra.mxu0 %v630
  %788 = vmatprep.subr.mxu0 0.0
  %789 = vmatpush1.msra.mxu0 %v631
  %790 = vmatprep.subr.mxu0 0.0
  %791 = vmatpush1.msra.mxu0 %v632
  %792 = vmatprep.subr.mxu0 0.0
  %793 = vmatpush1.msra.mxu0 %v633
  %794 = vmatprep.subr.mxu0 0.0
  %795 = vmatpush1.msra.mxu0 %v634
  %796 = vmatprep.subr.mxu0 0.0
  %797 = vmatpush1.msra.mxu0 %v635
  %798 = vmatprep.subr.mxu0 0.0
  %799 = vmatpush1.msra.mxu0 %v636
  %800 = vmatprep.subr.mxu0 0.0
  %801 = vmatpush1.msra.mxu0 %v637
  %802 = vmatprep.subr.mxu0 0.0
  %803 = vmatpush1.msra.mxu0 %v638
  %804 = vmatprep.subr.mxu0 0.0
  %805 = vmatpush1.msra.mxu0 %v639
  %806 = vmatprep.subr.mxu0 0.0
  %807 = vmatpush1.msra.mxu0 %v640
  %808 = vmatprep.subr.mxu0 0.0
  %809 = vmatpush1.msra.mxu0 %v641
  %810 = vmatprep.subr.mxu0 0.0
  %811 = vmatpush1.msra.mxu0 %v642
  %812 = vmatprep.mubr.f32.mxu0 %v677
  %813 = vmatmul.mubr.f32.gmra.mrb[0].mxu0 %v670
  %v814 = vpop.f32.mrb[0].mxu0
  %v815 = vadd.f32 %v745, %v814
  %v816 = vpop.f32.mrb[0].mxu0
  %817 = vdwg.mxu0
  %v818 = vmul.f32 %v815, 0.0078125
  %vm819 = vcmask 64512
  %v821 = vsel %vm819, %v818, 0
  %823 = vmatprep.subr.mxu0 %v644
  %824 = vmatpush1.msra.mxu0 %v643
  %825 = vmatprep.subr.mxu0 0.0
  %826 = vmatpush1.msra.mxu0 0.0
  %827 = vmatprep.subr.mxu0 0.0
  %828 = vmatpush1.msra.mxu0 0.0
  %829 = vmatprep.subr.mxu0 0.0
  %830 = vmatpush1.msra.mxu0 0.0
  %831 = vmatprep.subr.mxu0 0.0
  %832 = vmatpush1.msra.mxu0 0.0
  %833 = vmatprep.subr.mxu0 0.0
  %834 = vmatpush1.msra.mxu0 0.0
  %835 = vmatprep.subr.mxu0 0.0
  %836 = vmatpush1.msra.mxu0 0.0
  %837 = vmatprep.subr.mxu0 0.0
  %838 = vmatpush1.msra.mxu0 0.0
  %839 = vmatprep.subr.mxu0 0.0
  %840 = vmatpush1.msra.mxu0 0.0
  %841 = vmatprep.subr.mxu0 0.0
  %842 = vmatpush1.msra.mxu0 0.0
  %843 = vmatprep.subr.mxu0 0.0
  %844 = vmatpush1.msra.mxu0 0.0
  %845 = vmatprep.subr.mxu0 0.0
  %846 = vmatpush1.msra.mxu0 0.0
  %847 = vmatprep.subr.mxu0 0.0
  %848 = vmatpush1.msra.mxu0 0.0
  %849 = vmatprep.subr.mxu0 0.0
  %850 = vmatpush1.msra.mxu0 0.0
  %851 = vmatprep.subr.mxu0 0.0
  %852 = vmatpush1.msra.mxu0 0.0
  %853 = vmatprep.subr.mxu0 0.0
  %854 = vmatpush1.msra.mxu0 0.0
  %855 = vmatprep.subr.mxu0 0.0
  %856 = vmatpush1.msra.mxu0 0.0
  %857 = vmatprep.subr.mxu0 0.0
  %858 = vmatpush1.msra.mxu0 0.0
  %859 = vmatprep.subr.mxu0 0.0
  %860 = vmatpush1.msra.mxu0 0.0
  %861 = vmatprep.subr.mxu0 0.0
  %862 = vmatpush1.msra.mxu0 0.0
  %863 = vmatprep.subr.mxu0 0.0
  %864 = vmatpush1.msra.mxu0 0.0
  %865 = vmatprep.subr.mxu0 0.0
  %866 = vmatpush1.msra.mxu0 0.0
  %867 = vmatprep.subr.mxu0 0.0
  %868 = vmatpush1.msra.mxu0 0.0
  %869 = vmatprep.subr.mxu0 0.0
  %870 = vmatpush1.msra.mxu0 0.0
  %871 = vmatprep.subr.mxu0 0.0
  %872 = vmatpush1.msra.mxu0 0.0
  %873 = vmatprep.subr.mxu0 0.0
  %874 = vmatpush1.msra.mxu0 0.0
  %875 = vmatprep.subr.mxu0 0.0
  %876 = vmatpush1.msra.mxu0 0.0
  %877 = vmatprep.subr.mxu0 0.0
  %878 = vmatpush1.msra.mxu0 0.0
  %879 = vmatprep.subr.mxu0 0.0
  %880 = vmatpush1.msra.mxu0 0.0
  %881 = vmatprep.subr.mxu0 0.0
  %882 = vmatpush1.msra.mxu0 0.0
  %883 = vmatprep.subr.mxu0 0.0
  %884 = vmatpush1.msra.mxu0 0.0
  %885 = vmatprep.subr.mxu0 0.0
  %886 = vmatpush1.msra.mxu0 0.0
  %887 = vmatprep.mubr.f32.mxu0 0.0
  %888 = vmatmul.mubr.f32.gmra.mrb[0].mxu0 %v821
  %v889 = vpop.f32.mrb[0].mxu0
  %v890 = vadd.f32 0.0, %v889
  %v891 = vpop.f32.mrb[0].mxu0
  %v892 = vadd.f32 0.0, %v891
  %893 = vdwg.mxu0
  %894 = vmatprep.subr.mxu0 %v646
  %895 = vmatpush1.msra.mxu0 %v645
  %896 = vmatprep.subr.mxu0 0.0
  %897 = vmatpush1.msra.mxu0 0.0
  %898 = vmatprep.subr.mxu0 0.0
  %899 = vmatpush1.msra.mxu0 0.0
  %900 = vmatprep.subr.mxu0 0.0
  %901 = vmatpush1.msra.mxu0 0.0
  %902 = vmatprep.subr.mxu0 0.0
  %903 = vmatpush1.msra.mxu0 0.0
  %904 = vmatprep.subr.mxu0 0.0
  %905 = vmatpush1.msra.mxu0 0.0
  %906 = vmatprep.subr.mxu0 0.0
  %907 = vmatpush1.msra.mxu0 0.0
  %908 = vmatprep.subr.mxu0 0.0
  %909 = vmatpush1.msra.mxu0 0.0
  %910 = vmatprep.subr.mxu0 0.0
  %911 = vmatpush1.msra.mxu0 0.0
  %912 = vmatprep.subr.mxu0 0.0
  %913 = vmatpush1.msra.mxu0 0.0
  %914 = vmatprep.subr.mxu0 0.0
  %915 = vmatpush1.msra.mxu0 0.0
  %916 = vmatprep.subr.mxu0 0.0
  %917 = vmatpush1.msra.mxu0 0.0
  %918 = vmatprep.subr.mxu0 0.0
  %919 = vmatpush1.msra.mxu0 0.0
  %920 = vmatprep.subr.mxu0 0.0
  %921 = vmatpush1.msra.mxu0 0.0
  %922 = vmatprep.subr.mxu0 0.0
  %923 = vmatpush1.msra.mxu0 0.0
  %924 = vmatprep.subr.mxu0 0.0
  %925 = vmatpush1.msra.mxu0 0.0
  %926 = vmatprep.subr.mxu0 0.0
  %927 = vmatpush1.msra.mxu0 0.0
  %928 = vmatprep.subr.mxu0 0.0
  %929 = vmatpush1.msra.mxu0 0.0
  %930 = vmatprep.subr.mxu0 0.0
  %931 = vmatpush1.msra.mxu0 0.0
  %932 = vmatprep.subr.mxu0 0.0
  %933 = vmatpush1.msra.mxu0 0.0
  %934 = vmatprep.subr.mxu0 0.0
  %935 = vmatpush1.msra.mxu0 0.0
  %936 = vmatprep.subr.mxu0 0.0
  %937 = vmatpush1.msra.mxu0 0.0
  %938 = vmatprep.subr.mxu0 0.0
  %939 = vmatpush1.msra.mxu0 0.0
  %940 = vmatprep.subr.mxu0 0.0
  %941 = vmatpush1.msra.mxu0 0.0
  %942 = vmatprep.subr.mxu0 0.0
  %943 = vmatpush1.msra.mxu0 0.0
  %944 = vmatprep.subr.mxu0 0.0
  %945 = vmatpush1.msra.mxu0 0.0
  %946 = vmatprep.subr.mxu0 0.0
  %947 = vmatpush1.msra.mxu0 0.0
  %948 = vmatprep.subr.mxu0 0.0
  %949 = vmatpush1.msra.mxu0 0.0
  %950 = vmatprep.subr.mxu0 0.0
  %951 = vmatpush1.msra.mxu0 0.0
  %952 = vmatprep.subr.mxu0 0.0
  %953 = vmatpush1.msra.mxu0 0.0
  %954 = vmatprep.subr.mxu0 0.0
  %955 = vmatpush1.msra.mxu0 0.0
  %956 = vmatprep.subr.mxu0 0.0
  %957 = vmatpush1.msra.mxu0 0.0
  %958 = vmatprep.mubr.f32.mxu0 0.0
  %959 = vmatmul.mubr.f32.gmra.mrb[0].mxu0 %v821
  %v960 = vpop.f32.mrb[0].mxu0
  %v961 = vadd.f32 0.0, %v960
  %v962 = vpop.f32.mrb[0].mxu0
  %v963 = vadd.f32 0.0, %v962
  %964 = vdwg.mxu0
  %v965 = vlaneseq
  %v966 = vshrl.u32 %v965, 7
  %v967 = vsub.s32 0, %v966
  %v968 = vrot.slane %v890, %v967
  %v969 = vlaneseq
  %v970 = vshrl.u32 %v969, 7
  %v971 = vsub.s32 0, %v970
  %v972 = vrot.slane %v892, %v971
  %v973 = vlaneseq
  %v974 = vshrl.u32 %v973, 7
  %v975 = vsub.s32 0, %v974
  %v976 = vrot.slane %v961, %v975
  %v977 = vlaneseq
  %v978 = vshrl.u32 %v977, 7
  %v979 = vsub.s32 0, %v978
  %v980 = vrot.slane %v963, %v979
  %v981 = vsub.f32 %v532, %v968
  %v982 = vsub.f32 %v534, %v972
  %v983 = vsub.f32 %v573, %v976
  %v984 = vsub.f32 %v575, %v980
  %v985 = vmul.f32 %v981, %v981
  %v986 = vmul.f32 %v982, %v982
  %v987 = vmul.f32 %v983, %v983
  %v988 = vmul.f32 %v984, %v984
  %v989 = vsel %vm649, %v985, 0.0
  %v990 = vrot.slane %v989, 4
  %v991 = vadd.f32 %v989, %v990
  %v992 = vrot.slane %v991, 2
  %v993 = vadd.f32 %v991, %v992
  %v994 = vrot.slane %v993, 1
  %v995 = vadd.f32 %v993, %v994
  %v996 = vsel %vm649, %v986, 0.0
  %v997 = vrot.slane %v996, 4
  %v998 = vadd.f32 %v996, %v997
  %v999 = vrot.slane %v998, 2
  %v1000 = vadd.f32 %v998, %v999
  %v1001 = vrot.slane %v1000, 1
  %v1002 = vadd.f32 %v1000, %v1001
  %v1003 = vsel %vm649, %v987, 0.0
  %v1004 = vrot.slane %v1003, 4
  %v1005 = vadd.f32 %v1003, %v1004
  %v1006 = vrot.slane %v1005, 2
  %v1007 = vadd.f32 %v1005, %v1006
  %v1008 = vrot.slane %v1007, 1
  %v1009 = vadd.f32 %v1007, %v1008
  %v1010 = vsel %vm649, %v988, 0.0
  %v1011 = vrot.slane %v1010, 4
  %v1012 = vadd.f32 %v1010, %v1011
  %v1013 = vrot.slane %v1012, 2
  %v1014 = vadd.f32 %v1012, %v1013
  %v1015 = vrot.slane %v1014, 1
  %v1016 = vadd.f32 %v1014, %v1015
  %1017 = vmatprep.subr.mxu0 0.0
  %1018 = vmatpush1.msra.mxu0 %v579
  %1019 = vmatprep.subr.mxu0 0.0
  %1020 = vmatpush1.msra.mxu0 %v580
  %1021 = vmatprep.subr.mxu0 0.0
  %1022 = vmatpush1.msra.mxu0 %v581
  %1023 = vmatprep.subr.mxu0 0.0
  %1024 = vmatpush1.msra.mxu0 %v582
  %1025 = vmatprep.subr.mxu0 0.0
  %1026 = vmatpush1.msra.mxu0 %v583
  %1027 = vmatprep.subr.mxu0 0.0
  %1028 = vmatpush1.msra.mxu0 %v584
  %1029 = vmatprep.subr.mxu0 0.0
  %1030 = vmatpush1.msra.mxu0 %v585
  %1031 = vmatprep.subr.mxu0 0.0
  %1032 = vmatpush1.msra.mxu0 %v586
  %1033 = vmatprep.subr.mxu0 0.0
  %1034 = vmatpush1.msra.mxu0 %v587
  %1035 = vmatprep.subr.mxu0 0.0
  %1036 = vmatpush1.msra.mxu0 %v588
  %1037 = vmatprep.subr.mxu0 0.0
  %1038 = vmatpush1.msra.mxu0 %v589
  %1039 = vmatprep.subr.mxu0 0.0
  %1040 = vmatpush1.msra.mxu0 %v590
  %1041 = vmatprep.subr.mxu0 0.0
  %1042 = vmatpush1.msra.mxu0 %v591
  %1043 = vmatprep.subr.mxu0 0.0
  %1044 = vmatpush1.msra.mxu0 %v592
  %1045 = vmatprep.subr.mxu0 0.0
  %1046 = vmatpush1.msra.mxu0 %v593
  %1047 = vmatprep.subr.mxu0 0.0
  %1048 = vmatpush1.msra.mxu0 %v594
  %1049 = vmatprep.subr.mxu0 0.0
  %1050 = vmatpush1.msra.mxu0 %v595
  %1051 = vmatprep.subr.mxu0 0.0
  %1052 = vmatpush1.msra.mxu0 %v596
  %1053 = vmatprep.subr.mxu0 0.0
  %1054 = vmatpush1.msra.mxu0 %v597
  %1055 = vmatprep.subr.mxu0 0.0
  %1056 = vmatpush1.msra.mxu0 %v598
  %1057 = vmatprep.subr.mxu0 0.0
  %1058 = vmatpush1.msra.mxu0 %v599
  %1059 = vmatprep.subr.mxu0 0.0
  %1060 = vmatpush1.msra.mxu0 %v600
  %1061 = vmatprep.subr.mxu0 0.0
  %1062 = vmatpush1.msra.mxu0 %v601
  %1063 = vmatprep.subr.mxu0 0.0
  %1064 = vmatpush1.msra.mxu0 %v602
  %1065 = vmatprep.subr.mxu0 0.0
  %1066 = vmatpush1.msra.mxu0 %v603
  %1067 = vmatprep.subr.mxu0 0.0
  %1068 = vmatpush1.msra.mxu0 %v604
  %1069 = vmatprep.subr.mxu0 0.0
  %1070 = vmatpush1.msra.mxu0 %v605
  %1071 = vmatprep.subr.mxu0 0.0
  %1072 = vmatpush1.msra.mxu0 %v606
  %1073 = vmatprep.subr.mxu0 0.0
  %1074 = vmatpush1.msra.mxu0 %v607
  %1075 = vmatprep.subr.mxu0 0.0
  %1076 = vmatpush1.msra.mxu0 %v608
  %1077 = vmatprep.subr.mxu0 0.0
  %1078 = vmatpush1.msra.mxu0 %v609
  %1079 = vmatprep.subr.mxu0 0.0
  %1080 = vmatpush1.msra.mxu0 %v610
  %1081 = vmatprep.mubr.f32.mxu0 %v1002
  %1082 = vmatmul.mubr.f32.gmra.mrb[0].mxu0 %v995
  %v1083 = vpop.f32.mrb[0].mxu0
  %v1084 = vadd.f32 0.0, %v1083
  %v1085 = vpop.f32.mrb[0].mxu0
  %1086 = vdwg.mxu0
  %1087 = vmatprep.subr.mxu0 0.0
  %1088 = vmatpush1.msra.mxu0 %v611
  %1089 = vmatprep.subr.mxu0 0.0
  %1090 = vmatpush1.msra.mxu0 %v612
  %1091 = vmatprep.subr.mxu0 0.0
  %1092 = vmatpush1.msra.mxu0 %v613
  %1093 = vmatprep.subr.mxu0 0.0
  %1094 = vmatpush1.msra.mxu0 %v614
  %1095 = vmatprep.subr.mxu0 0.0
  %1096 = vmatpush1.msra.mxu0 %v615
  %1097 = vmatprep.subr.mxu0 0.0
  %1098 = vmatpush1.msra.mxu0 %v616
  %1099 = vmatprep.subr.mxu0 0.0
  %1100 = vmatpush1.msra.mxu0 %v617
  %1101 = vmatprep.subr.mxu0 0.0
  %1102 = vmatpush1.msra.mxu0 %v618
  %1103 = vmatprep.subr.mxu0 0.0
  %1104 = vmatpush1.msra.mxu0 %v619
  %1105 = vmatprep.subr.mxu0 0.0
  %1106 = vmatpush1.msra.mxu0 %v620
  %1107 = vmatprep.subr.mxu0 0.0
  %1108 = vmatpush1.msra.mxu0 %v621
  %1109 = vmatprep.subr.mxu0 0.0
  %1110 = vmatpush1.msra.mxu0 %v622
  %1111 = vmatprep.subr.mxu0 0.0
  %1112 = vmatpush1.msra.mxu0 %v623
  %1113 = vmatprep.subr.mxu0 0.0
  %1114 = vmatpush1.msra.mxu0 %v624
  %1115 = vmatprep.subr.mxu0 0.0
  %1116 = vmatpush1.msra.mxu0 %v625
  %1117 = vmatprep.subr.mxu0 0.0
  %1118 = vmatpush1.msra.mxu0 %v626
  %1119 = vmatprep.subr.mxu0 0.0
  %1120 = vmatpush1.msra.mxu0 %v627
  %1121 = vmatprep.subr.mxu0 0.0
  %1122 = vmatpush1.msra.mxu0 %v628
  %1123 = vmatprep.subr.mxu0 0.0
  %1124 = vmatpush1.msra.mxu0 %v629
  %1125 = vmatprep.subr.mxu0 0.0
  %1126 = vmatpush1.msra.mxu0 %v630
  %1127 = vmatprep.subr.mxu0 0.0
  %1128 = vmatpush1.msra.mxu0 %v631
  %1129 = vmatprep.subr.mxu0 0.0
  %1130 = vmatpush1.msra.mxu0 %v632
  %1131 = vmatprep.subr.mxu0 0.0
  %1132 = vmatpush1.msra.mxu0 %v633
  %1133 = vmatprep.subr.mxu0 0.0
  %1134 = vmatpush1.msra.mxu0 %v634
  %1135 = vmatprep.subr.mxu0 0.0
  %1136 = vmatpush1.msra.mxu0 %v635
  %1137 = vmatprep.subr.mxu0 0.0
  %1138 = vmatpush1.msra.mxu0 %v636
  %1139 = vmatprep.subr.mxu0 0.0
  %1140 = vmatpush1.msra.mxu0 %v637
  %1141 = vmatprep.subr.mxu0 0.0
  %1142 = vmatpush1.msra.mxu0 %v638
  %1143 = vmatprep.subr.mxu0 0.0
  %1144 = vmatpush1.msra.mxu0 %v639
  %1145 = vmatprep.subr.mxu0 0.0
  %1146 = vmatpush1.msra.mxu0 %v640
  %1147 = vmatprep.subr.mxu0 0.0
  %1148 = vmatpush1.msra.mxu0 %v641
  %1149 = vmatprep.subr.mxu0 0.0
  %1150 = vmatpush1.msra.mxu0 %v642
  %1151 = vmatprep.mubr.f32.mxu0 %v1016
  %1152 = vmatmul.mubr.f32.gmra.mrb[0].mxu0 %v1009
  %v1153 = vpop.f32.mrb[0].mxu0
  %v1154 = vadd.f32 %v1084, %v1153
  %v1155 = vpop.f32.mrb[0].mxu0
  %1156 = vdwg.mxu0
  %v1157 = vmul.f32 %v1154, 0.0078125
  %v1158 = vadd.f32 %v1157, 1e-05
  %v1159 = vrsqrt.pop %v1158
  %v1160 = vmul.f32 %v1159, %v647
  %v1162 = vsel %vm819, %v1160, 0
  %1164 = vmatprep.subr.mxu0 %v644
  %1165 = vmatpush1.msra.mxu0 %v643
  %1166 = vmatprep.subr.mxu0 0.0
  %1167 = vmatpush1.msra.mxu0 0.0
  %1168 = vmatprep.subr.mxu0 0.0
  %1169 = vmatpush1.msra.mxu0 0.0
  %1170 = vmatprep.subr.mxu0 0.0
  %1171 = vmatpush1.msra.mxu0 0.0
  %1172 = vmatprep.subr.mxu0 0.0
  %1173 = vmatpush1.msra.mxu0 0.0
  %1174 = vmatprep.subr.mxu0 0.0
  %1175 = vmatpush1.msra.mxu0 0.0
  %1176 = vmatprep.subr.mxu0 0.0
  %1177 = vmatpush1.msra.mxu0 0.0
  %1178 = vmatprep.subr.mxu0 0.0
  %1179 = vmatpush1.msra.mxu0 0.0
  %1180 = vmatprep.subr.mxu0 0.0
  %1181 = vmatpush1.msra.mxu0 0.0
  %1182 = vmatprep.subr.mxu0 0.0
  %1183 = vmatpush1.msra.mxu0 0.0
  %1184 = vmatprep.subr.mxu0 0.0
  %1185 = vmatpush1.msra.mxu0 0.0
  %1186 = vmatprep.subr.mxu0 0.0
  %1187 = vmatpush1.msra.mxu0 0.0
  %1188 = vmatprep.subr.mxu0 0.0
  %1189 = vmatpush1.msra.mxu0 0.0
  %1190 = vmatprep.subr.mxu0 0.0
  %1191 = vmatpush1.msra.mxu0 0.0
  %1192 = vmatprep.subr.mxu0 0.0
  %1193 = vmatpush1.msra.mxu0 0.0
  %1194 = vmatprep.subr.mxu0 0.0
  %1195 = vmatpush1.msra.mxu0 0.0
  %1196 = vmatprep.subr.mxu0 0.0
  %1197 = vmatpush1.msra.mxu0 0.0
  %1198 = vmatprep.subr.mxu0 0.0
  %1199 = vmatpush1.msra.mxu0 0.0
  %1200 = vmatprep.subr.mxu0 0.0
  %1201 = vmatpush1.msra.mxu0 0.0
  %1202 = vmatprep.subr.mxu0 0.0
  %1203 = vmatpush1.msra.mxu0 0.0
  %1204 = vmatprep.subr.mxu0 0.0
  %1205 = vmatpush1.msra.mxu0 0.0
  %1206 = vmatprep.subr.mxu0 0.0
  %1207 = vmatpush1.msra.mxu0 0.0
  %1208 = vmatprep.subr.mxu0 0.0
  %1209 = vmatpush1.msra.mxu0 0.0
  %1210 = vmatprep.subr.mxu0 0.0
  %1211 = vmatpush1.msra.mxu0 0.0
  %1212 = vmatprep.subr.mxu0 0.0
  %1213 = vmatpush1.msra.mxu0 0.0
  %1214 = vmatprep.subr.mxu0 0.0
  %1215 = vmatpush1.msra.mxu0 0.0
  %1216 = vmatprep.subr.mxu0 0.0
  %1217 = vmatpush1.msra.mxu0 0.0
  %1218 = vmatprep.subr.mxu0 0.0
  %1219 = vmatpush1.msra.mxu0 0.0
  %1220 = vmatprep.subr.mxu0 0.0
  %1221 = vmatpush1.msra.mxu0 0.0
  %1222 = vmatprep.subr.mxu0 0.0
  %1223 = vmatpush1.msra.mxu0 0.0
  %1224 = vmatprep.subr.mxu0 0.0
  %1225 = vmatpush1.msra.mxu0 0.0
  %1226 = vmatprep.subr.mxu0 0.0
  %1227 = vmatpush1.msra.mxu0 0.0
  %1228 = vmatprep.mubr.f32.mxu0 0.0
  %1229 = vmatmul.mubr.f32.gmra.mrb[0].mxu0 %v1162
  %v1230 = vpop.f32.mrb[0].mxu0
  %v1231 = vadd.f32 0.0, %v1230
  %v1232 = vpop.f32.mrb[0].mxu0
  %v1233 = vadd.f32 0.0, %v1232
  %1234 = vdwg.mxu0
  %1235 = vmatprep.subr.mxu0 %v646
  %1236 = vmatpush1.msra.mxu0 %v645
  %1237 = vmatprep.subr.mxu0 0.0
  %1238 = vmatpush1.msra.mxu0 0.0
  %1239 = vmatprep.subr.mxu0 0.0
  %1240 = vmatpush1.msra.mxu0 0.0
  %1241 = vmatprep.subr.mxu0 0.0
  %1242 = vmatpush1.msra.mxu0 0.0
  %1243 = vmatprep.subr.mxu0 0.0
  %1244 = vmatpush1.msra.mxu0 0.0
  %1245 = vmatprep.subr.mxu0 0.0
  %1246 = vmatpush1.msra.mxu0 0.0
  %1247 = vmatprep.subr.mxu0 0.0
  %1248 = vmatpush1.msra.mxu0 0.0
  %1249 = vmatprep.subr.mxu0 0.0
  %1250 = vmatpush1.msra.mxu0 0.0
  %1251 = vmatprep.subr.mxu0 0.0
  %1252 = vmatpush1.msra.mxu0 0.0
  %1253 = vmatprep.subr.mxu0 0.0
  %1254 = vmatpush1.msra.mxu0 0.0
  %1255 = vmatprep.subr.mxu0 0.0
  %1256 = vmatpush1.msra.mxu0 0.0
  %1257 = vmatprep.subr.mxu0 0.0
  %1258 = vmatpush1.msra.mxu0 0.0
  %1259 = vmatprep.subr.mxu0 0.0
  %1260 = vmatpush1.msra.mxu0 0.0
  %1261 = vmatprep.subr.mxu0 0.0
  %1262 = vmatpush1.msra.mxu0 0.0
  %1263 = vmatprep.subr.mxu0 0.0
  %1264 = vmatpush1.msra.mxu0 0.0
  %1265 = vmatprep.subr.mxu0 0.0
  %1266 = vmatpush1.msra.mxu0 0.0
  %1267 = vmatprep.subr.mxu0 0.0
  %1268 = vmatpush1.msra.mxu0 0.0
  %1269 = vmatprep.subr.mxu0 0.0
  %1270 = vmatpush1.msra.mxu0 0.0
  %1271 = vmatprep.subr.mxu0 0.0
  %1272 = vmatpush1.msra.mxu0 0.0
  %1273 = vmatprep.subr.mxu0 0.0
  %1274 = vmatpush1.msra.mxu0 0.0
  %1275 = vmatprep.subr.mxu0 0.0
  %1276 = vmatpush1.msra.mxu0 0.0
  %1277 = vmatprep.subr.mxu0 0.0
  %1278 = vmatpush1.msra.mxu0 0.0
  %1279 = vmatprep.subr.mxu0 0.0
  %1280 = vmatpush1.msra.mxu0 0.0
  %1281 = vmatprep.subr.mxu0 0.0
  %1282 = vmatpush1.msra.mxu0 0.0
  %1283 = vmatprep.subr.mxu0 0.0
  %1284 = vmatpush1.msra.mxu0 0.0
  %1285 = vmatprep.subr.mxu0 0.0
  %1286 = vmatpush1.msra.mxu0 0.0
  %1287 = vmatprep.subr.mxu0 0.0
  %1288 = vmatpush1.msra.mxu0 0.0
  %1289 = vmatprep.subr.mxu0 0.0
  %1290 = vmatpush1.msra.mxu0 0.0
  %1291 = vmatprep.subr.mxu0 0.0
  %1292 = vmatpush1.msra.mxu0 0.0
  %1293 = vmatprep.subr.mxu0 0.0
  %1294 = vmatpush1.msra.mxu0 0.0
  %1295 = vmatprep.subr.mxu0 0.0
  %1296 = vmatpush1.msra.mxu0 0.0
  %1297 = vmatprep.subr.mxu0 0.0
  %1298 = vmatpush1.msra.mxu0 0.0
  %1299 = vmatprep.mubr.f32.mxu0 0.0
  %1300 = vmatmul.mubr.f32.gmra.mrb[0].mxu0 %v1162
  %v1301 = vpop.f32.mrb[0].mxu0
  %v1302 = vadd.f32 0.0, %v1301
  %v1303 = vpop.f32.mrb[0].mxu0
  %v1304 = vadd.f32 0.0, %v1303
  %1305 = vdwg.mxu0
  %v1306 = vlaneseq
  %v1307 = vshrl.u32 %v1306, 7
  %v1308 = vsub.s32 0, %v1307
  %v1309 = vrot.slane %v1231, %v1308
  %v1310 = vlaneseq
  %v1311 = vshrl.u32 %v1310, 7
  %v1312 = vsub.s32 0, %v1311
  %v1313 = vrot.slane %v1233, %v1312
  %v1314 = vlaneseq
  %v1315 = vshrl.u32 %v1314, 7
  %v1316 = vsub.s32 0, %v1315
  %v1317 = vrot.slane %v1302, %v1316
  %v1318 = vlaneseq
  %v1319 = vshrl.u32 %v1318, 7
  %v1320 = vsub.s32 0, %v1319
  %v1321 = vrot.slane %v1304, %v1320
  %v1322 = vmul.f32 %v981, %v1309
  %v1323 = vmul.f32 %v982, %v1313
  %v1324 = vmul.f32 %v983, %v1317
  %v1325 = vmul.f32 %v984, %v1321
  %v1327 = vlaneseq
  %v1328 = vshrl.u32 %v1327, 7
  %v1329 = vsub.s32 0, %v1328
  %v1330 = vrot.slane %v648, %v1329
  %v1331 = vlaneseq
  %v1332 = vshrl.u32 %v1331, 7
  %v1333 = vsub.s32 1, %v1332
  %v1334 = vrot.slane %v648, %v1333
  %v1335 = vlaneseq
  %v1336 = vshrl.u32 %v1335, 7
  %v1337 = vsub.s32 2, %v1336
  %v1338 = vrot.slane %v648, %v1337
  %v1339 = vlaneseq
  %v1340 = vshrl.u32 %v1339, 7
  %v1341 = vsub.s32 3, %v1340
  %v1342 = vrot.slane %v648, %v1341
  %v1347 = vadd.f32 %v1322, %v1330
  %v1348 = vadd.f32 %v1323, %v1334
  %v1349 = vadd.f32 %v1324, %v1338
  %v1350 = vadd.f32 %v1325, %v1342
  %v1351 = vmax.f32 %v1347, 0.0
  %v1352 = vmax.f32 %v1348, 0.0
  %v1353 = vmax.f32 %v1349, 0.0
  %v1354 = vmax.f32 %v1350, 0.0
  %v1355 = vpack.c.bf16 %v1351, %v1351
  %v1356 = vpack.c.bf16 %v1352, %v1352
  %v1357 = vpack.c.bf16 %v1353, %v1353
  %v1358 = vpack.c.bf16 %v1354, %v1354
  %v1359 = vld [vmem:[%s6] sm:$0xff]
  %v1360 = vld [vmem:[%s6 + $0x8] sm:$0xff]
  %v1361 = vld [vmem:[%s6 + $0x10] sm:$0xff]
  %v1362 = vld [vmem:[%s6 + $0x18] sm:$0xff]
  %v1363 = vld [vmem:[%s6 + $0x20] sm:$0xff]
  %v1364 = vld [vmem:[%s6 + $0x28] sm:$0xff]
  %v1365 = vld [vmem:[%s6 + $0x30] sm:$0xff]
  %v1366 = vld [vmem:[%s6 + $0x38] sm:$0xff]
  %v1367 = vld [vmem:[%s6 + $0x40] sm:$0xff]
  %v1368 = vld [vmem:[%s6 + $0x48] sm:$0xff]
  %v1369 = vld [vmem:[%s6 + $0x50] sm:$0xff]
  %v1370 = vld [vmem:[%s6 + $0x58] sm:$0xff]
  %v1371 = vld [vmem:[%s6 + $0x60] sm:$0xff]
  %v1372 = vld [vmem:[%s6 + $0x68] sm:$0xff]
  %v1373 = vld [vmem:[%s6 + $0x70] sm:$0xff]
  %v1374 = vld [vmem:[%s6 + $0x78] sm:$0xff]
  %v1375 = vld [vmem:[%s6 + $0x80] sm:$0xff]
  %v1376 = vld [vmem:[%s6 + $0x88] sm:$0xff]
  %v1377 = vld [vmem:[%s6 + $0x90] sm:$0xff]
  %v1378 = vld [vmem:[%s6 + $0x98] sm:$0xff]
  %v1379 = vld [vmem:[%s6 + $0xa0] sm:$0xff]
  %v1380 = vld [vmem:[%s6 + $0xa8] sm:$0xff]
  %v1381 = vld [vmem:[%s6 + $0xb0] sm:$0xff]
  %v1382 = vld [vmem:[%s6 + $0xb8] sm:$0xff]
  %v1383 = vld [vmem:[%s6 + $0xc0] sm:$0xff]
  %v1384 = vld [vmem:[%s6 + $0xc8] sm:$0xff]
  %v1385 = vld [vmem:[%s6 + $0xd0] sm:$0xff]
  %v1386 = vld [vmem:[%s6 + $0xd8] sm:$0xff]
  %v1387 = vld [vmem:[%s6 + $0xe0] sm:$0xff]
  %v1388 = vld [vmem:[%s6 + $0xe8] sm:$0xff]
  %v1389 = vld [vmem:[%s6 + $0xf0] sm:$0xff]
  %v1390 = vld [vmem:[%s6 + $0xf8] sm:$0xff]
  %v1391 = vld [vmem:[%s6 + $0x100] sm:$0xff]
  %v1392 = vld [vmem:[%s6 + $0x108] sm:$0xff]
  %v1393 = vld [vmem:[%s6 + $0x110] sm:$0xff]
  %v1394 = vld [vmem:[%s6 + $0x118] sm:$0xff]
  %v1395 = vld [vmem:[%s6 + $0x120] sm:$0xff]
  %v1396 = vld [vmem:[%s6 + $0x128] sm:$0xff]
  %v1397 = vld [vmem:[%s6 + $0x130] sm:$0xff]
  %v1398 = vld [vmem:[%s6 + $0x138] sm:$0xff]
  %v1399 = vld [vmem:[%s6 + $0x140] sm:$0xff]
  %v1400 = vld [vmem:[%s6 + $0x148] sm:$0xff]
  %v1401 = vld [vmem:[%s6 + $0x150] sm:$0xff]
  %v1402 = vld [vmem:[%s6 + $0x158] sm:$0xff]
  %v1403 = vld [vmem:[%s6 + $0x160] sm:$0xff]
  %v1404 = vld [vmem:[%s6 + $0x168] sm:$0xff]
  %v1405 = vld [vmem:[%s6 + $0x170] sm:$0xff]
  %v1406 = vld [vmem:[%s6 + $0x178] sm:$0xff]
  %v1407 = vld [vmem:[%s6 + $0x180] sm:$0xff]
  %v1408 = vld [vmem:[%s6 + $0x188] sm:$0xff]
  %v1409 = vld [vmem:[%s6 + $0x190] sm:$0xff]
  %v1410 = vld [vmem:[%s6 + $0x198] sm:$0xff]
  %v1411 = vld [vmem:[%s6 + $0x1a0] sm:$0xff]
  %v1412 = vld [vmem:[%s6 + $0x1a8] sm:$0xff]
  %v1413 = vld [vmem:[%s6 + $0x1b0] sm:$0xff]
  %v1414 = vld [vmem:[%s6 + $0x1b8] sm:$0xff]
  %v1415 = vld [vmem:[%s6 + $0x1c0] sm:$0xff]
  %v1416 = vld [vmem:[%s6 + $0x1c8] sm:$0xff]
  %v1417 = vld [vmem:[%s6 + $0x1d0] sm:$0xff]
  %v1418 = vld [vmem:[%s6 + $0x1d8] sm:$0xff]
  %v1419 = vld [vmem:[%s6 + $0x1e0] sm:$0xff]
  %v1420 = vld [vmem:[%s6 + $0x1e8] sm:$0xff]
  %v1421 = vld [vmem:[%s6 + $0x1f0] sm:$0xff]
  %v1422 = vld [vmem:[%s6 + $0x1f8] sm:$0xff]
  %v1487 = vunpack.c.l.b16 %v1359
  %v1488 = vunpack.c.h.b16 %v1359
  %v1489 = vunpack.c.l.b16 %v1360
  %v1490 = vunpack.c.h.b16 %v1360
  %v1491 = vunpack.c.l.b16 %v1361
  %v1492 = vunpack.c.h.b16 %v1361
  %v1493 = vunpack.c.l.b16 %v1362
  %v1494 = vunpack.c.h.b16 %v1362
  %v1495 = vunpack.c.l.b16 %v1363
  %v1496 = vunpack.c.h.b16 %v1363
  %v1497 = vunpack.c.l.b16 %v1364
  %v1498 = vunpack.c.h.b16 %v1364
  %v1499 = vunpack.c.l.b16 %v1365
  %v1500 = vunpack.c.h.b16 %v1365
  %v1501 = vunpack.c.l.b16 %v1366
  %v1502 = vunpack.c.h.b16 %v1366
  %v1503 = vunpack.c.l.b16 %v1367
  %v1504 = vunpack.c.h.b16 %v1367
  %v1505 = vunpack.c.l.b16 %v1368
  %v1506 = vunpack.c.h.b16 %v1368
  %v1507 = vunpack.c.l.b16 %v1369
  %v1508 = vunpack.c.h.b16 %v1369
  %v1509 = vunpack.c.l.b16 %v1370
  %v1510 = vunpack.c.h.b16 %v1370
  %v1511 = vunpack.c.l.b16 %v1371
  %v1512 = vunpack.c.h.b16 %v1371
  %v1513 = vunpack.c.l.b16 %v1372
  %v1514 = vunpack.c.h.b16 %v1372
  %v1515 = vunpack.c.l.b16 %v1373
  %v1516 = vunpack.c.h.b16 %v1373
  %v1517 = vunpack.c.l.b16 %v1374
  %v1518 = vunpack.c.h.b16 %v1374
  %v1519 = vunpack.c.l.b16 %v1375
  %v1520 = vunpack.c.h.b16 %v1375
  %v1521 = vunpack.c.l.b16 %v1376
  %v1522 = vunpack.c.h.b16 %v1376
  %v1523 = vunpack.c.l.b16 %v1377
  %v1524 = vunpack.c.h.b16 %v1377
  %v1525 = vunpack.c.l.b16 %v1378
  %v1526 = vunpack.c.h.b16 %v1378
  %v1527 = vunpack.c.l.b16 %v1379
  %v1528 = vunpack.c.h.b16 %v1379
  %v1529 = vunpack.c.l.b16 %v1380
  %v1530 = vunpack.c.h.b16 %v1380
  %v1531 = vunpack.c.l.b16 %v1381
  %v1532 = vunpack.c.h.b16 %v1381
  %v1533 = vunpack.c.l.b16 %v1382
  %v1534 = vunpack.c.h.b16 %v1382
  %v1535 = vunpack.c.l.b16 %v1383
  %v1536 = vunpack.c.h.b16 %v1383
  %v1537 = vunpack.c.l.b16 %v1384
  %v1538 = vunpack.c.h.b16 %v1384
  %v1539 = vunpack.c.l.b16 %v1385
  %v1540 = vunpack.c.h.b16 %v1385
  %v1541 = vunpack.c.l.b16 %v1386
  %v1542 = vunpack.c.h.b16 %v1386
  %v1543 = vunpack.c.l.b16 %v1387
  %v1544 = vunpack.c.h.b16 %v1387
  %v1545 = vunpack.c.l.b16 %v1388
  %v1546 = vunpack.c.h.b16 %v1388
  %v1547 = vunpack.c.l.b16 %v1389
  %v1548 = vunpack.c.h.b16 %v1389
  %v1549 = vunpack.c.l.b16 %v1390
  %v1550 = vunpack.c.h.b16 %v1390
  %v1551 = vunpack.c.l.b16 %v1391
  %v1552 = vunpack.c.h.b16 %v1391
  %v1553 = vunpack.c.l.b16 %v1392
  %v1554 = vunpack.c.h.b16 %v1392
  %v1555 = vunpack.c.l.b16 %v1393
  %v1556 = vunpack.c.h.b16 %v1393
  %v1557 = vunpack.c.l.b16 %v1394
  %v1558 = vunpack.c.h.b16 %v1394
  %v1559 = vunpack.c.l.b16 %v1395
  %v1560 = vunpack.c.h.b16 %v1395
  %v1561 = vunpack.c.l.b16 %v1396
  %v1562 = vunpack.c.h.b16 %v1396
  %v1563 = vunpack.c.l.b16 %v1397
  %v1564 = vunpack.c.h.b16 %v1397
  %v1565 = vunpack.c.l.b16 %v1398
  %v1566 = vunpack.c.h.b16 %v1398
  %v1567 = vunpack.c.l.b16 %v1399
  %v1568 = vunpack.c.h.b16 %v1399
  %v1569 = vunpack.c.l.b16 %v1400
  %v1570 = vunpack.c.h.b16 %v1400
  %v1571 = vunpack.c.l.b16 %v1401
  %v1572 = vunpack.c.h.b16 %v1401
  %v1573 = vunpack.c.l.b16 %v1402
  %v1574 = vunpack.c.h.b16 %v1402
  %v1575 = vunpack.c.l.b16 %v1403
  %v1576 = vunpack.c.h.b16 %v1403
  %v1577 = vunpack.c.l.b16 %v1404
  %v1578 = vunpack.c.h.b16 %v1404
  %v1579 = vunpack.c.l.b16 %v1405
  %v1580 = vunpack.c.h.b16 %v1405
  %v1581 = vunpack.c.l.b16 %v1406
  %v1582 = vunpack.c.h.b16 %v1406
  %v1583 = vunpack.c.l.b16 %v1407
  %v1584 = vunpack.c.h.b16 %v1407
  %v1585 = vunpack.c.l.b16 %v1408
  %v1586 = vunpack.c.h.b16 %v1408
  %v1587 = vunpack.c.l.b16 %v1409
  %v1588 = vunpack.c.h.b16 %v1409
  %v1589 = vunpack.c.l.b16 %v1410
  %v1590 = vunpack.c.h.b16 %v1410
  %v1591 = vunpack.c.l.b16 %v1411
  %v1592 = vunpack.c.h.b16 %v1411
  %v1593 = vunpack.c.l.b16 %v1412
  %v1594 = vunpack.c.h.b16 %v1412
  %v1595 = vunpack.c.l.b16 %v1413
  %v1596 = vunpack.c.h.b16 %v1413
  %v1597 = vunpack.c.l.b16 %v1414
  %v1598 = vunpack.c.h.b16 %v1414
  %v1599 = vunpack.c.l.b16 %v1415
  %v1600 = vunpack.c.h.b16 %v1415
  %v1601 = vunpack.c.l.b16 %v1416
  %v1602 = vunpack.c.h.b16 %v1416
  %v1603 = vunpack.c.l.b16 %v1417
  %v1604 = vunpack.c.h.b16 %v1417
  %v1605 = vunpack.c.l.b16 %v1418
  %v1606 = vunpack.c.h.b16 %v1418
  %v1607 = vunpack.c.l.b16 %v1419
  %v1608 = vunpack.c.h.b16 %v1419
  %v1609 = vunpack.c.l.b16 %v1420
  %v1610 = vunpack.c.h.b16 %v1420
  %v1611 = vunpack.c.l.b16 %v1421
  %v1612 = vunpack.c.h.b16 %v1421
  %v1613 = vunpack.c.l.b16 %v1422
  %v1614 = vunpack.c.h.b16 %v1422
  %v1615 = vpack.c.b16 %v1489, %v1487
  %v1616 = vpack.c.b16 %v1490, %v1488
  %v1617 = vpack.c.b16 %v1493, %v1491
  %v1618 = vpack.c.b16 %v1494, %v1492
  %v1619 = vpack.c.b16 %v1497, %v1495
  %v1620 = vpack.c.b16 %v1498, %v1496
  %v1621 = vpack.c.b16 %v1501, %v1499
  %v1622 = vpack.c.b16 %v1502, %v1500
  %v1623 = vpack.c.b16 %v1505, %v1503
  %v1624 = vpack.c.b16 %v1506, %v1504
  %v1625 = vpack.c.b16 %v1509, %v1507
  %v1626 = vpack.c.b16 %v1510, %v1508
  %v1627 = vpack.c.b16 %v1513, %v1511
  %v1628 = vpack.c.b16 %v1514, %v1512
  %v1629 = vpack.c.b16 %v1517, %v1515
  %v1630 = vpack.c.b16 %v1518, %v1516
  %v1631 = vpack.c.b16 %v1521, %v1519
  %v1632 = vpack.c.b16 %v1522, %v1520
  %v1633 = vpack.c.b16 %v1525, %v1523
  %v1634 = vpack.c.b16 %v1526, %v1524
  %v1635 = vpack.c.b16 %v1529, %v1527
  %v1636 = vpack.c.b16 %v1530, %v1528
  %v1637 = vpack.c.b16 %v1533, %v1531
  %v1638 = vpack.c.b16 %v1534, %v1532
  %v1639 = vpack.c.b16 %v1537, %v1535
  %v1640 = vpack.c.b16 %v1538, %v1536
  %v1641 = vpack.c.b16 %v1541, %v1539
  %v1642 = vpack.c.b16 %v1542, %v1540
  %v1643 = vpack.c.b16 %v1545, %v1543
  %v1644 = vpack.c.b16 %v1546, %v1544
  %v1645 = vpack.c.b16 %v1549, %v1547
  %v1646 = vpack.c.b16 %v1550, %v1548
  %v1647 = vpack.c.b16 %v1553, %v1551
  %v1648 = vpack.c.b16 %v1554, %v1552
  %v1649 = vpack.c.b16 %v1557, %v1555
  %v1650 = vpack.c.b16 %v1558, %v1556
  %v1651 = vpack.c.b16 %v1561, %v1559
  %v1652 = vpack.c.b16 %v1562, %v1560
  %v1653 = vpack.c.b16 %v1565, %v1563
  %v1654 = vpack.c.b16 %v1566, %v1564
  %v1655 = vpack.c.b16 %v1569, %v1567
  %v1656 = vpack.c.b16 %v1570, %v1568
  %v1657 = vpack.c.b16 %v1573, %v1571
  %v1658 = vpack.c.b16 %v1574, %v1572
  %v1659 = vpack.c.b16 %v1577, %v1575
  %v1660 = vpack.c.b16 %v1578, %v1576
  %v1661 = vpack.c.b16 %v1581, %v1579
  %v1662 = vpack.c.b16 %v1582, %v1580
  %v1663 = vpack.c.b16 %v1585, %v1583
  %v1664 = vpack.c.b16 %v1586, %v1584
  %v1665 = vpack.c.b16 %v1589, %v1587
  %v1666 = vpack.c.b16 %v1590, %v1588
  %v1667 = vpack.c.b16 %v1593, %v1591
  %v1668 = vpack.c.b16 %v1594, %v1592
  %v1669 = vpack.c.b16 %v1597, %v1595
  %v1670 = vpack.c.b16 %v1598, %v1596
  %v1671 = vpack.c.b16 %v1601, %v1599
  %v1672 = vpack.c.b16 %v1602, %v1600
  %v1673 = vpack.c.b16 %v1605, %v1603
  %v1674 = vpack.c.b16 %v1606, %v1604
  %v1675 = vpack.c.b16 %v1609, %v1607
  %v1676 = vpack.c.b16 %v1610, %v1608
  %v1677 = vpack.c.b16 %v1613, %v1611
  %v1678 = vpack.c.b16 %v1614, %v1612
  %1743 = vmatprep.subr.bf16.mxu0 %v1616
  %1744 = vmatpush1.bf16.msra.mxu0 %v1615
  %1745 = vmatprep.subr.bf16.mxu0 %v1618
  %1746 = vmatpush1.bf16.msra.mxu0 %v1617
  %1747 = vmatprep.subr.bf16.mxu0 %v1620
  %1748 = vmatpush1.bf16.msra.mxu0 %v1619
  %1749 = vmatprep.subr.bf16.mxu0 %v1622
  %1750 = vmatpush1.bf16.msra.mxu0 %v1621
  %1751 = vmatprep.subr.bf16.mxu0 %v1624
  %1752 = vmatpush1.bf16.msra.mxu0 %v1623
  %1753 = vmatprep.subr.bf16.mxu0 %v1626
  %1754 = vmatpush1.bf16.msra.mxu0 %v1625
  %1755 = vmatprep.subr.bf16.mxu0 %v1628
  %1756 = vmatpush1.bf16.msra.mxu0 %v1627
  %1757 = vmatprep.subr.bf16.mxu0 %v1630
  %1758 = vmatpush1.bf16.msra.mxu0 %v1629
  %1759 = vmatprep.subr.bf16.mxu0 %v1632
  %1760 = vmatpush1.bf16.msra.mxu0 %v1631
  %1761 = vmatprep.subr.bf16.mxu0 %v1634
  %1762 = vmatpush1.bf16.msra.mxu0 %v1633
  %1763 = vmatprep.subr.bf16.mxu0 %v1636
  %1764 = vmatpush1.bf16.msra.mxu0 %v1635
  %1765 = vmatprep.subr.bf16.mxu0 %v1638
  %1766 = vmatpush1.bf16.msra.mxu0 %v1637
  %1767 = vmatprep.subr.bf16.mxu0 %v1640
  %1768 = vmatpush1.bf16.msra.mxu0 %v1639
  %1769 = vmatprep.subr.bf16.mxu0 %v1642
  %1770 = vmatpush1.bf16.msra.mxu0 %v1641
  %1771 = vmatprep.subr.bf16.mxu0 %v1644
  %1772 = vmatpush1.bf16.msra.mxu0 %v1643
  %1773 = vmatprep.subr.bf16.mxu0 %v1646
  %1774 = vmatpush1.bf16.msra.mxu0 %v1645
  %1775 = vmatprep.mubr.bf16.mxu0 %v1356
  %1776 = vmatmul.mubr.bf16.gmra.mrb[0].mxu0 %v1355
  %v1777 = vpop.f32.mrb[0].mxu0
  %v1778 = vadd.f32 0.0, %v1777
  %v1779 = vpop.f32.mrb[0].mxu0
  %v1780 = vadd.f32 0.0, %v1779
  %v1781 = vpop.f32.mrb[0].mxu0
  %v1782 = vpop.f32.mrb[0].mxu0
  %1783 = vdwg.mxu0
  %1784 = vmatprep.subr.bf16.mxu0 %v1648
  %1785 = vmatpush1.bf16.msra.mxu0 %v1647
  %1786 = vmatprep.subr.bf16.mxu0 %v1650
  %1787 = vmatpush1.bf16.msra.mxu0 %v1649
  %1788 = vmatprep.subr.bf16.mxu0 %v1652
  %1789 = vmatpush1.bf16.msra.mxu0 %v1651
  %1790 = vmatprep.subr.bf16.mxu0 %v1654
  %1791 = vmatpush1.bf16.msra.mxu0 %v1653
  %1792 = vmatprep.subr.bf16.mxu0 %v1656
  %1793 = vmatpush1.bf16.msra.mxu0 %v1655
  %1794 = vmatprep.subr.bf16.mxu0 %v1658
  %1795 = vmatpush1.bf16.msra.mxu0 %v1657
  %1796 = vmatprep.subr.bf16.mxu0 %v1660
  %1797 = vmatpush1.bf16.msra.mxu0 %v1659
  %1798 = vmatprep.subr.bf16.mxu0 %v1662
  %1799 = vmatpush1.bf16.msra.mxu0 %v1661
  %1800 = vmatprep.subr.bf16.mxu0 %v1664
  %1801 = vmatpush1.bf16.msra.mxu0 %v1663
  %1802 = vmatprep.subr.bf16.mxu0 %v1666
  %1803 = vmatpush1.bf16.msra.mxu0 %v1665
  %1804 = vmatprep.subr.bf16.mxu0 %v1668
  %1805 = vmatpush1.bf16.msra.mxu0 %v1667
  %1806 = vmatprep.subr.bf16.mxu0 %v1670
  %1807 = vmatpush1.bf16.msra.mxu0 %v1669
  %1808 = vmatprep.subr.bf16.mxu0 %v1672
  %1809 = vmatpush1.bf16.msra.mxu0 %v1671
  %1810 = vmatprep.subr.bf16.mxu0 %v1674
  %1811 = vmatpush1.bf16.msra.mxu0 %v1673
  %1812 = vmatprep.subr.bf16.mxu0 %v1676
  %1813 = vmatpush1.bf16.msra.mxu0 %v1675
  %1814 = vmatprep.subr.bf16.mxu0 %v1678
  %1815 = vmatpush1.bf16.msra.mxu0 %v1677
  %1816 = vmatprep.mubr.bf16.mxu0 %v1358
  %1817 = vmatmul.mubr.bf16.gmra.mrb[0].mxu0 %v1357
  %v1818 = vpop.f32.mrb[0].mxu0
  %v1819 = vadd.f32 %v1778, %v1818
  %v1820 = vpop.f32.mrb[0].mxu0
  %v1821 = vadd.f32 %v1780, %v1820
  %v1822 = vpop.f32.mrb[0].mxu0
  %v1823 = vpop.f32.mrb[0].mxu0
  %1824 = vdwg.mxu0
  %v1825 = vld [vmem:[%s7] sm:$0xff]
  %v1826 = vld [vmem:[%s7 + $0x8] sm:$0xff]
  %v1827 = vld [vmem:[%s7 + $0x10] sm:$0xff]
  %v1828 = vld [vmem:[%s7 + $0x18] sm:$0xff]
  %v1829 = vld [vmem:[%s7 + $0x20] sm:$0xff]
  %v1830 = vld [vmem:[%s7 + $0x28] sm:$0xff]
  %v1831 = vld [vmem:[%s7 + $0x30] sm:$0xff]
  %v1832 = vld [vmem:[%s7 + $0x38] sm:$0xff]
  %v1833 = vld [vmem:[%s7 + $0x40] sm:$0xff]
  %v1834 = vld [vmem:[%s7 + $0x48] sm:$0xff]
  %v1835 = vld [vmem:[%s7 + $0x50] sm:$0xff]
  %v1836 = vld [vmem:[%s7 + $0x58] sm:$0xff]
  %v1837 = vld [vmem:[%s7 + $0x60] sm:$0xff]
  %v1838 = vld [vmem:[%s7 + $0x68] sm:$0xff]
  %v1839 = vld [vmem:[%s7 + $0x70] sm:$0xff]
  %v1840 = vld [vmem:[%s7 + $0x78] sm:$0xff]
  %v1841 = vld [vmem:[%s7 + $0x80] sm:$0xff]
  %v1842 = vld [vmem:[%s7 + $0x88] sm:$0xff]
  %v1843 = vld [vmem:[%s7 + $0x90] sm:$0xff]
  %v1844 = vld [vmem:[%s7 + $0x98] sm:$0xff]
  %v1845 = vld [vmem:[%s7 + $0xa0] sm:$0xff]
  %v1846 = vld [vmem:[%s7 + $0xa8] sm:$0xff]
  %v1847 = vld [vmem:[%s7 + $0xb0] sm:$0xff]
  %v1848 = vld [vmem:[%s7 + $0xb8] sm:$0xff]
  %v1849 = vld [vmem:[%s7 + $0xc0] sm:$0xff]
  %v1850 = vld [vmem:[%s7 + $0xc8] sm:$0xff]
  %v1851 = vld [vmem:[%s7 + $0xd0] sm:$0xff]
  %v1852 = vld [vmem:[%s7 + $0xd8] sm:$0xff]
  %v1853 = vld [vmem:[%s7 + $0xe0] sm:$0xff]
  %v1854 = vld [vmem:[%s7 + $0xe8] sm:$0xff]
  %v1855 = vld [vmem:[%s7 + $0xf0] sm:$0xff]
  %v1856 = vld [vmem:[%s7 + $0xf8] sm:$0xff]
  %v1857 = vld [vmem:[%s8] sm:$0xff]
  %v1858 = vld [vmem:[%s8 + $0x8] sm:$0xff]
  %v1859 = vld [vmem:[%s8 + $0x10] sm:$0xff]
  %v1860 = vld [vmem:[%s8 + $0x18] sm:$0xff]
  %v1861 = vld [vmem:[%s9] sm:$0x1]
  %v1862 = vld [vmem:[%s10] sm:$0x3]
  %v1863 = vsel %vm649, %v1819, 0.0
  %v1864 = vrot.slane %v1863, 4
  %v1865 = vadd.f32 %v1863, %v1864
  %v1866 = vrot.slane %v1865, 2
  %v1867 = vadd.f32 %v1865, %v1866
  %v1868 = vrot.slane %v1867, 1
  %v1869 = vadd.f32 %v1867, %v1868
  %v1870 = vsel %vm649, %v1821, 0.0
  %v1871 = vrot.slane %v1870, 4
  %v1872 = vadd.f32 %v1870, %v1871
  %v1873 = vrot.slane %v1872, 2
  %v1874 = vadd.f32 %v1872, %v1873
  %v1875 = vrot.slane %v1874, 1
  %v1876 = vadd.f32 %v1874, %v1875
  %1877 = vmatprep.subr.mxu0 0.0
  %1878 = vmatpush1.msra.mxu0 %v1825
  %1879 = vmatprep.subr.mxu0 0.0
  %1880 = vmatpush1.msra.mxu0 %v1826
  %1881 = vmatprep.subr.mxu0 0.0
  %1882 = vmatpush1.msra.mxu0 %v1827
  %1883 = vmatprep.subr.mxu0 0.0
  %1884 = vmatpush1.msra.mxu0 %v1828
  %1885 = vmatprep.subr.mxu0 0.0
  %1886 = vmatpush1.msra.mxu0 %v1829
  %1887 = vmatprep.subr.mxu0 0.0
  %1888 = vmatpush1.msra.mxu0 %v1830
  %1889 = vmatprep.subr.mxu0 0.0
  %1890 = vmatpush1.msra.mxu0 %v1831
  %1891 = vmatprep.subr.mxu0 0.0
  %1892 = vmatpush1.msra.mxu0 %v1832
  %1893 = vmatprep.subr.mxu0 0.0
  %1894 = vmatpush1.msra.mxu0 %v1833
  %1895 = vmatprep.subr.mxu0 0.0
  %1896 = vmatpush1.msra.mxu0 %v1834
  %1897 = vmatprep.subr.mxu0 0.0
  %1898 = vmatpush1.msra.mxu0 %v1835
  %1899 = vmatprep.subr.mxu0 0.0
  %1900 = vmatpush1.msra.mxu0 %v1836
  %1901 = vmatprep.subr.mxu0 0.0
  %1902 = vmatpush1.msra.mxu0 %v1837
  %1903 = vmatprep.subr.mxu0 0.0
  %1904 = vmatpush1.msra.mxu0 %v1838
  %1905 = vmatprep.subr.mxu0 0.0
  %1906 = vmatpush1.msra.mxu0 %v1839
  %1907 = vmatprep.subr.mxu0 0.0
  %1908 = vmatpush1.msra.mxu0 %v1840
  %1909 = vmatprep.subr.mxu0 0.0
  %1910 = vmatpush1.msra.mxu0 %v1841
  %1911 = vmatprep.subr.mxu0 0.0
  %1912 = vmatpush1.msra.mxu0 %v1842
  %1913 = vmatprep.subr.mxu0 0.0
  %1914 = vmatpush1.msra.mxu0 %v1843
  %1915 = vmatprep.subr.mxu0 0.0
  %1916 = vmatpush1.msra.mxu0 %v1844
  %1917 = vmatprep.subr.mxu0 0.0
  %1918 = vmatpush1.msra.mxu0 %v1845
  %1919 = vmatprep.subr.mxu0 0.0
  %1920 = vmatpush1.msra.mxu0 %v1846
  %1921 = vmatprep.subr.mxu0 0.0
  %1922 = vmatpush1.msra.mxu0 %v1847
  %1923 = vmatprep.subr.mxu0 0.0
  %1924 = vmatpush1.msra.mxu0 %v1848
  %1925 = vmatprep.subr.mxu0 0.0
  %1926 = vmatpush1.msra.mxu0 %v1849
  %1927 = vmatprep.subr.mxu0 0.0
  %1928 = vmatpush1.msra.mxu0 %v1850
  %1929 = vmatprep.subr.mxu0 0.0
  %1930 = vmatpush1.msra.mxu0 %v1851
  %1931 = vmatprep.subr.mxu0 0.0
  %1932 = vmatpush1.msra.mxu0 %v1852
  %1933 = vmatprep.subr.mxu0 0.0
  %1934 = vmatpush1.msra.mxu0 %v1853
  %1935 = vmatprep.subr.mxu0 0.0
  %1936 = vmatpush1.msra.mxu0 %v1854
  %1937 = vmatprep.subr.mxu0 0.0
  %1938 = vmatpush1.msra.mxu0 %v1855
  %1939 = vmatprep.subr.mxu0 0.0
  %1940 = vmatpush1.msra.mxu0 %v1856
  %1941 = vmatprep.mubr.f32.mxu0 %v1876
  %1942 = vmatmul.mubr.f32.gmra.mrb[0].mxu0 %v1869
  %v1943 = vpop.f32.mrb[0].mxu0
  %v1944 = vadd.f32 0.0, %v1943
  %v1945 = vpop.f32.mrb[0].mxu0
  %1946 = vdwg.mxu0
  %v1947 = vmul.f32 %v1944, 0.03125
  %vm1948 = vcmask 130048
  %v1950 = vsel %vm1948, %v1947, 0
  %1952 = vmatprep.subr.mxu0 %v1858
  %1953 = vmatpush1.msra.mxu0 %v1857
  %1954 = vmatprep.subr.mxu0 %v1860
  %1955 = vmatpush1.msra.mxu0 %v1859
  %1956 = vmatprep.subr.mxu0 0.0
  %1957 = vmatpush1.msra.mxu0 0.0
  %1958 = vmatprep.subr.mxu0 0.0
  %1959 = vmatpush1.msra.mxu0 0.0
  %1960 = vmatprep.subr.mxu0 0.0
  %1961 = vmatpush1.msra.mxu0 0.0
  %1962 = vmatprep.subr.mxu0 0.0
  %1963 = vmatpush1.msra.mxu0 0.0
  %1964 = vmatprep.subr.mxu0 0.0
  %1965 = vmatpush1.msra.mxu0 0.0
  %1966 = vmatprep.subr.mxu0 0.0
  %1967 = vmatpush1.msra.mxu0 0.0
  %1968 = vmatprep.subr.mxu0 0.0
  %1969 = vmatpush1.msra.mxu0 0.0
  %1970 = vmatprep.subr.mxu0 0.0
  %1971 = vmatpush1.msra.mxu0 0.0
  %1972 = vmatprep.subr.mxu0 0.0
  %1973 = vmatpush1.msra.mxu0 0.0
  %1974 = vmatprep.subr.mxu0 0.0
  %1975 = vmatpush1.msra.mxu0 0.0
  %1976 = vmatprep.subr.mxu0 0.0
  %1977 = vmatpush1.msra.mxu0 0.0
  %1978 = vmatprep.subr.mxu0 0.0
  %1979 = vmatpush1.msra.mxu0 0.0
  %1980 = vmatprep.subr.mxu0 0.0
  %1981 = vmatpush1.msra.mxu0 0.0
  %1982 = vmatprep.subr.mxu0 0.0
  %1983 = vmatpush1.msra.mxu0 0.0
  %1984 = vmatprep.subr.mxu0 0.0
  %1985 = vmatpush1.msra.mxu0 0.0
  %1986 = vmatprep.subr.mxu0 0.0
  %1987 = vmatpush1.msra.mxu0 0.0
  %1988 = vmatprep.subr.mxu0 0.0
  %1989 = vmatpush1.msra.mxu0 0.0
  %1990 = vmatprep.subr.mxu0 0.0
  %1991 = vmatpush1.msra.mxu0 0.0
  %1992 = vmatprep.subr.mxu0 0.0
  %1993 = vmatpush1.msra.mxu0 0.0
  %1994 = vmatprep.subr.mxu0 0.0
  %1995 = vmatpush1.msra.mxu0 0.0
  %1996 = vmatprep.subr.mxu0 0.0
  %1997 = vmatpush1.msra.mxu0 0.0
  %1998 = vmatprep.subr.mxu0 0.0
  %1999 = vmatpush1.msra.mxu0 0.0
  %2000 = vmatprep.subr.mxu0 0.0
  %2001 = vmatpush1.msra.mxu0 0.0
  %2002 = vmatprep.subr.mxu0 0.0
  %2003 = vmatpush1.msra.mxu0 0.0
  %2004 = vmatprep.subr.mxu0 0.0
  %2005 = vmatpush1.msra.mxu0 0.0
  %2006 = vmatprep.subr.mxu0 0.0
  %2007 = vmatpush1.msra.mxu0 0.0
  %2008 = vmatprep.subr.mxu0 0.0
  %2009 = vmatpush1.msra.mxu0 0.0
  %2010 = vmatprep.subr.mxu0 0.0
  %2011 = vmatpush1.msra.mxu0 0.0
  %2012 = vmatprep.subr.mxu0 0.0
  %2013 = vmatpush1.msra.mxu0 0.0
  %2014 = vmatprep.subr.mxu0 0.0
  %2015 = vmatpush1.msra.mxu0 0.0
  %2016 = vmatprep.mubr.f32.mxu0 0.0
  %2017 = vmatmul.mubr.f32.gmra.mrb[0].mxu0 %v1950
  %v2018 = vpop.f32.mrb[0].mxu0
  %v2019 = vadd.f32 0.0, %v2018
  %v2020 = vpop.f32.mrb[0].mxu0
  %v2021 = vadd.f32 0.0, %v2020
  %2022 = vdwg.mxu0
  %v2023 = vlaneseq
  %v2024 = vshrl.u32 %v2023, 7
  %v2025 = vsub.s32 0, %v2024
  %v2026 = vrot.slane %v2019, %v2025
  %v2027 = vlaneseq
  %v2028 = vshrl.u32 %v2027, 7
  %v2029 = vsub.s32 0, %v2028
  %v2030 = vrot.slane %v2021, %v2029
  %v2031 = vsub.f32 %v1819, %v2026
  %v2032 = vsub.f32 %v1821, %v2030
  %v2033 = vmul.f32 %v2031, %v2031
  %v2034 = vmul.f32 %v2032, %v2032
  %v2035 = vsel %vm649, %v2033, 0.0
  %v2036 = vrot.slane %v2035, 4
  %v2037 = vadd.f32 %v2035, %v2036
  %v2038 = vrot.slane %v2037, 2
  %v2039 = vadd.f32 %v2037, %v2038
  %v2040 = vrot.slane %v2039, 1
  %v2041 = vadd.f32 %v2039, %v2040
  %v2042 = vsel %vm649, %v2034, 0.0
  %v2043 = vrot.slane %v2042, 4
  %v2044 = vadd.f32 %v2042, %v2043
  %v2045 = vrot.slane %v2044, 2
  %v2046 = vadd.f32 %v2044, %v2045
  %v2047 = vrot.slane %v2046, 1
  %v2048 = vadd.f32 %v2046, %v2047
  %2049 = vmatprep.subr.mxu0 0.0
  %2050 = vmatpush1.msra.mxu0 %v1825
  %2051 = vmatprep.subr.mxu0 0.0
  %2052 = vmatpush1.msra.mxu0 %v1826
  %2053 = vmatprep.subr.mxu0 0.0
  %2054 = vmatpush1.msra.mxu0 %v1827
  %2055 = vmatprep.subr.mxu0 0.0
  %2056 = vmatpush1.msra.mxu0 %v1828
  %2057 = vmatprep.subr.mxu0 0.0
  %2058 = vmatpush1.msra.mxu0 %v1829
  %2059 = vmatprep.subr.mxu0 0.0
  %2060 = vmatpush1.msra.mxu0 %v1830
  %2061 = vmatprep.subr.mxu0 0.0
  %2062 = vmatpush1.msra.mxu0 %v1831
  %2063 = vmatprep.subr.mxu0 0.0
  %2064 = vmatpush1.msra.mxu0 %v1832
  %2065 = vmatprep.subr.mxu0 0.0
  %2066 = vmatpush1.msra.mxu0 %v1833
  %2067 = vmatprep.subr.mxu0 0.0
  %2068 = vmatpush1.msra.mxu0 %v1834
  %2069 = vmatprep.subr.mxu0 0.0
  %2070 = vmatpush1.msra.mxu0 %v1835
  %2071 = vmatprep.subr.mxu0 0.0
  %2072 = vmatpush1.msra.mxu0 %v1836
  %2073 = vmatprep.subr.mxu0 0.0
  %2074 = vmatpush1.msra.mxu0 %v1837
  %2075 = vmatprep.subr.mxu0 0.0
  %2076 = vmatpush1.msra.mxu0 %v1838
  %2077 = vmatprep.subr.mxu0 0.0
  %2078 = vmatpush1.msra.mxu0 %v1839
  %2079 = vmatprep.subr.mxu0 0.0
  %2080 = vmatpush1.msra.mxu0 %v1840
  %2081 = vmatprep.subr.mxu0 0.0
  %2082 = vmatpush1.msra.mxu0 %v1841
  %2083 = vmatprep.subr.mxu0 0.0
  %2084 = vmatpush1.msra.mxu0 %v1842
  %2085 = vmatprep.subr.mxu0 0.0
  %2086 = vmatpush1.msra.mxu0 %v1843
  %2087 = vmatprep.subr.mxu0 0.0
  %2088 = vmatpush1.msra.mxu0 %v1844
  %2089 = vmatprep.subr.mxu0 0.0
  %2090 = vmatpush1.msra.mxu0 %v1845
  %2091 = vmatprep.subr.mxu0 0.0
  %2092 = vmatpush1.msra.mxu0 %v1846
  %2093 = vmatprep.subr.mxu0 0.0
  %2094 = vmatpush1.msra.mxu0 %v1847
  %2095 = vmatprep.subr.mxu0 0.0
  %2096 = vmatpush1.msra.mxu0 %v1848
  %2097 = vmatprep.subr.mxu0 0.0
  %2098 = vmatpush1.msra.mxu0 %v1849
  %2099 = vmatprep.subr.mxu0 0.0
  %2100 = vmatpush1.msra.mxu0 %v1850
  %2101 = vmatprep.subr.mxu0 0.0
  %2102 = vmatpush1.msra.mxu0 %v1851
  %2103 = vmatprep.subr.mxu0 0.0
  %2104 = vmatpush1.msra.mxu0 %v1852
  %2105 = vmatprep.subr.mxu0 0.0
  %2106 = vmatpush1.msra.mxu0 %v1853
  %2107 = vmatprep.subr.mxu0 0.0
  %2108 = vmatpush1.msra.mxu0 %v1854
  %2109 = vmatprep.subr.mxu0 0.0
  %2110 = vmatpush1.msra.mxu0 %v1855
  %2111 = vmatprep.subr.mxu0 0.0
  %2112 = vmatpush1.msra.mxu0 %v1856
  %2113 = vmatprep.mubr.f32.mxu0 %v2048
  %2114 = vmatmul.mubr.f32.gmra.mrb[0].mxu0 %v2041
  %v2115 = vpop.f32.mrb[0].mxu0
  %v2116 = vadd.f32 0.0, %v2115
  %v2117 = vpop.f32.mrb[0].mxu0
  %2118 = vdwg.mxu0
  %v2119 = vmul.f32 %v2116, 0.03125
  %v2120 = vadd.f32 %v2119, 1e-05
  %v2121 = vrsqrt.pop %v2120
  %v2122 = vmul.f32 %v2121, %v1861
  %v2124 = vsel %vm1948, %v2122, 0
  %2126 = vmatprep.subr.mxu0 %v1858
  %2127 = vmatpush1.msra.mxu0 %v1857
  %2128 = vmatprep.subr.mxu0 %v1860
  %2129 = vmatpush1.msra.mxu0 %v1859
  %2130 = vmatprep.subr.mxu0 0.0
  %2131 = vmatpush1.msra.mxu0 0.0
  %2132 = vmatprep.subr.mxu0 0.0
  %2133 = vmatpush1.msra.mxu0 0.0
  %2134 = vmatprep.subr.mxu0 0.0
  %2135 = vmatpush1.msra.mxu0 0.0
  %2136 = vmatprep.subr.mxu0 0.0
  %2137 = vmatpush1.msra.mxu0 0.0
  %2138 = vmatprep.subr.mxu0 0.0
  %2139 = vmatpush1.msra.mxu0 0.0
  %2140 = vmatprep.subr.mxu0 0.0
  %2141 = vmatpush1.msra.mxu0 0.0
  %2142 = vmatprep.subr.mxu0 0.0
  %2143 = vmatpush1.msra.mxu0 0.0
  %2144 = vmatprep.subr.mxu0 0.0
  %2145 = vmatpush1.msra.mxu0 0.0
  %2146 = vmatprep.subr.mxu0 0.0
  %2147 = vmatpush1.msra.mxu0 0.0
  %2148 = vmatprep.subr.mxu0 0.0
  %2149 = vmatpush1.msra.mxu0 0.0
  %2150 = vmatprep.subr.mxu0 0.0
  %2151 = vmatpush1.msra.mxu0 0.0
  %2152 = vmatprep.subr.mxu0 0.0
  %2153 = vmatpush1.msra.mxu0 0.0
  %2154 = vmatprep.subr.mxu0 0.0
  %2155 = vmatpush1.msra.mxu0 0.0
  %2156 = vmatprep.subr.mxu0 0.0
  %2157 = vmatpush1.msra.mxu0 0.0
  %2158 = vmatprep.subr.mxu0 0.0
  %2159 = vmatpush1.msra.mxu0 0.0
  %2160 = vmatprep.subr.mxu0 0.0
  %2161 = vmatpush1.msra.mxu0 0.0
  %2162 = vmatprep.subr.mxu0 0.0
  %2163 = vmatpush1.msra.mxu0 0.0
  %2164 = vmatprep.subr.mxu0 0.0
  %2165 = vmatpush1.msra.mxu0 0.0
  %2166 = vmatprep.subr.mxu0 0.0
  %2167 = vmatpush1.msra.mxu0 0.0
  %2168 = vmatprep.subr.mxu0 0.0
  %2169 = vmatpush1.msra.mxu0 0.0
  %2170 = vmatprep.subr.mxu0 0.0
  %2171 = vmatpush1.msra.mxu0 0.0
  %2172 = vmatprep.subr.mxu0 0.0
  %2173 = vmatpush1.msra.mxu0 0.0
  %2174 = vmatprep.subr.mxu0 0.0
  %2175 = vmatpush1.msra.mxu0 0.0
  %2176 = vmatprep.subr.mxu0 0.0
  %2177 = vmatpush1.msra.mxu0 0.0
  %2178 = vmatprep.subr.mxu0 0.0
  %2179 = vmatpush1.msra.mxu0 0.0
  %2180 = vmatprep.subr.mxu0 0.0
  %2181 = vmatpush1.msra.mxu0 0.0
  %2182 = vmatprep.subr.mxu0 0.0
  %2183 = vmatpush1.msra.mxu0 0.0
  %2184 = vmatprep.subr.mxu0 0.0
  %2185 = vmatpush1.msra.mxu0 0.0
  %2186 = vmatprep.subr.mxu0 0.0
  %2187 = vmatpush1.msra.mxu0 0.0
  %2188 = vmatprep.subr.mxu0 0.0
  %2189 = vmatpush1.msra.mxu0 0.0
  %2190 = vmatprep.mubr.f32.mxu0 0.0
  %2191 = vmatmul.mubr.f32.gmra.mrb[0].mxu0 %v2124
  %v2192 = vpop.f32.mrb[0].mxu0
  %v2193 = vadd.f32 0.0, %v2192
  %v2194 = vpop.f32.mrb[0].mxu0
  %v2195 = vadd.f32 0.0, %v2194
  %2196 = vdwg.mxu0
  %v2197 = vlaneseq
  %v2198 = vshrl.u32 %v2197, 7
  %v2199 = vsub.s32 0, %v2198
  %v2200 = vrot.slane %v2193, %v2199
  %v2201 = vlaneseq
  %v2202 = vshrl.u32 %v2201, 7
  %v2203 = vsub.s32 0, %v2202
  %v2204 = vrot.slane %v2195, %v2203
  %v2205 = vmul.f32 %v2031, %v2200
  %v2206 = vmul.f32 %v2032, %v2204
  %v2208 = vlaneseq
  %v2209 = vshrl.u32 %v2208, 7
  %v2210 = vsub.s32 0, %v2209
  %v2211 = vrot.slane %v1862, %v2210
  %v2212 = vlaneseq
  %v2213 = vshrl.u32 %v2212, 7
  %v2214 = vsub.s32 1, %v2213
  %v2215 = vrot.slane %v1862, %v2214
  %v2218 = vadd.f32 %v2205, %v2211
  %v2219 = vadd.f32 %v2206, %v2215
  %v2220 = vmax.f32 %v2218, 0.0
  %v2221 = vmax.f32 %v2219, 0.0
  %v2222 = vpack.c.bf16 %v2220, %v2220
  %v2223 = vpack.c.bf16 %v2221, %v2221
  %v2224 = vld [vmem:[%s11] sm:$0xff]
  %v2225 = vld [vmem:[%s11 + $0x8] sm:$0xf]
  %v2226 = vld [vmem:[%s11 + $0xc] sm:$0xff]
  %v2227 = vld [vmem:[%s11 + $0x14] sm:$0xf]
  %v2228 = vld [vmem:[%s11 + $0x18] sm:$0xff]
  %v2229 = vld [vmem:[%s11 + $0x20] sm:$0xf]
  %v2230 = vld [vmem:[%s11 + $0x24] sm:$0xff]
  %v2231 = vld [vmem:[%s11 + $0x2c] sm:$0xf]
  %v2232 = vld [vmem:[%s11 + $0x30] sm:$0xff]
  %v2233 = vld [vmem:[%s11 + $0x38] sm:$0xf]
  %v2234 = vld [vmem:[%s11 + $0x3c] sm:$0xff]
  %v2235 = vld [vmem:[%s11 + $0x44] sm:$0xf]
  %v2236 = vld [vmem:[%s11 + $0x48] sm:$0xff]
  %v2237 = vld [vmem:[%s11 + $0x50] sm:$0xf]
  %v2238 = vld [vmem:[%s11 + $0x54] sm:$0xff]
  %v2239 = vld [vmem:[%s11 + $0x5c] sm:$0xf]
  %v2240 = vld [vmem:[%s11 + $0x60] sm:$0xff]
  %v2241 = vld [vmem:[%s11 + $0x68] sm:$0xf]
  %v2242 = vld [vmem:[%s11 + $0x6c] sm:$0xff]
  %v2243 = vld [vmem:[%s11 + $0x74] sm:$0xf]
  %v2244 = vld [vmem:[%s11 + $0x78] sm:$0xff]
  %v2245 = vld [vmem:[%s11 + $0x80] sm:$0xf]
  %v2246 = vld [vmem:[%s11 + $0x84] sm:$0xff]
  %v2247 = vld [vmem:[%s11 + $0x8c] sm:$0xf]
  %v2248 = vld [vmem:[%s11 + $0x90] sm:$0xff]
  %v2249 = vld [vmem:[%s11 + $0x98] sm:$0xf]
  %v2250 = vld [vmem:[%s11 + $0x9c] sm:$0xff]
  %v2251 = vld [vmem:[%s11 + $0xa4] sm:$0xf]
  %v2252 = vld [vmem:[%s11 + $0xa8] sm:$0xff]
  %v2253 = vld [vmem:[%s11 + $0xb0] sm:$0xf]
  %v2254 = vld [vmem:[%s11 + $0xb4] sm:$0xff]
  %v2255 = vld [vmem:[%s11 + $0xbc] sm:$0xf]
  %v2256 = vld [vmem:[%s11 + $0xc0] sm:$0xff]
  %v2257 = vld [vmem:[%s11 + $0xc8] sm:$0xf]
  %v2258 = vld [vmem:[%s11 + $0xcc] sm:$0xff]
  %v2259 = vld [vmem:[%s11 + $0xd4] sm:$0xf]
  %v2260 = vld [vmem:[%s11 + $0xd8] sm:$0xff]
  %v2261 = vld [vmem:[%s11 + $0xe0] sm:$0xf]
  %v2262 = vld [vmem:[%s11 + $0xe4] sm:$0xff]
  %v2263 = vld [vmem:[%s11 + $0xec] sm:$0xf]
  %v2264 = vld [vmem:[%s11 + $0xf0] sm:$0xff]
  %v2265 = vld [vmem:[%s11 + $0xf8] sm:$0xf]
  %v2266 = vld [vmem:[%s11 + $0xfc] sm:$0xff]
  %v2267 = vld [vmem:[%s11 + $0x104] sm:$0xf]
  %v2268 = vld [vmem:[%s11 + $0x108] sm:$0xff]
  %v2269 = vld [vmem:[%s11 + $0x110] sm:$0xf]
  %v2270 = vld [vmem:[%s11 + $0x114] sm:$0xff]
  %v2271 = vld [vmem:[%s11 + $0x11c] sm:$0xf]
  %v2272 = vld [vmem:[%s11 + $0x120] sm:$0xff]
  %v2273 = vld [vmem:[%s11 + $0x128] sm:$0xf]
  %v2274 = vld [vmem:[%s11 + $0x12c] sm:$0xff]
  %v2275 = vld [vmem:[%s11 + $0x134] sm:$0xf]
  %v2276 = vld [vmem:[%s11 + $0x138] sm:$0xff]
  %v2277 = vld [vmem:[%s11 + $0x140] sm:$0xf]
  %v2278 = vld [vmem:[%s11 + $0x144] sm:$0xff]
  %v2279 = vld [vmem:[%s11 + $0x14c] sm:$0xf]
  %v2280 = vld [vmem:[%s11 + $0x150] sm:$0xff]
  %v2281 = vld [vmem:[%s11 + $0x158] sm:$0xf]
  %v2282 = vld [vmem:[%s11 + $0x15c] sm:$0xff]
  %v2283 = vld [vmem:[%s11 + $0x164] sm:$0xf]
  %v2284 = vld [vmem:[%s11 + $0x168] sm:$0xff]
  %v2285 = vld [vmem:[%s11 + $0x170] sm:$0xf]
  %v2286 = vld [vmem:[%s11 + $0x174] sm:$0xff]
  %v2287 = vld [vmem:[%s11 + $0x17c] sm:$0xf]
  %v2352 = vunpack.c.l.b16 %v2224
  %v2353 = vunpack.c.h.b16 %v2224
  %v2354 = vunpack.c.l.b16 %v2225
  %v2355 = vunpack.c.l.b16 %v2226
  %v2356 = vunpack.c.h.b16 %v2226
  %v2357 = vunpack.c.l.b16 %v2227
  %v2358 = vunpack.c.l.b16 %v2228
  %v2359 = vunpack.c.h.b16 %v2228
  %v2360 = vunpack.c.l.b16 %v2229
  %v2361 = vunpack.c.l.b16 %v2230
  %v2362 = vunpack.c.h.b16 %v2230
  %v2363 = vunpack.c.l.b16 %v2231
  %v2364 = vunpack.c.l.b16 %v2232
  %v2365 = vunpack.c.h.b16 %v2232
  %v2366 = vunpack.c.l.b16 %v2233
  %v2367 = vunpack.c.l.b16 %v2234
  %v2368 = vunpack.c.h.b16 %v2234
  %v2369 = vunpack.c.l.b16 %v2235
  %v2370 = vunpack.c.l.b16 %v2236
  %v2371 = vunpack.c.h.b16 %v2236
  %v2372 = vunpack.c.l.b16 %v2237
  %v2373 = vunpack.c.l.b16 %v2238
  %v2374 = vunpack.c.h.b16 %v2238
  %v2375 = vunpack.c.l.b16 %v2239
  %v2376 = vunpack.c.l.b16 %v2240
  %v2377 = vunpack.c.h.b16 %v2240
  %v2378 = vunpack.c.l.b16 %v2241
  %v2379 = vunpack.c.l.b16 %v2242
  %v2380 = vunpack.c.h.b16 %v2242
  %v2381 = vunpack.c.l.b16 %v2243
  %v2382 = vunpack.c.l.b16 %v2244
  %v2383 = vunpack.c.h.b16 %v2244
  %v2384 = vunpack.c.l.b16 %v2245
  %v2385 = vunpack.c.l.b16 %v2246
  %v2386 = vunpack.c.h.b16 %v2246
  %v2387 = vunpack.c.l.b16 %v2247
  %v2388 = vunpack.c.l.b16 %v2248
  %v2389 = vunpack.c.h.b16 %v2248
  %v2390 = vunpack.c.l.b16 %v2249
  %v2391 = vunpack.c.l.b16 %v2250
  %v2392 = vunpack.c.h.b16 %v2250
  %v2393 = vunpack.c.l.b16 %v2251
  %v2394 = vunpack.c.l.b16 %v2252
  %v2395 = vunpack.c.h.b16 %v2252
  %v2396 = vunpack.c.l.b16 %v2253
  %v2397 = vunpack.c.l.b16 %v2254
  %v2398 = vunpack.c.h.b16 %v2254
  %v2399 = vunpack.c.l.b16 %v2255
  %v2400 = vunpack.c.l.b16 %v2256
  %v2401 = vunpack.c.h.b16 %v2256
  %v2402 = vunpack.c.l.b16 %v2257
  %v2403 = vunpack.c.l.b16 %v2258
  %v2404 = vunpack.c.h.b16 %v2258
  %v2405 = vunpack.c.l.b16 %v2259
  %v2406 = vunpack.c.l.b16 %v2260
  %v2407 = vunpack.c.h.b16 %v2260
  %v2408 = vunpack.c.l.b16 %v2261
  %v2409 = vunpack.c.l.b16 %v2262
  %v2410 = vunpack.c.h.b16 %v2262
  %v2411 = vunpack.c.l.b16 %v2263
  %v2412 = vunpack.c.l.b16 %v2264
  %v2413 = vunpack.c.h.b16 %v2264
  %v2414 = vunpack.c.l.b16 %v2265
  %v2415 = vunpack.c.l.b16 %v2266
  %v2416 = vunpack.c.h.b16 %v2266
  %v2417 = vunpack.c.l.b16 %v2267
  %v2418 = vunpack.c.l.b16 %v2268
  %v2419 = vunpack.c.h.b16 %v2268
  %v2420 = vunpack.c.l.b16 %v2269
  %v2421 = vunpack.c.l.b16 %v2270
  %v2422 = vunpack.c.h.b16 %v2270
  %v2423 = vunpack.c.l.b16 %v2271
  %v2424 = vunpack.c.l.b16 %v2272
  %v2425 = vunpack.c.h.b16 %v2272
  %v2426 = vunpack.c.l.b16 %v2273
  %v2427 = vunpack.c.l.b16 %v2274
  %v2428 = vunpack.c.h.b16 %v2274
  %v2429 = vunpack.c.l.b16 %v2275
  %v2430 = vunpack.c.l.b16 %v2276
  %v2431 = vunpack.c.h.b16 %v2276
  %v2432 = vunpack.c.l.b16 %v2277
  %v2433 = vunpack.c.l.b16 %v2278
  %v2434 = vunpack.c.h.b16 %v2278
  %v2435 = vunpack.c.l.b16 %v2279
  %v2436 = vunpack.c.l.b16 %v2280
  %v2437 = vunpack.c.h.b16 %v2280
  %v2438 = vunpack.c.l.b16 %v2281
  %v2439 = vunpack.c.l.b16 %v2282
  %v2440 = vunpack.c.h.b16 %v2282
  %v2441 = vunpack.c.l.b16 %v2283
  %v2442 = vunpack.c.l.b16 %v2284
  %v2443 = vunpack.c.h.b16 %v2284
  %v2444 = vunpack.c.l.b16 %v2285
  %v2445 = vunpack.c.l.b16 %v2286
  %v2446 = vunpack.c.h.b16 %v2286
  %v2447 = vunpack.c.l.b16 %v2287
  %v2448 = vpack.c.b16 %v2355, %v2352
  %v2449 = vpack.c.b16 %v2356, %v2353
  %v2450 = vpack.c.b16 %v2357, %v2354
  %v2451 = vpack.c.b16 %v2361, %v2358
  %v2452 = vpack.c.b16 %v2362, %v2359
  %v2453 = vpack.c.b16 %v2363, %v2360
  %v2454 = vpack.c.b16 %v2367, %v2364
  %v2455 = vpack.c.b16 %v2368, %v2365
  %v2456 = vpack.c.b16 %v2369, %v2366
  %v2457 = vpack.c.b16 %v2373, %v2370
  %v2458 = vpack.c.b16 %v2374, %v2371
  %v2459 = vpack.c.b16 %v2375, %v2372
  %v2460 = vpack.c.b16 %v2379, %v2376
  %v2461 = vpack.c.b16 %v2380, %v2377
  %v2462 = vpack.c.b16 %v2381, %v2378
  %v2463 = vpack.c.b16 %v2385, %v2382
  %v2464 = vpack.c.b16 %v2386, %v2383
  %v2465 = vpack.c.b16 %v2387, %v2384
  %v2466 = vpack.c.b16 %v2391, %v2388
  %v2467 = vpack.c.b16 %v2392, %v2389
  %v2468 = vpack.c.b16 %v2393, %v2390
  %v2469 = vpack.c.b16 %v2397, %v2394
  %v2470 = vpack.c.b16 %v2398, %v2395
  %v2471 = vpack.c.b16 %v2399, %v2396
  %v2472 = vpack.c.b16 %v2403, %v2400
  %v2473 = vpack.c.b16 %v2404, %v2401
  %v2474 = vpack.c.b16 %v2405, %v2402
  %v2475 = vpack.c.b16 %v2409, %v2406
  %v2476 = vpack.c.b16 %v2410, %v2407
  %v2477 = vpack.c.b16 %v2411, %v2408
  %v2478 = vpack.c.b16 %v2415, %v2412
  %v2479 = vpack.c.b16 %v2416, %v2413
  %v2480 = vpack.c.b16 %v2417, %v2414
  %v2481 = vpack.c.b16 %v2421, %v2418
  %v2482 = vpack.c.b16 %v2422, %v2419
  %v2483 = vpack.c.b16 %v2423, %v2420
  %v2484 = vpack.c.b16 %v2427, %v2424
  %v2485 = vpack.c.b16 %v2428, %v2425
  %v2486 = vpack.c.b16 %v2429, %v2426
  %v2487 = vpack.c.b16 %v2433, %v2430
  %v2488 = vpack.c.b16 %v2434, %v2431
  %v2489 = vpack.c.b16 %v2435, %v2432
  %v2490 = vpack.c.b16 %v2439, %v2436
  %v2491 = vpack.c.b16 %v2440, %v2437
  %v2492 = vpack.c.b16 %v2441, %v2438
  %v2493 = vpack.c.b16 %v2445, %v2442
  %v2494 = vpack.c.b16 %v2446, %v2443
  %v2495 = vpack.c.b16 %v2447, %v2444
  %2544 = vmatprep.subr.bf16.mxu0 %v2449
  %2545 = vmatpush1.bf16.msra.mxu0 %v2448
  %2546 = vmatprep.subr.bf16.mxu0 %v2452
  %2547 = vmatpush1.bf16.msra.mxu0 %v2451
  %2548 = vmatprep.subr.bf16.mxu0 %v2455
  %2549 = vmatpush1.bf16.msra.mxu0 %v2454
  %2550 = vmatprep.subr.bf16.mxu0 %v2458
  %2551 = vmatpush1.bf16.msra.mxu0 %v2457
  %2552 = vmatprep.subr.bf16.mxu0 %v2461
  %2553 = vmatpush1.bf16.msra.mxu0 %v2460
  %2554 = vmatprep.subr.bf16.mxu0 %v2464
  %2555 = vmatpush1.bf16.msra.mxu0 %v2463
  %2556 = vmatprep.subr.bf16.mxu0 %v2467
  %2557 = vmatpush1.bf16.msra.mxu0 %v2466
  %2558 = vmatprep.subr.bf16.mxu0 %v2470
  %2559 = vmatpush1.bf16.msra.mxu0 %v2469
  %2560 = vmatprep.subr.bf16.mxu0 %v2473
  %2561 = vmatpush1.bf16.msra.mxu0 %v2472
  %2562 = vmatprep.subr.bf16.mxu0 %v2476
  %2563 = vmatpush1.bf16.msra.mxu0 %v2475
  %2564 = vmatprep.subr.bf16.mxu0 %v2479
  %2565 = vmatpush1.bf16.msra.mxu0 %v2478
  %2566 = vmatprep.subr.bf16.mxu0 %v2482
  %2567 = vmatpush1.bf16.msra.mxu0 %v2481
  %2568 = vmatprep.subr.bf16.mxu0 %v2485
  %2569 = vmatpush1.bf16.msra.mxu0 %v2484
  %2570 = vmatprep.subr.bf16.mxu0 %v2488
  %2571 = vmatpush1.bf16.msra.mxu0 %v2487
  %2572 = vmatprep.subr.bf16.mxu0 %v2491
  %2573 = vmatpush1.bf16.msra.mxu0 %v2490
  %2574 = vmatprep.subr.bf16.mxu0 %v2494
  %2575 = vmatpush1.bf16.msra.mxu0 %v2493
  %2576 = vmatprep.mubr.bf16.mxu0 %v2223
  %2577 = vmatmul.mubr.bf16.gmra.mrb[0].mxu0 %v2222
  %v2578 = vpop.f32.mrb[0].mxu0
  %v2579 = vadd.f32 0.0, %v2578
  %v2580 = vpop.f32.mrb[0].mxu0
  %v2581 = vadd.f32 0.0, %v2580
  %v2582 = vpop.f32.mrb[0].mxu0
  %v2583 = vpop.f32.mrb[0].mxu0
  %2584 = vdwg.mxu0
  %2585 = vmatprep.subr.bf16.mxu0 0
  %2586 = vmatpush1.bf16.msra.mxu0 %v2450
  %2587 = vmatprep.subr.bf16.mxu0 0
  %2588 = vmatpush1.bf16.msra.mxu0 %v2453
  %2589 = vmatprep.subr.bf16.mxu0 0
  %2590 = vmatpush1.bf16.msra.mxu0 %v2456
  %2591 = vmatprep.subr.bf16.mxu0 0
  %2592 = vmatpush1.bf16.msra.mxu0 %v2459
  %2593 = vmatprep.subr.bf16.mxu0 0
  %2594 = vmatpush1.bf16.msra.mxu0 %v2462
  %2595 = vmatprep.subr.bf16.mxu0 0
  %2596 = vmatpush1.bf16.msra.mxu0 %v2465
  %2597 = vmatprep.subr.bf16.mxu0 0
  %2598 = vmatpush1.bf16.msra.mxu0 %v2468
  %2599 = vmatprep.subr.bf16.mxu0 0
  %2600 = vmatpush1.bf16.msra.mxu0 %v2471
  %2601 = vmatprep.subr.bf16.mxu0 0
  %2602 = vmatpush1.bf16.msra.mxu0 %v2474
  %2603 = vmatprep.subr.bf16.mxu0 0
  %2604 = vmatpush1.bf16.msra.mxu0 %v2477
  %2605 = vmatprep.subr.bf16.mxu0 0
  %2606 = vmatpush1.bf16.msra.mxu0 %v2480
  %2607 = vmatprep.subr.bf16.mxu0 0
  %2608 = vmatpush1.bf16.msra.mxu0 %v2483
  %2609 = vmatprep.subr.bf16.mxu0 0
  %2610 = vmatpush1.bf16.msra.mxu0 %v2486
  %2611 = vmatprep.subr.bf16.mxu0 0
  %2612 = vmatpush1.bf16.msra.mxu0 %v2489
  %2613 = vmatprep.subr.bf16.mxu0 0
  %2614 = vmatpush1.bf16.msra.mxu0 %v2492
  %2615 = vmatprep.subr.bf16.mxu0 0
  %2616 = vmatpush1.bf16.msra.mxu0 %v2495
  %2617 = vmatprep.mubr.bf16.mxu0 %v2223
  %2618 = vmatmul.mubr.bf16.gmra.mrb[0].mxu0 %v2222
  %v2619 = vpop.f32.mrb[0].mxu0
  %v2620 = vadd.f32 0.0, %v2619
  %v2621 = vpop.f32.mrb[0].mxu0
  %v2622 = vpop.f32.mrb[0].mxu0
  %v2623 = vpop.f32.mrb[0].mxu0
  %2624 = vdwg.mxu0
  %v2625 = vld [vmem:[%s12] sm:$0xff]
  %v2626 = vld [vmem:[%s12 + $0x8] sm:$0xff]
  %v2627 = vld [vmem:[%s12 + $0x10] sm:$0xff]
  %v2628 = vld [vmem:[%s12 + $0x18] sm:$0xff]
  %v2629 = vld [vmem:[%s12 + $0x20] sm:$0xff]
  %v2630 = vld [vmem:[%s12 + $0x28] sm:$0xff]
  %v2631 = vld [vmem:[%s12 + $0x30] sm:$0xff]
  %v2632 = vld [vmem:[%s12 + $0x38] sm:$0xff]
  %v2633 = vld [vmem:[%s12 + $0x40] sm:$0xff]
  %v2634 = vld [vmem:[%s12 + $0x48] sm:$0xff]
  %v2635 = vld [vmem:[%s12 + $0x50] sm:$0xff]
  %v2636 = vld [vmem:[%s12 + $0x58] sm:$0xff]
  %v2637 = vld [vmem:[%s12 + $0x60] sm:$0xff]
  %v2638 = vld [vmem:[%s12 + $0x68] sm:$0xff]
  %v2639 = vld [vmem:[%s12 + $0x70] sm:$0xff]
  %v2640 = vld [vmem:[%s12 + $0x78] sm:$0xff]
  %v2641 = vld [vmem:[%s12 + $0x80] sm:$0xff]
  %v2642 = vld [vmem:[%s12 + $0x88] sm:$0xff]
  %v2643 = vld [vmem:[%s12 + $0x90] sm:$0xff]
  %v2644 = vld [vmem:[%s12 + $0x98] sm:$0xff]
  %v2645 = vld [vmem:[%s12 + $0xa0] sm:$0xff]
  %v2646 = vld [vmem:[%s12 + $0xa8] sm:$0xff]
  %v2647 = vld [vmem:[%s12 + $0xb0] sm:$0xff]
  %v2648 = vld [vmem:[%s12 + $0xb8] sm:$0xff]
  %v2649 = vld [vmem:[%s12 + $0xc0] sm:$0xff]
  %v2650 = vld [vmem:[%s12 + $0xc8] sm:$0xff]
  %v2651 = vld [vmem:[%s12 + $0xd0] sm:$0xff]
  %v2652 = vld [vmem:[%s12 + $0xd8] sm:$0xff]
  %v2653 = vld [vmem:[%s12 + $0xe0] sm:$0xff]
  %v2654 = vld [vmem:[%s12 + $0xe8] sm:$0xff]
  %v2655 = vld [vmem:[%s12 + $0xf0] sm:$0xff]
  %v2656 = vld [vmem:[%s12 + $0xf8] sm:$0xff]
  %v2657 = vld [vmem:[%s12 + $0x100] sm:$0xff]
  %v2658 = vld [vmem:[%s12 + $0x108] sm:$0xff]
  %v2659 = vld [vmem:[%s12 + $0x110] sm:$0xff]
  %v2660 = vld [vmem:[%s12 + $0x118] sm:$0xff]
  %v2661 = vld [vmem:[%s13] sm:$0xff]
  %v2662 = vld [vmem:[%s13 + $0x8] sm:$0xff]
  %v2663 = vld [vmem:[%s13 + $0x10] sm:$0xff]
  %v2664 = vld [vmem:[%s13 + $0x18] sm:$0xff]
  %v2665 = vld [vmem:[%s13 + $0x20] sm:$0xff]
  %v2666 = vld [vmem:[%s13 + $0x28] sm:$0xff]
  %v2667 = vld [vmem:[%s13 + $0x30] sm:$0xff]
  %v2668 = vld [vmem:[%s13 + $0x38] sm:$0xff]
  %v2669 = vld [vmem:[%s13 + $0x40] sm:$0xff]
  %v2670 = vld [vmem:[%s13 + $0x48] sm:$0xff]
  %v2671 = vld [vmem:[%s13 + $0x50] sm:$0xff]
  %v2672 = vld [vmem:[%s13 + $0x58] sm:$0xff]
  %v2673 = vld [vmem:[%s14] sm:$0x1]
  %v2674 = vld [vmem:[%s15] sm:$0x7]
  %v2675 = vsel %vm649, %v2579, 0.0
  %v2676 = vrot.slane %v2675, 4
  %v2677 = vadd.f32 %v2675, %v2676
  %v2678 = vrot.slane %v2677, 2
  %v2679 = vadd.f32 %v2677, %v2678
  %v2680 = vrot.slane %v2679, 1
  %v2681 = vadd.f32 %v2679, %v2680
  %v2682 = vsel %vm649, %v2581, 0.0
  %v2683 = vrot.slane %v2682, 4
  %v2684 = vadd.f32 %v2682, %v2683
  %v2685 = vrot.slane %v2684, 2
  %v2686 = vadd.f32 %v2684, %v2685
  %v2687 = vrot.slane %v2686, 1
  %v2688 = vadd.f32 %v2686, %v2687
  %vm2689 = vcmask 254976
  %v2690 = vsel %vm2689, %v2620, 0.0
  %v2691 = vrot.slane %v2690, 4
  %v2692 = vadd.f32 %v2690, %v2691
  %v2693 = vrot.slane %v2692, 2
  %v2694 = vadd.f32 %v2692, %v2693
  %v2695 = vrot.slane %v2694, 1
  %v2696 = vadd.f32 %v2694, %v2695
  %vm2697 = vcmask 261120
  %v2699 = vsel %vm2697, %v2696, 0
  %2701 = vmatprep.subr.mxu0 0.0
  %2702 = vmatpush1.msra.mxu0 %v2625
  %2703 = vmatprep.subr.mxu0 0.0
  %2704 = vmatpush1.msra.mxu0 %v2626
  %2705 = vmatprep.subr.mxu0 0.0
  %2706 = vmatpush1.msra.mxu0 %v2627
  %2707 = vmatprep.subr.mxu0 0.0
  %2708 = vmatpush1.msra.mxu0 %v2628
  %2709 = vmatprep.subr.mxu0 0.0
  %2710 = vmatpush1.msra.mxu0 %v2629
  %2711 = vmatprep.subr.mxu0 0.0
  %2712 = vmatpush1.msra.mxu0 %v2630
  %2713 = vmatprep.subr.mxu0 0.0
  %2714 = vmatpush1.msra.mxu0 %v2631
  %2715 = vmatprep.subr.mxu0 0.0
  %2716 = vmatpush1.msra.mxu0 %v2632
  %2717 = vmatprep.subr.mxu0 0.0
  %2718 = vmatpush1.msra.mxu0 %v2633
  %2719 = vmatprep.subr.mxu0 0.0
  %2720 = vmatpush1.msra.mxu0 %v2634
  %2721 = vmatprep.subr.mxu0 0.0
  %2722 = vmatpush1.msra.mxu0 %v2635
  %2723 = vmatprep.subr.mxu0 0.0
  %2724 = vmatpush1.msra.mxu0 %v2636
  %2725 = vmatprep.subr.mxu0 0.0
  %2726 = vmatpush1.msra.mxu0 %v2637
  %2727 = vmatprep.subr.mxu0 0.0
  %2728 = vmatpush1.msra.mxu0 %v2638
  %2729 = vmatprep.subr.mxu0 0.0
  %2730 = vmatpush1.msra.mxu0 %v2639
  %2731 = vmatprep.subr.mxu0 0.0
  %2732 = vmatpush1.msra.mxu0 %v2640
  %2733 = vmatprep.subr.mxu0 0.0
  %2734 = vmatpush1.msra.mxu0 %v2641
  %2735 = vmatprep.subr.mxu0 0.0
  %2736 = vmatpush1.msra.mxu0 %v2642
  %2737 = vmatprep.subr.mxu0 0.0
  %2738 = vmatpush1.msra.mxu0 %v2643
  %2739 = vmatprep.subr.mxu0 0.0
  %2740 = vmatpush1.msra.mxu0 %v2644
  %2741 = vmatprep.subr.mxu0 0.0
  %2742 = vmatpush1.msra.mxu0 %v2645
  %2743 = vmatprep.subr.mxu0 0.0
  %2744 = vmatpush1.msra.mxu0 %v2646
  %2745 = vmatprep.subr.mxu0 0.0
  %2746 = vmatpush1.msra.mxu0 %v2647
  %2747 = vmatprep.subr.mxu0 0.0
  %2748 = vmatpush1.msra.mxu0 %v2648
  %2749 = vmatprep.subr.mxu0 0.0
  %2750 = vmatpush1.msra.mxu0 %v2649
  %2751 = vmatprep.subr.mxu0 0.0
  %2752 = vmatpush1.msra.mxu0 %v2650
  %2753 = vmatprep.subr.mxu0 0.0
  %2754 = vmatpush1.msra.mxu0 %v2651
  %2755 = vmatprep.subr.mxu0 0.0
  %2756 = vmatpush1.msra.mxu0 %v2652
  %2757 = vmatprep.subr.mxu0 0.0
  %2758 = vmatpush1.msra.mxu0 %v2653
  %2759 = vmatprep.subr.mxu0 0.0
  %2760 = vmatpush1.msra.mxu0 %v2654
  %2761 = vmatprep.subr.mxu0 0.0
  %2762 = vmatpush1.msra.mxu0 %v2655
  %2763 = vmatprep.subr.mxu0 0.0
  %2764 = vmatpush1.msra.mxu0 %v2656
  %2765 = vmatprep.mubr.f32.mxu0 %v2688
  %2766 = vmatmul.mubr.f32.gmra.mrb[0].mxu0 %v2681
  %v2767 = vpop.f32.mrb[0].mxu0
  %v2768 = vadd.f32 0.0, %v2767
  %v2769 = vpop.f32.mrb[0].mxu0
  %2770 = vdwg.mxu0
  %2771 = vmatprep.subr.mxu0 0.0
  %2772 = vmatpush1.msra.mxu0 %v2657
  %2773 = vmatprep.subr.mxu0 0.0
  %2774 = vmatpush1.msra.mxu0 %v2658
  %2775 = vmatprep.subr.mxu0 0.0
  %2776 = vmatpush1.msra.mxu0 %v2659
  %2777 = vmatprep.subr.mxu0 0.0
  %2778 = vmatpush1.msra.mxu0 %v2660
  %2779 = vmatprep.subr.mxu0 0.0
  %2780 = vmatpush1.msra.mxu0 0.0
  %2781 = vmatprep.subr.mxu0 0.0
  %2782 = vmatpush1.msra.mxu0 0.0
  %2783 = vmatprep.subr.mxu0 0.0
  %2784 = vmatpush1.msra.mxu0 0.0
  %2785 = vmatprep.subr.mxu0 0.0
  %2786 = vmatpush1.msra.mxu0 0.0
  %2787 = vmatprep.subr.mxu0 0.0
  %2788 = vmatpush1.msra.mxu0 0.0
  %2789 = vmatprep.subr.mxu0 0.0
  %2790 = vmatpush1.msra.mxu0 0.0
  %2791 = vmatprep.subr.mxu0 0.0
  %2792 = vmatpush1.msra.mxu0 0.0
  %2793 = vmatprep.subr.mxu0 0.0
  %2794 = vmatpush1.msra.mxu0 0.0
  %2795 = vmatprep.subr.mxu0 0.0
  %2796 = vmatpush1.msra.mxu0 0.0
  %2797 = vmatprep.subr.mxu0 0.0
  %2798 = vmatpush1.msra.mxu0 0.0
  %2799 = vmatprep.subr.mxu0 0.0
  %2800 = vmatpush1.msra.mxu0 0.0
  %2801 = vmatprep.subr.mxu0 0.0
  %2802 = vmatpush1.msra.mxu0 0.0
  %2803 = vmatprep.subr.mxu0 0.0
  %2804 = vmatpush1.msra.mxu0 0.0
  %2805 = vmatprep.subr.mxu0 0.0
  %2806 = vmatpush1.msra.mxu0 0.0
  %2807 = vmatprep.subr.mxu0 0.0
  %2808 = vmatpush1.msra.mxu0 0.0
  %2809 = vmatprep.subr.mxu0 0.0
  %2810 = vmatpush1.msra.mxu0 0.0
  %2811 = vmatprep.subr.mxu0 0.0
  %2812 = vmatpush1.msra.mxu0 0.0
  %2813 = vmatprep.subr.mxu0 0.0
  %2814 = vmatpush1.msra.mxu0 0.0
  %2815 = vmatprep.subr.mxu0 0.0
  %2816 = vmatpush1.msra.mxu0 0.0
  %2817 = vmatprep.subr.mxu0 0.0
  %2818 = vmatpush1.msra.mxu0 0.0
  %2819 = vmatprep.subr.mxu0 0.0
  %2820 = vmatpush1.msra.mxu0 0.0
  %2821 = vmatprep.subr.mxu0 0.0
  %2822 = vmatpush1.msra.mxu0 0.0
  %2823 = vmatprep.subr.mxu0 0.0
  %2824 = vmatpush1.msra.mxu0 0.0
  %2825 = vmatprep.subr.mxu0 0.0
  %2826 = vmatpush1.msra.mxu0 0.0
  %2827 = vmatprep.subr.mxu0 0.0
  %2828 = vmatpush1.msra.mxu0 0.0
  %2829 = vmatprep.subr.mxu0 0.0
  %2830 = vmatpush1.msra.mxu0 0.0
  %2831 = vmatprep.subr.mxu0 0.0
  %2832 = vmatpush1.msra.mxu0 0.0
  %2833 = vmatprep.subr.mxu0 0.0
  %2834 = vmatpush1.msra.mxu0 0.0
  %2835 = vmatprep.mubr.f32.mxu0 0.0
  %2836 = vmatmul.mubr.f32.gmra.mrb[0].mxu0 %v2699
  %v2837 = vpop.f32.mrb[0].mxu0
  %v2838 = vadd.f32 %v2768, %v2837
  %v2839 = vpop.f32.mrb[0].mxu0
  %2840 = vdwg.mxu0
  %v2841 = vmul.f32 %v2838, 0.055555556
  %v2843 = vsel %vm2697, %v2841, 0
  %2845 = vmatprep.subr.mxu0 %v2662
  %2846 = vmatpush1.msra.mxu0 %v2661
  %2847 = vmatprep.subr.mxu0 %v2665
  %2848 = vmatpush1.msra.mxu0 %v2664
  %2849 = vmatprep.subr.mxu0 %v2668
  %2850 = vmatpush1.msra.mxu0 %v2667
  %2851 = vmatprep.subr.mxu0 %v2671
  %2852 = vmatpush1.msra.mxu0 %v2670
  %2853 = vmatprep.subr.mxu0 0.0
  %2854 = vmatpush1.msra.mxu0 0.0
  %2855 = vmatprep.subr.mxu0 0.0
  %2856 = vmatpush1.msra.mxu0 0.0
  %2857 = vmatprep.subr.mxu0 0.0
  %2858 = vmatpush1.msra.mxu0 0.0
  %2859 = vmatprep.subr.mxu0 0.0
  %2860 = vmatpush1.msra.mxu0 0.0
  %2861 = vmatprep.subr.mxu0 0.0
  %2862 = vmatpush1.msra.mxu0 0.0
  %2863 = vmatprep.subr.mxu0 0.0
  %2864 = vmatpush1.msra.mxu0 0.0
  %2865 = vmatprep.subr.mxu0 0.0
  %2866 = vmatpush1.msra.mxu0 0.0
  %2867 = vmatprep.subr.mxu0 0.0
  %2868 = vmatpush1.msra.mxu0 0.0
  %2869 = vmatprep.subr.mxu0 0.0
  %2870 = vmatpush1.msra.mxu0 0.0
  %2871 = vmatprep.subr.mxu0 0.0
  %2872 = vmatpush1.msra.mxu0 0.0
  %2873 = vmatprep.subr.mxu0 0.0
  %2874 = vmatpush1.msra.mxu0 0.0
  %2875 = vmatprep.subr.mxu0 0.0
  %2876 = vmatpush1.msra.mxu0 0.0
  %2877 = vmatprep.subr.mxu0 0.0
  %2878 = vmatpush1.msra.mxu0 0.0
  %2879 = vmatprep.subr.mxu0 0.0
  %2880 = vmatpush1.msra.mxu0 0.0
  %2881 = vmatprep.subr.mxu0 0.0
  %2882 = vmatpush1.msra.mxu0 0.0
  %2883 = vmatprep.subr.mxu0 0.0
  %2884 = vmatpush1.msra.mxu0 0.0
  %2885 = vmatprep.subr.mxu0 0.0
  %2886 = vmatpush1.msra.mxu0 0.0
  %2887 = vmatprep.subr.mxu0 0.0
  %2888 = vmatpush1.msra.mxu0 0.0
  %2889 = vmatprep.subr.mxu0 0.0
  %2890 = vmatpush1.msra.mxu0 0.0
  %2891 = vmatprep.subr.mxu0 0.0
  %2892 = vmatpush1.msra.mxu0 0.0
  %2893 = vmatprep.subr.mxu0 0.0
  %2894 = vmatpush1.msra.mxu0 0.0
  %2895 = vmatprep.subr.mxu0 0.0
  %2896 = vmatpush1.msra.mxu0 0.0
  %2897 = vmatprep.subr.mxu0 0.0
  %2898 = vmatpush1.msra.mxu0 0.0
  %2899 = vmatprep.subr.mxu0 0.0
  %2900 = vmatpush1.msra.mxu0 0.0
  %2901 = vmatprep.subr.mxu0 0.0
  %2902 = vmatpush1.msra.mxu0 0.0
  %2903 = vmatprep.subr.mxu0 0.0
  %2904 = vmatpush1.msra.mxu0 0.0
  %2905 = vmatprep.subr.mxu0 0.0
  %2906 = vmatpush1.msra.mxu0 0.0
  %2907 = vmatprep.subr.mxu0 0.0
  %2908 = vmatpush1.msra.mxu0 0.0
  %2909 = vmatprep.mubr.f32.mxu0 0.0
  %2910 = vmatmul.mubr.f32.gmra.mrb[0].mxu0 %v2843
  %v2911 = vpop.f32.mrb[0].mxu0
  %v2912 = vadd.f32 0.0, %v2911
  %v2913 = vpop.f32.mrb[0].mxu0
  %v2914 = vadd.f32 0.0, %v2913
  %2915 = vdwg.mxu0
  %2916 = vmatprep.subr.mxu0 0.0
  %2917 = vmatpush1.msra.mxu0 %v2663
  %2918 = vmatprep.subr.mxu0 0.0
  %2919 = vmatpush1.msra.mxu0 %v2666
  %2920 = vmatprep.subr.mxu0 0.0
  %2921 = vmatpush1.msra.mxu0 %v2669
  %2922 = vmatprep.subr.mxu0 0.0
  %2923 = vmatpush1.msra.mxu0 %v2672
  %2924 = vmatprep.subr.mxu0 0.0
  %2925 = vmatpush1.msra.mxu0 0.0
  %2926 = vmatprep.subr.mxu0 0.0
  %2927 = vmatpush1.msra.mxu0 0.0
  %2928 = vmatprep.subr.mxu0 0.0
  %2929 = vmatpush1.msra.mxu0 0.0
  %2930 = vmatprep.subr.mxu0 0.0
  %2931 = vmatpush1.msra.mxu0 0.0
  %2932 = vmatprep.subr.mxu0 0.0
  %2933 = vmatpush1.msra.mxu0 0.0
  %2934 = vmatprep.subr.mxu0 0.0
  %2935 = vmatpush1.msra.mxu0 0.0
  %2936 = vmatprep.subr.mxu0 0.0
  %2937 = vmatpush1.msra.mxu0 0.0
  %2938 = vmatprep.subr.mxu0 0.0
  %2939 = vmatpush1.msra.mxu0 0.0
  %2940 = vmatprep.subr.mxu0 0.0
  %2941 = vmatpush1.msra.mxu0 0.0
  %2942 = vmatprep.subr.mxu0 0.0
  %2943 = vmatpush1.msra.mxu0 0.0
  %2944 = vmatprep.subr.mxu0 0.0
  %2945 = vmatpush1.msra.mxu0 0.0
  %2946 = vmatprep.subr.mxu0 0.0
  %2947 = vmatpush1.msra.mxu0 0.0
  %2948 = vmatprep.subr.mxu0 0.0
  %2949 = vmatpush1.msra.mxu0 0.0
  %2950 = vmatprep.subr.mxu0 0.0
  %2951 = vmatpush1.msra.mxu0 0.0
  %2952 = vmatprep.subr.mxu0 0.0
  %2953 = vmatpush1.msra.mxu0 0.0
  %2954 = vmatprep.subr.mxu0 0.0
  %2955 = vmatpush1.msra.mxu0 0.0
  %2956 = vmatprep.subr.mxu0 0.0
  %2957 = vmatpush1.msra.mxu0 0.0
  %2958 = vmatprep.subr.mxu0 0.0
  %2959 = vmatpush1.msra.mxu0 0.0
  %2960 = vmatprep.subr.mxu0 0.0
  %2961 = vmatpush1.msra.mxu0 0.0
  %2962 = vmatprep.subr.mxu0 0.0
  %2963 = vmatpush1.msra.mxu0 0.0
  %2964 = vmatprep.subr.mxu0 0.0
  %2965 = vmatpush1.msra.mxu0 0.0
  %2966 = vmatprep.subr.mxu0 0.0
  %2967 = vmatpush1.msra.mxu0 0.0
  %2968 = vmatprep.subr.mxu0 0.0
  %2969 = vmatpush1.msra.mxu0 0.0
  %2970 = vmatprep.subr.mxu0 0.0
  %2971 = vmatpush1.msra.mxu0 0.0
  %2972 = vmatprep.subr.mxu0 0.0
  %2973 = vmatpush1.msra.mxu0 0.0
  %2974 = vmatprep.subr.mxu0 0.0
  %2975 = vmatpush1.msra.mxu0 0.0
  %2976 = vmatprep.subr.mxu0 0.0
  %2977 = vmatpush1.msra.mxu0 0.0
  %2978 = vmatprep.subr.mxu0 0.0
  %2979 = vmatpush1.msra.mxu0 0.0
  %2980 = vmatprep.mubr.f32.mxu0 0.0
  %2981 = vmatmul.mubr.f32.gmra.mrb[0].mxu0 %v2843
  %v2982 = vpop.f32.mrb[0].mxu0
  %v2983 = vadd.f32 0.0, %v2982
  %v2984 = vpop.f32.mrb[0].mxu0
  %2985 = vdwg.mxu0
  %v2986 = vlaneseq
  %v2987 = vshrl.u32 %v2986, 7
  %v2988 = vsub.s32 0, %v2987
  %v2989 = vrot.slane %v2912, %v2988
  %v2990 = vlaneseq
  %v2991 = vshrl.u32 %v2990, 7
  %v2992 = vsub.s32 0, %v2991
  %v2993 = vrot.slane %v2914, %v2992
  %v2994 = vlaneseq
  %v2995 = vshrl.u32 %v2994, 7
  %v2996 = vsub.s32 0, %v2995
  %v2997 = vrot.slane %v2983, %v2996
  %v2998 = vsub.f32 %v2579, %v2989
  %v2999 = vsub.f32 %v2581, %v2993
  %v3000 = vsub.f32 %v2620, %v2997
  %v3001 = vmul.f32 %v2998, %v2998
  %v3002 = vmul.f32 %v2999, %v2999
  %v3003 = vmul.f32 %v3000, %v3000
  %v3004 = vsel %vm649, %v3001, 0.0
  %v3005 = vrot.slane %v3004, 4
  %v3006 = vadd.f32 %v3004, %v3005
  %v3007 = vrot.slane %v3006, 2
  %v3008 = vadd.f32 %v3006, %v3007
  %v3009 = vrot.slane %v3008, 1
  %v3010 = vadd.f32 %v3008, %v3009
  %v3011 = vsel %vm649, %v3002, 0.0
  %v3012 = vrot.slane %v3011, 4
  %v3013 = vadd.f32 %v3011, %v3012
  %v3014 = vrot.slane %v3013, 2
  %v3015 = vadd.f32 %v3013, %v3014
  %v3016 = vrot.slane %v3015, 1
  %v3017 = vadd.f32 %v3015, %v3016
  %v3018 = vsel %vm2689, %v3003, 0.0
  %v3019 = vrot.slane %v3018, 4
  %v3020 = vadd.f32 %v3018, %v3019
  %v3021 = vrot.slane %v3020, 2
  %v3022 = vadd.f32 %v3020, %v3021
  %v3023 = vrot.slane %v3022, 1
  %v3024 = vadd.f32 %v3022, %v3023
  %v3026 = vsel %vm2697, %v3024, 0
  %3028 = vmatprep.subr.mxu0 0.0
  %3029 = vmatpush1.msra.mxu0 %v2625
  %3030 = vmatprep.subr.mxu0 0.0
  %3031 = vmatpush1.msra.mxu0 %v2626
  %3032 = vmatprep.subr.mxu0 0.0
  %3033 = vmatpush1.msra.mxu0 %v2627
  %3034 = vmatprep.subr.mxu0 0.0
  %3035 = vmatpush1.msra.mxu0 %v2628
  %3036 = vmatprep.subr.mxu0 0.0
  %3037 = vmatpush1.msra.mxu0 %v2629
  %3038 = vmatprep.subr.mxu0 0.0
  %3039 = vmatpush1.msra.mxu0 %v2630
  %3040 = vmatprep.subr.mxu0 0.0
  %3041 = vmatpush1.msra.mxu0 %v2631
  %3042 = vmatprep.subr.mxu0 0.0
  %3043 = vmatpush1.msra.mxu0 %v2632
  %3044 = vmatprep.subr.mxu0 0.0
  %3045 = vmatpush1.msra.mxu0 %v2633
  %3046 = vmatprep.subr.mxu0 0.0
  %3047 = vmatpush1.msra.mxu0 %v2634
  %3048 = vmatprep.subr.mxu0 0.0
  %3049 = vmatpush1.msra.mxu0 %v2635
  %3050 = vmatprep.subr.mxu0 0.0
  %3051 = vmatpush1.msra.mxu0 %v2636
  %3052 = vmatprep.subr.mxu0 0.0
  %3053 = vmatpush1.msra.mxu0 %v2637
  %3054 = vmatprep.subr.mxu0 0.0
  %3055 = vmatpush1.msra.mxu0 %v2638
  %3056 = vmatprep.subr.mxu0 0.0
  %3057 = vmatpush1.msra.mxu0 %v2639
  %3058 = vmatprep.subr.mxu0 0.0
  %3059 = vmatpush1.msra.mxu0 %v2640
  %3060 = vmatprep.subr.mxu0 0.0
  %3061 = vmatpush1.msra.mxu0 %v2641
  %3062 = vmatprep.subr.mxu0 0.0
  %3063 = vmatpush1.msra.mxu0 %v2642
  %3064 = vmatprep.subr.mxu0 0.0
  %3065 = vmatpush1.msra.mxu0 %v2643
  %3066 = vmatprep.subr.mxu0 0.0
  %3067 = vmatpush1.msra.mxu0 %v2644
  %3068 = vmatprep.subr.mxu0 0.0
  %3069 = vmatpush1.msra.mxu0 %v2645
  %3070 = vmatprep.subr.mxu0 0.0
  %3071 = vmatpush1.msra.mxu0 %v2646
  %3072 = vmatprep.subr.mxu0 0.0
  %3073 = vmatpush1.msra.mxu0 %v2647
  %3074 = vmatprep.subr.mxu0 0.0
  %3075 = vmatpush1.msra.mxu0 %v2648
  %3076 = vmatprep.subr.mxu0 0.0
  %3077 = vmatpush1.msra.mxu0 %v2649
  %3078 = vmatprep.subr.mxu0 0.0
  %3079 = vmatpush1.msra.mxu0 %v2650
  %3080 = vmatprep.subr.mxu0 0.0
  %3081 = vmatpush1.msra.mxu0 %v2651
  %3082 = vmatprep.subr.mxu0 0.0
  %3083 = vmatpush1.msra.mxu0 %v2652
  %3084 = vmatprep.subr.mxu0 0.0
  %3085 = vmatpush1.msra.mxu0 %v2653
  %3086 = vmatprep.subr.mxu0 0.0
  %3087 = vmatpush1.msra.mxu0 %v2654
  %3088 = vmatprep.subr.mxu0 0.0
  %3089 = vmatpush1.msra.mxu0 %v2655
  %3090 = vmatprep.subr.mxu0 0.0
  %3091 = vmatpush1.msra.mxu0 %v2656
  %3092 = vmatprep.mubr.f32.mxu0 %v3017
  %3093 = vmatmul.mubr.f32.gmra.mrb[0].mxu0 %v3010
  %v3094 = vpop.f32.mrb[0].mxu0
  %v3095 = vadd.f32 0.0, %v3094
  %v3096 = vpop.f32.mrb[0].mxu0
  %3097 = vdwg.mxu0
  %3098 = vmatprep.subr.mxu0 0.0
  %3099 = vmatpush1.msra.mxu0 %v2657
  %3100 = vmatprep.subr.mxu0 0.0
  %3101 = vmatpush1.msra.mxu0 %v2658
  %3102 = vmatprep.subr.mxu0 0.0
  %3103 = vmatpush1.msra.mxu0 %v2659
  %3104 = vmatprep.subr.mxu0 0.0
  %3105 = vmatpush1.msra.mxu0 %v2660
  %3106 = vmatprep.subr.mxu0 0.0
  %3107 = vmatpush1.msra.mxu0 0.0
  %3108 = vmatprep.subr.mxu0 0.0
  %3109 = vmatpush1.msra.mxu0 0.0
  %3110 = vmatprep.subr.mxu0 0.0
  %3111 = vmatpush1.msra.mxu0 0.0
  %3112 = vmatprep.subr.mxu0 0.0
  %3113 = vmatpush1.msra.mxu0 0.0
  %3114 = vmatprep.subr.mxu0 0.0
  %3115 = vmatpush1.msra.mxu0 0.0
  %3116 = vmatprep.subr.mxu0 0.0
  %3117 = vmatpush1.msra.mxu0 0.0
  %3118 = vmatprep.subr.mxu0 0.0
  %3119 = vmatpush1.msra.mxu0 0.0
  %3120 = vmatprep.subr.mxu0 0.0
  %3121 = vmatpush1.msra.mxu0 0.0
  %3122 = vmatprep.subr.mxu0 0.0
  %3123 = vmatpush1.msra.mxu0 0.0
  %3124 = vmatprep.subr.mxu0 0.0
  %3125 = vmatpush1.msra.mxu0 0.0
  %3126 = vmatprep.subr.mxu0 0.0
  %3127 = vmatpush1.msra.mxu0 0.0
  %3128 = vmatprep.subr.mxu0 0.0
  %3129 = vmatpush1.msra.mxu0 0.0
  %3130 = vmatprep.subr.mxu0 0.0
  %3131 = vmatpush1.msra.mxu0 0.0
  %3132 = vmatprep.subr.mxu0 0.0
  %3133 = vmatpush1.msra.mxu0 0.0
  %3134 = vmatprep.subr.mxu0 0.0
  %3135 = vmatpush1.msra.mxu0 0.0
  %3136 = vmatprep.subr.mxu0 0.0
  %3137 = vmatpush1.msra.mxu0 0.0
  %3138 = vmatprep.subr.mxu0 0.0
  %3139 = vmatpush1.msra.mxu0 0.0
  %3140 = vmatprep.subr.mxu0 0.0
  %3141 = vmatpush1.msra.mxu0 0.0
  %3142 = vmatprep.subr.mxu0 0.0
  %3143 = vmatpush1.msra.mxu0 0.0
  %3144 = vmatprep.subr.mxu0 0.0
  %3145 = vmatpush1.msra.mxu0 0.0
  %3146 = vmatprep.subr.mxu0 0.0
  %3147 = vmatpush1.msra.mxu0 0.0
  %3148 = vmatprep.subr.mxu0 0.0
  %3149 = vmatpush1.msra.mxu0 0.0
  %3150 = vmatprep.subr.mxu0 0.0
  %3151 = vmatpush1.msra.mxu0 0.0
  %3152 = vmatprep.subr.mxu0 0.0
  %3153 = vmatpush1.msra.mxu0 0.0
  %3154 = vmatprep.subr.mxu0 0.0
  %3155 = vmatpush1.msra.mxu0 0.0
  %3156 = vmatprep.subr.mxu0 0.0
  %3157 = vmatpush1.msra.mxu0 0.0
  %3158 = vmatprep.subr.mxu0 0.0
  %3159 = vmatpush1.msra.mxu0 0.0
  %3160 = vmatprep.subr.mxu0 0.0
  %3161 = vmatpush1.msra.mxu0 0.0
  %3162 = vmatprep.mubr.f32.mxu0 0.0
  %3163 = vmatmul.mubr.f32.gmra.mrb[0].mxu0 %v3026
  %v3164 = vpop.f32.mrb[0].mxu0
  %v3165 = vadd.f32 %v3095, %v3164
  %v3166 = vpop.f32.mrb[0].mxu0
  %3167 = vdwg.mxu0
  %v3168 = vmul.f32 %v3165, 0.055555556
  %v3169 = vadd.f32 %v3168, 1e-05
  %v3170 = vrsqrt.pop %v3169
  %v3171 = vmul.f32 %v3170, %v2673
  %v3173 = vsel %vm2697, %v3171, 0
  %3175 = vmatprep.subr.mxu0 %v2662
  %3176 = vmatpush1.msra.mxu0 %v2661
  %3177 = vmatprep.subr.mxu0 %v2665
  %3178 = vmatpush1.msra.mxu0 %v2664
  %3179 = vmatprep.subr.mxu0 %v2668
  %3180 = vmatpush1.msra.mxu0 %v2667
  %3181 = vmatprep.subr.mxu0 %v2671
  %3182 = vmatpush1.msra.mxu0 %v2670
  %3183 = vmatprep.subr.mxu0 0.0
  %3184 = vmatpush1.msra.mxu0 0.0
  %3185 = vmatprep.subr.mxu0 0.0
  %3186 = vmatpush1.msra.mxu0 0.0
  %3187 = vmatprep.subr.mxu0 0.0
  %3188 = vmatpush1.msra.mxu0 0.0
  %3189 = vmatprep.subr.mxu0 0.0
  %3190 = vmatpush1.msra.mxu0 0.0
  %3191 = vmatprep.subr.mxu0 0.0
  %3192 = vmatpush1.msra.mxu0 0.0
  %3193 = vmatprep.subr.mxu0 0.0
  %3194 = vmatpush1.msra.mxu0 0.0
  %3195 = vmatprep.subr.mxu0 0.0
  %3196 = vmatpush1.msra.mxu0 0.0
  %3197 = vmatprep.subr.mxu0 0.0
  %3198 = vmatpush1.msra.mxu0 0.0
  %3199 = vmatprep.subr.mxu0 0.0
  %3200 = vmatpush1.msra.mxu0 0.0
  %3201 = vmatprep.subr.mxu0 0.0
  %3202 = vmatpush1.msra.mxu0 0.0
  %3203 = vmatprep.subr.mxu0 0.0
  %3204 = vmatpush1.msra.mxu0 0.0
  %3205 = vmatprep.subr.mxu0 0.0
  %3206 = vmatpush1.msra.mxu0 0.0
  %3207 = vmatprep.subr.mxu0 0.0
  %3208 = vmatpush1.msra.mxu0 0.0
  %3209 = vmatprep.subr.mxu0 0.0
  %3210 = vmatpush1.msra.mxu0 0.0
  %3211 = vmatprep.subr.mxu0 0.0
  %3212 = vmatpush1.msra.mxu0 0.0
  %3213 = vmatprep.subr.mxu0 0.0
  %3214 = vmatpush1.msra.mxu0 0.0
  %3215 = vmatprep.subr.mxu0 0.0
  %3216 = vmatpush1.msra.mxu0 0.0
  %3217 = vmatprep.subr.mxu0 0.0
  %3218 = vmatpush1.msra.mxu0 0.0
  %3219 = vmatprep.subr.mxu0 0.0
  %3220 = vmatpush1.msra.mxu0 0.0
  %3221 = vmatprep.subr.mxu0 0.0
  %3222 = vmatpush1.msra.mxu0 0.0
  %3223 = vmatprep.subr.mxu0 0.0
  %3224 = vmatpush1.msra.mxu0 0.0
  %3225 = vmatprep.subr.mxu0 0.0
  %3226 = vmatpush1.msra.mxu0 0.0
  %3227 = vmatprep.subr.mxu0 0.0
  %3228 = vmatpush1.msra.mxu0 0.0
  %3229 = vmatprep.subr.mxu0 0.0
  %3230 = vmatpush1.msra.mxu0 0.0
  %3231 = vmatprep.subr.mxu0 0.0
  %3232 = vmatpush1.msra.mxu0 0.0
  %3233 = vmatprep.subr.mxu0 0.0
  %3234 = vmatpush1.msra.mxu0 0.0
  %3235 = vmatprep.subr.mxu0 0.0
  %3236 = vmatpush1.msra.mxu0 0.0
  %3237 = vmatprep.subr.mxu0 0.0
  %3238 = vmatpush1.msra.mxu0 0.0
  %3239 = vmatprep.mubr.f32.mxu0 0.0
  %3240 = vmatmul.mubr.f32.gmra.mrb[0].mxu0 %v3173
  %v3241 = vpop.f32.mrb[0].mxu0
  %v3242 = vadd.f32 0.0, %v3241
  %v3243 = vpop.f32.mrb[0].mxu0
  %v3244 = vadd.f32 0.0, %v3243
  %3245 = vdwg.mxu0
  %3246 = vmatprep.subr.mxu0 0.0
  %3247 = vmatpush1.msra.mxu0 %v2663
  %3248 = vmatprep.subr.mxu0 0.0
  %3249 = vmatpush1.msra.mxu0 %v2666
  %3250 = vmatprep.subr.mxu0 0.0
  %3251 = vmatpush1.msra.mxu0 %v2669
  %3252 = vmatprep.subr.mxu0 0.0
  %3253 = vmatpush1.msra.mxu0 %v2672
  %3254 = vmatprep.subr.mxu0 0.0
  %3255 = vmatpush1.msra.mxu0 0.0
  %3256 = vmatprep.subr.mxu0 0.0
  %3257 = vmatpush1.msra.mxu0 0.0
  %3258 = vmatprep.subr.mxu0 0.0
  %3259 = vmatpush1.msra.mxu0 0.0
  %3260 = vmatprep.subr.mxu0 0.0
  %3261 = vmatpush1.msra.mxu0 0.0
  %3262 = vmatprep.subr.mxu0 0.0
  %3263 = vmatpush1.msra.mxu0 0.0
  %3264 = vmatprep.subr.mxu0 0.0
  %3265 = vmatpush1.msra.mxu0 0.0
  %3266 = vmatprep.subr.mxu0 0.0
  %3267 = vmatpush1.msra.mxu0 0.0
  %3268 = vmatprep.subr.mxu0 0.0
  %3269 = vmatpush1.msra.mxu0 0.0
  %3270 = vmatprep.subr.mxu0 0.0
  %3271 = vmatpush1.msra.mxu0 0.0
  %3272 = vmatprep.subr.mxu0 0.0
  %3273 = vmatpush1.msra.mxu0 0.0
  %3274 = vmatprep.subr.mxu0 0.0
  %3275 = vmatpush1.msra.mxu0 0.0
  %3276 = vmatprep.subr.mxu0 0.0
  %3277 = vmatpush1.msra.mxu0 0.0
  %3278 = vmatprep.subr.mxu0 0.0
  %3279 = vmatpush1.msra.mxu0 0.0
  %3280 = vmatprep.subr.mxu0 0.0
  %3281 = vmatpush1.msra.mxu0 0.0
  %3282 = vmatprep.subr.mxu0 0.0
  %3283 = vmatpush1.msra.mxu0 0.0
  %3284 = vmatprep.subr.mxu0 0.0
  %3285 = vmatpush1.msra.mxu0 0.0
  %3286 = vmatprep.subr.mxu0 0.0
  %3287 = vmatpush1.msra.mxu0 0.0
  %3288 = vmatprep.subr.mxu0 0.0
  %3289 = vmatpush1.msra.mxu0 0.0
  %3290 = vmatprep.subr.mxu0 0.0
  %3291 = vmatpush1.msra.mxu0 0.0
  %3292 = vmatprep.subr.mxu0 0.0
  %3293 = vmatpush1.msra.mxu0 0.0
  %3294 = vmatprep.subr.mxu0 0.0
  %3295 = vmatpush1.msra.mxu0 0.0
  %3296 = vmatprep.subr.mxu0 0.0
  %3297 = vmatpush1.msra.mxu0 0.0
  %3298 = vmatprep.subr.mxu0 0.0
  %3299 = vmatpush1.msra.mxu0 0.0
  %3300 = vmatprep.subr.mxu0 0.0
  %3301 = vmatpush1.msra.mxu0 0.0
  %3302 = vmatprep.subr.mxu0 0.0
  %3303 = vmatpush1.msra.mxu0 0.0
  %3304 = vmatprep.subr.mxu0 0.0
  %3305 = vmatpush1.msra.mxu0 0.0
  %3306 = vmatprep.subr.mxu0 0.0
  %3307 = vmatpush1.msra.mxu0 0.0
  %3308 = vmatprep.subr.mxu0 0.0
  %3309 = vmatpush1.msra.mxu0 0.0
  %3310 = vmatprep.mubr.f32.mxu0 0.0
  %3311 = vmatmul.mubr.f32.gmra.mrb[0].mxu0 %v3173
  %v3312 = vpop.f32.mrb[0].mxu0
  %v3313 = vadd.f32 0.0, %v3312
  %v3314 = vpop.f32.mrb[0].mxu0
  %3315 = vdwg.mxu0
  %v3316 = vlaneseq
  %v3317 = vshrl.u32 %v3316, 7
  %v3318 = vsub.s32 0, %v3317
  %v3319 = vrot.slane %v3242, %v3318
  %v3320 = vlaneseq
  %v3321 = vshrl.u32 %v3320, 7
  %v3322 = vsub.s32 0, %v3321
  %v3323 = vrot.slane %v3244, %v3322
  %v3324 = vlaneseq
  %v3325 = vshrl.u32 %v3324, 7
  %v3326 = vsub.s32 0, %v3325
  %v3327 = vrot.slane %v3313, %v3326
  %v3328 = vmul.f32 %v2998, %v3319
  %v3329 = vmul.f32 %v2999, %v3323
  %v3330 = vmul.f32 %v3000, %v3327
  %v3332 = vlaneseq
  %v3333 = vshrl.u32 %v3332, 7
  %v3334 = vsub.s32 0, %v3333
  %v3335 = vrot.slane %v2674, %v3334
  %v3336 = vlaneseq
  %v3337 = vshrl.u32 %v3336, 7
  %v3338 = vsub.s32 1, %v3337
  %v3339 = vrot.slane %v2674, %v3338
  %v3340 = vlaneseq
  %v3341 = vshrl.u32 %v3340, 7
  %v3342 = vsub.s32 2, %v3341
  %v3343 = vrot.slane %v2674, %v3342
  %v3347 = vadd.f32 %v3328, %v3335
  %v3348 = vadd.f32 %v3329, %v3339
  %v3349 = vadd.f32 %v3330, %v3343
  %v3350 = vmax.f32 %v3347, 0.0
  %v3351 = vmax.f32 %v3348, 0.0
  %v3352 = vmax.f32 %v3349, 0.0
  %v3353 = vpack.c.bf16 %v3350, %v3350
  %v3354 = vpack.c.bf16 %v3351, %v3351
  %v3355 = vpack.c.bf16 %v3352, %v3352
  %v3356 = vld [vmem:[%s16] sm:$0xff]
  %v3357 = vld [vmem:[%s16 + $0x8] sm:$0xff]
  %v3358 = vld [vmem:[%s16 + $0x10] sm:$0xff]
  %v3359 = vld [vmem:[%s16 + $0x18] sm:$0xff]
  %v3360 = vld [vmem:[%s16 + $0x20] sm:$0xff]
  %v3361 = vld [vmem:[%s16 + $0x28] sm:$0xff]
  %v3362 = vld [vmem:[%s16 + $0x30] sm:$0xff]
  %v3363 = vld [vmem:[%s16 + $0x38] sm:$0xff]
  %v3364 = vld [vmem:[%s16 + $0x40] sm:$0xff]
  %v3365 = vld [vmem:[%s16 + $0x48] sm:$0xff]
  %v3366 = vld [vmem:[%s16 + $0x50] sm:$0xff]
  %v3367 = vld [vmem:[%s16 + $0x58] sm:$0xff]
  %v3368 = vld [vmem:[%s16 + $0x60] sm:$0xff]
  %v3369 = vld [vmem:[%s16 + $0x68] sm:$0xff]
  %v3370 = vld [vmem:[%s16 + $0x70] sm:$0xff]
  %v3371 = vld [vmem:[%s16 + $0x78] sm:$0xff]
  %v3372 = vld [vmem:[%s16 + $0x80] sm:$0xff]
  %v3373 = vld [vmem:[%s16 + $0x88] sm:$0xff]
  %v3374 = vld [vmem:[%s16 + $0x90] sm:$0xff]
  %v3375 = vld [vmem:[%s16 + $0x98] sm:$0xff]
  %v3376 = vld [vmem:[%s16 + $0xa0] sm:$0xff]
  %v3377 = vld [vmem:[%s16 + $0xa8] sm:$0xff]
  %v3378 = vld [vmem:[%s16 + $0xb0] sm:$0xff]
  %v3379 = vld [vmem:[%s16 + $0xb8] sm:$0xff]
  %v3380 = vld [vmem:[%s16 + $0xc0] sm:$0xff]
  %v3381 = vld [vmem:[%s16 + $0xc8] sm:$0xff]
  %v3382 = vld [vmem:[%s16 + $0xd0] sm:$0xff]
  %v3383 = vld [vmem:[%s16 + $0xd8] sm:$0xff]
  %v3384 = vld [vmem:[%s16 + $0xe0] sm:$0xff]
  %v3385 = vld [vmem:[%s16 + $0xe8] sm:$0xff]
  %v3386 = vld [vmem:[%s16 + $0xf0] sm:$0xff]
  %v3387 = vld [vmem:[%s16 + $0xf8] sm:$0xff]
  %v3388 = vld [vmem:[%s16 + $0x100] sm:$0xff]
  %v3389 = vld [vmem:[%s16 + $0x108] sm:$0xff]
  %v3390 = vld [vmem:[%s16 + $0x110] sm:$0xff]
  %v3391 = vld [vmem:[%s16 + $0x118] sm:$0xff]
  %v3392 = vld [vmem:[%s16 + $0x120] sm:$0xff]
  %v3393 = vld [vmem:[%s16 + $0x128] sm:$0xff]
  %v3394 = vld [vmem:[%s16 + $0x130] sm:$0xff]
  %v3395 = vld [vmem:[%s16 + $0x138] sm:$0xff]
  %v3396 = vld [vmem:[%s16 + $0x140] sm:$0xff]
  %v3397 = vld [vmem:[%s16 + $0x148] sm:$0xff]
  %v3398 = vld [vmem:[%s16 + $0x150] sm:$0xff]
  %v3399 = vld [vmem:[%s16 + $0x158] sm:$0xff]
  %v3400 = vld [vmem:[%s16 + $0x160] sm:$0xff]
  %v3401 = vld [vmem:[%s16 + $0x168] sm:$0xff]
  %v3402 = vld [vmem:[%s16 + $0x170] sm:$0xff]
  %v3403 = vld [vmem:[%s16 + $0x178] sm:$0xff]
  %v3404 = vld [vmem:[%s16 + $0x180] sm:$0xff]
  %v3405 = vld [vmem:[%s16 + $0x188] sm:$0xff]
  %v3406 = vld [vmem:[%s16 + $0x190] sm:$0xff]
  %v3407 = vld [vmem:[%s16 + $0x198] sm:$0xff]
  %v3408 = vld [vmem:[%s16 + $0x1a0] sm:$0xff]
  %v3409 = vld [vmem:[%s16 + $0x1a8] sm:$0xff]
  %v3410 = vld [vmem:[%s16 + $0x1b0] sm:$0xff]
  %v3411 = vld [vmem:[%s16 + $0x1b8] sm:$0xff]
  %v3412 = vld [vmem:[%s16 + $0x1c0] sm:$0xff]
  %v3413 = vld [vmem:[%s16 + $0x1c8] sm:$0xff]
  %v3414 = vld [vmem:[%s16 + $0x1d0] sm:$0xff]
  %v3415 = vld [vmem:[%s16 + $0x1d8] sm:$0xff]
  %v3416 = vld [vmem:[%s16 + $0x1e0] sm:$0xff]
  %v3417 = vld [vmem:[%s16 + $0x1e8] sm:$0xff]
  %v3418 = vld [vmem:[%s16 + $0x1f0] sm:$0xff]
  %v3419 = vld [vmem:[%s16 + $0x1f8] sm:$0xff]
  %v3420 = vld [vmem:[%s16 + $0x200] sm:$0xff]
  %v3421 = vld [vmem:[%s16 + $0x208] sm:$0xff]
  %v3422 = vld [vmem:[%s16 + $0x210] sm:$0xff]
  %v3423 = vld [vmem:[%s16 + $0x218] sm:$0xff]
  %v3424 = vld [vmem:[%s16 + $0x220] sm:$0xff]
  %v3425 = vld [vmem:[%s16 + $0x228] sm:$0xff]
  %v3426 = vld [vmem:[%s16 + $0x230] sm:$0xff]
  %v3427 = vld [vmem:[%s16 + $0x238] sm:$0xff]
  %v3500 = vunpack.c.l.b16 %v3356
  %v3501 = vunpack.c.h.b16 %v3356
  %v3502 = vunpack.c.l.b16 %v3357
  %v3503 = vunpack.c.h.b16 %v3357
  %v3504 = vunpack.c.l.b16 %v3358
  %v3505 = vunpack.c.h.b16 %v3358
  %v3506 = vunpack.c.l.b16 %v3359
  %v3507 = vunpack.c.h.b16 %v3359
  %v3508 = vunpack.c.l.b16 %v3360
  %v3509 = vunpack.c.h.b16 %v3360
  %v3510 = vunpack.c.l.b16 %v3361
  %v3511 = vunpack.c.h.b16 %v3361
  %v3512 = vunpack.c.l.b16 %v3362
  %v3513 = vunpack.c.h.b16 %v3362
  %v3514 = vunpack.c.l.b16 %v3363
  %v3515 = vunpack.c.h.b16 %v3363
  %v3516 = vunpack.c.l.b16 %v3364
  %v3517 = vunpack.c.h.b16 %v3364
  %v3518 = vunpack.c.l.b16 %v3365
  %v3519 = vunpack.c.h.b16 %v3365
  %v3520 = vunpack.c.l.b16 %v3366
  %v3521 = vunpack.c.h.b16 %v3366
  %v3522 = vunpack.c.l.b16 %v3367
  %v3523 = vunpack.c.h.b16 %v3367
  %v3524 = vunpack.c.l.b16 %v3368
  %v3525 = vunpack.c.h.b16 %v3368
  %v3526 = vunpack.c.l.b16 %v3369
  %v3527 = vunpack.c.h.b16 %v3369
  %v3528 = vunpack.c.l.b16 %v3370
  %v3529 = vunpack.c.h.b16 %v3370
  %v3530 = vunpack.c.l.b16 %v3371
  %v3531 = vunpack.c.h.b16 %v3371
  %v3532 = vunpack.c.l.b16 %v3372
  %v3533 = vunpack.c.h.b16 %v3372
  %v3534 = vunpack.c.l.b16 %v3373
  %v3535 = vunpack.c.h.b16 %v3373
  %v3536 = vunpack.c.l.b16 %v3374
  %v3537 = vunpack.c.h.b16 %v3374
  %v3538 = vunpack.c.l.b16 %v3375
  %v3539 = vunpack.c.h.b16 %v3375
  %v3540 = vunpack.c.l.b16 %v3376
  %v3541 = vunpack.c.h.b16 %v3376
  %v3542 = vunpack.c.l.b16 %v3377
  %v3543 = vunpack.c.h.b16 %v3377
  %v3544 = vunpack.c.l.b16 %v3378
  %v3545 = vunpack.c.h.b16 %v3378
  %v3546 = vunpack.c.l.b16 %v3379
  %v3547 = vunpack.c.h.b16 %v3379
  %v3548 = vunpack.c.l.b16 %v3380
  %v3549 = vunpack.c.h.b16 %v3380
  %v3550 = vunpack.c.l.b16 %v3381
  %v3551 = vunpack.c.h.b16 %v3381
  %v3552 = vunpack.c.l.b16 %v3382
  %v3553 = vunpack.c.h.b16 %v3382
  %v3554 = vunpack.c.l.b16 %v3383
  %v3555 = vunpack.c.h.b16 %v3383
  %v3556 = vunpack.c.l.b16 %v3384
  %v3557 = vunpack.c.h.b16 %v3384
  %v3558 = vunpack.c.l.b16 %v3385
  %v3559 = vunpack.c.h.b16 %v3385
  %v3560 = vunpack.c.l.b16 %v3386
  %v3561 = vunpack.c.h.b16 %v3386
  %v3562 = vunpack.c.l.b16 %v3387
  %v3563 = vunpack.c.h.b16 %v3387
  %v3564 = vunpack.c.l.b16 %v3388
  %v3565 = vunpack.c.h.b16 %v3388
  %v3566 = vunpack.c.l.b16 %v3389
  %v3567 = vunpack.c.h.b16 %v3389
  %v3568 = vunpack.c.l.b16 %v3390
  %v3569 = vunpack.c.h.b16 %v3390
  %v3570 = vunpack.c.l.b16 %v3391
  %v3571 = vunpack.c.h.b16 %v3391
  %v3572 = vunpack.c.l.b16 %v3392
  %v3573 = vunpack.c.h.b16 %v3392
  %v3574 = vunpack.c.l.b16 %v3393
  %v3575 = vunpack.c.h.b16 %v3393
  %v3576 = vunpack.c.l.b16 %v3394
  %v3577 = vunpack.c.h.b16 %v3394
  %v3578 = vunpack.c.l.b16 %v3395
  %v3579 = vunpack.c.h.b16 %v3395
  %v3580 = vunpack.c.l.b16 %v3396
  %v3581 = vunpack.c.h.b16 %v3396
  %v3582 = vunpack.c.l.b16 %v3397
  %v3583 = vunpack.c.h.b16 %v3397
  %v3584 = vunpack.c.l.b16 %v3398
  %v3585 = vunpack.c.h.b16 %v3398
  %v3586 = vunpack.c.l.b16 %v3399
  %v3587 = vunpack.c.h.b16 %v3399
  %v3588 = vunpack.c.l.b16 %v3400
  %v3589 = vunpack.c.h.b16 %v3400
  %v3590 = vunpack.c.l.b16 %v3401
  %v3591 = vunpack.c.h.b16 %v3401
  %v3592 = vunpack.c.l.b16 %v3402
  %v3593 = vunpack.c.h.b16 %v3402
  %v3594 = vunpack.c.l.b16 %v3403
  %v3595 = vunpack.c.h.b16 %v3403
  %v3596 = vunpack.c.l.b16 %v3404
  %v3597 = vunpack.c.h.b16 %v3404
  %v3598 = vunpack.c.l.b16 %v3405
  %v3599 = vunpack.c.h.b16 %v3405
  %v3600 = vunpack.c.l.b16 %v3406
  %v3601 = vunpack.c.h.b16 %v3406
  %v3602 = vunpack.c.l.b16 %v3407
  %v3603 = vunpack.c.h.b16 %v3407
  %v3604 = vunpack.c.l.b16 %v3408
  %v3605 = vunpack.c.h.b16 %v3408
  %v3606 = vunpack.c.l.b16 %v3409
  %v3607 = vunpack.c.h.b16 %v3409
  %v3608 = vunpack.c.l.b16 %v3410
  %v3609 = vunpack.c.h.b16 %v3410
  %v3610 = vunpack.c.l.b16 %v3411
  %v3611 = vunpack.c.h.b16 %v3411
  %v3612 = vunpack.c.l.b16 %v3412
  %v3613 = vunpack.c.h.b16 %v3412
  %v3614 = vunpack.c.l.b16 %v3413
  %v3615 = vunpack.c.h.b16 %v3413
  %v3616 = vunpack.c.l.b16 %v3414
  %v3617 = vunpack.c.h.b16 %v3414
  %v3618 = vunpack.c.l.b16 %v3415
  %v3619 = vunpack.c.h.b16 %v3415
  %v3620 = vunpack.c.l.b16 %v3416
  %v3621 = vunpack.c.h.b16 %v3416
  %v3622 = vunpack.c.l.b16 %v3417
  %v3623 = vunpack.c.h.b16 %v3417
  %v3624 = vunpack.c.l.b16 %v3418
  %v3625 = vunpack.c.h.b16 %v3418
  %v3626 = vunpack.c.l.b16 %v3419
  %v3627 = vunpack.c.h.b16 %v3419
  %v3628 = vunpack.c.l.b16 %v3420
  %v3629 = vunpack.c.h.b16 %v3420
  %v3630 = vunpack.c.l.b16 %v3421
  %v3631 = vunpack.c.h.b16 %v3421
  %v3632 = vunpack.c.l.b16 %v3422
  %v3633 = vunpack.c.h.b16 %v3422
  %v3634 = vunpack.c.l.b16 %v3423
  %v3635 = vunpack.c.h.b16 %v3423
  %v3636 = vunpack.c.l.b16 %v3424
  %v3637 = vunpack.c.h.b16 %v3424
  %v3638 = vunpack.c.l.b16 %v3425
  %v3639 = vunpack.c.h.b16 %v3425
  %v3640 = vunpack.c.l.b16 %v3426
  %v3641 = vunpack.c.h.b16 %v3426
  %v3642 = vunpack.c.l.b16 %v3427
  %v3643 = vunpack.c.h.b16 %v3427
  %v3644 = vpack.c.b16 %v3504, %v3500
  %v3645 = vpack.c.b16 %v3505, %v3501
  %v3646 = vpack.c.b16 %v3506, %v3502
  %v3647 = vpack.c.b16 %v3507, %v3503
  %v3648 = vpack.c.b16 %v3512, %v3508
  %v3649 = vpack.c.b16 %v3513, %v3509
  %v3650 = vpack.c.b16 %v3514, %v3510
  %v3651 = vpack.c.b16 %v3515, %v3511
  %v3652 = vpack.c.b16 %v3520, %v3516
  %v3653 = vpack.c.b16 %v3521, %v3517
  %v3654 = vpack.c.b16 %v3522, %v3518
  %v3655 = vpack.c.b16 %v3523, %v3519
  %v3656 = vpack.c.b16 %v3528, %v3524
  %v3657 = vpack.c.b16 %v3529, %v3525
  %v3658 = vpack.c.b16 %v3530, %v3526
  %v3659 = vpack.c.b16 %v3531, %v3527
  %v3660 = vpack.c.b16 %v3536, %v3532
  %v3661 = vpack.c.b16 %v3537, %v3533
  %v3662 = vpack.c.b16 %v3538, %v3534
  %v3663 = vpack.c.b16 %v3539, %v3535
  %v3664 = vpack.c.b16 %v3544, %v3540
  %v3665 = vpack.c.b16 %v3545, %v3541
  %v3666 = vpack.c.b16 %v3546, %v3542
  %v3667 = vpack.c.b16 %v3547, %v3543
  %v3668 = vpack.c.b16 %v3552, %v3548
  %v3669 = vpack.c.b16 %v3553, %v3549
  %v3670 = vpack.c.b16 %v3554, %v3550
  %v3671 = vpack.c.b16 %v3555, %v3551
  %v3672 = vpack.c.b16 %v3560, %v3556
  %v3673 = vpack.c.b16 %v3561, %v3557
  %v3674 = vpack.c.b16 %v3562, %v3558
  %v3675 = vpack.c.b16 %v3563, %v3559
  %v3676 = vpack.c.b16 %v3568, %v3564
  %v3677 = vpack.c.b16 %v3569, %v3565
  %v3678 = vpack.c.b16 %v3570, %v3566
  %v3679 = vpack.c.b16 %v3571, %v3567
  %v3680 = vpack.c.b16 %v3576, %v3572
  %v3681 = vpack.c.b16 %v3577, %v3573
  %v3682 = vpack.c.b16 %v3578, %v3574
  %v3683 = vpack.c.b16 %v3579, %v3575
  %v3684 = vpack.c.b16 %v3584, %v3580
  %v3685 = vpack.c.b16 %v3585, %v3581
  %v3686 = vpack.c.b16 %v3586, %v3582
  %v3687 = vpack.c.b16 %v3587, %v3583
  %v3688 = vpack.c.b16 %v3592, %v3588
  %v3689 = vpack.c.b16 %v3593, %v3589
  %v3690 = vpack.c.b16 %v3594, %v3590
  %v3691 = vpack.c.b16 %v3595, %v3591
  %v3692 = vpack.c.b16 %v3600, %v3596
  %v3693 = vpack.c.b16 %v3601, %v3597
  %v3694 = vpack.c.b16 %v3602, %v3598
  %v3695 = vpack.c.b16 %v3603, %v3599
  %v3696 = vpack.c.b16 %v3608, %v3604
  %v3697 = vpack.c.b16 %v3609, %v3605
  %v3698 = vpack.c.b16 %v3610, %v3606
  %v3699 = vpack.c.b16 %v3611, %v3607
  %v3700 = vpack.c.b16 %v3616, %v3612
  %v3701 = vpack.c.b16 %v3617, %v3613
  %v3702 = vpack.c.b16 %v3618, %v3614
  %v3703 = vpack.c.b16 %v3619, %v3615
  %v3704 = vpack.c.b16 %v3624, %v3620
  %v3705 = vpack.c.b16 %v3625, %v3621
  %v3706 = vpack.c.b16 %v3626, %v3622
  %v3707 = vpack.c.b16 %v3627, %v3623
  %v3708 = vpack.c.b16 %v3632, %v3628
  %v3709 = vpack.c.b16 %v3633, %v3629
  %v3710 = vpack.c.b16 %v3634, %v3630
  %v3711 = vpack.c.b16 %v3635, %v3631
  %v3712 = vpack.c.b16 %v3640, %v3636
  %v3713 = vpack.c.b16 %v3641, %v3637
  %v3714 = vpack.c.b16 %v3642, %v3638
  %v3715 = vpack.c.b16 %v3643, %v3639
  %v3789 = vsel %vm2697, %v3355, 0
  %3791 = vmatprep.subr.bf16.mxu0 %v3645
  %3792 = vmatpush1.bf16.msra.mxu0 %v3644
  %3793 = vmatprep.subr.bf16.mxu0 %v3649
  %3794 = vmatpush1.bf16.msra.mxu0 %v3648
  %3795 = vmatprep.subr.bf16.mxu0 %v3653
  %3796 = vmatpush1.bf16.msra.mxu0 %v3652
  %3797 = vmatprep.subr.bf16.mxu0 %v3657
  %3798 = vmatpush1.bf16.msra.mxu0 %v3656
  %3799 = vmatprep.subr.bf16.mxu0 %v3661
  %3800 = vmatpush1.bf16.msra.mxu0 %v3660
  %3801 = vmatprep.subr.bf16.mxu0 %v3665
  %3802 = vmatpush1.bf16.msra.mxu0 %v3664
  %3803 = vmatprep.subr.bf16.mxu0 %v3669
  %3804 = vmatpush1.bf16.msra.mxu0 %v3668
  %3805 = vmatprep.subr.bf16.mxu0 %v3673
  %3806 = vmatpush1.bf16.msra.mxu0 %v3672
  %3807 = vmatprep.subr.bf16.mxu0 %v3677
  %3808 = vmatpush1.bf16.msra.mxu0 %v3676
  %3809 = vmatprep.subr.bf16.mxu0 %v3681
  %3810 = vmatpush1.bf16.msra.mxu0 %v3680
  %3811 = vmatprep.subr.bf16.mxu0 %v3685
  %3812 = vmatpush1.bf16.msra.mxu0 %v3684
  %3813 = vmatprep.subr.bf16.mxu0 %v3689
  %3814 = vmatpush1.bf16.msra.mxu0 %v3688
  %3815 = vmatprep.subr.bf16.mxu0 %v3693
  %3816 = vmatpush1.bf16.msra.mxu0 %v3692
  %3817 = vmatprep.subr.bf16.mxu0 %v3697
  %3818 = vmatpush1.bf16.msra.mxu0 %v3696
  %3819 = vmatprep.subr.bf16.mxu0 %v3701
  %3820 = vmatpush1.bf16.msra.mxu0 %v3700
  %3821 = vmatprep.subr.bf16.mxu0 %v3705
  %3822 = vmatpush1.bf16.msra.mxu0 %v3704
  %3823 = vmatprep.mubr.bf16.mxu0 %v3354
  %3824 = vmatmul.mubr.bf16.gmra.mrb[0].mxu0 %v3353
  %v3825 = vpop.f32.mrb[0].mxu0
  %v3826 = vadd.f32 0.0, %v3825
  %v3827 = vpop.f32.mrb[0].mxu0
  %v3828 = vadd.f32 0.0, %v3827
  %v3829 = vpop.f32.mrb[0].mxu0
  %v3830 = vpop.f32.mrb[0].mxu0
  %3831 = vdwg.mxu0
  %3832 = vmatprep.subr.bf16.mxu0 %v3709
  %3833 = vmatpush1.bf16.msra.mxu0 %v3708
  %3834 = vmatprep.subr.bf16.mxu0 %v3713
  %3835 = vmatpush1.bf16.msra.mxu0 %v3712
  %3836 = vmatprep.subr.bf16.mxu0 0
  %3837 = vmatpush1.bf16.msra.mxu0 0
  %3838 = vmatprep.subr.bf16.mxu0 0
  %3839 = vmatpush1.bf16.msra.mxu0 0
  %3840 = vmatprep.subr.bf16.mxu0 0
  %3841 = vmatpush1.bf16.msra.mxu0 0
  %3842 = vmatprep.subr.bf16.mxu0 0
  %3843 = vmatpush1.bf16.msra.mxu0 0
  %3844 = vmatprep.subr.bf16.mxu0 0
  %3845 = vmatpush1.bf16.msra.mxu0 0
  %3846 = vmatprep.subr.bf16.mxu0 0
  %3847 = vmatpush1.bf16.msra.mxu0 0
  %3848 = vmatprep.subr.bf16.mxu0 0
  %3849 = vmatpush1.bf16.msra.mxu0 0
  %3850 = vmatprep.subr.bf16.mxu0 0
  %3851 = vmatpush1.bf16.msra.mxu0 0
  %3852 = vmatprep.subr.bf16.mxu0 0
  %3853 = vmatpush1.bf16.msra.mxu0 0
  %3854 = vmatprep.subr.bf16.mxu0 0
  %3855 = vmatpush1.bf16.msra.mxu0 0
  %3856 = vmatprep.subr.bf16.mxu0 0
  %3857 = vmatpush1.bf16.msra.mxu0 0
  %3858 = vmatprep.subr.bf16.mxu0 0
  %3859 = vmatpush1.bf16.msra.mxu0 0
  %3860 = vmatprep.subr.bf16.mxu0 0
  %3861 = vmatpush1.bf16.msra.mxu0 0
  %3862 = vmatprep.subr.bf16.mxu0 0
  %3863 = vmatpush1.bf16.msra.mxu0 0
  %3864 = vmatprep.mubr.bf16.mxu0 0
  %3865 = vmatmul.mubr.bf16.gmra.mrb[0].mxu0 %v3789
  %v3866 = vpop.f32.mrb[0].mxu0
  %v3867 = vadd.f32 %v3826, %v3866
  %v3868 = vpop.f32.mrb[0].mxu0
  %v3869 = vadd.f32 %v3828, %v3868
  %v3870 = vpop.f32.mrb[0].mxu0
  %v3871 = vpop.f32.mrb[0].mxu0
  %3872 = vdwg.mxu0
  %3873 = vmatprep.subr.bf16.mxu0 %v3647
  %3874 = vmatpush1.bf16.msra.mxu0 %v3646
  %3875 = vmatprep.subr.bf16.mxu0 %v3651
  %3876 = vmatpush1.bf16.msra.mxu0 %v3650
  %3877 = vmatprep.subr.bf16.mxu0 %v3655
  %3878 = vmatpush1.bf16.msra.mxu0 %v3654
  %3879 = vmatprep.subr.bf16.mxu0 %v3659
  %3880 = vmatpush1.bf16.msra.mxu0 %v3658
  %3881 = vmatprep.subr.bf16.mxu0 %v3663
  %3882 = vmatpush1.bf16.msra.mxu0 %v3662
  %3883 = vmatprep.subr.bf16.mxu0 %v3667
  %3884 = vmatpush1.bf16.msra.mxu0 %v3666
  %3885 = vmatprep.subr.bf16.mxu0 %v3671
  %3886 = vmatpush1.bf16.msra.mxu0 %v3670
  %3887 = vmatprep.subr.bf16.mxu0 %v3675
  %3888 = vmatpush1.bf16.msra.mxu0 %v3674
  %3889 = vmatprep.subr.bf16.mxu0 %v3679
  %3890 = vmatpush1.bf16.msra.mxu0 %v3678
  %3891 = vmatprep.subr.bf16.mxu0 %v3683
  %3892 = vmatpush1.bf16.msra.mxu0 %v3682
  %3893 = vmatprep.subr.bf16.mxu0 %v3687
  %3894 = vmatpush1.bf16.msra.mxu0 %v3686
  %3895 = vmatprep.subr.bf16.mxu0 %v3691
  %3896 = vmatpush1.bf16.msra.mxu0 %v3690
  %3897 = vmatprep.subr.bf16.mxu0 %v3695
  %3898 = vmatpush1.bf16.msra.mxu0 %v3694
  %3899 = vmatprep.subr.bf16.mxu0 %v3699
  %3900 = vmatpush1.bf16.msra.mxu0 %v3698
  %3901 = vmatprep.subr.bf16.mxu0 %v3703
  %3902 = vmatpush1.bf16.msra.mxu0 %v3702
  %3903 = vmatprep.subr.bf16.mxu0 %v3707
  %3904 = vmatpush1.bf16.msra.mxu0 %v3706
  %3905 = vmatprep.mubr.bf16.mxu0 %v3354
  %3906 = vmatmul.mubr.bf16.gmra.mrb[0].mxu0 %v3353
  %v3907 = vpop.f32.mrb[0].mxu0
  %v3908 = vadd.f32 0.0, %v3907
  %v3909 = vpop.f32.mrb[0].mxu0
  %v3910 = vadd.f32 0.0, %v3909
  %v3911 = vpop.f32.mrb[0].mxu0
  %v3912 = vpop.f32.mrb[0].mxu0
  %3913 = vdwg.mxu0
  %3914 = vmatprep.subr.bf16.mxu0 %v3711
  %3915 = vmatpush1.bf16.msra.mxu0 %v3710
  %3916 = vmatprep.subr.bf16.mxu0 %v3715
  %3917 = vmatpush1.bf16.msra.mxu0 %v3714
  %3918 = vmatprep.subr.bf16.mxu0 0
  %3919 = vmatpush1.bf16.msra.mxu0 0
  %3920 = vmatprep.subr.bf16.mxu0 0
  %3921 = vmatpush1.bf16.msra.mxu0 0
  %3922 = vmatprep.subr.bf16.mxu0 0
  %3923 = vmatpush1.bf16.msra.mxu0 0
  %3924 = vmatprep.subr.bf16.mxu0 0
  %3925 = vmatpush1.bf16.msra.mxu0 0
  %3926 = vmatprep.subr.bf16.mxu0 0
  %3927 = vmatpush1.bf16.msra.mxu0 0
  %3928 = vmatprep.subr.bf16.mxu0 0
  %3929 = vmatpush1.bf16.msra.mxu0 0
  %3930 = vmatprep.subr.bf16.mxu0 0
  %3931 = vmatpush1.bf16.msra.mxu0 0
  %3932 = vmatprep.subr.bf16.mxu0 0
  %3933 = vmatpush1.bf16.msra.mxu0 0
  %3934 = vmatprep.subr.bf16.mxu0 0
  %3935 = vmatpush1.bf16.msra.mxu0 0
  %3936 = vmatprep.subr.bf16.mxu0 0
  %3937 = vmatpush1.bf16.msra.mxu0 0
  %3938 = vmatprep.subr.bf16.mxu0 0
  %3939 = vmatpush1.bf16.msra.mxu0 0
  %3940 = vmatprep.subr.bf16.mxu0 0
  %3941 = vmatpush1.bf16.msra.mxu0 0
  %3942 = vmatprep.subr.bf16.mxu0 0
  %3943 = vmatpush1.bf16.msra.mxu0 0
  %3944 = vmatprep.subr.bf16.mxu0 0
  %3945 = vmatpush1.bf16.msra.mxu0 0
  %3946 = vmatprep.mubr.bf16.mxu0 0
  %3947 = vmatmul.mubr.bf16.gmra.mrb[0].mxu0 %v3789
  %v3948 = vpop.f32.mrb[0].mxu0
  %v3949 = vadd.f32 %v3908, %v3948
  %v3950 = vpop.f32.mrb[0].mxu0
  %v3951 = vadd.f32 %v3910, %v3950
  %v3952 = vpop.f32.mrb[0].mxu0
  %v3953 = vpop.f32.mrb[0].mxu0
  %3954 = vdwg.mxu0
  %v3955 = vld [vmem:[%s17] sm:$0xff]
  %v3956 = vld [vmem:[%s17 + $0x8] sm:$0xff]
  %v3957 = vld [vmem:[%s17 + $0x10] sm:$0xff]
  %v3958 = vld [vmem:[%s17 + $0x18] sm:$0xff]
  %v3959 = vld [vmem:[%s17 + $0x20] sm:$0xff]
  %v3960 = vld [vmem:[%s17 + $0x28] sm:$0xff]
  %v3961 = vld [vmem:[%s17 + $0x30] sm:$0xff]
  %v3962 = vld [vmem:[%s17 + $0x38] sm:$0xff]
  %v3963 = vld [vmem:[%s17 + $0x40] sm:$0xff]
  %v3964 = vld [vmem:[%s17 + $0x48] sm:$0xff]
  %v3965 = vld [vmem:[%s17 + $0x50] sm:$0xff]
  %v3966 = vld [vmem:[%s17 + $0x58] sm:$0xff]
  %v3967 = vld [vmem:[%s17 + $0x60] sm:$0xff]
  %v3968 = vld [vmem:[%s17 + $0x68] sm:$0xff]
  %v3969 = vld [vmem:[%s17 + $0x70] sm:$0xff]
  %v3970 = vld [vmem:[%s17 + $0x78] sm:$0xff]
  %v3971 = vld [vmem:[%s17 + $0x80] sm:$0xff]
  %v3972 = vld [vmem:[%s17 + $0x88] sm:$0xff]
  %v3973 = vld [vmem:[%s17 + $0x90] sm:$0xff]
  %v3974 = vld [vmem:[%s17 + $0x98] sm:$0xff]
  %v3975 = vld [vmem:[%s17 + $0xa0] sm:$0xff]
  %v3976 = vld [vmem:[%s17 + $0xa8] sm:$0xff]
  %v3977 = vld [vmem:[%s17 + $0xb0] sm:$0xff]
  %v3978 = vld [vmem:[%s17 + $0xb8] sm:$0xff]
  %v3979 = vld [vmem:[%s17 + $0xc0] sm:$0xff]
  %v3980 = vld [vmem:[%s17 + $0xc8] sm:$0xff]
  %v3981 = vld [vmem:[%s17 + $0xd0] sm:$0xff]
  %v3982 = vld [vmem:[%s17 + $0xd8] sm:$0xff]
  %v3983 = vld [vmem:[%s17 + $0xe0] sm:$0xff]
  %v3984 = vld [vmem:[%s17 + $0xe8] sm:$0xff]
  %v3985 = vld [vmem:[%s17 + $0xf0] sm:$0xff]
  %v3986 = vld [vmem:[%s17 + $0xf8] sm:$0xff]
  %v3987 = vld [vmem:[%s17 + $0x100] sm:$0xff]
  %v3988 = vld [vmem:[%s17 + $0x108] sm:$0xff]
  %v3989 = vld [vmem:[%s17 + $0x110] sm:$0xff]
  %v3990 = vld [vmem:[%s17 + $0x118] sm:$0xff]
  %v3991 = vld [vmem:[%s17 + $0x120] sm:$0xff]
  %v3992 = vld [vmem:[%s17 + $0x128] sm:$0xff]
  %v3993 = vld [vmem:[%s17 + $0x130] sm:$0xff]
  %v3994 = vld [vmem:[%s17 + $0x138] sm:$0xff]
  %v3995 = vld [vmem:[%s17 + $0x140] sm:$0xff]
  %v3996 = vld [vmem:[%s17 + $0x148] sm:$0xff]
  %v3997 = vld [vmem:[%s17 + $0x150] sm:$0xff]
  %v3998 = vld [vmem:[%s17 + $0x158] sm:$0xff]
  %v3999 = vld [vmem:[%s17 + $0x160] sm:$0xff]
  %v4000 = vld [vmem:[%s17 + $0x168] sm:$0xff]
  %v4001 = vld [vmem:[%s17 + $0x170] sm:$0xff]
  %v4002 = vld [vmem:[%s17 + $0x178] sm:$0xff]
  %v4003 = vld [vmem:[%s17 + $0x180] sm:$0xff]
  %v4004 = vld [vmem:[%s17 + $0x188] sm:$0xff]
  %v4005 = vld [vmem:[%s18] sm:$0xff]
  %v4006 = vld [vmem:[%s18 + $0x8] sm:$0xff]
  %v4007 = vld [vmem:[%s18 + $0x10] sm:$0xff]
  %v4008 = vld [vmem:[%s18 + $0x18] sm:$0xff]
  %v4009 = vld [vmem:[%s18 + $0x20] sm:$0xff]
  %v4010 = vld [vmem:[%s18 + $0x28] sm:$0xff]
  %v4011 = vld [vmem:[%s18 + $0x30] sm:$0xff]
  %v4012 = vld [vmem:[%s18 + $0x38] sm:$0xff]
  %v4013 = vld [vmem:[%s19] sm:$0x1]
  %v4014 = vld [vmem:[%s20] sm:$0xf]
  %v4015 = vsel %vm649, %v3867, 0.0
  %v4016 = vrot.slane %v4015, 4
  %v4017 = vadd.f32 %v4015, %v4016
  %v4018 = vrot.slane %v4017, 2
  %v4019 = vadd.f32 %v4017, %v4018
  %v4020 = vrot.slane %v4019, 1
  %v4021 = vadd.f32 %v4019, %v4020
  %v4022 = vsel %vm649, %v3869, 0.0
  %v4023 = vrot.slane %v4022, 4
  %v4024 = vadd.f32 %v4022, %v4023
  %v4025 = vrot.slane %v4024, 2
  %v4026 = vadd.f32 %v4024, %v4025
  %v4027 = vrot.slane %v4026, 1
  %v4028 = vadd.f32 %v4026, %v4027
  %v4029 = vsel %vm649, %v3949, 0.0
  %v4030 = vrot.slane %v4029, 4
  %v4031 = vadd.f32 %v4029, %v4030
  %v4032 = vrot.slane %v4031, 2
  %v4033 = vadd.f32 %v4031, %v4032
  %v4034 = vrot.slane %v4033, 1
  %v4035 = vadd.f32 %v4033, %v4034
  %vm4036 = vcmask 123904
  %v4037 = vsel %vm4036, %v3951, 0.0
  %v4038 = vrot.slane %v4037, 4
  %v4039 = vadd.f32 %v4037, %v4038
  %v4040 = vrot.slane %v4039, 2
  %v4041 = vadd.f32 %v4039, %v4040
  %v4042 = vrot.slane %v4041, 1
  %v4043 = vadd.f32 %v4041, %v4042
  %v4045 = vsel %vm1948, %v4043, 0
  %4047 = vmatprep.subr.mxu0 0.0
  %4048 = vmatpush1.msra.mxu0 %v3955
  %4049 = vmatprep.subr.mxu0 0.0
  %4050 = vmatpush1.msra.mxu0 %v3956
  %4051 = vmatprep.subr.mxu0 0.0
  %4052 = vmatpush1.msra.mxu0 %v3957
  %4053 = vmatprep.subr.mxu0 0.0
  %4054 = vmatpush1.msra.mxu0 %v3958
  %4055 = vmatprep.subr.mxu0 0.0
  %4056 = vmatpush1.msra.mxu0 %v3959
  %4057 = vmatprep.subr.mxu0 0.0
  %4058 = vmatpush1.msra.mxu0 %v3960
  %4059 = vmatprep.subr.mxu0 0.0
  %4060 = vmatpush1.msra.mxu0 %v3961
  %4061 = vmatprep.subr.mxu0 0.0
  %4062 = vmatpush1.msra.mxu0 %v3962
  %4063 = vmatprep.subr.mxu0 0.0
  %4064 = vmatpush1.msra.mxu0 %v3963
  %4065 = vmatprep.subr.mxu0 0.0
  %4066 = vmatpush1.msra.mxu0 %v3964
  %4067 = vmatprep.subr.mxu0 0.0
  %4068 = vmatpush1.msra.mxu0 %v3965
  %4069 = vmatprep.subr.mxu0 0.0
  %4070 = vmatpush1.msra.mxu0 %v3966
  %4071 = vmatprep.subr.mxu0 0.0
  %4072 = vmatpush1.msra.mxu0 %v3967
  %4073 = vmatprep.subr.mxu0 0.0
  %4074 = vmatpush1.msra.mxu0 %v3968
  %4075 = vmatprep.subr.mxu0 0.0
  %4076 = vmatpush1.msra.mxu0 %v3969
  %4077 = vmatprep.subr.mxu0 0.0
  %4078 = vmatpush1.msra.mxu0 %v3970
  %4079 = vmatprep.subr.mxu0 0.0
  %4080 = vmatpush1.msra.mxu0 %v3971
  %4081 = vmatprep.subr.mxu0 0.0
  %4082 = vmatpush1.msra.mxu0 %v3972
  %4083 = vmatprep.subr.mxu0 0.0
  %4084 = vmatpush1.msra.mxu0 %v3973
  %4085 = vmatprep.subr.mxu0 0.0
  %4086 = vmatpush1.msra.mxu0 %v3974
  %4087 = vmatprep.subr.mxu0 0.0
  %4088 = vmatpush1.msra.mxu0 %v3975
  %4089 = vmatprep.subr.mxu0 0.0
  %4090 = vmatpush1.msra.mxu0 %v3976
  %4091 = vmatprep.subr.mxu0 0.0
  %4092 = vmatpush1.msra.mxu0 %v3977
  %4093 = vmatprep.subr.mxu0 0.0
  %4094 = vmatpush1.msra.mxu0 %v3978
  %4095 = vmatprep.subr.mxu0 0.0
  %4096 = vmatpush1.msra.mxu0 %v3979
  %4097 = vmatprep.subr.mxu0 0.0
  %4098 = vmatpush1.msra.mxu0 %v3980
  %4099 = vmatprep.subr.mxu0 0.0
  %4100 = vmatpush1.msra.mxu0 %v3981
  %4101 = vmatprep.subr.mxu0 0.0
  %4102 = vmatpush1.msra.mxu0 %v3982
  %4103 = vmatprep.subr.mxu0 0.0
  %4104 = vmatpush1.msra.mxu0 %v3983
  %4105 = vmatprep.subr.mxu0 0.0
  %4106 = vmatpush1.msra.mxu0 %v3984
  %4107 = vmatprep.subr.mxu0 0.0
  %4108 = vmatpush1.msra.mxu0 %v3985
  %4109 = vmatprep.subr.mxu0 0.0
  %4110 = vmatpush1.msra.mxu0 %v3986
  %4111 = vmatprep.mubr.f32.mxu0 %v4028
  %4112 = vmatmul.mubr.f32.gmra.mrb[0].mxu0 %v4021
  %v4113 = vpop.f32.mrb[0].mxu0
  %v4114 = vadd.f32 0.0, %v4113
  %v4115 = vpop.f32.mrb[0].mxu0
  %4116 = vdwg.mxu0
  %4117 = vmatprep.subr.mxu0 0.0
  %4118 = vmatpush1.msra.mxu0 %v3987
  %4119 = vmatprep.subr.mxu0 0.0
  %4120 = vmatpush1.msra.mxu0 %v3988
  %4121 = vmatprep.subr.mxu0 0.0
  %4122 = vmatpush1.msra.mxu0 %v3989
  %4123 = vmatprep.subr.mxu0 0.0
  %4124 = vmatpush1.msra.mxu0 %v3990
  %4125 = vmatprep.subr.mxu0 0.0
  %4126 = vmatpush1.msra.mxu0 %v3991
  %4127 = vmatprep.subr.mxu0 0.0
  %4128 = vmatpush1.msra.mxu0 %v3992
  %4129 = vmatprep.subr.mxu0 0.0
  %4130 = vmatpush1.msra.mxu0 %v3993
  %4131 = vmatprep.subr.mxu0 0.0
  %4132 = vmatpush1.msra.mxu0 %v3994
  %4133 = vmatprep.subr.mxu0 0.0
  %4134 = vmatpush1.msra.mxu0 %v3995
  %4135 = vmatprep.subr.mxu0 0.0
  %4136 = vmatpush1.msra.mxu0 %v3996
  %4137 = vmatprep.subr.mxu0 0.0
  %4138 = vmatpush1.msra.mxu0 %v3997
  %4139 = vmatprep.subr.mxu0 0.0
  %4140 = vmatpush1.msra.mxu0 %v3998
  %4141 = vmatprep.subr.mxu0 0.0
  %4142 = vmatpush1.msra.mxu0 %v3999
  %4143 = vmatprep.subr.mxu0 0.0
  %4144 = vmatpush1.msra.mxu0 %v4000
  %4145 = vmatprep.subr.mxu0 0.0
  %4146 = vmatpush1.msra.mxu0 %v4001
  %4147 = vmatprep.subr.mxu0 0.0
  %4148 = vmatpush1.msra.mxu0 %v4002
  %4149 = vmatprep.subr.mxu0 0.0
  %4150 = vmatpush1.msra.mxu0 %v4003
  %4151 = vmatprep.subr.mxu0 0.0
  %4152 = vmatpush1.msra.mxu0 %v4004
  %4153 = vmatprep.subr.mxu0 0.0
  %4154 = vmatpush1.msra.mxu0 0.0
  %4155 = vmatprep.subr.mxu0 0.0
  %4156 = vmatpush1.msra.mxu0 0.0
  %4157 = vmatprep.subr.mxu0 0.0
  %4158 = vmatpush1.msra.mxu0 0.0
  %4159 = vmatprep.subr.mxu0 0.0
  %4160 = vmatpush1.msra.mxu0 0.0
  %4161 = vmatprep.subr.mxu0 0.0
  %4162 = vmatpush1.msra.mxu0 0.0
  %4163 = vmatprep.subr.mxu0 0.0
  %4164 = vmatpush1.msra.mxu0 0.0
  %4165 = vmatprep.subr.mxu0 0.0
  %4166 = vmatpush1.msra.mxu0 0.0
  %4167 = vmatprep.subr.mxu0 0.0
  %4168 = vmatpush1.msra.mxu0 0.0
  %4169 = vmatprep.subr.mxu0 0.0
  %4170 = vmatpush1.msra.mxu0 0.0
  %4171 = vmatprep.subr.mxu0 0.0
  %4172 = vmatpush1.msra.mxu0 0.0
  %4173 = vmatprep.subr.mxu0 0.0
  %4174 = vmatpush1.msra.mxu0 0.0
  %4175 = vmatprep.subr.mxu0 0.0
  %4176 = vmatpush1.msra.mxu0 0.0
  %4177 = vmatprep.subr.mxu0 0.0
  %4178 = vmatpush1.msra.mxu0 0.0
  %4179 = vmatprep.subr.mxu0 0.0
  %4180 = vmatpush1.msra.mxu0 0.0
  %4181 = vmatprep.mubr.f32.mxu0 %v4045
  %4182 = vmatmul.mubr.f32.gmra.mrb[0].mxu0 %v4035
  %v4183 = vpop.f32.mrb[0].mxu0
  %v4184 = vadd.f32 %v4114, %v4183
  %v4185 = vpop.f32.mrb[0].mxu0
  %4186 = vdwg.mxu0
  %v4187 = vmul.f32 %v4184, 0.02
  %v4189 = vsel %vm1948, %v4187, 0
  %4191 = vmatprep.subr.mxu0 %v4006
  %4192 = vmatpush1.msra.mxu0 %v4005
  %4193 = vmatprep.subr.mxu0 %v4010
  %4194 = vmatpush1.msra.mxu0 %v4009
  %4195 = vmatprep.subr.mxu0 0.0
  %4196 = vmatpush1.msra.mxu0 0.0
  %4197 = vmatprep.subr.mxu0 0.0
  %4198 = vmatpush1.msra.mxu0 0.0
  %4199 = vmatprep.subr.mxu0 0.0
  %4200 = vmatpush1.msra.mxu0 0.0
  %4201 = vmatprep.subr.mxu0 0.0
  %4202 = vmatpush1.msra.mxu0 0.0
  %4203 = vmatprep.subr.mxu0 0.0
  %4204 = vmatpush1.msra.mxu0 0.0
  %4205 = vmatprep.subr.mxu0 0.0
  %4206 = vmatpush1.msra.mxu0 0.0
  %4207 = vmatprep.subr.mxu0 0.0
  %4208 = vmatpush1.msra.mxu0 0.0
  %4209 = vmatprep.subr.mxu0 0.0
  %4210 = vmatpush1.msra.mxu0 0.0
  %4211 = vmatprep.subr.mxu0 0.0
  %4212 = vmatpush1.msra.mxu0 0.0
  %4213 = vmatprep.subr.mxu0 0.0
  %4214 = vmatpush1.msra.mxu0 0.0
  %4215 = vmatprep.subr.mxu0 0.0
  %4216 = vmatpush1.msra.mxu0 0.0
  %4217 = vmatprep.subr.mxu0 0.0
  %4218 = vmatpush1.msra.mxu0 0.0
  %4219 = vmatprep.subr.mxu0 0.0
  %4220 = vmatpush1.msra.mxu0 0.0
  %4221 = vmatprep.subr.mxu0 0.0
  %4222 = vmatpush1.msra.mxu0 0.0
  %4223 = vmatprep.subr.mxu0 0.0
  %4224 = vmatpush1.msra.mxu0 0.0
  %4225 = vmatprep.subr.mxu0 0.0
  %4226 = vmatpush1.msra.mxu0 0.0
  %4227 = vmatprep.subr.mxu0 0.0
  %4228 = vmatpush1.msra.mxu0 0.0
  %4229 = vmatprep.subr.mxu0 0.0
  %4230 = vmatpush1.msra.mxu0 0.0
  %4231 = vmatprep.subr.mxu0 0.0
  %4232 = vmatpush1.msra.mxu0 0.0
  %4233 = vmatprep.subr.mxu0 0.0
  %4234 = vmatpush1.msra.mxu0 0.0
  %4235 = vmatprep.subr.mxu0 0.0
  %4236 = vmatpush1.msra.mxu0 0.0
  %4237 = vmatprep.subr.mxu0 0.0
  %4238 = vmatpush1.msra.mxu0 0.0
  %4239 = vmatprep.subr.mxu0 0.0
  %4240 = vmatpush1.msra.mxu0 0.0
  %4241 = vmatprep.subr.mxu0 0.0
  %4242 = vmatpush1.msra.mxu0 0.0
  %4243 = vmatprep.subr.mxu0 0.0
  %4244 = vmatpush1.msra.mxu0 0.0
  %4245 = vmatprep.subr.mxu0 0.0
  %4246 = vmatpush1.msra.mxu0 0.0
  %4247 = vmatprep.subr.mxu0 0.0
  %4248 = vmatpush1.msra.mxu0 0.0
  %4249 = vmatprep.subr.mxu0 0.0
  %4250 = vmatpush1.msra.mxu0 0.0
  %4251 = vmatprep.subr.mxu0 0.0
  %4252 = vmatpush1.msra.mxu0 0.0
  %4253 = vmatprep.subr.mxu0 0.0
  %4254 = vmatpush1.msra.mxu0 0.0
  %4255 = vmatprep.mubr.f32.mxu0 0.0
  %4256 = vmatmul.mubr.f32.gmra.mrb[0].mxu0 %v4189
  %v4257 = vpop.f32.mrb[0].mxu0
  %v4258 = vadd.f32 0.0, %v4257
  %v4259 = vpop.f32.mrb[0].mxu0
  %v4260 = vadd.f32 0.0, %v4259
  %4261 = vdwg.mxu0
  %4262 = vmatprep.subr.mxu0 %v4008
  %4263 = vmatpush1.msra.mxu0 %v4007
  %4264 = vmatprep.subr.mxu0 %v4012
  %4265 = vmatpush1.msra.mxu0 %v4011
  %4266 = vmatprep.subr.mxu0 0.0
  %4267 = vmatpush1.msra.mxu0 0.0
  %4268 = vmatprep.subr.mxu0 0.0
  %4269 = vmatpush1.msra.mxu0 0.0
  %4270 = vmatprep.subr.mxu0 0.0
  %4271 = vmatpush1.msra.mxu0 0.0
  %4272 = vmatprep.subr.mxu0 0.0
  %4273 = vmatpush1.msra.mxu0 0.0
  %4274 = vmatprep.subr.mxu0 0.0
  %4275 = vmatpush1.msra.mxu0 0.0
  %4276 = vmatprep.subr.mxu0 0.0
  %4277 = vmatpush1.msra.mxu0 0.0
  %4278 = vmatprep.subr.mxu0 0.0
  %4279 = vmatpush1.msra.mxu0 0.0
  %4280 = vmatprep.subr.mxu0 0.0
  %4281 = vmatpush1.msra.mxu0 0.0
  %4282 = vmatprep.subr.mxu0 0.0
  %4283 = vmatpush1.msra.mxu0 0.0
  %4284 = vmatprep.subr.mxu0 0.0
  %4285 = vmatpush1.msra.mxu0 0.0
  %4286 = vmatprep.subr.mxu0 0.0
  %4287 = vmatpush1.msra.mxu0 0.0
  %4288 = vmatprep.subr.mxu0 0.0
  %4289 = vmatpush1.msra.mxu0 0.0
  %4290 = vmatprep.subr.mxu0 0.0
  %4291 = vmatpush1.msra.mxu0 0.0
  %4292 = vmatprep.subr.mxu0 0.0
  %4293 = vmatpush1.msra.mxu0 0.0
  %4294 = vmatprep.subr.mxu0 0.0
  %4295 = vmatpush1.msra.mxu0 0.0
  %4296 = vmatprep.subr.mxu0 0.0
  %4297 = vmatpush1.msra.mxu0 0.0
  %4298 = vmatprep.subr.mxu0 0.0
  %4299 = vmatpush1.msra.mxu0 0.0
  %4300 = vmatprep.subr.mxu0 0.0
  %4301 = vmatpush1.msra.mxu0 0.0
  %4302 = vmatprep.subr.mxu0 0.0
  %4303 = vmatpush1.msra.mxu0 0.0
  %4304 = vmatprep.subr.mxu0 0.0
  %4305 = vmatpush1.msra.mxu0 0.0
  %4306 = vmatprep.subr.mxu0 0.0
  %4307 = vmatpush1.msra.mxu0 0.0
  %4308 = vmatprep.subr.mxu0 0.0
  %4309 = vmatpush1.msra.mxu0 0.0
  %4310 = vmatprep.subr.mxu0 0.0
  %4311 = vmatpush1.msra.mxu0 0.0
  %4312 = vmatprep.subr.mxu0 0.0
  %4313 = vmatpush1.msra.mxu0 0.0
  %4314 = vmatprep.subr.mxu0 0.0
  %4315 = vmatpush1.msra.mxu0 0.0
  %4316 = vmatprep.subr.mxu0 0.0
  %4317 = vmatpush1.msra.mxu0 0.0
  %4318 = vmatprep.subr.mxu0 0.0
  %4319 = vmatpush1.msra.mxu0 0.0
  %4320 = vmatprep.subr.mxu0 0.0
  %4321 = vmatpush1.msra.mxu0 0.0
  %4322 = vmatprep.subr.mxu0 0.0
  %4323 = vmatpush1.msra.mxu0 0.0
  %4324 = vmatprep.subr.mxu0 0.0
  %4325 = vmatpush1.msra.mxu0 0.0
  %4326 = vmatprep.mubr.f32.mxu0 0.0
  %4327 = vmatmul.mubr.f32.gmra.mrb[0].mxu0 %v4189
  %v4328 = vpop.f32.mrb[0].mxu0
  %v4329 = vadd.f32 0.0, %v4328
  %v4330 = vpop.f32.mrb[0].mxu0
  %v4331 = vadd.f32 0.0, %v4330
  %4332 = vdwg.mxu0
  %v4333 = vlaneseq
  %v4334 = vshrl.u32 %v4333, 7
  %v4335 = vsub.s32 0, %v4334
  %v4336 = vrot.slane %v4258, %v4335
  %v4337 = vlaneseq
  %v4338 = vshrl.u32 %v4337, 7
  %v4339 = vsub.s32 0, %v4338
  %v4340 = vrot.slane %v4260, %v4339
  %v4341 = vlaneseq
  %v4342 = vshrl.u32 %v4341, 7
  %v4343 = vsub.s32 0, %v4342
  %v4344 = vrot.slane %v4329, %v4343
  %v4345 = vlaneseq
  %v4346 = vshrl.u32 %v4345, 7
  %v4347 = vsub.s32 0, %v4346
  %v4348 = vrot.slane %v4331, %v4347
  %v4349 = vsub.f32 %v3867, %v4336
  %v4350 = vsub.f32 %v3869, %v4340
  %v4351 = vsub.f32 %v3949, %v4344
  %v4352 = vsub.f32 %v3951, %v4348
  %v4353 = vmul.f32 %v4349, %v4349
  %v4354 = vmul.f32 %v4350, %v4350
  %v4355 = vmul.f32 %v4351, %v4351
  %v4356 = vmul.f32 %v4352, %v4352
  %v4357 = vsel %vm649, %v4353, 0.0
  %v4358 = vrot.slane %v4357, 4
  %v4359 = vadd.f32 %v4357, %v4358
  %v4360 = vrot.slane %v4359, 2
  %v4361 = vadd.f32 %v4359, %v4360
  %v4362 = vrot.slane %v4361, 1
  %v4363 = vadd.f32 %v4361, %v4362
  %v4364 = vsel %vm649, %v4354, 0.0
  %v4365 = vrot.slane %v4364, 4
  %v4366 = vadd.f32 %v4364, %v4365
  %v4367 = vrot.slane %v4366, 2
  %v4368 = vadd.f32 %v4366, %v4367
  %v4369 = vrot.slane %v4368, 1
  %v4370 = vadd.f32 %v4368, %v4369
  %v4371 = vsel %vm649, %v4355, 0.0
  %v4372 = vrot.slane %v4371, 4
  %v4373 = vadd.f32 %v4371, %v4372
  %v4374 = vrot.slane %v4373, 2
  %v4375 = vadd.f32 %v4373, %v4374
  %v4376 = vrot.slane %v4375, 1
  %v4377 = vadd.f32 %v4375, %v4376
  %v4378 = vsel %vm4036, %v4356, 0.0
  %v4379 = vrot.slane %v4378, 4
  %v4380 = vadd.f32 %v4378, %v4379
  %v4381 = vrot.slane %v4380, 2
  %v4382 = vadd.f32 %v4380, %v4381
  %v4383 = vrot.slane %v4382, 1
  %v4384 = vadd.f32 %v4382, %v4383
  %v4386 = vsel %vm1948, %v4384, 0
  %4388 = vmatprep.subr.mxu0 0.0
  %4389 = vmatpush1.msra.mxu0 %v3955
  %4390 = vmatprep.subr.mxu0 0.0
  %4391 = vmatpush1.msra.mxu0 %v3956
  %4392 = vmatprep.subr.mxu0 0.0
  %4393 = vmatpush1.msra.mxu0 %v3957
  %4394 = vmatprep.subr.mxu0 0.0
  %4395 = vmatpush1.msra.mxu0 %v3958
  %4396 = vmatprep.subr.mxu0 0.0
  %4397 = vmatpush1.msra.mxu0 %v3959
  %4398 = vmatprep.subr.mxu0 0.0
  %4399 = vmatpush1.msra.mxu0 %v3960
  %4400 = vmatprep.subr.mxu0 0.0
  %4401 = vmatpush1.msra.mxu0 %v3961
  %4402 = vmatprep.subr.mxu0 0.0
  %4403 = vmatpush1.msra.mxu0 %v3962
  %4404 = vmatprep.subr.mxu0 0.0
  %4405 = vmatpush1.msra.mxu0 %v3963
  %4406 = vmatprep.subr.mxu0 0.0
  %4407 = vmatpush1.msra.mxu0 %v3964
  %4408 = vmatprep.subr.mxu0 0.0
  %4409 = vmatpush1.msra.mxu0 %v3965
  %4410 = vmatprep.subr.mxu0 0.0
  %4411 = vmatpush1.msra.mxu0 %v3966
  %4412 = vmatprep.subr.mxu0 0.0
  %4413 = vmatpush1.msra.mxu0 %v3967
  %4414 = vmatprep.subr.mxu0 0.0
  %4415 = vmatpush1.msra.mxu0 %v3968
  %4416 = vmatprep.subr.mxu0 0.0
  %4417 = vmatpush1.msra.mxu0 %v3969
  %4418 = vmatprep.subr.mxu0 0.0
  %4419 = vmatpush1.msra.mxu0 %v3970
  %4420 = vmatprep.subr.mxu0 0.0
  %4421 = vmatpush1.msra.mxu0 %v3971
  %4422 = vmatprep.subr.mxu0 0.0
  %4423 = vmatpush1.msra.mxu0 %v3972
  %4424 = vmatprep.subr.mxu0 0.0
  %4425 = vmatpush1.msra.mxu0 %v3973
  %4426 = vmatprep.subr.mxu0 0.0
  %4427 = vmatpush1.msra.mxu0 %v3974
  %4428 = vmatprep.subr.mxu0 0.0
  %4429 = vmatpush1.msra.mxu0 %v3975
  %4430 = vmatprep.subr.mxu0 0.0
  %4431 = vmatpush1.msra.mxu0 %v3976
  %4432 = vmatprep.subr.mxu0 0.0
  %4433 = vmatpush1.msra.mxu0 %v3977
  %4434 = vmatprep.subr.mxu0 0.0
  %4435 = vmatpush1.msra.mxu0 %v3978
  %4436 = vmatprep.subr.mxu0 0.0
  %4437 = vmatpush1.msra.mxu0 %v3979
  %4438 = vmatprep.subr.mxu0 0.0
  %4439 = vmatpush1.msra.mxu0 %v3980
  %4440 = vmatprep.subr.mxu0 0.0
  %4441 = vmatpush1.msra.mxu0 %v3981
  %4442 = vmatprep.subr.mxu0 0.0
  %4443 = vmatpush1.msra.mxu0 %v3982
  %4444 = vmatprep.subr.mxu0 0.0
  %4445 = vmatpush1.msra.mxu0 %v3983
  %4446 = vmatprep.subr.mxu0 0.0
  %4447 = vmatpush1.msra.mxu0 %v3984
  %4448 = vmatprep.subr.mxu0 0.0
  %4449 = vmatpush1.msra.mxu0 %v3985
  %4450 = vmatprep.subr.mxu0 0.0
  %4451 = vmatpush1.msra.mxu0 %v3986
  %4452 = vmatprep.mubr.f32.mxu0 %v4370
  %4453 = vmatmul.mubr.f32.gmra.mrb[0].mxu0 %v4363
  %v4454 = vpop.f32.mrb[0].mxu0
  %v4455 = vadd.f32 0.0, %v4454
  %v4456 = vpop.f32.mrb[0].mxu0
  %4457 = vdwg.mxu0
  %4458 = vmatprep.subr.mxu0 0.0
  %4459 = vmatpush1.msra.mxu0 %v3987
  %4460 = vmatprep.subr.mxu0 0.0
  %4461 = vmatpush1.msra.mxu0 %v3988
  %4462 = vmatprep.subr.mxu0 0.0
  %4463 = vmatpush1.msra.mxu0 %v3989
  %4464 = vmatprep.subr.mxu0 0.0
  %4465 = vmatpush1.msra.mxu0 %v3990
  %4466 = vmatprep.subr.mxu0 0.0
  %4467 = vmatpush1.msra.mxu0 %v3991
  %4468 = vmatprep.subr.mxu0 0.0
  %4469 = vmatpush1.msra.mxu0 %v3992
  %4470 = vmatprep.subr.mxu0 0.0
  %4471 = vmatpush1.msra.mxu0 %v3993
  %4472 = vmatprep.subr.mxu0 0.0
  %4473 = vmatpush1.msra.mxu0 %v3994
  %4474 = vmatprep.subr.mxu0 0.0
  %4475 = vmatpush1.msra.mxu0 %v3995
  %4476 = vmatprep.subr.mxu0 0.0
  %4477 = vmatpush1.msra.mxu0 %v3996
  %4478 = vmatprep.subr.mxu0 0.0
  %4479 = vmatpush1.msra.mxu0 %v3997
  %4480 = vmatprep.subr.mxu0 0.0
  %4481 = vmatpush1.msra.mxu0 %v3998
  %4482 = vmatprep.subr.mxu0 0.0
  %4483 = vmatpush1.msra.mxu0 %v3999
  %4484 = vmatprep.subr.mxu0 0.0
  %4485 = vmatpush1.msra.mxu0 %v4000
  %4486 = vmatprep.subr.mxu0 0.0
  %4487 = vmatpush1.msra.mxu0 %v4001
  %4488 = vmatprep.subr.mxu0 0.0
  %4489 = vmatpush1.msra.mxu0 %v4002
  %4490 = vmatprep.subr.mxu0 0.0
  %4491 = vmatpush1.msra.mxu0 %v4003
  %4492 = vmatprep.subr.mxu0 0.0
  %4493 = vmatpush1.msra.mxu0 %v4004
  %4494 = vmatprep.subr.mxu0 0.0
  %4495 = vmatpush1.msra.mxu0 0.0
  %4496 = vmatprep.subr.mxu0 0.0
  %4497 = vmatpush1.msra.mxu0 0.0
  %4498 = vmatprep.subr.mxu0 0.0
  %4499 = vmatpush1.msra.mxu0 0.0
  %4500 = vmatprep.subr.mxu0 0.0
  %4501 = vmatpush1.msra.mxu0 0.0
  %4502 = vmatprep.subr.mxu0 0.0
  %4503 = vmatpush1.msra.mxu0 0.0
  %4504 = vmatprep.subr.mxu0 0.0
  %4505 = vmatpush1.msra.mxu0 0.0
  %4506 = vmatprep.subr.mxu0 0.0
  %4507 = vmatpush1.msra.mxu0 0.0
  %4508 = vmatprep.subr.mxu0 0.0
  %4509 = vmatpush1.msra.mxu0 0.0
  %4510 = vmatprep.subr.mxu0 0.0
  %4511 = vmatpush1.msra.mxu0 0.0
  %4512 = vmatprep.subr.mxu0 0.0
  %4513 = vmatpush1.msra.mxu0 0.0
  %4514 = vmatprep.subr.mxu0 0.0
  %4515 = vmatpush1.msra.mxu0 0.0
  %4516 = vmatprep.subr.mxu0 0.0
  %4517 = vmatpush1.msra.mxu0 0.0
  %4518 = vmatprep.subr.mxu0 0.0
  %4519 = vmatpush1.msra.mxu0 0.0
  %4520 = vmatprep.subr.mxu0 0.0
  %4521 = vmatpush1.msra.mxu0 0.0
  %4522 = vmatprep.mubr.f32.mxu0 %v4386
  %4523 = vmatmul.mubr.f32.gmra.mrb[0].mxu0 %v4377
  %v4524 = vpop.f32.mrb[0].mxu0
  %v4525 = vadd.f32 %v4455, %v4524
  %v4526 = vpop.f32.mrb[0].mxu0
  %4527 = vdwg.mxu0
  %v4528 = vmul.f32 %v4525, 0.02
  %v4529 = vadd.f32 %v4528, 1e-05
  %v4530 = vrsqrt.pop %v4529
  %v4531 = vmul.f32 %v4530, %v4013
  %v4533 = vsel %vm1948, %v4531, 0
  %4535 = vmatprep.subr.mxu0 %v4006
  %4536 = vmatpush1.msra.mxu0 %v4005
  %4537 = vmatprep.subr.mxu0 %v4010
  %4538 = vmatpush1.msra.mxu0 %v4009
  %4539 = vmatprep.subr.mxu0 0.0
  %4540 = vmatpush1.msra.mxu0 0.0
  %4541 = vmatprep.subr.mxu0 0.0
  %4542 = vmatpush1.msra.mxu0 0.0
  %4543 = vmatprep.subr.mxu0 0.0
  %4544 = vmatpush1.msra.mxu0 0.0
  %4545 = vmatprep.subr.mxu0 0.0
  %4546 = vmatpush1.msra.mxu0 0.0
  %4547 = vmatprep.subr.mxu0 0.0
  %4548 = vmatpush1.msra.mxu0 0.0
  %4549 = vmatprep.subr.mxu0 0.0
  %4550 = vmatpush1.msra.mxu0 0.0
  %4551 = vmatprep.subr.mxu0 0.0
  %4552 = vmatpush1.msra.mxu0 0.0
  %4553 = vmatprep.subr.mxu0 0.0
  %4554 = vmatpush1.msra.mxu0 0.0
  %4555 = vmatprep.subr.mxu0 0.0
  %4556 = vmatpush1.msra.mxu0 0.0
  %4557 = vmatprep.subr.mxu0 0.0
  %4558 = vmatpush1.msra.mxu0 0.0
  %4559 = vmatprep.subr.mxu0 0.0
  %4560 = vmatpush1.msra.mxu0 0.0
  %4561 = vmatprep.subr.mxu0 0.0
  %4562 = vmatpush1.msra.mxu0 0.0
  %4563 = vmatprep.subr.mxu0 0.0
  %4564 = vmatpush1.msra.mxu0 0.0
  %4565 = vmatprep.subr.mxu0 0.0
  %4566 = vmatpush1.msra.mxu0 0.0
  %4567 = vmatprep.subr.mxu0 0.0
  %4568 = vmatpush1.msra.mxu0 0.0
  %4569 = vmatprep.subr.mxu0 0.0
  %4570 = vmatpush1.msra.mxu0 0.0
  %4571 = vmatprep.subr.mxu0 0.0
  %4572 = vmatpush1.msra.mxu0 0.0
  %4573 = vmatprep.subr.mxu0 0.0
  %4574 = vmatpush1.msra.mxu0 0.0
  %4575 = vmatprep.subr.mxu0 0.0
  %4576 = vmatpush1.msra.mxu0 0.0
  %4577 = vmatprep.subr.mxu0 0.0
  %4578 = vmatpush1.msra.mxu0 0.0
  %4579 = vmatprep.subr.mxu0 0.0
  %4580 = vmatpush1.msra.mxu0 0.0
  %4581 = vmatprep.subr.mxu0 0.0
  %4582 = vmatpush1.msra.mxu0 0.0
  %4583 = vmatprep.subr.mxu0 0.0
  %4584 = vmatpush1.msra.mxu0 0.0
  %4585 = vmatprep.subr.mxu0 0.0
  %4586 = vmatpush1.msra.mxu0 0.0
  %4587 = vmatprep.subr.mxu0 0.0
  %4588 = vmatpush1.msra.mxu0 0.0
  %4589 = vmatprep.subr.mxu0 0.0
  %4590 = vmatpush1.msra.mxu0 0.0
  %4591 = vmatprep.subr.mxu0 0.0
  %4592 = vmatpush1.msra.mxu0 0.0
  %4593 = vmatprep.subr.mxu0 0.0
  %4594 = vmatpush1.msra.mxu0 0.0
  %4595 = vmatprep.subr.mxu0 0.0
  %4596 = vmatpush1.msra.mxu0 0.0
  %4597 = vmatprep.subr.mxu0 0.0
  %4598 = vmatpush1.msra.mxu0 0.0
  %4599 = vmatprep.mubr.f32.mxu0 0.0
  %4600 = vmatmul.mubr.f32.gmra.mrb[0].mxu0 %v4533
  %v4601 = vpop.f32.mrb[0].mxu0
  %v4602 = vadd.f32 0.0, %v4601
  %v4603 = vpop.f32.mrb[0].mxu0
  %v4604 = vadd.f32 0.0, %v4603
  %4605 = vdwg.mxu0
  %4606 = vmatprep.subr.mxu0 %v4008
  %4607 = vmatpush1.msra.mxu0 %v4007
  %4608 = vmatprep.subr.mxu0 %v4012
  %4609 = vmatpush1.msra.mxu0 %v4011
  %4610 = vmatprep.subr.mxu0 0.0
  %4611 = vmatpush1.msra.mxu0 0.0
  %4612 = vmatprep.subr.mxu0 0.0
  %4613 = vmatpush1.msra.mxu0 0.0
  %4614 = vmatprep.subr.mxu0 0.0
  %4615 = vmatpush1.msra.mxu0 0.0
  %4616 = vmatprep.subr.mxu0 0.0
  %4617 = vmatpush1.msra.mxu0 0.0
  %4618 = vmatprep.subr.mxu0 0.0
  %4619 = vmatpush1.msra.mxu0 0.0
  %4620 = vmatprep.subr.mxu0 0.0
  %4621 = vmatpush1.msra.mxu0 0.0
  %4622 = vmatprep.subr.mxu0 0.0
  %4623 = vmatpush1.msra.mxu0 0.0
  %4624 = vmatprep.subr.mxu0 0.0
  %4625 = vmatpush1.msra.mxu0 0.0
  %4626 = vmatprep.subr.mxu0 0.0
  %4627 = vmatpush1.msra.mxu0 0.0
  %4628 = vmatprep.subr.mxu0 0.0
  %4629 = vmatpush1.msra.mxu0 0.0
  %4630 = vmatprep.subr.mxu0 0.0
  %4631 = vmatpush1.msra.mxu0 0.0
  %4632 = vmatprep.subr.mxu0 0.0
  %4633 = vmatpush1.msra.mxu0 0.0
  %4634 = vmatprep.subr.mxu0 0.0
  %4635 = vmatpush1.msra.mxu0 0.0
  %4636 = vmatprep.subr.mxu0 0.0
  %4637 = vmatpush1.msra.mxu0 0.0
  %4638 = vmatprep.subr.mxu0 0.0
  %4639 = vmatpush1.msra.mxu0 0.0
  %4640 = vmatprep.subr.mxu0 0.0
  %4641 = vmatpush1.msra.mxu0 0.0
  %4642 = vmatprep.subr.mxu0 0.0
  %4643 = vmatpush1.msra.mxu0 0.0
  %4644 = vmatprep.subr.mxu0 0.0
  %4645 = vmatpush1.msra.mxu0 0.0
  %4646 = vmatprep.subr.mxu0 0.0
  %4647 = vmatpush1.msra.mxu0 0.0
  %4648 = vmatprep.subr.mxu0 0.0
  %4649 = vmatpush1.msra.mxu0 0.0
  %4650 = vmatprep.subr.mxu0 0.0
  %4651 = vmatpush1.msra.mxu0 0.0
  %4652 = vmatprep.subr.mxu0 0.0
  %4653 = vmatpush1.msra.mxu0 0.0
  %4654 = vmatprep.subr.mxu0 0.0
  %4655 = vmatpush1.msra.mxu0 0.0
  %4656 = vmatprep.subr.mxu0 0.0
  %4657 = vmatpush1.msra.mxu0 0.0
  %4658 = vmatprep.subr.mxu0 0.0
  %4659 = vmatpush1.msra.mxu0 0.0
  %4660 = vmatprep.subr.mxu0 0.0
  %4661 = vmatpush1.msra.mxu0 0.0
  %4662 = vmatprep.subr.mxu0 0.0
  %4663 = vmatpush1.msra.mxu0 0.0
  %4664 = vmatprep.subr.mxu0 0.0
  %4665 = vmatpush1.msra.mxu0 0.0
  %4666 = vmatprep.subr.mxu0 0.0
  %4667 = vmatpush1.msra.mxu0 0.0
  %4668 = vmatprep.subr.mxu0 0.0
  %4669 = vmatpush1.msra.mxu0 0.0
  %4670 = vmatprep.mubr.f32.mxu0 0.0
  %4671 = vmatmul.mubr.f32.gmra.mrb[0].mxu0 %v4533
  %v4672 = vpop.f32.mrb[0].mxu0
  %v4673 = vadd.f32 0.0, %v4672
  %v4674 = vpop.f32.mrb[0].mxu0
  %v4675 = vadd.f32 0.0, %v4674
  %4676 = vdwg.mxu0
  %v4677 = vlaneseq
  %v4678 = vshrl.u32 %v4677, 7
  %v4679 = vsub.s32 0, %v4678
  %v4680 = vrot.slane %v4602, %v4679
  %v4681 = vlaneseq
  %v4682 = vshrl.u32 %v4681, 7
  %v4683 = vsub.s32 0, %v4682
  %v4684 = vrot.slane %v4604, %v4683
  %v4685 = vlaneseq
  %v4686 = vshrl.u32 %v4685, 7
  %v4687 = vsub.s32 0, %v4686
  %v4688 = vrot.slane %v4673, %v4687
  %v4689 = vlaneseq
  %v4690 = vshrl.u32 %v4689, 7
  %v4691 = vsub.s32 0, %v4690
  %v4692 = vrot.slane %v4675, %v4691
  %v4693 = vmul.f32 %v4349, %v4680
  %v4694 = vmul.f32 %v4350, %v4684
  %v4695 = vmul.f32 %v4351, %v4688
  %v4696 = vmul.f32 %v4352, %v4692
  %v4698 = vlaneseq
  %v4699 = vshrl.u32 %v4698, 7
  %v4700 = vsub.s32 0, %v4699
  %v4701 = vrot.slane %v4014, %v4700
  %v4702 = vlaneseq
  %v4703 = vshrl.u32 %v4702, 7
  %v4704 = vsub.s32 1, %v4703
  %v4705 = vrot.slane %v4014, %v4704
  %v4706 = vlaneseq
  %v4707 = vshrl.u32 %v4706, 7
  %v4708 = vsub.s32 2, %v4707
  %v4709 = vrot.slane %v4014, %v4708
  %v4710 = vlaneseq
  %v4711 = vshrl.u32 %v4710, 7
  %v4712 = vsub.s32 3, %v4711
  %v4713 = vrot.slane %v4014, %v4712
  %v4718 = vadd.f32 %v4693, %v4701
  %v4719 = vadd.f32 %v4694, %v4705
  %v4720 = vadd.f32 %v4695, %v4709
  %v4721 = vadd.f32 %v4696, %v4713
  %v4722 = vmax.f32 %v4718, 0.0
  %v4723 = vmax.f32 %v4719, 0.0
  %v4724 = vmax.f32 %v4720, 0.0
  %v4725 = vmax.f32 %v4721, 0.0
  %v4726 = vpack.c.bf16 %v4722, %v4722
  %v4727 = vpack.c.bf16 %v4723, %v4723
  %v4728 = vpack.c.bf16 %v4724, %v4724
  %v4729 = vpack.c.bf16 %v4725, %v4725
  %v4730 = vld [vmem:[%s21] sm:$0xff]
  %v4731 = vld [vmem:[%s21 + $0x8] sm:$0xff]
  %v4732 = vld [vmem:[%s21 + $0x10] sm:$0xff]
  %v4733 = vld [vmem:[%s21 + $0x18] sm:$0xf]
  %v4734 = vld [vmem:[%s21 + $0x1c] sm:$0xff]
  %v4735 = vld [vmem:[%s21 + $0x24] sm:$0xff]
  %v4736 = vld [vmem:[%s21 + $0x2c] sm:$0xff]
  %v4737 = vld [vmem:[%s21 + $0x34] sm:$0xf]
  %v4738 = vld [vmem:[%s21 + $0x38] sm:$0xff]
  %v4739 = vld [vmem:[%s21 + $0x40] sm:$0xff]
  %v4740 = vld [vmem:[%s21 + $0x48] sm:$0xff]
  %v4741 = vld [vmem:[%s21 + $0x50] sm:$0xf]
  %v4742 = vld [vmem:[%s21 + $0x54] sm:$0xff]
  %v4743 = vld [vmem:[%s21 + $0x5c] sm:$0xff]
  %v4744 = vld [vmem:[%s21 + $0x64] sm:$0xff]
  %v4745 = vld [vmem:[%s21 + $0x6c] sm:$0xf]
  %v4746 = vld [vmem:[%s21 + $0x70] sm:$0xff]
  %v4747 = vld [vmem:[%s21 + $0x78] sm:$0xff]
  %v4748 = vld [vmem:[%s21 + $0x80] sm:$0xff]
  %v4749 = vld [vmem:[%s21 + $0x88] sm:$0xf]
  %v4750 = vld [vmem:[%s21 + $0x8c] sm:$0xff]
  %v4751 = vld [vmem:[%s21 + $0x94] sm:$0xff]
  %v4752 = vld [vmem:[%s21 + $0x9c] sm:$0xff]
  %v4753 = vld [vmem:[%s21 + $0xa4] sm:$0xf]
  %v4754 = vld [vmem:[%s21 + $0xa8] sm:$0xff]
  %v4755 = vld [vmem:[%s21 + $0xb0] sm:$0xff]
  %v4756 = vld [vmem:[%s21 + $0xb8] sm:$0xff]
  %v4757 = vld [vmem:[%s21 + $0xc0] sm:$0xf]
  %v4758 = vld [vmem:[%s21 + $0xc4] sm:$0xff]
  %v4759 = vld [vmem:[%s21 + $0xcc] sm:$0xff]
  %v4760 = vld [vmem:[%s21 + $0xd4] sm:$0xff]
  %v4761 = vld [vmem:[%s21 + $0xdc] sm:$0xf]
  %v4762 = vld [vmem:[%s21 + $0xe0] sm:$0xff]
  %v4763 = vld [vmem:[%s21 + $0xe8] sm:$0xff]
  %v4764 = vld [vmem:[%s21 + $0xf0] sm:$0xff]
  %v4765 = vld [vmem:[%s21 + $0xf8] sm:$0xf]
  %v4766 = vld [vmem:[%s21 + $0xfc] sm:$0xff]
  %v4767 = vld [vmem:[%s21 + $0x104] sm:$0xff]
  %v4768 = vld [vmem:[%s21 + $0x10c] sm:$0xff]
  %v4769 = vld [vmem:[%s21 + $0x114] sm:$0xf]
  %v4770 = vld [vmem:[%s21 + $0x118] sm:$0xff]
  %v4771 = vld [vmem:[%s21 + $0x120] sm:$0xff]
  %v4772 = vld [vmem:[%s21 + $0x128] sm:$0xff]
  %v4773 = vld [vmem:[%s21 + $0x130] sm:$0xf]
  %v4774 = vld [vmem:[%s21 + $0x134] sm:$0xff]
  %v4775 = vld [vmem:[%s21 + $0x13c] sm:$0xff]
  %v4776 = vld [vmem:[%s21 + $0x144] sm:$0xff]
  %v4777 = vld [vmem:[%s21 + $0x14c] sm:$0xf]
  %v4778 = vld [vmem:[%s21 + $0x150] sm:$0xff]
  %v4779 = vld [vmem:[%s21 + $0x158] sm:$0xff]
  %v4780 = vld [vmem:[%s21 + $0x160] sm:$0xff]
  %v4781 = vld [vmem:[%s21 + $0x168] sm:$0xf]
  %v4782 = vld [vmem:[%s21 + $0x16c] sm:$0xff]
  %v4783 = vld [vmem:[%s21 + $0x174] sm:$0xff]
  %v4784 = vld [vmem:[%s21 + $0x17c] sm:$0xff]
  %v4785 = vld [vmem:[%s21 + $0x184] sm:$0xf]
  %v4786 = vld [vmem:[%s21 + $0x188] sm:$0xff]
  %v4787 = vld [vmem:[%s21 + $0x190] sm:$0xff]
  %v4788 = vld [vmem:[%s21 + $0x198] sm:$0xff]
  %v4789 = vld [vmem:[%s21 + $0x1a0] sm:$0xf]
  %v4790 = vld [vmem:[%s21 + $0x1a4] sm:$0xff]
  %v4791 = vld [vmem:[%s21 + $0x1ac] sm:$0xff]
  %v4792 = vld [vmem:[%s21 + $0x1b4] sm:$0xff]
  %v4793 = vld [vmem:[%s21 + $0x1bc] sm:$0xf]
  %v4794 = vld [vmem:[%s21 + $0x1c0] sm:$0xff]
  %v4795 = vld [vmem:[%s21 + $0x1c8] sm:$0xff]
  %v4796 = vld [vmem:[%s21 + $0x1d0] sm:$0xff]
  %v4797 = vld [vmem:[%s21 + $0x1d8] sm:$0xf]
  %v4798 = vld [vmem:[%s21 + $0x1dc] sm:$0xff]
  %v4799 = vld [vmem:[%s21 + $0x1e4] sm:$0xff]
  %v4800 = vld [vmem:[%s21 + $0x1ec] sm:$0xff]
  %v4801 = vld [vmem:[%s21 + $0x1f4] sm:$0xf]
  %v4802 = vld [vmem:[%s21 + $0x1f8] sm:$0xff]
  %v4803 = vld [vmem:[%s21 + $0x200] sm:$0xff]
  %v4804 = vld [vmem:[%s21 + $0x208] sm:$0xff]
  %v4805 = vld [vmem:[%s21 + $0x210] sm:$0xf]
  %v4806 = vld [vmem:[%s21 + $0x214] sm:$0xff]
  %v4807 = vld [vmem:[%s21 + $0x21c] sm:$0xff]
  %v4808 = vld [vmem:[%s21 + $0x224] sm:$0xff]
  %v4809 = vld [vmem:[%s21 + $0x22c] sm:$0xf]
  %v4810 = vld [vmem:[%s21 + $0x230] sm:$0xff]
  %v4811 = vld [vmem:[%s21 + $0x238] sm:$0xff]
  %v4812 = vld [vmem:[%s21 + $0x240] sm:$0xff]
  %v4813 = vld [vmem:[%s21 + $0x248] sm:$0xf]
  %v4814 = vld [vmem:[%s21 + $0x24c] sm:$0xff]
  %v4815 = vld [vmem:[%s21 + $0x254] sm:$0xff]
  %v4816 = vld [vmem:[%s21 + $0x25c] sm:$0xff]
  %v4817 = vld [vmem:[%s21 + $0x264] sm:$0xf]
  %v4818 = vld [vmem:[%s21 + $0x268] sm:$0xff]
  %v4819 = vld [vmem:[%s21 + $0x270] sm:$0xff]
  %v4820 = vld [vmem:[%s21 + $0x278] sm:$0xff]
  %v4821 = vld [vmem:[%s21 + $0x280] sm:$0xf]
  %v4822 = vld [vmem:[%s21 + $0x284] sm:$0xff]
  %v4823 = vld [vmem:[%s21 + $0x28c] sm:$0xff]
  %v4824 = vld [vmem:[%s21 + $0x294] sm:$0xff]
  %v4825 = vld [vmem:[%s21 + $0x29c] sm:$0xf]
  %v4826 = vld [vmem:[%s21 + $0x2a0] sm:$0xff]
  %v4827 = vld [vmem:[%s21 + $0x2a8] sm:$0xff]
  %v4828 = vld [vmem:[%s21 + $0x2b0] sm:$0xff]
  %v4829 = vld [vmem:[%s21 + $0x2b8] sm:$0xf]
  %v4830 = vld [vmem:[%s21 + $0x2bc] sm:$0xff]
  %v4831 = vld [vmem:[%s21 + $0x2c4] sm:$0xff]
  %v4832 = vld [vmem:[%s21 + $0x2cc] sm:$0xff]
  %v4833 = vld [vmem:[%s21 + $0x2d4] sm:$0xf]
  %v4834 = vld [vmem:[%s21 + $0x2d8] sm:$0xff]
  %v4835 = vld [vmem:[%s21 + $0x2e0] sm:$0xff]
  %v4836 = vld [vmem:[%s21 + $0x2e8] sm:$0xff]
  %v4837 = vld [vmem:[%s21 + $0x2f0] sm:$0xf]
  %v4838 = vld [vmem:[%s21 + $0x2f4] sm:$0xff]
  %v4839 = vld [vmem:[%s21 + $0x2fc] sm:$0xff]
  %v4840 = vld [vmem:[%s21 + $0x304] sm:$0xff]
  %v4841 = vld [vmem:[%s21 + $0x30c] sm:$0xf]
  %v4842 = vld [vmem:[%s21 + $0x310] sm:$0xff]
  %v4843 = vld [vmem:[%s21 + $0x318] sm:$0xff]
  %v4844 = vld [vmem:[%s21 + $0x320] sm:$0xff]
  %v4845 = vld [vmem:[%s21 + $0x328] sm:$0xf]
  %v4846 = vld [vmem:[%s21 + $0x32c] sm:$0xff]
  %v4847 = vld [vmem:[%s21 + $0x334] sm:$0xff]
  %v4848 = vld [vmem:[%s21 + $0x33c] sm:$0xff]
  %v4849 = vld [vmem:[%s21 + $0x344] sm:$0xf]
  %v4850 = vld [vmem:[%s21 + $0x348] sm:$0xff]
  %v4851 = vld [vmem:[%s21 + $0x350] sm:$0xff]
  %v4852 = vld [vmem:[%s21 + $0x358] sm:$0xff]
  %v4853 = vld [vmem:[%s21 + $0x360] sm:$0xf]
  %v4854 = vld [vmem:[%s21 + $0x364] sm:$0xff]
  %v4855 = vld [vmem:[%s21 + $0x36c] sm:$0xff]
  %v4856 = vld [vmem:[%s21 + $0x374] sm:$0xff]
  %v4857 = vld [vmem:[%s21 + $0x37c] sm:$0xf]
  %v4858 = vld [vmem:[%s21 + $0x380] sm:$0xff]
  %v4859 = vld [vmem:[%s21 + $0x388] sm:$0xff]
  %v4860 = vld [vmem:[%s21 + $0x390] sm:$0xff]
  %v4861 = vld [vmem:[%s21 + $0x398] sm:$0xf]
  %v4862 = vld [vmem:[%s21 + $0x39c] sm:$0xff]
  %v4863 = vld [vmem:[%s21 + $0x3a4] sm:$0xff]
  %v4864 = vld [vmem:[%s21 + $0x3ac] sm:$0xff]
  %v4865 = vld [vmem:[%s21 + $0x3b4] sm:$0xf]
  %v4866 = vld [vmem:[%s21 + $0x3b8] sm:$0xff]
  %v4867 = vld [vmem:[%s21 + $0x3c0] sm:$0xff]
  %v4868 = vld [vmem:[%s21 + $0x3c8] sm:$0xff]
  %v4869 = vld [vmem:[%s21 + $0x3d0] sm:$0xf]
  %v4870 = vld [vmem:[%s21 + $0x3d4] sm:$0xff]
  %v4871 = vld [vmem:[%s21 + $0x3dc] sm:$0xff]
  %v4872 = vld [vmem:[%s21 + $0x3e4] sm:$0xff]
  %v4873 = vld [vmem:[%s21 + $0x3ec] sm:$0xf]
  %v4874 = vld [vmem:[%s21 + $0x3f0] sm:$0xff]
  %v4875 = vld [vmem:[%s21 + $0x3f8] sm:$0xff]
  %v4876 = vld [vmem:[%s21 + $0x400] sm:$0xff]
  %v4877 = vld [vmem:[%s21 + $0x408] sm:$0xf]
  %v4878 = vld [vmem:[%s21 + $0x40c] sm:$0xff]
  %v4879 = vld [vmem:[%s21 + $0x414] sm:$0xff]
  %v4880 = vld [vmem:[%s21 + $0x41c] sm:$0xff]
  %v4881 = vld [vmem:[%s21 + $0x424] sm:$0xf]
  %v4882 = vld [vmem:[%s21 + $0x428] sm:$0xff]
  %v4883 = vld [vmem:[%s21 + $0x430] sm:$0xff]
  %v4884 = vld [vmem:[%s21 + $0x438] sm:$0xff]
  %v4885 = vld [vmem:[%s21 + $0x440] sm:$0xf]
  %v4886 = vld [vmem:[%s21 + $0x444] sm:$0xff]
  %v4887 = vld [vmem:[%s21 + $0x44c] sm:$0xff]
  %v4888 = vld [vmem:[%s21 + $0x454] sm:$0xff]
  %v4889 = vld [vmem:[%s21 + $0x45c] sm:$0xf]
  %v4890 = vld [vmem:[%s21 + $0x460] sm:$0xff]
  %v4891 = vld [vmem:[%s21 + $0x468] sm:$0xff]
  %v4892 = vld [vmem:[%s21 + $0x470] sm:$0xff]
  %v4893 = vld [vmem:[%s21 + $0x478] sm:$0xf]
  %v4894 = vld [vmem:[%s21 + $0x47c] sm:$0xff]
  %v4895 = vld [vmem:[%s21 + $0x484] sm:$0xff]
  %v4896 = vld [vmem:[%s21 + $0x48c] sm:$0xff]
  %v4897 = vld [vmem:[%s21 + $0x494] sm:$0xf]
  %v4898 = vld [vmem:[%s21 + $0x498] sm:$0xff]
  %v4899 = vld [vmem:[%s21 + $0x4a0] sm:$0xff]
  %v4900 = vld [vmem:[%s21 + $0x4a8] sm:$0xff]
  %v4901 = vld [vmem:[%s21 + $0x4b0] sm:$0xf]
  %v4902 = vld [vmem:[%s21 + $0x4b4] sm:$0xff]
  %v4903 = vld [vmem:[%s21 + $0x4bc] sm:$0xff]
  %v4904 = vld [vmem:[%s21 + $0x4c4] sm:$0xff]
  %v4905 = vld [vmem:[%s21 + $0x4cc] sm:$0xf]
  %v4906 = vld [vmem:[%s21 + $0x4d0] sm:$0xff]
  %v4907 = vld [vmem:[%s21 + $0x4d8] sm:$0xff]
  %v4908 = vld [vmem:[%s21 + $0x4e0] sm:$0xff]
  %v4909 = vld [vmem:[%s21 + $0x4e8] sm:$0xf]
  %v4910 = vld [vmem:[%s21 + $0x4ec] sm:$0xff]
  %v4911 = vld [vmem:[%s21 + $0x4f4] sm:$0xff]
  %v4912 = vld [vmem:[%s21 + $0x4fc] sm:$0xff]
  %v4913 = vld [vmem:[%s21 + $0x504] sm:$0xf]
  %v4914 = vld [vmem:[%s21 + $0x508] sm:$0xff]
  %v4915 = vld [vmem:[%s21 + $0x510] sm:$0xff]
  %v4916 = vld [vmem:[%s21 + $0x518] sm:$0xff]
  %v4917 = vld [vmem:[%s21 + $0x520] sm:$0xf]
  %v4918 = vld [vmem:[%s21 + $0x524] sm:$0xff]
  %v4919 = vld [vmem:[%s21 + $0x52c] sm:$0xff]
  %v4920 = vld [vmem:[%s21 + $0x534] sm:$0xff]
  %v4921 = vld [vmem:[%s21 + $0x53c] sm:$0xf]
  %v4922 = vld [vmem:[%s21 + $0x540] sm:$0xff]
  %v4923 = vld [vmem:[%s21 + $0x548] sm:$0xff]
  %v4924 = vld [vmem:[%s21 + $0x550] sm:$0xff]
  %v4925 = vld [vmem:[%s21 + $0x558] sm:$0xf]
  %v4926 = vld [vmem:[%s21 + $0x55c] sm:$0xff]
  %v4927 = vld [vmem:[%s21 + $0x564] sm:$0xff]
  %v4928 = vld [vmem:[%s21 + $0x56c] sm:$0xff]
  %v4929 = vld [vmem:[%s21 + $0x574] sm:$0xf]
  %v5130 = vunpack.c.l.b16 %v4730
  %v5131 = vunpack.c.h.b16 %v4730
  %v5132 = vunpack.c.l.b16 %v4731
  %v5133 = vunpack.c.h.b16 %v4731
  %v5134 = vunpack.c.l.b16 %v4732
  %v5135 = vunpack.c.h.b16 %v4732
  %v5136 = vunpack.c.l.b16 %v4733
  %v5137 = vunpack.c.l.b16 %v4734
  %v5138 = vunpack.c.h.b16 %v4734
  %v5139 = vunpack.c.l.b16 %v4735
  %v5140 = vunpack.c.h.b16 %v4735
  %v5141 = vunpack.c.l.b16 %v4736
  %v5142 = vunpack.c.h.b16 %v4736
  %v5143 = vunpack.c.l.b16 %v4737
  %v5144 = vunpack.c.l.b16 %v4738
  %v5145 = vunpack.c.h.b16 %v4738
  %v5146 = vunpack.c.l.b16 %v4739
  %v5147 = vunpack.c.h.b16 %v4739
  %v5148 = vunpack.c.l.b16 %v4740
  %v5149 = vunpack.c.h.b16 %v4740
  %v5150 = vunpack.c.l.b16 %v4741
  %v5151 = vunpack.c.l.b16 %v4742
  %v5152 = vunpack.c.h.b16 %v4742
  %v5153 = vunpack.c.l.b16 %v4743
  %v5154 = vunpack.c.h.b16 %v4743
  %v5155 = vunpack.c.l.b16 %v4744
  %v5156 = vunpack.c.h.b16 %v4744
  %v5157 = vunpack.c.l.b16 %v4745
  %v5158 = vunpack.c.l.b16 %v4746
  %v5159 = vunpack.c.h.b16 %v4746
  %v5160 = vunpack.c.l.b16 %v4747
  %v5161 = vunpack.c.h.b16 %v4747
  %v5162 = vunpack.c.l.b16 %v4748
  %v5163 = vunpack.c.h.b16 %v4748
  %v5164 = vunpack.c.l.b16 %v4749
  %v5165 = vunpack.c.l.b16 %v4750
  %v5166 = vunpack.c.h.b16 %v4750
  %v5167 = vunpack.c.l.b16 %v4751
  %v5168 = vunpack.c.h.b16 %v4751
  %v5169 = vunpack.c.l.b16 %v4752
  %v5170 = vunpack.c.h.b16 %v4752
  %v5171 = vunpack.c.l.b16 %v4753
  %v5172 = vunpack.c.l.b16 %v4754
  %v5173 = vunpack.c.h.b16 %v4754
  %v5174 = vunpack.c.l.b16 %v4755
  %v5175 = vunpack.c.h.b16 %v4755
  %v5176 = vunpack.c.l.b16 %v4756
  %v5177 = vunpack.c.h.b16 %v4756
  %v5178 = vunpack.c.l.b16 %v4757
  %v5179 = vunpack.c.l.b16 %v4758
  %v5180 = vunpack.c.h.b16 %v4758
  %v5181 = vunpack.c.l.b16 %v4759
  %v5182 = vunpack.c.h.b16 %v4759
  %v5183 = vunpack.c.l.b16 %v4760
  %v5184 = vunpack.c.h.b16 %v4760
  %v5185 = vunpack.c.l.b16 %v4761
  %v5186 = vunpack.c.l.b16 %v4762
  %v5187 = vunpack.c.h.b16 %v4762
  %v5188 = vunpack.c.l.b16 %v4763
  %v5189 = vunpack.c.h.b16 %v4763
  %v5190 = vunpack.c.l.b16 %v4764
  %v5191 = vunpack.c.h.b16 %v4764
  %v5192 = vunpack.c.l.b16 %v4765
  %v5193 = vunpack.c.l.b16 %v4766
  %v5194 = vunpack.c.h.b16 %v4766
  %v5195 = vunpack.c.l.b16 %v4767
  %v5196 = vunpack.c.h.b16 %v4767
  %v5197 = vunpack.c.l.b16 %v4768
  %v5198 = vunpack.c.h.b16 %v4768
  %v5199 = vunpack.c.l.b16 %v4769
  %v5200 = vunpack.c.l.b16 %v4770
  %v5201 = vunpack.c.h.b16 %v4770
  %v5202 = vunpack.c.l.b16 %v4771
  %v5203 = vunpack.c.h.b16 %v4771
  %v5204 = vunpack.c.l.b16 %v4772
  %v5205 = vunpack.c.h.b16 %v4772
  %v5206 = vunpack.c.l.b16 %v4773
  %v5207 = vunpack.c.l.b16 %v4774
  %v5208 = vunpack.c.h.b16 %v4774
  %v5209 = vunpack.c.l.b16 %v4775
  %v5210 = vunpack.c.h.b16 %v4775
  %v5211 = vunpack.c.l.b16 %v4776
  %v5212 = vunpack.c.h.b16 %v4776
  %v5213 = vunpack.c.l.b16 %v4777
  %v5214 = vunpack.c.l.b16 %v4778
  %v5215 = vunpack.c.h.b16 %v4778
  %v5216 = vunpack.c.l.b16 %v4779
  %v5217 = vunpack.c.h.b16 %v4779
  %v5218 = vunpack.c.l.b16 %v4780
  %v5219 = vunpack.c.h.b16 %v4780
  %v5220 = vunpack.c.l.b16 %v4781
  %v5221 = vunpack.c.l.b16 %v4782
  %v5222 = vunpack.c.h.b16 %v4782
  %v5223 = vunpack.c.l.b16 %v4783
  %v5224 = vunpack.c.h.b16 %v4783
  %v5225 = vunpack.c.l.b16 %v4784
  %v5226 = vunpack.c.h.b16 %v4784
  %v5227 = vunpack.c.l.b16 %v4785
  %v5228 = vunpack.c.l.b16 %v4786
  %v5229 = vunpack.c.h.b16 %v4786
  %v5230 = vunpack.c.l.b16 %v4787
  %v5231 = vunpack.c.h.b16 %v4787
  %v5232 = vunpack.c.l.b16 %v4788
  %v5233 = vunpack.c.h.b16 %v4788
  %v5234 = vunpack.c.l.b16 %v4789
  %v5235 = vunpack.c.l.b16 %v4790
  %v5236 = vunpack.c.h.b16 %v4790
  %v5237 = vunpack.c.l.b16 %v4791
  %v5238 = vunpack.c.h.b16 %v4791
  %v5239 = vunpack.c.l.b16 %v4792
  %v5240 = vunpack.c.h.b16 %v4792
  %v5241 = vunpack.c.l.b16 %v4793
  %v5242 = vunpack.c.l.b16 %v4794
  %v5243 = vunpack.c.h.b16 %v4794
  %v5244 = vunpack.c.l.b16 %v4795
  %v5245 = vunpack.c.h.b16 %v4795
  %v5246 = vunpack.c.l.b16 %v4796
  %v5247 = vunpack.c.h.b16 %v4796
  %v5248 = vunpack.c.l.b16 %v4797
  %v5249 = vunpack.c.l.b16 %v4798
  %v5250 = vunpack.c.h.b16 %v4798
  %v5251 = vunpack.c.l.b16 %v4799
  %v5252 = vunpack.c.h.b16 %v4799
  %v5253 = vunpack.c.l.b16 %v4800
  %v5254 = vunpack.c.h.b16 %v4800
  %v5255 = vunpack.c.l.b16 %v4801
  %v5256 = vunpack.c.l.b16 %v4802
  %v5257 = vunpack.c.h.b16 %v4802
  %v5258 = vunpack.c.l.b16 %v4803
  %v5259 = vunpack.c.h.b16 %v4803
  %v5260 = vunpack.c.l.b16 %v4804
  %v5261 = vunpack.c.h.b16 %v4804
  %v5262 = vunpack.c.l.b16 %v4805
  %v5263 = vunpack.c.l.b16 %v4806
  %v5264 = vunpack.c.h.b16 %v4806
  %v5265 = vunpack.c.l.b16 %v4807
  %v5266 = vunpack.c.h.b16 %v4807
  %v5267 = vunpack.c.l.b16 %v4808
  %v5268 = vunpack.c.h.b16 %v4808
  %v5269 = vunpack.c.l.b16 %v4809
  %v5270 = vunpack.c.l.b16 %v4810
  %v5271 = vunpack.c.h.b16 %v4810
  %v5272 = vunpack.c.l.b16 %v4811
  %v5273 = vunpack.c.h.b16 %v4811
  %v5274 = vunpack.c.l.b16 %v4812
  %v5275 = vunpack.c.h.b16 %v4812
  %v5276 = vunpack.c.l.b16 %v4813
  %v5277 = vunpack.c.l.b16 %v4814
  %v5278 = vunpack.c.h.b16 %v4814
  %v5279 = vunpack.c.l.b16 %v4815
  %v5280 = vunpack.c.h.b16 %v4815
  %v5281 = vunpack.c.l.b16 %v4816
  %v5282 = vunpack.c.h.b16 %v4816
  %v5283 = vunpack.c.l.b16 %v4817
  %v5284 = vunpack.c.l.b16 %v4818
  %v5285 = vunpack.c.h.b16 %v4818
  %v5286 = vunpack.c.l.b16 %v4819
  %v5287 = vunpack.c.h.b16 %v4819
  %v5288 = vunpack.c.l.b16 %v4820
  %v5289 = vunpack.c.h.b16 %v4820
  %v5290 = vunpack.c.l.b16 %v4821
  %v5291 = vunpack.c.l.b16 %v4822
  %v5292 = vunpack.c.h.b16 %v4822
  %v5293 = vunpack.c.l.b16 %v4823
  %v5294 = vunpack.c.h.b16 %v4823
  %v5295 = vunpack.c.l.b16 %v4824
  %v5296 = vunpack.c.h.b16 %v4824
  %v5297 = vunpack.c.l.b16 %v4825
  %v5298 = vunpack.c.l.b16 %v4826
  %v5299 = vunpack.c.h.b16 %v4826
  %v5300 = vunpack.c.l.b16 %v4827
  %v5301 = vunpack.c.h.b16 %v4827
  %v5302 = vunpack.c.l.b16 %v4828
  %v5303 = vunpack.c.h.b16 %v4828
  %v5304 = vunpack.c.l.b16 %v4829
  %v5305 = vunpack.c.l.b16 %v4830
  %v5306 = vunpack.c.h.b16 %v4830
  %v5307 = vunpack.c.l.b16 %v4831
  %v5308 = vunpack.c.h.b16 %v4831
  %v5309 = vunpack.c.l.b16 %v4832
  %v5310 = vunpack.c.h.b16 %v4832
  %v5311 = vunpack.c.l.b16 %v4833
  %v5312 = vunpack.c.l.b16 %v4834
  %v5313 = vunpack.c.h.b16 %v4834
  %v5314 = vunpack.c.l.b16 %v4835
  %v5315 = vunpack.c.h.b16 %v4835
  %v5316 = vunpack.c.l.b16 %v4836
  %v5317 = vunpack.c.h.b16 %v4836
  %v5318 = vunpack.c.l.b16 %v4837
  %v5319 = vunpack.c.l.b16 %v4838
  %v5320 = vunpack.c.h.b16 %v4838
  %v5321 = vunpack.c.l.b16 %v4839
  %v5322 = vunpack.c.h.b16 %v4839
  %v5323 = vunpack.c.l.b16 %v4840
  %v5324 = vunpack.c.h.b16 %v4840
  %v5325 = vunpack.c.l.b16 %v4841
  %v5326 = vunpack.c.l.b16 %v4842
  %v5327 = vunpack.c.h.b16 %v4842
  %v5328 = vunpack.c.l.b16 %v4843
  %v5329 = vunpack.c.h.b16 %v4843
  %v5330 = vunpack.c.l.b16 %v4844
  %v5331 = vunpack.c.h.b16 %v4844
  %v5332 = vunpack.c.l.b16 %v4845
  %v5333 = vunpack.c.l.b16 %v4846
  %v5334 = vunpack.c.h.b16 %v4846
  %v5335 = vunpack.c.l.b16 %v4847
  %v5336 = vunpack.c.h.b16 %v4847
  %v5337 = vunpack.c.l.b16 %v4848
  %v5338 = vunpack.c.h.b16 %v4848
  %v5339 = vunpack.c.l.b16 %v4849
  %v5340 = vunpack.c.l.b16 %v4850
  %v5341 = vunpack.c.h.b16 %v4850
  %v5342 = vunpack.c.l.b16 %v4851
  %v5343 = vunpack.c.h.b16 %v4851
  %v5344 = vunpack.c.l.b16 %v4852
  %v5345 = vunpack.c.h.b16 %v4852
  %v5346 = vunpack.c.l.b16 %v4853
  %v5347 = vunpack.c.l.b16 %v4854
  %v5348 = vunpack.c.h.b16 %v4854
  %v5349 = vunpack.c.l.b16 %v4855
  %v5350 = vunpack.c.h.b16 %v4855
  %v5351 = vunpack.c.l.b16 %v4856
  %v5352 = vunpack.c.h.b16 %v4856
  %v5353 = vunpack.c.l.b16 %v4857
  %v5354 = vunpack.c.l.b16 %v4858
  %v5355 = vunpack.c.h.b16 %v4858
  %v5356 = vunpack.c.l.b16 %v4859
  %v5357 = vunpack.c.h.b16 %v4859
  %v5358 = vunpack.c.l.b16 %v4860
  %v5359 = vunpack.c.h.b16 %v4860
  %v5360 = vunpack.c.l.b16 %v4861
  %v5361 = vunpack.c.l.b16 %v4862
  %v5362 = vunpack.c.h.b16 %v4862
  %v5363 = vunpack.c.l.b16 %v4863
  %v5364 = vunpack.c.h.b16 %v4863
  %v5365 = vunpack.c.l.b16 %v4864
  %v5366 = vunpack.c.h.b16 %v4864
  %v5367 = vunpack.c.l.b16 %v4865
  %v5368 = vunpack.c.l.b16 %v4866
  %v5369 = vunpack.c.h.b16 %v4866
  %v5370 = vunpack.c.l.b16 %v4867
  %v5371 = vunpack.c.h.b16 %v4867
  %v5372 = vunpack.c.l.b16 %v4868
  %v5373 = vunpack.c.h.b16 %v4868
  %v5374 = vunpack.c.l.b16 %v4869
  %v5375 = vunpack.c.l.b16 %v4870
  %v5376 = vunpack.c.h.b16 %v4870
  %v5377 = vunpack.c.l.b16 %v4871
  %v5378 = vunpack.c.h.b16 %v4871
  %v5379 = vunpack.c.l.b16 %v4872
  %v5380 = vunpack.c.h.b16 %v4872
  %v5381 = vunpack.c.l.b16 %v4873
  %v5382 = vunpack.c.l.b16 %v4874
  %v5383 = vunpack.c.h.b16 %v4874
  %v5384 = vunpack.c.l.b16 %v4875
  %v5385 = vunpack.c.h.b16 %v4875
  %v5386 = vunpack.c.l.b16 %v4876
  %v5387 = vunpack.c.h.b16 %v4876
  %v5388 = vunpack.c.l.b16 %v4877
  %v5389 = vunpack.c.l.b16 %v4878
  %v5390 = vunpack.c.h.b16 %v4878
  %v5391 = vunpack.c.l.b16 %v4879
  %v5392 = vunpack.c.h.b16 %v4879
  %v5393 = vunpack.c.l.b16 %v4880
  %v5394 = vunpack.c.h.b16 %v4880
  %v5395 = vunpack.c.l.b16 %v4881
  %v5396 = vunpack.c.l.b16 %v4882
  %v5397 = vunpack.c.h.b16 %v4882
  %v5398 = vunpack.c.l.b16 %v4883
  %v5399 = vunpack.c.h.b16 %v4883
  %v5400 = vunpack.c.l.b16 %v4884
  %v5401 = vunpack.c.h.b16 %v4884
  %v5402 = vunpack.c.l.b16 %v4885
  %v5403 = vunpack.c.l.b16 %v4886
  %v5404 = vunpack.c.h.b16 %v4886
  %v5405 = vunpack.c.l.b16 %v4887
  %v5406 = vunpack.c.h.b16 %v4887
  %v5407 = vunpack.c.l.b16 %v4888
  %v5408 = vunpack.c.h.b16 %v4888
  %v5409 = vunpack.c.l.b16 %v4889
  %v5410 = vunpack.c.l.b16 %v4890
  %v5411 = vunpack.c.h.b16 %v4890
  %v5412 = vunpack.c.l.b16 %v4891
  %v5413 = vunpack.c.h.b16 %v4891
  %v5414 = vunpack.c.l.b16 %v4892
  %v5415 = vunpack.c.h.b16 %v4892
  %v5416 = vunpack.c.l.b16 %v4893
  %v5417 = vunpack.c.l.b16 %v4894
  %v5418 = vunpack.c.h.b16 %v4894
  %v5419 = vunpack.c.l.b16 %v4895
  %v5420 = vunpack.c.h.b16 %v4895
  %v5421 = vunpack.c.l.b16 %v4896
  %v5422 = vunpack.c.h.b16 %v4896
  %v5423 = vunpack.c.l.b16 %v4897
  %v5424 = vunpack.c.l.b16 %v4898
  %v5425 = vunpack.c.h.b16 %v4898
  %v5426 = vunpack.c.l.b16 %v4899
  %v5427 = vunpack.c.h.b16 %v4899
  %v5428 = vunpack.c.l.b16 %v4900
  %v5429 = vunpack.c.h.b16 %v4900
  %v5430 = vunpack.c.l.b16 %v4901
  %v5431 = vunpack.c.l.b16 %v4902
  %v5432 = vunpack.c.h.b16 %v4902
  %v5433 = vunpack.c.l.b16 %v4903
  %v5434 = vunpack.c.h.b16 %v4903
  %v5435 = vunpack.c.l.b16 %v4904
  %v5436 = vunpack.c.h.b16 %v4904
  %v5437 = vunpack.c.l.b16 %v4905
  %v5438 = vunpack.c.l.b16 %v4906
  %v5439 = vunpack.c.h.b16 %v4906
  %v5440 = vunpack.c.l.b16 %v4907
  %v5441 = vunpack.c.h.b16 %v4907
  %v5442 = vunpack.c.l.b16 %v4908
  %v5443 = vunpack.c.h.b16 %v4908
  %v5444 = vunpack.c.l.b16 %v4909
  %v5445 = vunpack.c.l.b16 %v4910
  %v5446 = vunpack.c.h.b16 %v4910
  %v5447 = vunpack.c.l.b16 %v4911
  %v5448 = vunpack.c.h.b16 %v4911
  %v5449 = vunpack.c.l.b16 %v4912
  %v5450 = vunpack.c.h.b16 %v4912
  %v5451 = vunpack.c.l.b16 %v4913
  %v5452 = vunpack.c.l.b16 %v4914
  %v5453 = vunpack.c.h.b16 %v4914
  %v5454 = vunpack.c.l.b16 %v4915
  %v5455 = vunpack.c.h.b16 %v4915
  %v5456 = vunpack.c.l.b16 %v4916
  %v5457 = vunpack.c.h.b16 %v4916
  %v5458 = vunpack.c.l.b16 %v4917
  %v5459 = vunpack.c.l.b16 %v4918
  %v5460 = vunpack.c.h.b16 %v4918
  %v5461 = vunpack.c.l.b16 %v4919
  %v5462 = vunpack.c.h.b16 %v4919
  %v5463 = vunpack.c.l.b16 %v4920
  %v5464 = vunpack.c.h.b16 %v4920
  %v5465 = vunpack.c.l.b16 %v4921
  %v5466 = vunpack.c.l.b16 %v4922
  %v5467 = vunpack.c.h.b16 %v4922
  %v5468 = vunpack.c.l.b16 %v4923
  %v5469 = vunpack.c.h.b16 %v4923
  %v5470 = vunpack.c.l.b16 %v4924
  %v5471 = vunpack.c.h.b16 %v4924
  %v5472 = vunpack.c.l.b16 %v4925
  %v5473 = vunpack.c.l.b16 %v4926
  %v5474 = vunpack.c.h.b16 %v4926
  %v5475 = vunpack.c.l.b16 %v4927
  %v5476 = vunpack.c.h.b16 %v4927
  %v5477 = vunpack.c.l.b16 %v4928
  %v5478 = vunpack.c.h.b16 %v4928
  %v5479 = vunpack.c.l.b16 %v4929
  %v5480 = vpack.c.b16 %v5137, %v5130
  %v5481 = vpack.c.b16 %v5138, %v5131
  %v5482 = vpack.c.b16 %v5139, %v5132
  %v5483 = vpack.c.b16 %v5140, %v5133
  %v5484 = vpack.c.b16 %v5141, %v5134
  %v5485 = vpack.c.b16 %v5142, %v5135
  %v5486 = vpack.c.b16 %v5143, %v5136
  %v5487 = vpack.c.b16 %v5151, %v5144
  %v5488 = vpack.c.b16 %v5152, %v5145
  %v5489 = vpack.c.b16 %v5153, %v5146
  %v5490 = vpack.c.b16 %v5154, %v5147
  %v5491 = vpack.c.b16 %v5155, %v5148
  %v5492 = vpack.c.b16 %v5156, %v5149
  %v5493 = vpack.c.b16 %v5157, %v5150
  %v5494 = vpack.c.b16 %v5165, %v5158
  %v5495 = vpack.c.b16 %v5166, %v5159
  %v5496 = vpack.c.b16 %v5167, %v5160
  %v5497 = vpack.c.b16 %v5168, %v5161
  %v5498 = vpack.c.b16 %v5169, %v5162
  %v5499 = vpack.c.b16 %v5170, %v5163
  %v5500 = vpack.c.b16 %v5171, %v5164
  %v5501 = vpack.c.b16 %v5179, %v5172
  %v5502 = vpack.c.b16 %v5180, %v5173
  %v5503 = vpack.c.b16 %v5181, %v5174
  %v5504 = vpack.c.b16 %v5182, %v5175
  %v5505 = vpack.c.b16 %v5183, %v5176
  %v5506 = vpack.c.b16 %v5184, %v5177
  %v5507 = vpack.c.b16 %v5185, %v5178
  %v5508 = vpack.c.b16 %v5193, %v5186
  %v5509 = vpack.c.b16 %v5194, %v5187
  %v5510 = vpack.c.b16 %v5195, %v5188
  %v5511 = vpack.c.b16 %v5196, %v5189
  %v5512 = vpack.c.b16 %v5197, %v5190
  %v5513 = vpack.c.b16 %v5198, %v5191
  %v5514 = vpack.c.b16 %v5199, %v5192
  %v5515 = vpack.c.b16 %v5207, %v5200
  %v5516 = vpack.c.b16 %v5208, %v5201
  %v5517 = vpack.c.b16 %v5209, %v5202
  %v5518 = vpack.c.b16 %v5210, %v5203
  %v5519 = vpack.c.b16 %v5211, %v5204
  %v5520 = vpack.c.b16 %v5212, %v5205
  %v5521 = vpack.c.b16 %v5213, %v5206
  %v5522 = vpack.c.b16 %v5221, %v5214
  %v5523 = vpack.c.b16 %v5222, %v5215
  %v5524 = vpack.c.b16 %v5223, %v5216
  %v5525 = vpack.c.b16 %v5224, %v5217
  %v5526 = vpack.c.b16 %v5225, %v5218
  %v5527 = vpack.c.b16 %v5226, %v5219
  %v5528 = vpack.c.b16 %v5227, %v5220
  %v5529 = vpack.c.b16 %v5235, %v5228
  %v5530 = vpack.c.b16 %v5236, %v5229
  %v5531 = vpack.c.b16 %v5237, %v5230
  %v5532 = vpack.c.b16 %v5238, %v5231
  %v5533 = vpack.c.b16 %v5239, %v5232
  %v5534 = vpack.c.b16 %v5240, %v5233
  %v5535 = vpack.c.b16 %v5241, %v5234
  %v5536 = vpack.c.b16 %v5249, %v5242
  %v5537 = vpack.c.b16 %v5250, %v5243
  %v5538 = vpack.c.b16 %v5251, %v5244
  %v5539 = vpack.c.b16 %v5252, %v5245
  %v5540 = vpack.c.b16 %v5253, %v5246
  %v5541 = vpack.c.b16 %v5254, %v5247
  %v5542 = vpack.c.b16 %v5255, %v5248
  %v5543 = vpack.c.b16 %v5263, %v5256
  %v5544 = vpack.c.b16 %v5264, %v5257
  %v5545 = vpack.c.b16 %v5265, %v5258
  %v5546 = vpack.c.b16 %v5266, %v5259
  %v5547 = vpack.c.b16 %v5267, %v5260
  %v5548 = vpack.c.b16 %v5268, %v5261
  %v5549 = vpack.c.b16 %v5269, %v5262
  %v5550 = vpack.c.b16 %v5277, %v5270
  %v5551 = vpack.c.b16 %v5278, %v5271
  %v5552 = vpack.c.b16 %v5279, %v5272
  %v5553 = vpack.c.b16 %v5280, %v5273
  %v5554 = vpack.c.b16 %v5281, %v5274
  %v5555 = vpack.c.b16 %v5282, %v5275
  %v5556 = vpack.c.b16 %v5283, %v5276
  %v5557 = vpack.c.b16 %v5291, %v5284
  %v5558 = vpack.c.b16 %v5292, %v5285
  %v5559 = vpack.c.b16 %v5293, %v5286
  %v5560 = vpack.c.b16 %v5294, %v5287
  %v5561 = vpack.c.b16 %v5295, %v5288
  %v5562 = vpack.c.b16 %v5296, %v5289
  %v5563 = vpack.c.b16 %v5297, %v5290
  %v5564 = vpack.c.b16 %v5305, %v5298
  %v5565 = vpack.c.b16 %v5306, %v5299
  %v5566 = vpack.c.b16 %v5307, %v5300
  %v5567 = vpack.c.b16 %v5308, %v5301
  %v5568 = vpack.c.b16 %v5309, %v5302
  %v5569 = vpack.c.b16 %v5310, %v5303
  %v5570 = vpack.c.b16 %v5311, %v5304
  %v5571 = vpack.c.b16 %v5319, %v5312
  %v5572 = vpack.c.b16 %v5320, %v5313
  %v5573 = vpack.c.b16 %v5321, %v5314
  %v5574 = vpack.c.b16 %v5322, %v5315
  %v5575 = vpack.c.b16 %v5323, %v5316
  %v5576 = vpack.c.b16 %v5324, %v5317
  %v5577 = vpack.c.b16 %v5325, %v5318
  %v5578 = vpack.c.b16 %v5333, %v5326
  %v5579 = vpack.c.b16 %v5334, %v5327
  %v5580 = vpack.c.b16 %v5335, %v5328
  %v5581 = vpack.c.b16 %v5336, %v5329
  %v5582 = vpack.c.b16 %v5337, %v5330
  %v5583 = vpack.c.b16 %v5338, %v5331
  %v5584 = vpack.c.b16 %v5339, %v5332
  %v5585 = vpack.c.b16 %v5347, %v5340
  %v5586 = vpack.c.b16 %v5348, %v5341
  %v5587 = vpack.c.b16 %v5349, %v5342
  %v5588 = vpack.c.b16 %v5350, %v5343
  %v5589 = vpack.c.b16 %v5351, %v5344
  %v5590 = vpack.c.b16 %v5352, %v5345
  %v5591 = vpack.c.b16 %v5353, %v5346
  %v5592 = vpack.c.b16 %v5361, %v5354
  %v5593 = vpack.c.b16 %v5362, %v5355
  %v5594 = vpack.c.b16 %v5363, %v5356
  %v5595 = vpack.c.b16 %v5364, %v5357
  %v5596 = vpack.c.b16 %v5365, %v5358
  %v5597 = vpack.c.b16 %v5366, %v5359
  %v5598 = vpack.c.b16 %v5367, %v5360
  %v5599 = vpack.c.b16 %v5375, %v5368
  %v5600 = vpack.c.b16 %v5376, %v5369
  %v5601 = vpack.c.b16 %v5377, %v5370
  %v5602 = vpack.c.b16 %v5378, %v5371
  %v5603 = vpack.c.b16 %v5379, %v5372
  %v5604 = vpack.c.b16 %v5380, %v5373
  %v5605 = vpack.c.b16 %v5381, %v5374
  %v5606 = vpack.c.b16 %v5389, %v5382
  %v5607 = vpack.c.b16 %v5390, %v5383
  %v5608 = vpack.c.b16 %v5391, %v5384
  %v5609 = vpack.c.b16 %v5392, %v5385
  %v5610 = vpack.c.b16 %v5393, %v5386
  %v5611 = vpack.c.b16 %v5394, %v5387
  %v5612 = vpack.c.b16 %v5395, %v5388
  %v5613 = vpack.c.b16 %v5403, %v5396
  %v5614 = vpack.c.b16 %v5404, %v5397
  %v5615 = vpack.c.b16 %v5405, %v5398
  %v5616 = vpack.c.b16 %v5406, %v5399
  %v5617 = vpack.c.b16 %v5407, %v5400
  %v5618 = vpack.c.b16 %v5408, %v5401
  %v5619 = vpack.c.b16 %v5409, %v5402
  %v5620 = vpack.c.b16 %v5417, %v5410
  %v5621 = vpack.c.b16 %v5418, %v5411
  %v5622 = vpack.c.b16 %v5419, %v5412
  %v5623 = vpack.c.b16 %v5420, %v5413
  %v5624 = vpack.c.b16 %v5421, %v5414
  %v5625 = vpack.c.b16 %v5422, %v5415
  %v5626 = vpack.c.b16 %v5423, %v5416
  %v5627 = vpack.c.b16 %v5431, %v5424
  %v5628 = vpack.c.b16 %v5432, %v5425
  %v5629 = vpack.c.b16 %v5433, %v5426
  %v5630 = vpack.c.b16 %v5434, %v5427
  %v5631 = vpack.c.b16 %v5435, %v5428
  %v5632 = vpack.c.b16 %v5436, %v5429
  %v5633 = vpack.c.b16 %v5437, %v5430
  %v5634 = vpack.c.b16 %v5445, %v5438
  %v5635 = vpack.c.b16 %v5446, %v5439
  %v5636 = vpack.c.b16 %v5447, %v5440
  %v5637 = vpack.c.b16 %v5448, %v5441
  %v5638 = vpack.c.b16 %v5449, %v5442
  %v5639 = vpack.c.b16 %v5450, %v5443
  %v5640 = vpack.c.b16 %v5451, %v5444
  %v5641 = vpack.c.b16 %v5459, %v5452
  %v5642 = vpack.c.b16 %v5460, %v5453
  %v5643 = vpack.c.b16 %v5461, %v5454
  %v5644 = vpack.c.b16 %v5462, %v5455
  %v5645 = vpack.c.b16 %v5463, %v5456
  %v5646 = vpack.c.b16 %v5464, %v5457
  %v5647 = vpack.c.b16 %v5465, %v5458
  %v5648 = vpack.c.b16 %v5473, %v5466
  %v5649 = vpack.c.b16 %v5474, %v5467
  %v5650 = vpack.c.b16 %v5475, %v5468
  %v5651 = vpack.c.b16 %v5476, %v5469
  %v5652 = vpack.c.b16 %v5477, %v5470
  %v5653 = vpack.c.b16 %v5478, %v5471
  %v5654 = vpack.c.b16 %v5479, %v5472
  %v5831 = vsel %vm1948, %v4729, 0
  %5833 = vmatprep.subr.bf16.mxu0 %v5481
  %5834 = vmatpush1.bf16.msra.mxu0 %v5480
  %5835 = vmatprep.subr.bf16.mxu0 %v5488
  %5836 = vmatpush1.bf16.msra.mxu0 %v5487
  %5837 = vmatprep.subr.bf16.mxu0 %v5495
  %5838 = vmatpush1.bf16.msra.mxu0 %v5494
  %5839 = vmatprep.subr.bf16.mxu0 %v5502
  %5840 = vmatpush1.bf16.msra.mxu0 %v5501
  %5841 = vmatprep.subr.bf16.mxu0 %v5509
  %5842 = vmatpush1.bf16.msra.mxu0 %v5508
  %5843 = vmatprep.subr.bf16.mxu0 %v5516
  %5844 = vmatpush1.bf16.msra.mxu0 %v5515
  %5845 = vmatprep.subr.bf16.mxu0 %v5523
  %5846 = vmatpush1.bf16.msra.mxu0 %v5522
  %5847 = vmatprep.subr.bf16.mxu0 %v5530
  %5848 = vmatpush1.bf16.msra.mxu0 %v5529
  %5849 = vmatprep.subr.bf16.mxu0 %v5537
  %5850 = vmatpush1.bf16.msra.mxu0 %v5536
  %5851 = vmatprep.subr.bf16.mxu0 %v5544
  %5852 = vmatpush1.bf16.msra.mxu0 %v5543
  %5853 = vmatprep.subr.bf16.mxu0 %v5551
  %5854 = vmatpush1.bf16.msra.mxu0 %v5550
  %5855 = vmatprep.subr.bf16.mxu0 %v5558
  %5856 = vmatpush1.bf16.msra.mxu0 %v5557
  %5857 = vmatprep.subr.bf16.mxu0 %v5565
  %5858 = vmatpush1.bf16.msra.mxu0 %v5564
  %5859 = vmatprep.subr.bf16.mxu0 %v5572
  %5860 = vmatpush1.bf16.msra.mxu0 %v5571
  %5861 = vmatprep.subr.bf16.mxu0 %v5579
  %5862 = vmatpush1.bf16.msra.mxu0 %v5578
  %5863 = vmatprep.subr.bf16.mxu0 %v5586
  %5864 = vmatpush1.bf16.msra.mxu0 %v5585
  %5865 = vmatprep.mubr.bf16.mxu0 %v4727
  %5866 = vmatmul.mubr.bf16.gmra.mrb[0].mxu0 %v4726
  %v5867 = vpop.f32.mrb[0].mxu0
  %v5868 = vadd.f32 0.0, %v5867
  %v5869 = vpop.f32.mrb[0].mxu0
  %v5870 = vadd.f32 0.0, %v5869
  %v5871 = vpop.f32.mrb[0].mxu0
  %v5872 = vpop.f32.mrb[0].mxu0
  %5873 = vdwg.mxu0
  %5874 = vmatprep.subr.bf16.mxu0 %v5593
  %5875 = vmatpush1.bf16.msra.mxu0 %v5592
  %5876 = vmatprep.subr.bf16.mxu0 %v5600
  %5877 = vmatpush1.bf16.msra.mxu0 %v5599
  %5878 = vmatprep.subr.bf16.mxu0 %v5607
  %5879 = vmatpush1.bf16.msra.mxu0 %v5606
  %5880 = vmatprep.subr.bf16.mxu0 %v5614
  %5881 = vmatpush1.bf16.msra.mxu0 %v5613
  %5882 = vmatprep.subr.bf16.mxu0 %v5621
  %5883 = vmatpush1.bf16.msra.mxu0 %v5620
  %5884 = vmatprep.subr.bf16.mxu0 %v5628
  %5885 = vmatpush1.bf16.msra.mxu0 %v5627
  %5886 = vmatprep.subr.bf16.mxu0 %v5635
  %5887 = vmatpush1.bf16.msra.mxu0 %v5634
  %5888 = vmatprep.subr.bf16.mxu0 %v5642
  %5889 = vmatpush1.bf16.msra.mxu0 %v5641
  %5890 = vmatprep.subr.bf16.mxu0 %v5649
  %5891 = vmatpush1.bf16.msra.mxu0 %v5648
  %5892 = vmatprep.subr.bf16.mxu0 0
  %5893 = vmatpush1.bf16.msra.mxu0 0
  %5894 = vmatprep.subr.bf16.mxu0 0
  %5895 = vmatpush1.bf16.msra.mxu0 0
  %5896 = vmatprep.subr.bf16.mxu0 0
  %5897 = vmatpush1.bf16.msra.mxu0 0
  %5898 = vmatprep.subr.bf16.mxu0 0
  %5899 = vmatpush1.bf16.msra.mxu0 0
  %5900 = vmatprep.subr.bf16.mxu0 0
  %5901 = vmatpush1.bf16.msra.mxu0 0
  %5902 = vmatprep.subr.bf16.mxu0 0
  %5903 = vmatpush1.bf16.msra.mxu0 0
  %5904 = vmatprep.subr.bf16.mxu0 0
  %5905 = vmatpush1.bf16.msra.mxu0 0
  %5906 = vmatprep.mubr.bf16.mxu0 %v5831
  %5907 = vmatmul.mubr.bf16.gmra.mrb[0].mxu0 %v4728
  %v5908 = vpop.f32.mrb[0].mxu0
  %v5909 = vadd.f32 %v5868, %v5908
  %v5910 = vpop.f32.mrb[0].mxu0
  %v5911 = vadd.f32 %v5870, %v5910
  %v5912 = vpop.f32.mrb[0].mxu0
  %v5913 = vpop.f32.mrb[0].mxu0
  %5914 = vdwg.mxu0
  %5915 = vmatprep.subr.bf16.mxu0 %v5483
  %5916 = vmatpush1.bf16.msra.mxu0 %v5482
  %5917 = vmatprep.subr.bf16.mxu0 %v5490
  %5918 = vmatpush1.bf16.msra.mxu0 %v5489
  %5919 = vmatprep.subr.bf16.mxu0 %v5497
  %5920 = vmatpush1.bf16.msra.mxu0 %v5496
  %5921 = vmatprep.subr.bf16.mxu0 %v5504
  %5922 = vmatpush1.bf16.msra.mxu0 %v5503
  %5923 = vmatprep.subr.bf16.mxu0 %v5511
  %5924 = vmatpush1.bf16.msra.mxu0 %v5510
  %5925 = vmatprep.subr.bf16.mxu0 %v5518
  %5926 = vmatpush1.bf16.msra.mxu0 %v5517
  %5927 = vmatprep.subr.bf16.mxu0 %v5525
  %5928 = vmatpush1.bf16.msra.mxu0 %v5524
  %5929 = vmatprep.subr.bf16.mxu0 %v5532
  %5930 = vmatpush1.bf16.msra.mxu0 %v5531
  %5931 = vmatprep.subr.bf16.mxu0 %v5539
  %5932 = vmatpush1.bf16.msra.mxu0 %v5538
  %5933 = vmatprep.subr.bf16.mxu0 %v5546
  %5934 = vmatpush1.bf16.msra.mxu0 %v5545
  %5935 = vmatprep.subr.bf16.mxu0 %v5553
  %5936 = vmatpush1.bf16.msra.mxu0 %v5552
  %5937 = vmatprep.subr.bf16.mxu0 %v5560
  %5938 = vmatpush1.bf16.msra.mxu0 %v5559
  %5939 = vmatprep.subr.bf16.mxu0 %v5567
  %5940 = vmatpush1.bf16.msra.mxu0 %v5566
  %5941 = vmatprep.subr.bf16.mxu0 %v5574
  %5942 = vmatpush1.bf16.msra.mxu0 %v5573
  %5943 = vmatprep.subr.bf16.mxu0 %v5581
  %5944 = vmatpush1.bf16.msra.mxu0 %v5580
  %5945 = vmatprep.subr.bf16.mxu0 %v5588
  %5946 = vmatpush1.bf16.msra.mxu0 %v5587
  %5947 = vmatprep.mubr.bf16.mxu0 %v4727
  %5948 = vmatmul.mubr.bf16.gmra.mrb[0].mxu0 %v4726
  %v5949 = vpop.f32.mrb[0].mxu0
  %v5950 = vadd.f32 0.0, %v5949
  %v5951 = vpop.f32.mrb[0].mxu0
  %v5952 = vadd.f32 0.0, %v5951
  %v5953 = vpop.f32.mrb[0].mxu0
  %v5954 = vpop.f32.mrb[0].mxu0
  %5955 = vdwg.mxu0
  %5956 = vmatprep.subr.bf16.mxu0 %v5595
  %5957 = vmatpush1.bf16.msra.mxu0 %v5594
  %5958 = vmatprep.subr.bf16.mxu0 %v5602
  %5959 = vmatpush1.bf16.msra.mxu0 %v5601
  %5960 = vmatprep.subr.bf16.mxu0 %v5609
  %5961 = vmatpush1.bf16.msra.mxu0 %v5608
  %5962 = vmatprep.subr.bf16.mxu0 %v5616
  %5963 = vmatpush1.bf16.msra.mxu0 %v5615
  %5964 = vmatprep.subr.bf16.mxu0 %v5623
  %5965 = vmatpush1.bf16.msra.mxu0 %v5622
  %5966 = vmatprep.subr.bf16.mxu0 %v5630
  %5967 = vmatpush1.bf16.msra.mxu0 %v5629
  %5968 = vmatprep.subr.bf16.mxu0 %v5637
  %5969 = vmatpush1.bf16.msra.mxu0 %v5636
  %5970 = vmatprep.subr.bf16.mxu0 %v5644
  %5971 = vmatpush1.bf16.msra.mxu0 %v5643
  %5972 = vmatprep.subr.bf16.mxu0 %v5651
  %5973 = vmatpush1.bf16.msra.mxu0 %v5650
  %5974 = vmatprep.subr.bf16.mxu0 0
  %5975 = vmatpush1.bf16.msra.mxu0 0
  %5976 = vmatprep.subr.bf16.mxu0 0
  %5977 = vmatpush1.bf16.msra.mxu0 0
  %5978 = vmatprep.subr.bf16.mxu0 0
  %5979 = vmatpush1.bf16.msra.mxu0 0
  %5980 = vmatprep.subr.bf16.mxu0 0
  %5981 = vmatpush1.bf16.msra.mxu0 0
  %5982 = vmatprep.subr.bf16.mxu0 0
  %5983 = vmatpush1.bf16.msra.mxu0 0
  %5984 = vmatprep.subr.bf16.mxu0 0
  %5985 = vmatpush1.bf16.msra.mxu0 0
  %5986 = vmatprep.subr.bf16.mxu0 0
  %5987 = vmatpush1.bf16.msra.mxu0 0
  %5988 = vmatprep.mubr.bf16.mxu0 %v5831
  %5989 = vmatmul.mubr.bf16.gmra.mrb[0].mxu0 %v4728
  %v5990 = vpop.f32.mrb[0].mxu0
  %v5991 = vadd.f32 %v5950, %v5990
  %v5992 = vpop.f32.mrb[0].mxu0
  %v5993 = vadd.f32 %v5952, %v5992
  %v5994 = vpop.f32.mrb[0].mxu0
  %v5995 = vpop.f32.mrb[0].mxu0
  %5996 = vdwg.mxu0
  %5997 = vmatprep.subr.bf16.mxu0 %v5485
  %5998 = vmatpush1.bf16.msra.mxu0 %v5484
  %5999 = vmatprep.subr.bf16.mxu0 %v5492
  %6000 = vmatpush1.bf16.msra.mxu0 %v5491
  %6001 = vmatprep.subr.bf16.mxu0 %v5499
  %6002 = vmatpush1.bf16.msra.mxu0 %v5498
  %6003 = vmatprep.subr.bf16.mxu0 %v5506
  %6004 = vmatpush1.bf16.msra.mxu0 %v5505
  %6005 = vmatprep.subr.bf16.mxu0 %v5513
  %6006 = vmatpush1.bf16.msra.mxu0 %v5512
  %6007 = vmatprep.subr.bf16.mxu0 %v5520
  %6008 = vmatpush1.bf16.msra.mxu0 %v5519
  %6009 = vmatprep.subr.bf16.mxu0 %v5527
  %6010 = vmatpush1.bf16.msra.mxu0 %v5526
  %6011 = vmatprep.subr.bf16.mxu0 %v5534
  %6012 = vmatpush1.bf16.msra.mxu0 %v5533
  %6013 = vmatprep.subr.bf16.mxu0 %v5541
  %6014 = vmatpush1.bf16.msra.mxu0 %v5540
  %6015 = vmatprep.subr.bf16.mxu0 %v5548
  %6016 = vmatpush1.bf16.msra.mxu0 %v5547
  %6017 = vmatprep.subr.bf16.mxu0 %v5555
  %6018 = vmatpush1.bf16.msra.mxu0 %v5554
  %6019 = vmatprep.subr.bf16.mxu0 %v5562
  %6020 = vmatpush1.bf16.msra.mxu0 %v5561
  %6021 = vmatprep.subr.bf16.mxu0 %v5569
  %6022 = vmatpush1.bf16.msra.mxu0 %v5568
  %6023 = vmatprep.subr.bf16.mxu0 %v5576
  %6024 = vmatpush1.bf16.msra.mxu0 %v5575
  %6025 = vmatprep.subr.bf16.mxu0 %v5583
  %6026 = vmatpush1.bf16.msra.mxu0 %v5582
  %6027 = vmatprep.subr.bf16.mxu0 %v5590
  %6028 = vmatpush1.bf16.msra.mxu0 %v5589
  %6029 = vmatprep.mubr.bf16.mxu0 %v4727
  %6030 = vmatmul.mubr.bf16.gmra.mrb[0].mxu0 %v4726
  %v6031 = vpop.f32.mrb[0].mxu0
  %v6032 = vadd.f32 0.0, %v6031
  %v6033 = vpop.f32.mrb[0].mxu0
  %v6034 = vadd.f32 0.0, %v6033
  %v6035 = vpop.f32.mrb[0].mxu0
  %v6036 = vpop.f32.mrb[0].mxu0
  %6037 = vdwg.mxu0
  %6038 = vmatprep.subr.bf16.mxu0 %v5597
  %6039 = vmatpush1.bf16.msra.mxu0 %v5596
  %6040 = vmatprep.subr.bf16.mxu0 %v5604
  %6041 = vmatpush1.bf16.msra.mxu0 %v5603
  %6042 = vmatprep.subr.bf16.mxu0 %v5611
  %6043 = vmatpush1.bf16.msra.mxu0 %v5610
  %6044 = vmatprep.subr.bf16.mxu0 %v5618
  %6045 = vmatpush1.bf16.msra.mxu0 %v5617
  %6046 = vmatprep.subr.bf16.mxu0 %v5625
  %6047 = vmatpush1.bf16.msra.mxu0 %v5624
  %6048 = vmatprep.subr.bf16.mxu0 %v5632
  %6049 = vmatpush1.bf16.msra.mxu0 %v5631
  %6050 = vmatprep.subr.bf16.mxu0 %v5639
  %6051 = vmatpush1.bf16.msra.mxu0 %v5638
  %6052 = vmatprep.subr.bf16.mxu0 %v5646
  %6053 = vmatpush1.bf16.msra.mxu0 %v5645
  %6054 = vmatprep.subr.bf16.mxu0 %v5653
  %6055 = vmatpush1.bf16.msra.mxu0 %v5652
  %6056 = vmatprep.subr.bf16.mxu0 0
  %6057 = vmatpush1.bf16.msra.mxu0 0
  %6058 = vmatprep.subr.bf16.mxu0 0
  %6059 = vmatpush1.bf16.msra.mxu0 0
  %6060 = vmatprep.subr.bf16.mxu0 0
  %6061 = vmatpush1.bf16.msra.mxu0 0
  %6062 = vmatprep.subr.bf16.mxu0 0
  %6063 = vmatpush1.bf16.msra.mxu0 0
  %6064 = vmatprep.subr.bf16.mxu0 0
  %6065 = vmatpush1.bf16.msra.mxu0 0
  %6066 = vmatprep.subr.bf16.mxu0 0
  %6067 = vmatpush1.bf16.msra.mxu0 0
  %6068 = vmatprep.subr.bf16.mxu0 0
  %6069 = vmatpush1.bf16.msra.mxu0 0
  %6070 = vmatprep.mubr.bf16.mxu0 %v5831
  %6071 = vmatmul.mubr.bf16.gmra.mrb[0].mxu0 %v4728
  %v6072 = vpop.f32.mrb[0].mxu0
  %v6073 = vadd.f32 %v6032, %v6072
  %v6074 = vpop.f32.mrb[0].mxu0
  %v6075 = vadd.f32 %v6034, %v6074
  %v6076 = vpop.f32.mrb[0].mxu0
  %v6077 = vpop.f32.mrb[0].mxu0
  %6078 = vdwg.mxu0
  %6079 = vmatprep.subr.bf16.mxu0 0
  %6080 = vmatpush1.bf16.msra.mxu0 %v5486
  %6081 = vmatprep.subr.bf16.mxu0 0
  %6082 = vmatpush1.bf16.msra.mxu0 %v5493
  %6083 = vmatprep.subr.bf16.mxu0 0
  %6084 = vmatpush1.bf16.msra.mxu0 %v5500
  %6085 = vmatprep.subr.bf16.mxu0 0
  %6086 = vmatpush1.bf16.msra.mxu0 %v5507
  %6087 = vmatprep.subr.bf16.mxu0 0
  %6088 = vmatpush1.bf16.msra.mxu0 %v5514
  %6089 = vmatprep.subr.bf16.mxu0 0
  %6090 = vmatpush1.bf16.msra.mxu0 %v5521
  %6091 = vmatprep.subr.bf16.mxu0 0
  %6092 = vmatpush1.bf16.msra.mxu0 %v5528
  %6093 = vmatprep.subr.bf16.mxu0 0
  %6094 = vmatpush1.bf16.msra.mxu0 %v5535
  %6095 = vmatprep.subr.bf16.mxu0 0
  %6096 = vmatpush1.bf16.msra.mxu0 %v5542
  %6097 = vmatprep.subr.bf16.mxu0 0
  %6098 = vmatpush1.bf16.msra.mxu0 %v5549
  %6099 = vmatprep.subr.bf16.mxu0 0
  %6100 = vmatpush1.bf16.msra.mxu0 %v5556
  %6101 = vmatprep.subr.bf16.mxu0 0
  %6102 = vmatpush1.bf16.msra.mxu0 %v5563
  %6103 = vmatprep.subr.bf16.mxu0 0
  %6104 = vmatpush1.bf16.msra.mxu0 %v5570
  %6105 = vmatprep.subr.bf16.mxu0 0
  %6106 = vmatpush1.bf16.msra.mxu0 %v5577
  %6107 = vmatprep.subr.bf16.mxu0 0
  %6108 = vmatpush1.bf16.msra.mxu0 %v5584
  %6109 = vmatprep.subr.bf16.mxu0 0
  %6110 = vmatpush1.bf16.msra.mxu0 %v5591
  %6111 = vmatprep.mubr.bf16.mxu0 %v4727
  %6112 = vmatmul.mubr.bf16.gmra.mrb[0].mxu0 %v4726
  %v6113 = vpop.f32.mrb[0].mxu0
  %v6114 = vadd.f32 0.0, %v6113
  %v6115 = vpop.f32.mrb[0].mxu0
  %v6116 = vpop.f32.mrb[0].mxu0
  %v6117 = vpop.f32.mrb[0].mxu0
  %6118 = vdwg.mxu0
  %6119 = vmatprep.subr.bf16.mxu0 0
  %6120 = vmatpush1.bf16.msra.mxu0 %v5598
  %6121 = vmatprep.subr.bf16.mxu0 0
  %6122 = vmatpush1.bf16.msra.mxu0 %v5605
  %6123 = vmatprep.subr.bf16.mxu0 0
  %6124 = vmatpush1.bf16.msra.mxu0 %v5612
  %6125 = vmatprep.subr.bf16.mxu0 0
  %6126 = vmatpush1.bf16.msra.mxu0 %v5619
  %6127 = vmatprep.subr.bf16.mxu0 0
  %6128 = vmatpush1.bf16.msra.mxu0 %v5626
  %6129 = vmatprep.subr.bf16.mxu0 0
  %6130 = vmatpush1.bf16.msra.mxu0 %v5633
  %6131 = vmatprep.subr.bf16.mxu0 0
  %6132 = vmatpush1.bf16.msra.mxu0 %v5640
  %6133 = vmatprep.subr.bf16.mxu0 0
  %6134 = vmatpush1.bf16.msra.mxu0 %v5647
  %6135 = vmatprep.subr.bf16.mxu0 0
  %6136 = vmatpush1.bf16.msra.mxu0 %v5654
  %6137 = vmatprep.subr.bf16.mxu0 0
  %6138 = vmatpush1.bf16.msra.mxu0 0
  %6139 = vmatprep.subr.bf16.mxu0 0
  %6140 = vmatpush1.bf16.msra.mxu0 0
  %6141 = vmatprep.subr.bf16.mxu0 0
  %6142 = vmatpush1.bf16.msra.mxu0 0
  %6143 = vmatprep.subr.bf16.mxu0 0
  %6144 = vmatpush1.bf16.msra.mxu0 0
  %6145 = vmatprep.subr.bf16.mxu0 0
  %6146 = vmatpush1.bf16.msra.mxu0 0
  %6147 = vmatprep.subr.bf16.mxu0 0
  %6148 = vmatpush1.bf16.msra.mxu0 0
  %6149 = vmatprep.subr.bf16.mxu0 0
  %6150 = vmatpush1.bf16.msra.mxu0 0
  %6151 = vmatprep.mubr.bf16.mxu0 %v5831
  %6152 = vmatmul.mubr.bf16.gmra.mrb[0].mxu0 %v4728
  %v6153 = vpop.f32.mrb[0].mxu0
  %v6154 = vadd.f32 %v6114, %v6153
  %v6155 = vpop.f32.mrb[0].mxu0
  %v6156 = vpop.f32.mrb[0].mxu0
  %v6157 = vpop.f32.mrb[0].mxu0
  %6158 = vdwg.mxu0
  %v6159 = vld [vmem:[%s22] sm:$0xff]
  %v6160 = vld [vmem:[%s22 + $0x8] sm:$0xff]
  %v6161 = vld [vmem:[%s22 + $0x10] sm:$0xff]
  %v6162 = vld [vmem:[%s22 + $0x18] sm:$0xff]
  %v6163 = vld [vmem:[%s22 + $0x20] sm:$0xff]
  %v6164 = vld [vmem:[%s22 + $0x28] sm:$0xff]
  %v6165 = vld [vmem:[%s22 + $0x30] sm:$0xff]
  %v6166 = vld [vmem:[%s22 + $0x38] sm:$0xff]
  %v6167 = vld [vmem:[%s22 + $0x40] sm:$0xff]
  %v6168 = vld [vmem:[%s22 + $0x48] sm:$0xff]
  %v6169 = vld [vmem:[%s22 + $0x50] sm:$0xff]
  %v6170 = vld [vmem:[%s22 + $0x58] sm:$0xff]
  %v6171 = vld [vmem:[%s22 + $0x60] sm:$0xff]
  %v6172 = vld [vmem:[%s22 + $0x68] sm:$0xff]
  %v6173 = vld [vmem:[%s22 + $0x70] sm:$0xff]
  %v6174 = vld [vmem:[%s22 + $0x78] sm:$0xff]
  %v6175 = vld [vmem:[%s22 + $0x80] sm:$0xff]
  %v6176 = vld [vmem:[%s22 + $0x88] sm:$0xff]
  %v6177 = vld [vmem:[%s22 + $0x90] sm:$0xff]
  %v6178 = vld [vmem:[%s22 + $0x98] sm:$0xff]
  %v6179 = vld [vmem:[%s22 + $0xa0] sm:$0xff]
  %v6180 = vld [vmem:[%s22 + $0xa8] sm:$0xff]
  %v6181 = vld [vmem:[%s22 + $0xb0] sm:$0xff]
  %v6182 = vld [vmem:[%s22 + $0xb8] sm:$0xff]
  %v6183 = vld [vmem:[%s22 + $0xc0] sm:$0xff]
  %v6184 = vld [vmem:[%s22 + $0xc8] sm:$0xff]
  %v6185 = vld [vmem:[%s22 + $0xd0] sm:$0xff]
  %v6186 = vld [vmem:[%s22 + $0xd8] sm:$0xff]
  %v6187 = vld [vmem:[%s22 + $0xe0] sm:$0xff]
  %v6188 = vld [vmem:[%s22 + $0xe8] sm:$0xff]
  %v6189 = vld [vmem:[%s22 + $0xf0] sm:$0xff]
  %v6190 = vld [vmem:[%s22 + $0xf8] sm:$0xff]
  %v6191 = vld [vmem:[%s22 + $0x100] sm:$0xff]
  %v6192 = vld [vmem:[%s22 + $0x108] sm:$0xff]
  %v6193 = vld [vmem:[%s22 + $0x110] sm:$0xff]
  %v6194 = vld [vmem:[%s22 + $0x118] sm:$0xff]
  %v6195 = vld [vmem:[%s22 + $0x120] sm:$0xff]
  %v6196 = vld [vmem:[%s22 + $0x128] sm:$0xff]
  %v6197 = vld [vmem:[%s22 + $0x130] sm:$0xff]
  %v6198 = vld [vmem:[%s22 + $0x138] sm:$0xff]
  %v6199 = vld [vmem:[%s22 + $0x140] sm:$0xff]
  %v6200 = vld [vmem:[%s22 + $0x148] sm:$0xff]
  %v6201 = vld [vmem:[%s22 + $0x150] sm:$0xff]
  %v6202 = vld [vmem:[%s22 + $0x158] sm:$0xff]
  %v6203 = vld [vmem:[%s22 + $0x160] sm:$0xff]
  %v6204 = vld [vmem:[%s22 + $0x168] sm:$0xff]
  %v6205 = vld [vmem:[%s22 + $0x170] sm:$0xff]
  %v6206 = vld [vmem:[%s22 + $0x178] sm:$0xff]
  %v6207 = vld [vmem:[%s22 + $0x180] sm:$0xff]
  %v6208 = vld [vmem:[%s22 + $0x188] sm:$0xff]
  %v6209 = vld [vmem:[%s22 + $0x190] sm:$0xff]
  %v6210 = vld [vmem:[%s22 + $0x198] sm:$0xff]
  %v6211 = vld [vmem:[%s22 + $0x1a0] sm:$0xff]
  %v6212 = vld [vmem:[%s22 + $0x1a8] sm:$0xff]
  %v6213 = vld [vmem:[%s22 + $0x1b0] sm:$0xff]
  %v6214 = vld [vmem:[%s22 + $0x1b8] sm:$0xff]
  %v6215 = vld [vmem:[%s22 + $0x1c0] sm:$0xff]
  %v6216 = vld [vmem:[%s22 + $0x1c8] sm:$0xff]
  %v6217 = vld [vmem:[%s22 + $0x1d0] sm:$0xff]
  %v6218 = vld [vmem:[%s22 + $0x1d8] sm:$0xff]
  %v6219 = vld [vmem:[%s22 + $0x1e0] sm:$0xff]
  %v6220 = vld [vmem:[%s22 + $0x1e8] sm:$0xff]
  %v6221 = vld [vmem:[%s22 + $0x1f0] sm:$0xff]
  %v6222 = vld [vmem:[%s22 + $0x1f8] sm:$0xff]
  %v6223 = vld [vmem:[%s22 + $0x200] sm:$0xff]
  %v6224 = vld [vmem:[%s22 + $0x208] sm:$0xff]
  %v6225 = vld [vmem:[%s22 + $0x210] sm:$0xff]
  %v6226 = vld [vmem:[%s22 + $0x218] sm:$0xff]
  %v6227 = vld [vmem:[%s22 + $0x220] sm:$0xff]
  %v6228 = vld [vmem:[%s22 + $0x228] sm:$0xff]
  %v6229 = vld [vmem:[%s22 + $0x230] sm:$0xff]
  %v6230 = vld [vmem:[%s22 + $0x238] sm:$0xff]
  %v6231 = vld [vmem:[%s22 + $0x240] sm:$0xff]
  %v6232 = vld [vmem:[%s22 + $0x248] sm:$0xff]
  %v6233 = vld [vmem:[%s22 + $0x250] sm:$0xff]
  %v6234 = vld [vmem:[%s22 + $0x258] sm:$0xff]
  %v6235 = vld [vmem:[%s22 + $0x260] sm:$0xff]
  %v6236 = vld [vmem:[%s22 + $0x268] sm:$0xff]
  %v6237 = vld [vmem:[%s22 + $0x270] sm:$0xff]
  %v6238 = vld [vmem:[%s22 + $0x278] sm:$0xff]
  %v6239 = vld [vmem:[%s22 + $0x280] sm:$0xff]
  %v6240 = vld [vmem:[%s22 + $0x288] sm:$0xff]
  %v6241 = vld [vmem:[%s22 + $0x290] sm:$0xff]
  %v6242 = vld [vmem:[%s22 + $0x298] sm:$0xff]
  %v6243 = vld [vmem:[%s22 + $0x2a0] sm:$0xff]
  %v6244 = vld [vmem:[%s22 + $0x2a8] sm:$0xff]
  %v6245 = vld [vmem:[%s22 + $0x2b0] sm:$0xff]
  %v6246 = vld [vmem:[%s22 + $0x2b8] sm:$0xff]
  %v6247 = vld [vmem:[%s22 + $0x2c0] sm:$0xff]
  %v6248 = vld [vmem:[%s22 + $0x2c8] sm:$0xff]
  %v6249 = vld [vmem:[%s22 + $0x2d0] sm:$0xff]
  %v6250 = vld [vmem:[%s22 + $0x2d8] sm:$0xff]
  %v6251 = vld [vmem:[%s22 + $0x2e0] sm:$0xff]
  %v6252 = vld [vmem:[%s22 + $0x2e8] sm:$0xff]
  %v6253 = vld [vmem:[%s22 + $0x2f0] sm:$0xff]
  %v6254 = vld [vmem:[%s22 + $0x2f8] sm:$0xff]
  %v6255 = vld [vmem:[%s22 + $0x300] sm:$0xff]
  %v6256 = vld [vmem:[%s22 + $0x308] sm:$0xff]
  %v6257 = vld [vmem:[%s22 + $0x310] sm:$0xff]
  %v6258 = vld [vmem:[%s22 + $0x318] sm:$0xff]
  %v6259 = vld [vmem:[%s23] sm:$0xff]
  %v6260 = vld [vmem:[%s23 + $0x8] sm:$0xff]
  %v6261 = vld [vmem:[%s23 + $0x10] sm:$0xff]
  %v6262 = vld [vmem:[%s23 + $0x18] sm:$0xff]
  %v6263 = vld [vmem:[%s23 + $0x20] sm:$0xff]
  %v6264 = vld [vmem:[%s23 + $0x28] sm:$0xff]
  %v6265 = vld [vmem:[%s23 + $0x30] sm:$0xff]
  %v6266 = vld [vmem:[%s24] sm:$0x1]
  %v6267 = vld [vmem:[%s25] sm:$0x7f]
  %v6268 = vsel %vm649, %v5909, 0.0
  %v6269 = vrot.slane %v6268, 4
  %v6270 = vadd.f32 %v6268, %v6269
  %v6271 = vrot.slane %v6270, 2
  %v6272 = vadd.f32 %v6270, %v6271
  %v6273 = vrot.slane %v6272, 1
  %v6274 = vadd.f32 %v6272, %v6273
  %v6275 = vsel %vm649, %v5911, 0.0
  %v6276 = vrot.slane %v6275, 4
  %v6277 = vadd.f32 %v6275, %v6276
  %v6278 = vrot.slane %v6277, 2
  %v6279 = vadd.f32 %v6277, %v6278
  %v6280 = vrot.slane %v6279, 1
  %v6281 = vadd.f32 %v6279, %v6280
  %v6282 = vsel %vm649, %v5991, 0.0
  %v6283 = vrot.slane %v6282, 4
  %v6284 = vadd.f32 %v6282, %v6283
  %v6285 = vrot.slane %v6284, 2
  %v6286 = vadd.f32 %v6284, %v6285
  %v6287 = vrot.slane %v6286, 1
  %v6288 = vadd.f32 %v6286, %v6287
  %v6289 = vsel %vm649, %v5993, 0.0
  %v6290 = vrot.slane %v6289, 4
  %v6291 = vadd.f32 %v6289, %v6290
  %v6292 = vrot.slane %v6291, 2
  %v6293 = vadd.f32 %v6291, %v6292
  %v6294 = vrot.slane %v6293, 1
  %v6295 = vadd.f32 %v6293, %v6294
  %v6296 = vsel %vm649, %v6073, 0.0
  %v6297 = vrot.slane %v6296, 4
  %v6298 = vadd.f32 %v6296, %v6297
  %v6299 = vrot.slane %v6298, 2
  %v6300 = vadd.f32 %v6298, %v6299
  %v6301 = vrot.slane %v6300, 1
  %v6302 = vadd.f32 %v6300, %v6301
  %v6303 = vsel %vm649, %v6075, 0.0
  %v6304 = vrot.slane %v6303, 4
  %v6305 = vadd.f32 %v6303, %v6304
  %v6306 = vrot.slane %v6305, 2
  %v6307 = vadd.f32 %v6305, %v6306
  %v6308 = vrot.slane %v6307, 1
  %v6309 = vadd.f32 %v6307, %v6308
  %v6310 = vsel %vm2689, %v6154, 0.0
  %v6311 = vrot.slane %v6310, 4
  %v6312 = vadd.f32 %v6310, %v6311
  %v6313 = vrot.slane %v6312, 2
  %v6314 = vadd.f32 %v6312, %v6313
  %v6315 = vrot.slane %v6314, 1
  %v6316 = vadd.f32 %v6314, %v6315
  %v6318 = vsel %vm2697, %v6316, 0
  %6320 = vmatprep.subr.mxu0 0.0
  %6321 = vmatpush1.msra.mxu0 %v6159
  %6322 = vmatprep.subr.mxu0 0.0
  %6323 = vmatpush1.msra.mxu0 %v6160
  %6324 = vmatprep.subr.mxu0 0.0
  %6325 = vmatpush1.msra.mxu0 %v6161
  %6326 = vmatprep.subr.mxu0 0.0
  %6327 = vmatpush1.msra.mxu0 %v6162
  %6328 = vmatprep.subr.mxu0 0.0
  %6329 = vmatpush1.msra.mxu0 %v6163
  %6330 = vmatprep.subr.mxu0 0.0
  %6331 = vmatpush1.msra.mxu0 %v6164
  %6332 = vmatprep.subr.mxu0 0.0
  %6333 = vmatpush1.msra.mxu0 %v6165
  %6334 = vmatprep.subr.mxu0 0.0
  %6335 = vmatpush1.msra.mxu0 %v6166
  %6336 = vmatprep.subr.mxu0 0.0
  %6337 = vmatpush1.msra.mxu0 %v6167
  %6338 = vmatprep.subr.mxu0 0.0
  %6339 = vmatpush1.msra.mxu0 %v6168
  %6340 = vmatprep.subr.mxu0 0.0
  %6341 = vmatpush1.msra.mxu0 %v6169
  %6342 = vmatprep.subr.mxu0 0.0
  %6343 = vmatpush1.msra.mxu0 %v6170
  %6344 = vmatprep.subr.mxu0 0.0
  %6345 = vmatpush1.msra.mxu0 %v6171
  %6346 = vmatprep.subr.mxu0 0.0
  %6347 = vmatpush1.msra.mxu0 %v6172
  %6348 = vmatprep.subr.mxu0 0.0
  %6349 = vmatpush1.msra.mxu0 %v6173
  %6350 = vmatprep.subr.mxu0 0.0
  %6351 = vmatpush1.msra.mxu0 %v6174
  %6352 = vmatprep.subr.mxu0 0.0
  %6353 = vmatpush1.msra.mxu0 %v6175
  %6354 = vmatprep.subr.mxu0 0.0
  %6355 = vmatpush1.msra.mxu0 %v6176
  %6356 = vmatprep.subr.mxu0 0.0
  %6357 = vmatpush1.msra.mxu0 %v6177
  %6358 = vmatprep.subr.mxu0 0.0
  %6359 = vmatpush1.msra.mxu0 %v6178
  %6360 = vmatprep.subr.mxu0 0.0
  %6361 = vmatpush1.msra.mxu0 %v6179
  %6362 = vmatprep.subr.mxu0 0.0
  %6363 = vmatpush1.msra.mxu0 %v6180
  %6364 = vmatprep.subr.mxu0 0.0
  %6365 = vmatpush1.msra.mxu0 %v6181
  %6366 = vmatprep.subr.mxu0 0.0
  %6367 = vmatpush1.msra.mxu0 %v6182
  %6368 = vmatprep.subr.mxu0 0.0
  %6369 = vmatpush1.msra.mxu0 %v6183
  %6370 = vmatprep.subr.mxu0 0.0
  %6371 = vmatpush1.msra.mxu0 %v6184
  %6372 = vmatprep.subr.mxu0 0.0
  %6373 = vmatpush1.msra.mxu0 %v6185
  %6374 = vmatprep.subr.mxu0 0.0
  %6375 = vmatpush1.msra.mxu0 %v6186
  %6376 = vmatprep.subr.mxu0 0.0
  %6377 = vmatpush1.msra.mxu0 %v6187
  %6378 = vmatprep.subr.mxu0 0.0
  %6379 = vmatpush1.msra.mxu0 %v6188
  %6380 = vmatprep.subr.mxu0 0.0
  %6381 = vmatpush1.msra.mxu0 %v6189
  %6382 = vmatprep.subr.mxu0 0.0
  %6383 = vmatpush1.msra.mxu0 %v6190
  %6384 = vmatprep.mubr.f32.mxu0 %v6281
  %6385 = vmatmul.mubr.f32.gmra.mrb[0].mxu0 %v6274
  %v6386 = vpop.f32.mrb[0].mxu0
  %v6387 = vadd.f32 0.0, %v6386
  %v6388 = vpop.f32.mrb[0].mxu0
  %6389 = vdwg.mxu0
  %6390 = vmatprep.subr.mxu0 0.0
  %6391 = vmatpush1.msra.mxu0 %v6191
  %6392 = vmatprep.subr.mxu0 0.0
  %6393 = vmatpush1.msra.mxu0 %v6192
  %6394 = vmatprep.subr.mxu0 0.0
  %6395 = vmatpush1.msra.mxu0 %v6193
  %6396 = vmatprep.subr.mxu0 0.0
  %6397 = vmatpush1.msra.mxu0 %v6194
  %6398 = vmatprep.subr.mxu0 0.0
  %6399 = vmatpush1.msra.mxu0 %v6195
  %6400 = vmatprep.subr.mxu0 0.0
  %6401 = vmatpush1.msra.mxu0 %v6196
  %6402 = vmatprep.subr.mxu0 0.0
  %6403 = vmatpush1.msra.mxu0 %v6197
  %6404 = vmatprep.subr.mxu0 0.0
  %6405 = vmatpush1.msra.mxu0 %v6198
  %6406 = vmatprep.subr.mxu0 0.0
  %6407 = vmatpush1.msra.mxu0 %v6199
  %6408 = vmatprep.subr.mxu0 0.0
  %6409 = vmatpush1.msra.mxu0 %v6200
  %6410 = vmatprep.subr.mxu0 0.0
  %6411 = vmatpush1.msra.mxu0 %v6201
  %6412 = vmatprep.subr.mxu0 0.0
  %6413 = vmatpush1.msra.mxu0 %v6202
  %6414 = vmatprep.subr.mxu0 0.0
  %6415 = vmatpush1.msra.mxu0 %v6203
  %6416 = vmatprep.subr.mxu0 0.0
  %6417 = vmatpush1.msra.mxu0 %v6204
  %6418 = vmatprep.subr.mxu0 0.0
  %6419 = vmatpush1.msra.mxu0 %v6205
  %6420 = vmatprep.subr.mxu0 0.0
  %6421 = vmatpush1.msra.mxu0 %v6206
  %6422 = vmatprep.subr.mxu0 0.0
  %6423 = vmatpush1.msra.mxu0 %v6207
  %6424 = vmatprep.subr.mxu0 0.0
  %6425 = vmatpush1.msra.mxu0 %v6208
  %6426 = vmatprep.subr.mxu0 0.0
  %6427 = vmatpush1.msra.mxu0 %v6209
  %6428 = vmatprep.subr.mxu0 0.0
  %6429 = vmatpush1.msra.mxu0 %v6210
  %6430 = vmatprep.subr.mxu0 0.0
  %6431 = vmatpush1.msra.mxu0 %v6211
  %6432 = vmatprep.subr.mxu0 0.0
  %6433 = vmatpush1.msra.mxu0 %v6212
  %6434 = vmatprep.subr.mxu0 0.0
  %6435 = vmatpush1.msra.mxu0 %v6213
  %6436 = vmatprep.subr.mxu0 0.0
  %6437 = vmatpush1.msra.mxu0 %v6214
  %6438 = vmatprep.subr.mxu0 0.0
  %6439 = vmatpush1.msra.mxu0 %v6215
  %6440 = vmatprep.subr.mxu0 0.0
  %6441 = vmatpush1.msra.mxu0 %v6216
  %6442 = vmatprep.subr.mxu0 0.0
  %6443 = vmatpush1.msra.mxu0 %v6217
  %6444 = vmatprep.subr.mxu0 0.0
  %6445 = vmatpush1.msra.mxu0 %v6218
  %6446 = vmatprep.subr.mxu0 0.0
  %6447 = vmatpush1.msra.mxu0 %v6219
  %6448 = vmatprep.subr.mxu0 0.0
  %6449 = vmatpush1.msra.mxu0 %v6220
  %6450 = vmatprep.subr.mxu0 0.0
  %6451 = vmatpush1.msra.mxu0 %v6221
  %6452 = vmatprep.subr.mxu0 0.0
  %6453 = vmatpush1.msra.mxu0 %v6222
  %6454 = vmatprep.mubr.f32.mxu0 %v6295
  %6455 = vmatmul.mubr.f32.gmra.mrb[0].mxu0 %v6288
  %v6456 = vpop.f32.mrb[0].mxu0
  %v6457 = vadd.f32 %v6387, %v6456
  %v6458 = vpop.f32.mrb[0].mxu0
  %6459 = vdwg.mxu0
  %6460 = vmatprep.subr.mxu0 0.0
  %6461 = vmatpush1.msra.mxu0 %v6223
  %6462 = vmatprep.subr.mxu0 0.0
  %6463 = vmatpush1.msra.mxu0 %v6224
  %6464 = vmatprep.subr.mxu0 0.0
  %6465 = vmatpush1.msra.mxu0 %v6225
  %6466 = vmatprep.subr.mxu0 0.0
  %6467 = vmatpush1.msra.mxu0 %v6226
  %6468 = vmatprep.subr.mxu0 0.0
  %6469 = vmatpush1.msra.mxu0 %v6227
  %6470 = vmatprep.subr.mxu0 0.0
  %6471 = vmatpush1.msra.mxu0 %v6228
  %6472 = vmatprep.subr.mxu0 0.0
  %6473 = vmatpush1.msra.mxu0 %v6229
  %6474 = vmatprep.subr.mxu0 0.0
  %6475 = vmatpush1.msra.mxu0 %v6230
  %6476 = vmatprep.subr.mxu0 0.0
  %6477 = vmatpush1.msra.mxu0 %v6231
  %6478 = vmatprep.subr.mxu0 0.0
  %6479 = vmatpush1.msra.mxu0 %v6232
  %6480 = vmatprep.subr.mxu0 0.0
  %6481 = vmatpush1.msra.mxu0 %v6233
  %6482 = vmatprep.subr.mxu0 0.0
  %6483 = vmatpush1.msra.mxu0 %v6234
  %6484 = vmatprep.subr.mxu0 0.0
  %6485 = vmatpush1.msra.mxu0 %v6235
  %6486 = vmatprep.subr.mxu0 0.0
  %6487 = vmatpush1.msra.mxu0 %v6236
  %6488 = vmatprep.subr.mxu0 0.0
  %6489 = vmatpush1.msra.mxu0 %v6237
  %6490 = vmatprep.subr.mxu0 0.0
  %6491 = vmatpush1.msra.mxu0 %v6238
  %6492 = vmatprep.subr.mxu0 0.0
  %6493 = vmatpush1.msra.mxu0 %v6239
  %6494 = vmatprep.subr.mxu0 0.0
  %6495 = vmatpush1.msra.mxu0 %v6240
  %6496 = vmatprep.subr.mxu0 0.0
  %6497 = vmatpush1.msra.mxu0 %v6241
  %6498 = vmatprep.subr.mxu0 0.0
  %6499 = vmatpush1.msra.mxu0 %v6242
  %6500 = vmatprep.subr.mxu0 0.0
  %6501 = vmatpush1.msra.mxu0 %v6243
  %6502 = vmatprep.subr.mxu0 0.0
  %6503 = vmatpush1.msra.mxu0 %v6244
  %6504 = vmatprep.subr.mxu0 0.0
  %6505 = vmatpush1.msra.mxu0 %v6245
  %6506 = vmatprep.subr.mxu0 0.0
  %6507 = vmatpush1.msra.mxu0 %v6246
  %6508 = vmatprep.subr.mxu0 0.0
  %6509 = vmatpush1.msra.mxu0 %v6247
  %6510 = vmatprep.subr.mxu0 0.0
  %6511 = vmatpush1.msra.mxu0 %v6248
  %6512 = vmatprep.subr.mxu0 0.0
  %6513 = vmatpush1.msra.mxu0 %v6249
  %6514 = vmatprep.subr.mxu0 0.0
  %6515 = vmatpush1.msra.mxu0 %v6250
  %6516 = vmatprep.subr.mxu0 0.0
  %6517 = vmatpush1.msra.mxu0 %v6251
  %6518 = vmatprep.subr.mxu0 0.0
  %6519 = vmatpush1.msra.mxu0 %v6252
  %6520 = vmatprep.subr.mxu0 0.0
  %6521 = vmatpush1.msra.mxu0 %v6253
  %6522 = vmatprep.subr.mxu0 0.0
  %6523 = vmatpush1.msra.mxu0 %v6254
  %6524 = vmatprep.mubr.f32.mxu0 %v6309
  %6525 = vmatmul.mubr.f32.gmra.mrb[0].mxu0 %v6302
  %v6526 = vpop.f32.mrb[0].mxu0
  %v6527 = vadd.f32 %v6457, %v6526
  %v6528 = vpop.f32.mrb[0].mxu0
  %6529 = vdwg.mxu0
  %6530 = vmatprep.subr.mxu0 0.0
  %6531 = vmatpush1.msra.mxu0 %v6255
  %6532 = vmatprep.subr.mxu0 0.0
  %6533 = vmatpush1.msra.mxu0 %v6256
  %6534 = vmatprep.subr.mxu0 0.0
  %6535 = vmatpush1.msra.mxu0 %v6257
  %6536 = vmatprep.subr.mxu0 0.0
  %6537 = vmatpush1.msra.mxu0 %v6258
  %6538 = vmatprep.subr.mxu0 0.0
  %6539 = vmatpush1.msra.mxu0 0.0
  %6540 = vmatprep.subr.mxu0 0.0
  %6541 = vmatpush1.msra.mxu0 0.0
  %6542 = vmatprep.subr.mxu0 0.0
  %6543 = vmatpush1.msra.mxu0 0.0
  %6544 = vmatprep.subr.mxu0 0.0
  %6545 = vmatpush1.msra.mxu0 0.0
  %6546 = vmatprep.subr.mxu0 0.0
  %6547 = vmatpush1.msra.mxu0 0.0
  %6548 = vmatprep.subr.mxu0 0.0
  %6549 = vmatpush1.msra.mxu0 0.0
  %6550 = vmatprep.subr.mxu0 0.0
  %6551 = vmatpush1.msra.mxu0 0.0
  %6552 = vmatprep.subr.mxu0 0.0
  %6553 = vmatpush1.msra.mxu0 0.0
  %6554 = vmatprep.subr.mxu0 0.0
  %6555 = vmatpush1.msra.mxu0 0.0
  %6556 = vmatprep.subr.mxu0 0.0
  %6557 = vmatpush1.msra.mxu0 0.0
  %6558 = vmatprep.subr.mxu0 0.0
  %6559 = vmatpush1.msra.mxu0 0.0
  %6560 = vmatprep.subr.mxu0 0.0
  %6561 = vmatpush1.msra.mxu0 0.0
  %6562 = vmatprep.subr.mxu0 0.0
  %6563 = vmatpush1.msra.mxu0 0.0
  %6564 = vmatprep.subr.mxu0 0.0
  %6565 = vmatpush1.msra.mxu0 0.0
  %6566 = vmatprep.subr.mxu0 0.0
  %6567 = vmatpush1.msra.mxu0 0.0
  %6568 = vmatprep.subr.mxu0 0.0
  %6569 = vmatpush1.msra.mxu0 0.0
  %6570 = vmatprep.subr.mxu0 0.0
  %6571 = vmatpush1.msra.mxu0 0.0
  %6572 = vmatprep.subr.mxu0 0.0
  %6573 = vmatpush1.msra.mxu0 0.0
  %6574 = vmatprep.subr.mxu0 0.0
  %6575 = vmatpush1.msra.mxu0 0.0
  %6576 = vmatprep.subr.mxu0 0.0
  %6577 = vmatpush1.msra.mxu0 0.0
  %6578 = vmatprep.subr.mxu0 0.0
  %6579 = vmatpush1.msra.mxu0 0.0
  %6580 = vmatprep.subr.mxu0 0.0
  %6581 = vmatpush1.msra.mxu0 0.0
  %6582 = vmatprep.subr.mxu0 0.0
  %6583 = vmatpush1.msra.mxu0 0.0
  %6584 = vmatprep.subr.mxu0 0.0
  %6585 = vmatpush1.msra.mxu0 0.0
  %6586 = vmatprep.subr.mxu0 0.0
  %6587 = vmatpush1.msra.mxu0 0.0
  %6588 = vmatprep.subr.mxu0 0.0
  %6589 = vmatpush1.msra.mxu0 0.0
  %6590 = vmatprep.subr.mxu0 0.0
  %6591 = vmatpush1.msra.mxu0 0.0
  %6592 = vmatprep.subr.mxu0 0.0
  %6593 = vmatpush1.msra.mxu0 0.0
  %6594 = vmatprep.mubr.f32.mxu0 0.0
  %6595 = vmatmul.mubr.f32.gmra.mrb[0].mxu0 %v6318
  %v6596 = vpop.f32.mrb[0].mxu0
  %v6597 = vadd.f32 %v6527, %v6596
  %v6598 = vpop.f32.mrb[0].mxu0
  %6599 = vdwg.mxu0
  %v6600 = vmul.f32 %v6597, 0.005
  %v6602 = vsel %vm819, %v6600, 0
  %6604 = vmatprep.subr.mxu0 %v6260
  %6605 = vmatpush1.msra.mxu0 %v6259
  %6606 = vmatprep.subr.mxu0 0.0
  %6607 = vmatpush1.msra.mxu0 0.0
  %6608 = vmatprep.subr.mxu0 0.0
  %6609 = vmatpush1.msra.mxu0 0.0
  %6610 = vmatprep.subr.mxu0 0.0
  %6611 = vmatpush1.msra.mxu0 0.0
  %6612 = vmatprep.subr.mxu0 0.0
  %6613 = vmatpush1.msra.mxu0 0.0
  %6614 = vmatprep.subr.mxu0 0.0
  %6615 = vmatpush1.msra.mxu0 0.0
  %6616 = vmatprep.subr.mxu0 0.0
  %6617 = vmatpush1.msra.mxu0 0.0
  %6618 = vmatprep.subr.mxu0 0.0
  %6619 = vmatpush1.msra.mxu0 0.0
  %6620 = vmatprep.subr.mxu0 0.0
  %6621 = vmatpush1.msra.mxu0 0.0
  %6622 = vmatprep.subr.mxu0 0.0
  %6623 = vmatpush1.msra.mxu0 0.0
  %6624 = vmatprep.subr.mxu0 0.0
  %6625 = vmatpush1.msra.mxu0 0.0
  %6626 = vmatprep.subr.mxu0 0.0
  %6627 = vmatpush1.msra.mxu0 0.0
  %6628 = vmatprep.subr.mxu0 0.0
  %6629 = vmatpush1.msra.mxu0 0.0
  %6630 = vmatprep.subr.mxu0 0.0
  %6631 = vmatpush1.msra.mxu0 0.0
  %6632 = vmatprep.subr.mxu0 0.0
  %6633 = vmatpush1.msra.mxu0 0.0
  %6634 = vmatprep.subr.mxu0 0.0
  %6635 = vmatpush1.msra.mxu0 0.0
  %6636 = vmatprep.subr.mxu0 0.0
  %6637 = vmatpush1.msra.mxu0 0.0
  %6638 = vmatprep.subr.mxu0 0.0
  %6639 = vmatpush1.msra.mxu0 0.0
  %6640 = vmatprep.subr.mxu0 0.0
  %6641 = vmatpush1.msra.mxu0 0.0
  %6642 = vmatprep.subr.mxu0 0.0
  %6643 = vmatpush1.msra.mxu0 0.0
  %6644 = vmatprep.subr.mxu0 0.0
  %6645 = vmatpush1.msra.mxu0 0.0
  %6646 = vmatprep.subr.mxu0 0.0
  %6647 = vmatpush1.msra.mxu0 0.0
  %6648 = vmatprep.subr.mxu0 0.0
  %6649 = vmatpush1.msra.mxu0 0.0
  %6650 = vmatprep.subr.mxu0 0.0
  %6651 = vmatpush1.msra.mxu0 0.0
  %6652 = vmatprep.subr.mxu0 0.0
  %6653 = vmatpush1.msra.mxu0 0.0
  %6654 = vmatprep.subr.mxu0 0.0
  %6655 = vmatpush1.msra.mxu0 0.0
  %6656 = vmatprep.subr.mxu0 0.0
  %6657 = vmatpush1.msra.mxu0 0.0
  %6658 = vmatprep.subr.mxu0 0.0
  %6659 = vmatpush1.msra.mxu0 0.0
  %6660 = vmatprep.subr.mxu0 0.0
  %6661 = vmatpush1.msra.mxu0 0.0
  %6662 = vmatprep.subr.mxu0 0.0
  %6663 = vmatpush1.msra.mxu0 0.0
  %6664 = vmatprep.subr.mxu0 0.0
  %6665 = vmatpush1.msra.mxu0 0.0
  %6666 = vmatprep.subr.mxu0 0.0
  %6667 = vmatpush1.msra.mxu0 0.0
  %6668 = vmatprep.mubr.f32.mxu0 0.0
  %6669 = vmatmul.mubr.f32.gmra.mrb[0].mxu0 %v6602
  %v6670 = vpop.f32.mrb[0].mxu0
  %v6671 = vadd.f32 0.0, %v6670
  %v6672 = vpop.f32.mrb[0].mxu0
  %v6673 = vadd.f32 0.0, %v6672
  %6674 = vdwg.mxu0
  %6675 = vmatprep.subr.mxu0 %v6262
  %6676 = vmatpush1.msra.mxu0 %v6261
  %6677 = vmatprep.subr.mxu0 0.0
  %6678 = vmatpush1.msra.mxu0 0.0
  %6679 = vmatprep.subr.mxu0 0.0
  %6680 = vmatpush1.msra.mxu0 0.0
  %6681 = vmatprep.subr.mxu0 0.0
  %6682 = vmatpush1.msra.mxu0 0.0
  %6683 = vmatprep.subr.mxu0 0.0
  %6684 = vmatpush1.msra.mxu0 0.0
  %6685 = vmatprep.subr.mxu0 0.0
  %6686 = vmatpush1.msra.mxu0 0.0
  %6687 = vmatprep.subr.mxu0 0.0
  %6688 = vmatpush1.msra.mxu0 0.0
  %6689 = vmatprep.subr.mxu0 0.0
  %6690 = vmatpush1.msra.mxu0 0.0
  %6691 = vmatprep.subr.mxu0 0.0
  %6692 = vmatpush1.msra.mxu0 0.0
  %6693 = vmatprep.subr.mxu0 0.0
  %6694 = vmatpush1.msra.mxu0 0.0
  %6695 = vmatprep.subr.mxu0 0.0
  %6696 = vmatpush1.msra.mxu0 0.0
  %6697 = vmatprep.subr.mxu0 0.0
  %6698 = vmatpush1.msra.mxu0 0.0
  %6699 = vmatprep.subr.mxu0 0.0
  %6700 = vmatpush1.msra.mxu0 0.0
  %6701 = vmatprep.subr.mxu0 0.0
  %6702 = vmatpush1.msra.mxu0 0.0
  %6703 = vmatprep.subr.mxu0 0.0
  %6704 = vmatpush1.msra.mxu0 0.0
  %6705 = vmatprep.subr.mxu0 0.0
  %6706 = vmatpush1.msra.mxu0 0.0
  %6707 = vmatprep.subr.mxu0 0.0
  %6708 = vmatpush1.msra.mxu0 0.0
  %6709 = vmatprep.subr.mxu0 0.0
  %6710 = vmatpush1.msra.mxu0 0.0
  %6711 = vmatprep.subr.mxu0 0.0
  %6712 = vmatpush1.msra.mxu0 0.0
  %6713 = vmatprep.subr.mxu0 0.0
  %6714 = vmatpush1.msra.mxu0 0.0
  %6715 = vmatprep.subr.mxu0 0.0
  %6716 = vmatpush1.msra.mxu0 0.0
  %6717 = vmatprep.subr.mxu0 0.0
  %6718 = vmatpush1.msra.mxu0 0.0
  %6719 = vmatprep.subr.mxu0 0.0
  %6720 = vmatpush1.msra.mxu0 0.0
  %6721 = vmatprep.subr.mxu0 0.0
  %6722 = vmatpush1.msra.mxu0 0.0
  %6723 = vmatprep.subr.mxu0 0.0
  %6724 = vmatpush1.msra.mxu0 0.0
  %6725 = vmatprep.subr.mxu0 0.0
  %6726 = vmatpush1.msra.mxu0 0.0
  %6727 = vmatprep.subr.mxu0 0.0
  %6728 = vmatpush1.msra.mxu0 0.0
  %6729 = vmatprep.subr.mxu0 0.0
  %6730 = vmatpush1.msra.mxu0 0.0
  %6731 = vmatprep.subr.mxu0 0.0
  %6732 = vmatpush1.msra.mxu0 0.0
  %6733 = vmatprep.subr.mxu0 0.0
  %6734 = vmatpush1.msra.mxu0 0.0
  %6735 = vmatprep.subr.mxu0 0.0
  %6736 = vmatpush1.msra.mxu0 0.0
  %6737 = vmatprep.subr.mxu0 0.0
  %6738 = vmatpush1.msra.mxu0 0.0
  %6739 = vmatprep.mubr.f32.mxu0 0.0
  %6740 = vmatmul.mubr.f32.gmra.mrb[0].mxu0 %v6602
  %v6741 = vpop.f32.mrb[0].mxu0
  %v6742 = vadd.f32 0.0, %v6741
  %v6743 = vpop.f32.mrb[0].mxu0
  %v6744 = vadd.f32 0.0, %v6743
  %6745 = vdwg.mxu0
  %6746 = vmatprep.subr.mxu0 %v6264
  %6747 = vmatpush1.msra.mxu0 %v6263
  %6748 = vmatprep.subr.mxu0 0.0
  %6749 = vmatpush1.msra.mxu0 0.0
  %6750 = vmatprep.subr.mxu0 0.0
  %6751 = vmatpush1.msra.mxu0 0.0
  %6752 = vmatprep.subr.mxu0 0.0
  %6753 = vmatpush1.msra.mxu0 0.0
  %6754 = vmatprep.subr.mxu0 0.0
  %6755 = vmatpush1.msra.mxu0 0.0
  %6756 = vmatprep.subr.mxu0 0.0
  %6757 = vmatpush1.msra.mxu0 0.0
  %6758 = vmatprep.subr.mxu0 0.0
  %6759 = vmatpush1.msra.mxu0 0.0
  %6760 = vmatprep.subr.mxu0 0.0
  %6761 = vmatpush1.msra.mxu0 0.0
  %6762 = vmatprep.subr.mxu0 0.0
  %6763 = vmatpush1.msra.mxu0 0.0
  %6764 = vmatprep.subr.mxu0 0.0
  %6765 = vmatpush1.msra.mxu0 0.0
  %6766 = vmatprep.subr.mxu0 0.0
  %6767 = vmatpush1.msra.mxu0 0.0
  %6768 = vmatprep.subr.mxu0 0.0
  %6769 = vmatpush1.msra.mxu0 0.0
  %6770 = vmatprep.subr.mxu0 0.0
  %6771 = vmatpush1.msra.mxu0 0.0
  %6772 = vmatprep.subr.mxu0 0.0
  %6773 = vmatpush1.msra.mxu0 0.0
  %6774 = vmatprep.subr.mxu0 0.0
  %6775 = vmatpush1.msra.mxu0 0.0
  %6776 = vmatprep.subr.mxu0 0.0
  %6777 = vmatpush1.msra.mxu0 0.0
  %6778 = vmatprep.subr.mxu0 0.0
  %6779 = vmatpush1.msra.mxu0 0.0
  %6780 = vmatprep.subr.mxu0 0.0
  %6781 = vmatpush1.msra.mxu0 0.0
  %6782 = vmatprep.subr.mxu0 0.0
  %6783 = vmatpush1.msra.mxu0 0.0
  %6784 = vmatprep.subr.mxu0 0.0
  %6785 = vmatpush1.msra.mxu0 0.0
  %6786 = vmatprep.subr.mxu0 0.0
  %6787 = vmatpush1.msra.mxu0 0.0
  %6788 = vmatprep.subr.mxu0 0.0
  %6789 = vmatpush1.msra.mxu0 0.0
  %6790 = vmatprep.subr.mxu0 0.0
  %6791 = vmatpush1.msra.mxu0 0.0
  %6792 = vmatprep.subr.mxu0 0.0
  %6793 = vmatpush1.msra.mxu0 0.0
  %6794 = vmatprep.subr.mxu0 0.0
  %6795 = vmatpush1.msra.mxu0 0.0
  %6796 = vmatprep.subr.mxu0 0.0
  %6797 = vmatpush1.msra.mxu0 0.0
  %6798 = vmatprep.subr.mxu0 0.0
  %6799 = vmatpush1.msra.mxu0 0.0
  %6800 = vmatprep.subr.mxu0 0.0
  %6801 = vmatpush1.msra.mxu0 0.0
  %6802 = vmatprep.subr.mxu0 0.0
  %6803 = vmatpush1.msra.mxu0 0.0
  %6804 = vmatprep.subr.mxu0 0.0
  %6805 = vmatpush1.msra.mxu0 0.0
  %6806 = vmatprep.subr.mxu0 0.0
  %6807 = vmatpush1.msra.mxu0 0.0
  %6808 = vmatprep.subr.mxu0 0.0
  %6809 = vmatpush1.msra.mxu0 0.0
  %6810 = vmatprep.mubr.f32.mxu0 0.0
  %6811 = vmatmul.mubr.f32.gmra.mrb[0].mxu0 %v6602
  %v6812 = vpop.f32.mrb[0].mxu0
  %v6813 = vadd.f32 0.0, %v6812
  %v6814 = vpop.f32.mrb[0].mxu0
  %v6815 = vadd.f32 0.0, %v6814
  %6816 = vdwg.mxu0
  %6817 = vmatprep.subr.mxu0 0.0
  %6818 = vmatpush1.msra.mxu0 %v6265
  %6819 = vmatprep.subr.mxu0 0.0
  %6820 = vmatpush1.msra.mxu0 0.0
  %6821 = vmatprep.subr.mxu0 0.0
  %6822 = vmatpush1.msra.mxu0 0.0
  %6823 = vmatprep.subr.mxu0 0.0
  %6824 = vmatpush1.msra.mxu0 0.0
  %6825 = vmatprep.subr.mxu0 0.0
  %6826 = vmatpush1.msra.mxu0 0.0
  %6827 = vmatprep.subr.mxu0 0.0
  %6828 = vmatpush1.msra.mxu0 0.0
  %6829 = vmatprep.subr.mxu0 0.0
  %6830 = vmatpush1.msra.mxu0 0.0
  %6831 = vmatprep.subr.mxu0 0.0
  %6832 = vmatpush1.msra.mxu0 0.0
  %6833 = vmatprep.subr.mxu0 0.0
  %6834 = vmatpush1.msra.mxu0 0.0
  %6835 = vmatprep.subr.mxu0 0.0
  %6836 = vmatpush1.msra.mxu0 0.0
  %6837 = vmatprep.subr.mxu0 0.0
  %6838 = vmatpush1.msra.mxu0 0.0
  %6839 = vmatprep.subr.mxu0 0.0
  %6840 = vmatpush1.msra.mxu0 0.0
  %6841 = vmatprep.subr.mxu0 0.0
  %6842 = vmatpush1.msra.mxu0 0.0
  %6843 = vmatprep.subr.mxu0 0.0
  %6844 = vmatpush1.msra.mxu0 0.0
  %6845 = vmatprep.subr.mxu0 0.0
  %6846 = vmatpush1.msra.mxu0 0.0
  %6847 = vmatprep.subr.mxu0 0.0
  %6848 = vmatpush1.msra.mxu0 0.0
  %6849 = vmatprep.subr.mxu0 0.0
  %6850 = vmatpush1.msra.mxu0 0.0
  %6851 = vmatprep.subr.mxu0 0.0
  %6852 = vmatpush1.msra.mxu0 0.0
  %6853 = vmatprep.subr.mxu0 0.0
  %6854 = vmatpush1.msra.mxu0 0.0
  %6855 = vmatprep.subr.mxu0 0.0
  %6856 = vmatpush1.msra.mxu0 0.0
  %6857 = vmatprep.subr.mxu0 0.0
  %6858 = vmatpush1.msra.mxu0 0.0
  %6859 = vmatprep.subr.mxu0 0.0
  %6860 = vmatpush1.msra.mxu0 0.0
  %6861 = vmatprep.subr.mxu0 0.0
  %6862 = vmatpush1.msra.mxu0 0.0
  %6863 = vmatprep.subr.mxu0 0.0
  %6864 = vmatpush1.msra.mxu0 0.0
  %6865 = vmatprep.subr.mxu0 0.0
  %6866 = vmatpush1.msra.mxu0 0.0
  %6867 = vmatprep.subr.mxu0 0.0
  %6868 = vmatpush1.msra.mxu0 0.0
  %6869 = vmatprep.subr.mxu0 0.0
  %6870 = vmatpush1.msra.mxu0 0.0
  %6871 = vmatprep.subr.mxu0 0.0
  %6872 = vmatpush1.msra.mxu0 0.0
  %6873 = vmatprep.subr.mxu0 0.0
  %6874 = vmatpush1.msra.mxu0 0.0
  %6875 = vmatprep.subr.mxu0 0.0
  %6876 = vmatpush1.msra.mxu0 0.0
  %6877 = vmatprep.subr.mxu0 0.0
  %6878 = vmatpush1.msra.mxu0 0.0
  %6879 = vmatprep.subr.mxu0 0.0
  %6880 = vmatpush1.msra.mxu0 0.0
  %6881 = vmatprep.mubr.f32.mxu0 0.0
  %6882 = vmatmul.mubr.f32.gmra.mrb[0].mxu0 %v6602
  %v6883 = vpop.f32.mrb[0].mxu0
  %v6884 = vadd.f32 0.0, %v6883
  %v6885 = vpop.f32.mrb[0].mxu0
  %6886 = vdwg.mxu0
  %v6887 = vlaneseq
  %v6888 = vshrl.u32 %v6887, 7
  %v6889 = vsub.s32 0, %v6888
  %v6890 = vrot.slane %v6671, %v6889
  %v6891 = vlaneseq
  %v6892 = vshrl.u32 %v6891, 7
  %v6893 = vsub.s32 0, %v6892
  %v6894 = vrot.slane %v6673, %v6893
  %v6895 = vlaneseq
  %v6896 = vshrl.u32 %v6895, 7
  %v6897 = vsub.s32 0, %v6896
  %v6898 = vrot.slane %v6742, %v6897
  %v6899 = vlaneseq
  %v6900 = vshrl.u32 %v6899, 7
  %v6901 = vsub.s32 0, %v6900
  %v6902 = vrot.slane %v6744, %v6901
  %v6903 = vlaneseq
  %v6904 = vshrl.u32 %v6903, 7
  %v6905 = vsub.s32 0, %v6904
  %v6906 = vrot.slane %v6813, %v6905
  %v6907 = vlaneseq
  %v6908 = vshrl.u32 %v6907, 7
  %v6909 = vsub.s32 0, %v6908
  %v6910 = vrot.slane %v6815, %v6909
  %v6911 = vlaneseq
  %v6912 = vshrl.u32 %v6911, 7
  %v6913 = vsub.s32 0, %v6912
  %v6914 = vrot.slane %v6884, %v6913
  %v6915 = vsub.f32 %v5909, %v6890
  %v6916 = vsub.f32 %v5911, %v6894
  %v6917 = vsub.f32 %v5991, %v6898
  %v6918 = vsub.f32 %v5993, %v6902
  %v6919 = vsub.f32 %v6073, %v6906
  %v6920 = vsub.f32 %v6075, %v6910
  %v6921 = vsub.f32 %v6154, %v6914
  %v6922 = vmul.f32 %v6915, %v6915
  %v6923 = vmul.f32 %v6916, %v6916
  %v6924 = vmul.f32 %v6917, %v6917
  %v6925 = vmul.f32 %v6918, %v6918
  %v6926 = vmul.f32 %v6919, %v6919
  %v6927 = vmul.f32 %v6920, %v6920
  %v6928 = vmul.f32 %v6921, %v6921
  %v6929 = vsel %vm649, %v6922, 0.0
  %v6930 = vrot.slane %v6929, 4
  %v6931 = vadd.f32 %v6929, %v6930
  %v6932 = vrot.slane %v6931, 2
  %v6933 = vadd.f32 %v6931, %v6932
  %v6934 = vrot.slane %v6933, 1
  %v6935 = vadd.f32 %v6933, %v6934
  %v6936 = vsel %vm649, %v6923, 0.0
  %v6937 = vrot.slane %v6936, 4
  %v6938 = vadd.f32 %v6936, %v6937
  %v6939 = vrot.slane %v6938, 2
  %v6940 = vadd.f32 %v6938, %v6939
  %v6941 = vrot.slane %v6940, 1
  %v6942 = vadd.f32 %v6940, %v6941
  %v6943 = vsel %vm649, %v6924, 0.0
  %v6944 = vrot.slane %v6943, 4
  %v6945 = vadd.f32 %v6943, %v6944
  %v6946 = vrot.slane %v6945, 2
  %v6947 = vadd.f32 %v6945, %v6946
  %v6948 = vrot.slane %v6947, 1
  %v6949 = vadd.f32 %v6947, %v6948
  %v6950 = vsel %vm649, %v6925, 0.0
  %v6951 = vrot.slane %v6950, 4
  %v6952 = vadd.f32 %v6950, %v6951
  %v6953 = vrot.slane %v6952, 2
  %v6954 = vadd.f32 %v6952, %v6953
  %v6955 = vrot.slane %v6954, 1
  %v6956 = vadd.f32 %v6954, %v6955
  %v6957 = vsel %vm649, %v6926, 0.0
  %v6958 = vrot.slane %v6957, 4
  %v6959 = vadd.f32 %v6957, %v6958
  %v6960 = vrot.slane %v6959, 2
  %v6961 = vadd.f32 %v6959, %v6960
  %v6962 = vrot.slane %v6961, 1
  %v6963 = vadd.f32 %v6961, %v6962
  %v6964 = vsel %vm649, %v6927, 0.0
  %v6965 = vrot.slane %v6964, 4
  %v6966 = vadd.f32 %v6964, %v6965
  %v6967 = vrot.slane %v6966, 2
  %v6968 = vadd.f32 %v6966, %v6967
  %v6969 = vrot.slane %v6968, 1
  %v6970 = vadd.f32 %v6968, %v6969
  %v6971 = vsel %vm2689, %v6928, 0.0
  %v6972 = vrot.slane %v6971, 4
  %v6973 = vadd.f32 %v6971, %v6972
  %v6974 = vrot.slane %v6973, 2
  %v6975 = vadd.f32 %v6973, %v6974
  %v6976 = vrot.slane %v6975, 1
  %v6977 = vadd.f32 %v6975, %v6976
  %v6979 = vsel %vm2697, %v6977, 0
  %6981 = vmatprep.subr.mxu0 0.0
  %6982 = vmatpush1.msra.mxu0 %v6159
  %6983 = vmatprep.subr.mxu0 0.0
  %6984 = vmatpush1.msra.mxu0 %v6160
  %6985 = vmatprep.subr.mxu0 0.0
  %6986 = vmatpush1.msra.mxu0 %v6161
  %6987 = vmatprep.subr.mxu0 0.0
  %6988 = vmatpush1.msra.mxu0 %v6162
  %6989 = vmatprep.subr.mxu0 0.0
  %6990 = vmatpush1.msra.mxu0 %v6163
  %6991 = vmatprep.subr.mxu0 0.0
  %6992 = vmatpush1.msra.mxu0 %v6164
  %6993 = vmatprep.subr.mxu0 0.0
  %6994 = vmatpush1.msra.mxu0 %v6165
  %6995 = vmatprep.subr.mxu0 0.0
  %6996 = vmatpush1.msra.mxu0 %v6166
  %6997 = vmatprep.subr.mxu0 0.0
  %6998 = vmatpush1.msra.mxu0 %v6167
  %6999 = vmatprep.subr.mxu0 0.0
  %7000 = vmatpush1.msra.mxu0 %v6168
  %7001 = vmatprep.subr.mxu0 0.0
  %7002 = vmatpush1.msra.mxu0 %v6169
  %7003 = vmatprep.subr.mxu0 0.0
  %7004 = vmatpush1.msra.mxu0 %v6170
  %7005 = vmatprep.subr.mxu0 0.0
  %7006 = vmatpush1.msra.mxu0 %v6171
  %7007 = vmatprep.subr.mxu0 0.0
  %7008 = vmatpush1.msra.mxu0 %v6172
  %7009 = vmatprep.subr.mxu0 0.0
  %7010 = vmatpush1.msra.mxu0 %v6173
  %7011 = vmatprep.subr.mxu0 0.0
  %7012 = vmatpush1.msra.mxu0 %v6174
  %7013 = vmatprep.subr.mxu0 0.0
  %7014 = vmatpush1.msra.mxu0 %v6175
  %7015 = vmatprep.subr.mxu0 0.0
  %7016 = vmatpush1.msra.mxu0 %v6176
  %7017 = vmatprep.subr.mxu0 0.0
  %7018 = vmatpush1.msra.mxu0 %v6177
  %7019 = vmatprep.subr.mxu0 0.0
  %7020 = vmatpush1.msra.mxu0 %v6178
  %7021 = vmatprep.subr.mxu0 0.0
  %7022 = vmatpush1.msra.mxu0 %v6179
  %7023 = vmatprep.subr.mxu0 0.0
  %7024 = vmatpush1.msra.mxu0 %v6180
  %7025 = vmatprep.subr.mxu0 0.0
  %7026 = vmatpush1.msra.mxu0 %v6181
  %7027 = vmatprep.subr.mxu0 0.0
  %7028 = vmatpush1.msra.mxu0 %v6182
  %7029 = vmatprep.subr.mxu0 0.0
  %7030 = vmatpush1.msra.mxu0 %v6183
  %7031 = vmatprep.subr.mxu0 0.0
  %7032 = vmatpush1.msra.mxu0 %v6184
  %7033 = vmatprep.subr.mxu0 0.0
  %7034 = vmatpush1.msra.mxu0 %v6185
  %7035 = vmatprep.subr.mxu0 0.0
  %7036 = vmatpush1.msra.mxu0 %v6186
  %7037 = vmatprep.subr.mxu0 0.0
  %7038 = vmatpush1.msra.mxu0 %v6187
  %7039 = vmatprep.subr.mxu0 0.0
  %7040 = vmatpush1.msra.mxu0 %v6188
  %7041 = vmatprep.subr.mxu0 0.0
  %7042 = vmatpush1.msra.mxu0 %v6189
  %7043 = vmatprep.subr.mxu0 0.0
  %7044 = vmatpush1.msra.mxu0 %v6190
  %7045 = vmatprep.mubr.f32.mxu0 %v6942
  %7046 = vmatmul.mubr.f32.gmra.mrb[0].mxu0 %v6935
  %v7047 = vpop.f32.mrb[0].mxu0
  %v7048 = vadd.f32 0.0, %v7047
  %v7049 = vpop.f32.mrb[0].mxu0
  %7050 = vdwg.mxu0
  %7051 = vmatprep.subr.mxu0 0.0
  %7052 = vmatpush1.msra.mxu0 %v6191
  %7053 = vmatprep.subr.mxu0 0.0
  %7054 = vmatpush1.msra.mxu0 %v6192
  %7055 = vmatprep.subr.mxu0 0.0
  %7056 = vmatpush1.msra.mxu0 %v6193
  %7057 = vmatprep.subr.mxu0 0.0
  %7058 = vmatpush1.msra.mxu0 %v6194
  %7059 = vmatprep.subr.mxu0 0.0
  %7060 = vmatpush1.msra.mxu0 %v6195
  %7061 = vmatprep.subr.mxu0 0.0
  %7062 = vmatpush1.msra.mxu0 %v6196
  %7063 = vmatprep.subr.mxu0 0.0
  %7064 = vmatpush1.msra.mxu0 %v6197
  %7065 = vmatprep.subr.mxu0 0.0
  %7066 = vmatpush1.msra.mxu0 %v6198
  %7067 = vmatprep.subr.mxu0 0.0
  %7068 = vmatpush1.msra.mxu0 %v6199
  %7069 = vmatprep.subr.mxu0 0.0
  %7070 = vmatpush1.msra.mxu0 %v6200
  %7071 = vmatprep.subr.mxu0 0.0
  %7072 = vmatpush1.msra.mxu0 %v6201
  %7073 = vmatprep.subr.mxu0 0.0
  %7074 = vmatpush1.msra.mxu0 %v6202
  %7075 = vmatprep.subr.mxu0 0.0
  %7076 = vmatpush1.msra.mxu0 %v6203
  %7077 = vmatprep.subr.mxu0 0.0
  %7078 = vmatpush1.msra.mxu0 %v6204
  %7079 = vmatprep.subr.mxu0 0.0
  %7080 = vmatpush1.msra.mxu0 %v6205
  %7081 = vmatprep.subr.mxu0 0.0
  %7082 = vmatpush1.msra.mxu0 %v6206
  %7083 = vmatprep.subr.mxu0 0.0
  %7084 = vmatpush1.msra.mxu0 %v6207
  %7085 = vmatprep.subr.mxu0 0.0
  %7086 = vmatpush1.msra.mxu0 %v6208
  %7087 = vmatprep.subr.mxu0 0.0
  %7088 = vmatpush1.msra.mxu0 %v6209
  %7089 = vmatprep.subr.mxu0 0.0
  %7090 = vmatpush1.msra.mxu0 %v6210
  %7091 = vmatprep.subr.mxu0 0.0
  %7092 = vmatpush1.msra.mxu0 %v6211
  %7093 = vmatprep.subr.mxu0 0.0
  %7094 = vmatpush1.msra.mxu0 %v6212
  %7095 = vmatprep.subr.mxu0 0.0
  %7096 = vmatpush1.msra.mxu0 %v6213
  %7097 = vmatprep.subr.mxu0 0.0
  %7098 = vmatpush1.msra.mxu0 %v6214
  %7099 = vmatprep.subr.mxu0 0.0
  %7100 = vmatpush1.msra.mxu0 %v6215
  %7101 = vmatprep.subr.mxu0 0.0
  %7102 = vmatpush1.msra.mxu0 %v6216
  %7103 = vmatprep.subr.mxu0 0.0
  %7104 = vmatpush1.msra.mxu0 %v6217
  %7105 = vmatprep.subr.mxu0 0.0
  %7106 = vmatpush1.msra.mxu0 %v6218
  %7107 = vmatprep.subr.mxu0 0.0
  %7108 = vmatpush1.msra.mxu0 %v6219
  %7109 = vmatprep.subr.mxu0 0.0
  %7110 = vmatpush1.msra.mxu0 %v6220
  %7111 = vmatprep.subr.mxu0 0.0
  %7112 = vmatpush1.msra.mxu0 %v6221
  %7113 = vmatprep.subr.mxu0 0.0
  %7114 = vmatpush1.msra.mxu0 %v6222
  %7115 = vmatprep.mubr.f32.mxu0 %v6956
  %7116 = vmatmul.mubr.f32.gmra.mrb[0].mxu0 %v6949
  %v7117 = vpop.f32.mrb[0].mxu0
  %v7118 = vadd.f32 %v7048, %v7117
  %v7119 = vpop.f32.mrb[0].mxu0
  %7120 = vdwg.mxu0
  %7121 = vmatprep.subr.mxu0 0.0
  %7122 = vmatpush1.msra.mxu0 %v6223
  %7123 = vmatprep.subr.mxu0 0.0
  %7124 = vmatpush1.msra.mxu0 %v6224
  %7125 = vmatprep.subr.mxu0 0.0
  %7126 = vmatpush1.msra.mxu0 %v6225
  %7127 = vmatprep.subr.mxu0 0.0
  %7128 = vmatpush1.msra.mxu0 %v6226
  %7129 = vmatprep.subr.mxu0 0.0
  %7130 = vmatpush1.msra.mxu0 %v6227
  %7131 = vmatprep.subr.mxu0 0.0
  %7132 = vmatpush1.msra.mxu0 %v6228
  %7133 = vmatprep.subr.mxu0 0.0
  %7134 = vmatpush1.msra.mxu0 %v6229
  %7135 = vmatprep.subr.mxu0 0.0
  %7136 = vmatpush1.msra.mxu0 %v6230
  %7137 = vmatprep.subr.mxu0 0.0
  %7138 = vmatpush1.msra.mxu0 %v6231
  %7139 = vmatprep.subr.mxu0 0.0
  %7140 = vmatpush1.msra.mxu0 %v6232
  %7141 = vmatprep.subr.mxu0 0.0
  %7142 = vmatpush1.msra.mxu0 %v6233
  %7143 = vmatprep.subr.mxu0 0.0
  %7144 = vmatpush1.msra.mxu0 %v6234
  %7145 = vmatprep.subr.mxu0 0.0
  %7146 = vmatpush1.msra.mxu0 %v6235
  %7147 = vmatprep.subr.mxu0 0.0
  %7148 = vmatpush1.msra.mxu0 %v6236
  %7149 = vmatprep.subr.mxu0 0.0
  %7150 = vmatpush1.msra.mxu0 %v6237
  %7151 = vmatprep.subr.mxu0 0.0
  %7152 = vmatpush1.msra.mxu0 %v6238
  %7153 = vmatprep.subr.mxu0 0.0
  %7154 = vmatpush1.msra.mxu0 %v6239
  %7155 = vmatprep.subr.mxu0 0.0
  %7156 = vmatpush1.msra.mxu0 %v6240
  %7157 = vmatprep.subr.mxu0 0.0
  %7158 = vmatpush1.msra.mxu0 %v6241
  %7159 = vmatprep.subr.mxu0 0.0
  %7160 = vmatpush1.msra.mxu0 %v6242
  %7161 = vmatprep.subr.mxu0 0.0
  %7162 = vmatpush1.msra.mxu0 %v6243
  %7163 = vmatprep.subr.mxu0 0.0
  %7164 = vmatpush1.msra.mxu0 %v6244
  %7165 = vmatprep.subr.mxu0 0.0
  %7166 = vmatpush1.msra.mxu0 %v6245
  %7167 = vmatprep.subr.mxu0 0.0
  %7168 = vmatpush1.msra.mxu0 %v6246
  %7169 = vmatprep.subr.mxu0 0.0
  %7170 = vmatpush1.msra.mxu0 %v6247
  %7171 = vmatprep.subr.mxu0 0.0
  %7172 = vmatpush1.msra.mxu0 %v6248
  %7173 = vmatprep.subr.mxu0 0.0
  %7174 = vmatpush1.msra.mxu0 %v6249
  %7175 = vmatprep.subr.mxu0 0.0
  %7176 = vmatpush1.msra.mxu0 %v6250
  %7177 = vmatprep.subr.mxu0 0.0
  %7178 = vmatpush1.msra.mxu0 %v6251
  %7179 = vmatprep.subr.mxu0 0.0
  %7180 = vmatpush1.msra.mxu0 %v6252
  %7181 = vmatprep.subr.mxu0 0.0
  %7182 = vmatpush1.msra.mxu0 %v6253
  %7183 = vmatprep.subr.mxu0 0.0
  %7184 = vmatpush1.msra.mxu0 %v6254
  %7185 = vmatprep.mubr.f32.mxu0 %v6970
  %7186 = vmatmul.mubr.f32.gmra.mrb[0].mxu0 %v6963
  %v7187 = vpop.f32.mrb[0].mxu0
  %v7188 = vadd.f32 %v7118, %v7187
  %v7189 = vpop.f32.mrb[0].mxu0
  %7190 = vdwg.mxu0
  %7191 = vmatprep.subr.mxu0 0.0
  %7192 = vmatpush1.msra.mxu0 %v6255
  %7193 = vmatprep.subr.mxu0 0.0
  %7194 = vmatpush1.msra.mxu0 %v6256
  %7195 = vmatprep.subr.mxu0 0.0
  %7196 = vmatpush1.msra.mxu0 %v6257
  %7197 = vmatprep.subr.mxu0 0.0
  %7198 = vmatpush1.msra.mxu0 %v6258
  %7199 = vmatprep.subr.mxu0 0.0
  %7200 = vmatpush1.msra.mxu0 0.0
  %7201 = vmatprep.subr.mxu0 0.0
  %7202 = vmatpush1.msra.mxu0 0.0
  %7203 = vmatprep.subr.mxu0 0.0
  %7204 = vmatpush1.msra.mxu0 0.0
  %7205 = vmatprep.subr.mxu0 0.0
  %7206 = vmatpush1.msra.mxu0 0.0
  %7207 = vmatprep.subr.mxu0 0.0
  %7208 = vmatpush1.msra.mxu0 0.0
  %7209 = vmatprep.subr.mxu0 0.0
  %7210 = vmatpush1.msra.mxu0 0.0
  %7211 = vmatprep.subr.mxu0 0.0
  %7212 = vmatpush1.msra.mxu0 0.0
  %7213 = vmatprep.subr.mxu0 0.0
  %7214 = vmatpush1.msra.mxu0 0.0
  %7215 = vmatprep.subr.mxu0 0.0
  %7216 = vmatpush1.msra.mxu0 0.0
  %7217 = vmatprep.subr.mxu0 0.0
  %7218 = vmatpush1.msra.mxu0 0.0
  %7219 = vmatprep.subr.mxu0 0.0
  %7220 = vmatpush1.msra.mxu0 0.0
  %7221 = vmatprep.subr.mxu0 0.0
  %7222 = vmatpush1.msra.mxu0 0.0
  %7223 = vmatprep.subr.mxu0 0.0
  %7224 = vmatpush1.msra.mxu0 0.0
  %7225 = vmatprep.subr.mxu0 0.0
  %7226 = vmatpush1.msra.mxu0 0.0
  %7227 = vmatprep.subr.mxu0 0.0
  %7228 = vmatpush1.msra.mxu0 0.0
  %7229 = vmatprep.subr.mxu0 0.0
  %7230 = vmatpush1.msra.mxu0 0.0
  %7231 = vmatprep.subr.mxu0 0.0
  %7232 = vmatpush1.msra.mxu0 0.0
  %7233 = vmatprep.subr.mxu0 0.0
  %7234 = vmatpush1.msra.mxu0 0.0
  %7235 = vmatprep.subr.mxu0 0.0
  %7236 = vmatpush1.msra.mxu0 0.0
  %7237 = vmatprep.subr.mxu0 0.0
  %7238 = vmatpush1.msra.mxu0 0.0
  %7239 = vmatprep.subr.mxu0 0.0
  %7240 = vmatpush1.msra.mxu0 0.0
  %7241 = vmatprep.subr.mxu0 0.0
  %7242 = vmatpush1.msra.mxu0 0.0
  %7243 = vmatprep.subr.mxu0 0.0
  %7244 = vmatpush1.msra.mxu0 0.0
  %7245 = vmatprep.subr.mxu0 0.0
  %7246 = vmatpush1.msra.mxu0 0.0
  %7247 = vmatprep.subr.mxu0 0.0
  %7248 = vmatpush1.msra.mxu0 0.0
  %7249 = vmatprep.subr.mxu0 0.0
  %7250 = vmatpush1.msra.mxu0 0.0
  %7251 = vmatprep.subr.mxu0 0.0
  %7252 = vmatpush1.msra.mxu0 0.0
  %7253 = vmatprep.subr.mxu0 0.0
  %7254 = vmatpush1.msra.mxu0 0.0
  %7255 = vmatprep.mubr.f32.mxu0 0.0
  %7256 = vmatmul.mubr.f32.gmra.mrb[0].mxu0 %v6979
  %v7257 = vpop.f32.mrb[0].mxu0
  %v7258 = vadd.f32 %v7188, %v7257
  %v7259 = vpop.f32.mrb[0].mxu0
  %7260 = vdwg.mxu0
  %v7261 = vmul.f32 %v7258, 0.005
  %v7262 = vadd.f32 %v7261, 1e-05
  %v7263 = vrsqrt.pop %v7262
  %v7264 = vmul.f32 %v7263, %v6266
  %v7266 = vsel %vm819, %v7264, 0
  %7268 = vmatprep.subr.mxu0 %v6260
  %7269 = vmatpush1.msra.mxu0 %v6259
  %7270 = vmatprep.subr.mxu0 0.0
  %7271 = vmatpush1.msra.mxu0 0.0
  %7272 = vmatprep.subr.mxu0 0.0
  %7273 = vmatpush1.msra.mxu0 0.0
  %7274 = vmatprep.subr.mxu0 0.0
  %7275 = vmatpush1.msra.mxu0 0.0
  %7276 = vmatprep.subr.mxu0 0.0
  %7277 = vmatpush1.msra.mxu0 0.0
  %7278 = vmatprep.subr.mxu0 0.0
  %7279 = vmatpush1.msra.mxu0 0.0
  %7280 = vmatprep.subr.mxu0 0.0
  %7281 = vmatpush1.msra.mxu0 0.0
  %7282 = vmatprep.subr.mxu0 0.0
  %7283 = vmatpush1.msra.mxu0 0.0
  %7284 = vmatprep.subr.mxu0 0.0
  %7285 = vmatpush1.msra.mxu0 0.0
  %7286 = vmatprep.subr.mxu0 0.0
  %7287 = vmatpush1.msra.mxu0 0.0
  %7288 = vmatprep.subr.mxu0 0.0
  %7289 = vmatpush1.msra.mxu0 0.0
  %7290 = vmatprep.subr.mxu0 0.0
  %7291 = vmatpush1.msra.mxu0 0.0
  %7292 = vmatprep.subr.mxu0 0.0
  %7293 = vmatpush1.msra.mxu0 0.0
  %7294 = vmatprep.subr.mxu0 0.0
  %7295 = vmatpush1.msra.mxu0 0.0
  %7296 = vmatprep.subr.mxu0 0.0
  %7297 = vmatpush1.msra.mxu0 0.0
  %7298 = vmatprep.subr.mxu0 0.0
  %7299 = vmatpush1.msra.mxu0 0.0
  %7300 = vmatprep.subr.mxu0 0.0
  %7301 = vmatpush1.msra.mxu0 0.0
  %7302 = vmatprep.subr.mxu0 0.0
  %7303 = vmatpush1.msra.mxu0 0.0
  %7304 = vmatprep.subr.mxu0 0.0
  %7305 = vmatpush1.msra.mxu0 0.0
  %7306 = vmatprep.subr.mxu0 0.0
  %7307 = vmatpush1.msra.mxu0 0.0
  %7308 = vmatprep.subr.mxu0 0.0
  %7309 = vmatpush1.msra.mxu0 0.0
  %7310 = vmatprep.subr.mxu0 0.0
  %7311 = vmatpush1.msra.mxu0 0.0
  %7312 = vmatprep.subr.mxu0 0.0
  %7313 = vmatpush1.msra.mxu0 0.0
  %7314 = vmatprep.subr.mxu0 0.0
  %7315 = vmatpush1.msra.mxu0 0.0
  %7316 = vmatprep.subr.mxu0 0.0
  %7317 = vmatpush1.msra.mxu0 0.0
  %7318 = vmatprep.subr.mxu0 0.0
  %7319 = vmatpush1.msra.mxu0 0.0
  %7320 = vmatprep.subr.mxu0 0.0
  %7321 = vmatpush1.msra.mxu0 0.0
  %7322 = vmatprep.subr.mxu0 0.0
  %7323 = vmatpush1.msra.mxu0 0.0
  %7324 = vmatprep.subr.mxu0 0.0
  %7325 = vmatpush1.msra.mxu0 0.0
  %7326 = vmatprep.subr.mxu0 0.0
  %7327 = vmatpush1.msra.mxu0 0.0
  %7328 = vmatprep.subr.mxu0 0.0
  %7329 = vmatpush1.msra.mxu0 0.0
  %7330 = vmatprep.subr.mxu0 0.0
  %7331 = vmatpush1.msra.mxu0 0.0
  %7332 = vmatprep.mubr.f32.mxu0 0.0
  %7333 = vmatmul.mubr.f32.gmra.mrb[0].mxu0 %v7266
  %v7334 = vpop.f32.mrb[0].mxu0
  %v7335 = vadd.f32 0.0, %v7334
  %v7336 = vpop.f32.mrb[0].mxu0
  %v7337 = vadd.f32 0.0, %v7336
  %7338 = vdwg.mxu0
  %7339 = vmatprep.subr.mxu0 %v6262
  %7340 = vmatpush1.msra.mxu0 %v6261
  %7341 = vmatprep.subr.mxu0 0.0
  %7342 = vmatpush1.msra.mxu0 0.0
  %7343 = vmatprep.subr.mxu0 0.0
  %7344 = vmatpush1.msra.mxu0 0.0
  %7345 = vmatprep.subr.mxu0 0.0
  %7346 = vmatpush1.msra.mxu0 0.0
  %7347 = vmatprep.subr.mxu0 0.0
  %7348 = vmatpush1.msra.mxu0 0.0
  %7349 = vmatprep.subr.mxu0 0.0
  %7350 = vmatpush1.msra.mxu0 0.0
  %7351 = vmatprep.subr.mxu0 0.0
  %7352 = vmatpush1.msra.mxu0 0.0
  %7353 = vmatprep.subr.mxu0 0.0
  %7354 = vmatpush1.msra.mxu0 0.0
  %7355 = vmatprep.subr.mxu0 0.0
  %7356 = vmatpush1.msra.mxu0 0.0
  %7357 = vmatprep.subr.mxu0 0.0
  %7358 = vmatpush1.msra.mxu0 0.0
  %7359 = vmatprep.subr.mxu0 0.0
  %7360 = vmatpush1.msra.mxu0 0.0
  %7361 = vmatprep.subr.mxu0 0.0
  %7362 = vmatpush1.msra.mxu0 0.0
  %7363 = vmatprep.subr.mxu0 0.0
  %7364 = vmatpush1.msra.mxu0 0.0
  %7365 = vmatprep.subr.mxu0 0.0
  %7366 = vmatpush1.msra.mxu0 0.0
  %7367 = vmatprep.subr.mxu0 0.0
  %7368 = vmatpush1.msra.mxu0 0.0
  %7369 = vmatprep.subr.mxu0 0.0
  %7370 = vmatpush1.msra.mxu0 0.0
  %7371 = vmatprep.subr.mxu0 0.0
  %7372 = vmatpush1.msra.mxu0 0.0
  %7373 = vmatprep.subr.mxu0 0.0
  %7374 = vmatpush1.msra.mxu0 0.0
  %7375 = vmatprep.subr.mxu0 0.0
  %7376 = vmatpush1.msra.mxu0 0.0
  %7377 = vmatprep.subr.mxu0 0.0
  %7378 = vmatpush1.msra.mxu0 0.0
  %7379 = vmatprep.subr.mxu0 0.0
  %7380 = vmatpush1.msra.mxu0 0.0
  %7381 = vmatprep.subr.mxu0 0.0
  %7382 = vmatpush1.msra.mxu0 0.0
  %7383 = vmatprep.subr.mxu0 0.0
  %7384 = vmatpush1.msra.mxu0 0.0
  %7385 = vmatprep.subr.mxu0 0.0
  %7386 = vmatpush1.msra.mxu0 0.0
  %7387 = vmatprep.subr.mxu0 0.0
  %7388 = vmatpush1.msra.mxu0 0.0
  %7389 = vmatprep.subr.mxu0 0.0
  %7390 = vmatpush1.msra.mxu0 0.0
  %7391 = vmatprep.subr.mxu0 0.0
  %7392 = vmatpush1.msra.mxu0 0.0
  %7393 = vmatprep.subr.mxu0 0.0
  %7394 = vmatpush1.msra.mxu0 0.0
  %7395 = vmatprep.subr.mxu0 0.0
  %7396 = vmatpush1.msra.mxu0 0.0
  %7397 = vmatprep.subr.mxu0 0.0
  %7398 = vmatpush1.msra.mxu0 0.0
  %7399 = vmatprep.subr.mxu0 0.0
  %7400 = vmatpush1.msra.mxu0 0.0
  %7401 = vmatprep.subr.mxu0 0.0
  %7402 = vmatpush1.msra.mxu0 0.0
  %7403 = vmatprep.mubr.f32.mxu0 0.0
  %7404 = vmatmul.mubr.f32.gmra.mrb[0].mxu0 %v7266
  %v7405 = vpop.f32.mrb[0].mxu0
  %v7406 = vadd.f32 0.0, %v7405
  %v7407 = vpop.f32.mrb[0].mxu0
  %v7408 = vadd.f32 0.0, %v7407
  %7409 = vdwg.mxu0
  %7410 = vmatprep.subr.mxu0 %v6264
  %7411 = vmatpush1.msra.mxu0 %v6263
  %7412 = vmatprep.subr.mxu0 0.0
  %7413 = vmatpush1.msra.mxu0 0.0
  %7414 = vmatprep.subr.mxu0 0.0
  %7415 = vmatpush1.msra.mxu0 0.0
  %7416 = vmatprep.subr.mxu0 0.0
  %7417 = vmatpush1.msra.mxu0 0.0
  %7418 = vmatprep.subr.mxu0 0.0
  %7419 = vmatpush1.msra.mxu0 0.0
  %7420 = vmatprep.subr.mxu0 0.0
  %7421 = vmatpush1.msra.mxu0 0.0
  %7422 = vmatprep.subr.mxu0 0.0
  %7423 = vmatpush1.msra.mxu0 0.0
  %7424 = vmatprep.subr.mxu0 0.0
  %7425 = vmatpush1.msra.mxu0 0.0
  %7426 = vmatprep.subr.mxu0 0.0
  %7427 = vmatpush1.msra.mxu0 0.0
  %7428 = vmatprep.subr.mxu0 0.0
  %7429 = vmatpush1.msra.mxu0 0.0
  %7430 = vmatprep.subr.mxu0 0.0
  %7431 = vmatpush1.msra.mxu0 0.0
  %7432 = vmatprep.subr.mxu0 0.0
  %7433 = vmatpush1.msra.mxu0 0.0
  %7434 = vmatprep.subr.mxu0 0.0
  %7435 = vmatpush1.msra.mxu0 0.0
  %7436 = vmatprep.subr.mxu0 0.0
  %7437 = vmatpush1.msra.mxu0 0.0
  %7438 = vmatprep.subr.mxu0 0.0
  %7439 = vmatpush1.msra.mxu0 0.0
  %7440 = vmatprep.subr.mxu0 0.0
  %7441 = vmatpush1.msra.mxu0 0.0
  %7442 = vmatprep.subr.mxu0 0.0
  %7443 = vmatpush1.msra.mxu0 0.0
  %7444 = vmatprep.subr.mxu0 0.0
  %7445 = vmatpush1.msra.mxu0 0.0
  %7446 = vmatprep.subr.mxu0 0.0
  %7447 = vmatpush1.msra.mxu0 0.0
  %7448 = vmatprep.subr.mxu0 0.0
  %7449 = vmatpush1.msra.mxu0 0.0
  %7450 = vmatprep.subr.mxu0 0.0
  %7451 = vmatpush1.msra.mxu0 0.0
  %7452 = vmatprep.subr.mxu0 0.0
  %7453 = vmatpush1.msra.mxu0 0.0
  %7454 = vmatprep.subr.mxu0 0.0
  %7455 = vmatpush1.msra.mxu0 0.0
  %7456 = vmatprep.subr.mxu0 0.0
  %7457 = vmatpush1.msra.mxu0 0.0
  %7458 = vmatprep.subr.mxu0 0.0
  %7459 = vmatpush1.msra.mxu0 0.0
  %7460 = vmatprep.subr.mxu0 0.0
  %7461 = vmatpush1.msra.mxu0 0.0
  %7462 = vmatprep.subr.mxu0 0.0
  %7463 = vmatpush1.msra.mxu0 0.0
  %7464 = vmatprep.subr.mxu0 0.0
  %7465 = vmatpush1.msra.mxu0 0.0
  %7466 = vmatprep.subr.mxu0 0.0
  %7467 = vmatpush1.msra.mxu0 0.0
  %7468 = vmatprep.subr.mxu0 0.0
  %7469 = vmatpush1.msra.mxu0 0.0
  %7470 = vmatprep.subr.mxu0 0.0
  %7471 = vmatpush1.msra.mxu0 0.0
  %7472 = vmatprep.subr.mxu0 0.0
  %7473 = vmatpush1.msra.mxu0 0.0
  %7474 = vmatprep.mubr.f32.mxu0 0.0
  %7475 = vmatmul.mubr.f32.gmra.mrb[0].mxu0 %v7266
  %v7476 = vpop.f32.mrb[0].mxu0
  %v7477 = vadd.f32 0.0, %v7476
  %v7478 = vpop.f32.mrb[0].mxu0
  %v7479 = vadd.f32 0.0, %v7478
  %7480 = vdwg.mxu0
  %7481 = vmatprep.subr.mxu0 0.0
  %7482 = vmatpush1.msra.mxu0 %v6265
  %7483 = vmatprep.subr.mxu0 0.0
  %7484 = vmatpush1.msra.mxu0 0.0
  %7485 = vmatprep.subr.mxu0 0.0
  %7486 = vmatpush1.msra.mxu0 0.0
  %7487 = vmatprep.subr.mxu0 0.0
  %7488 = vmatpush1.msra.mxu0 0.0
  %7489 = vmatprep.subr.mxu0 0.0
  %7490 = vmatpush1.msra.mxu0 0.0
  %7491 = vmatprep.subr.mxu0 0.0
  %7492 = vmatpush1.msra.mxu0 0.0
  %7493 = vmatprep.subr.mxu0 0.0
  %7494 = vmatpush1.msra.mxu0 0.0
  %7495 = vmatprep.subr.mxu0 0.0
  %7496 = vmatpush1.msra.mxu0 0.0
  %7497 = vmatprep.subr.mxu0 0.0
  %7498 = vmatpush1.msra.mxu0 0.0
  %7499 = vmatprep.subr.mxu0 0.0
  %7500 = vmatpush1.msra.mxu0 0.0
  %7501 = vmatprep.subr.mxu0 0.0
  %7502 = vmatpush1.msra.mxu0 0.0
  %7503 = vmatprep.subr.mxu0 0.0
  %7504 = vmatpush1.msra.mxu0 0.0
  %7505 = vmatprep.subr.mxu0 0.0
  %7506 = vmatpush1.msra.mxu0 0.0
  %7507 = vmatprep.subr.mxu0 0.0
  %7508 = vmatpush1.msra.mxu0 0.0
  %7509 = vmatprep.subr.mxu0 0.0
  %7510 = vmatpush1.msra.mxu0 0.0
  %7511 = vmatprep.subr.mxu0 0.0
  %7512 = vmatpush1.msra.mxu0 0.0
  %7513 = vmatprep.subr.mxu0 0.0
  %7514 = vmatpush1.msra.mxu0 0.0
  %7515 = vmatprep.subr.mxu0 0.0
  %7516 = vmatpush1.msra.mxu0 0.0
  %7517 = vmatprep.subr.mxu0 0.0
  %7518 = vmatpush1.msra.mxu0 0.0
  %7519 = vmatprep.subr.mxu0 0.0
  %7520 = vmatpush1.msra.mxu0 0.0
  %7521 = vmatprep.subr.mxu0 0.0
  %7522 = vmatpush1.msra.mxu0 0.0
  %7523 = vmatprep.subr.mxu0 0.0
  %7524 = vmatpush1.msra.mxu0 0.0
  %7525 = vmatprep.subr.mxu0 0.0
  %7526 = vmatpush1.msra.mxu0 0.0
  %7527 = vmatprep.subr.mxu0 0.0
  %7528 = vmatpush1.msra.mxu0 0.0
  %7529 = vmatprep.subr.mxu0 0.0
  %7530 = vmatpush1.msra.mxu0 0.0
  %7531 = vmatprep.subr.mxu0 0.0
  %7532 = vmatpush1.msra.mxu0 0.0
  %7533 = vmatprep.subr.mxu0 0.0
  %7534 = vmatpush1.msra.mxu0 0.0
  %7535 = vmatprep.subr.mxu0 0.0
  %7536 = vmatpush1.msra.mxu0 0.0
  %7537 = vmatprep.subr.mxu0 0.0
  %7538 = vmatpush1.msra.mxu0 0.0
  %7539 = vmatprep.subr.mxu0 0.0
  %7540 = vmatpush1.msra.mxu0 0.0
  %7541 = vmatprep.subr.mxu0 0.0
  %7542 = vmatpush1.msra.mxu0 0.0
  %7543 = vmatprep.subr.mxu0 0.0
  %7544 = vmatpush1.msra.mxu0 0.0
  %7545 = vmatprep.mubr.f32.mxu0 0.0
  %7546 = vmatmul.mubr.f32.gmra.mrb[0].mxu0 %v7266
  %v7547 = vpop.f32.mrb[0].mxu0
  %v7548 = vadd.f32 0.0, %v7547
  %v7549 = vpop.f32.mrb[0].mxu0
  %7550 = vdwg.mxu0
  %v7551 = vlaneseq
  %v7552 = vshrl.u32 %v7551, 7
  %v7553 = vsub.s32 0, %v7552
  %v7554 = vrot.slane %v7335, %v7553
  %v7555 = vlaneseq
  %v7556 = vshrl.u32 %v7555, 7
  %v7557 = vsub.s32 0, %v7556
  %v7558 = vrot.slane %v7337, %v7557
  %v7559 = vlaneseq
  %v7560 = vshrl.u32 %v7559, 7
  %v7561 = vsub.s32 0, %v7560
  %v7562 = vrot.slane %v7406, %v7561
  %v7563 = vlaneseq
  %v7564 = vshrl.u32 %v7563, 7
  %v7565 = vsub.s32 0, %v7564
  %v7566 = vrot.slane %v7408, %v7565
  %v7567 = vlaneseq
  %v7568 = vshrl.u32 %v7567, 7
  %v7569 = vsub.s32 0, %v7568
  %v7570 = vrot.slane %v7477, %v7569
  %v7571 = vlaneseq
  %v7572 = vshrl.u32 %v7571, 7
  %v7573 = vsub.s32 0, %v7572
  %v7574 = vrot.slane %v7479, %v7573
  %v7575 = vlaneseq
  %v7576 = vshrl.u32 %v7575, 7
  %v7577 = vsub.s32 0, %v7576
  %v7578 = vrot.slane %v7548, %v7577
  %v7579 = vmul.f32 %v6915, %v7554
  %v7580 = vmul.f32 %v6916, %v7558
  %v7581 = vmul.f32 %v6917, %v7562
  %v7582 = vmul.f32 %v6918, %v7566
  %v7583 = vmul.f32 %v6919, %v7570
  %v7584 = vmul.f32 %v6920, %v7574
  %v7585 = vmul.f32 %v6921, %v7578
  %v7587 = vlaneseq
  %v7588 = vshrl.u32 %v7587, 7
  %v7589 = vsub.s32 0, %v7588
  %v7590 = vrot.slane %v6267, %v7589
  %v7591 = vlaneseq
  %v7592 = vshrl.u32 %v7591, 7
  %v7593 = vsub.s32 1, %v7592
  %v7594 = vrot.slane %v6267, %v7593
  %v7595 = vlaneseq
  %v7596 = vshrl.u32 %v7595, 7
  %v7597 = vsub.s32 2, %v7596
  %v7598 = vrot.slane %v6267, %v7597
  %v7599 = vlaneseq
  %v7600 = vshrl.u32 %v7599, 7
  %v7601 = vsub.s32 3, %v7600
  %v7602 = vrot.slane %v6267, %v7601
  %v7603 = vlaneseq
  %v7604 = vshrl.u32 %v7603, 7
  %v7605 = vsub.s32 4, %v7604
  %v7606 = vrot.slane %v6267, %v7605
  %v7607 = vlaneseq
  %v7608 = vshrl.u32 %v7607, 7
  %v7609 = vsub.s32 5, %v7608
  %v7610 = vrot.slane %v6267, %v7609
  %v7611 = vlaneseq
  %v7612 = vshrl.u32 %v7611, 7
  %v7613 = vsub.s32 6, %v7612
  %v7614 = vrot.slane %v6267, %v7613
  %v7622 = vadd.f32 %v7579, %v7590
  %v7623 = vadd.f32 %v7580, %v7594
  %v7624 = vadd.f32 %v7581, %v7598
  %v7625 = vadd.f32 %v7582, %v7602
  %v7626 = vadd.f32 %v7583, %v7606
  %v7627 = vadd.f32 %v7584, %v7610
  %v7628 = vadd.f32 %v7585, %v7614
  %v7629 = vmax.f32 %v7622, 0.0
  %v7630 = vmax.f32 %v7623, 0.0
  %v7631 = vmax.f32 %v7624, 0.0
  %v7632 = vmax.f32 %v7625, 0.0
  %v7633 = vmax.f32 %v7626, 0.0
  %v7634 = vmax.f32 %v7627, 0.0
  %v7635 = vmax.f32 %v7628, 0.0
  %v7636 = vpack.c.bf16 %v7629, %v7629
  %v7637 = vpack.c.bf16 %v7630, %v7630
  %v7638 = vpack.c.bf16 %v7631, %v7631
  %v7639 = vpack.c.bf16 %v7632, %v7632
  %v7640 = vpack.c.bf16 %v7633, %v7633
  %v7641 = vpack.c.bf16 %v7634, %v7634
  %v7642 = vpack.c.bf16 %v7635, %v7635
  %v7643 = vld [vmem:[%s26] sm:$0xff]
  %v7644 = vld [vmem:[%s26 + $0x8] sm:$0xff]
  %v7645 = vld [vmem:[%s26 + $0x10] sm:$0xff]
  %v7646 = vld [vmem:[%s26 + $0x18] sm:$0xff]
  %v7647 = vld [vmem:[%s26 + $0x20] sm:$0xff]
  %v7648 = vld [vmem:[%s26 + $0x28] sm:$0xff]
  %v7649 = vld [vmem:[%s26 + $0x30] sm:$0xff]
  %v7650 = vld [vmem:[%s26 + $0x38] sm:$0xff]
  %v7651 = vld [vmem:[%s26 + $0x40] sm:$0xff]
  %v7652 = vld [vmem:[%s26 + $0x48] sm:$0xff]
  %v7653 = vld [vmem:[%s26 + $0x50] sm:$0xff]
  %v7654 = vld [vmem:[%s26 + $0x58] sm:$0xff]
  %v7655 = vld [vmem:[%s26 + $0x60] sm:$0xff]
  %v7656 = vld [vmem:[%s26 + $0x68] sm:$0xff]
  %v7657 = vld [vmem:[%s26 + $0x70] sm:$0xff]
  %v7658 = vld [vmem:[%s26 + $0x78] sm:$0xff]
  %v7659 = vld [vmem:[%s26 + $0x80] sm:$0xff]
  %v7660 = vld [vmem:[%s26 + $0x88] sm:$0xff]
  %v7661 = vld [vmem:[%s26 + $0x90] sm:$0xff]
  %v7662 = vld [vmem:[%s26 + $0x98] sm:$0xff]
  %v7663 = vld [vmem:[%s26 + $0xa0] sm:$0xff]
  %v7664 = vld [vmem:[%s26 + $0xa8] sm:$0xff]
  %v7665 = vld [vmem:[%s26 + $0xb0] sm:$0xff]
  %v7666 = vld [vmem:[%s26 + $0xb8] sm:$0xff]
  %v7667 = vld [vmem:[%s26 + $0xc0] sm:$0xff]
  %v7668 = vld [vmem:[%s26 + $0xc8] sm:$0xff]
  %v7669 = vld [vmem:[%s26 + $0xd0] sm:$0xff]
  %v7670 = vld [vmem:[%s26 + $0xd8] sm:$0xff]
  %v7671 = vld [vmem:[%s26 + $0xe0] sm:$0xff]
  %v7672 = vld [vmem:[%s26 + $0xe8] sm:$0xff]
  %v7673 = vld [vmem:[%s26 + $0xf0] sm:$0xff]
  %v7674 = vld [vmem:[%s26 + $0xf8] sm:$0xff]
  %v7675 = vld [vmem:[%s26 + $0x100] sm:$0xff]
  %v7676 = vld [vmem:[%s26 + $0x108] sm:$0xff]
  %v7677 = vld [vmem:[%s26 + $0x110] sm:$0xff]
  %v7678 = vld [vmem:[%s26 + $0x118] sm:$0xff]
  %v7679 = vld [vmem:[%s26 + $0x120] sm:$0xff]
  %v7680 = vld [vmem:[%s26 + $0x128] sm:$0xff]
  %v7681 = vld [vmem:[%s26 + $0x130] sm:$0xff]
  %v7682 = vld [vmem:[%s26 + $0x138] sm:$0xff]
  %v7683 = vld [vmem:[%s26 + $0x140] sm:$0xff]
  %v7684 = vld [vmem:[%s26 + $0x148] sm:$0xff]
  %v7685 = vld [vmem:[%s26 + $0x150] sm:$0xff]
  %v7686 = vld [vmem:[%s26 + $0x158] sm:$0xff]
  %v7687 = vld [vmem:[%s26 + $0x160] sm:$0xff]
  %v7688 = vld [vmem:[%s26 + $0x168] sm:$0xff]
  %v7689 = vld [vmem:[%s26 + $0x170] sm:$0xff]
  %v7690 = vld [vmem:[%s26 + $0x178] sm:$0xff]
  %v7691 = vld [vmem:[%s26 + $0x180] sm:$0xff]
  %v7692 = vld [vmem:[%s26 + $0x188] sm:$0xff]
  %v7693 = vld [vmem:[%s26 + $0x190] sm:$0xff]
  %v7694 = vld [vmem:[%s26 + $0x198] sm:$0xff]
  %v7695 = vld [vmem:[%s26 + $0x1a0] sm:$0xff]
  %v7696 = vld [vmem:[%s26 + $0x1a8] sm:$0xff]
  %v7697 = vld [vmem:[%s26 + $0x1b0] sm:$0xff]
  %v7698 = vld [vmem:[%s26 + $0x1b8] sm:$0xff]
  %v7699 = vld [vmem:[%s26 + $0x1c0] sm:$0xff]
  %v7700 = vld [vmem:[%s26 + $0x1c8] sm:$0xff]
  %v7701 = vld [vmem:[%s26 + $0x1d0] sm:$0xff]
  %v7702 = vld [vmem:[%s26 + $0x1d8] sm:$0xff]
  %v7703 = vld [vmem:[%s26 + $0x1e0] sm:$0xff]
  %v7704 = vld [vmem:[%s26 + $0x1e8] sm:$0xff]
  %v7705 = vld [vmem:[%s26 + $0x1f0] sm:$0xff]
  %v7706 = vld [vmem:[%s26 + $0x1f8] sm:$0xff]
  %v7707 = vld [vmem:[%s26 + $0x200] sm:$0xff]
  %v7708 = vld [vmem:[%s26 + $0x208] sm:$0xff]
  %v7709 = vld [vmem:[%s26 + $0x210] sm:$0xff]
  %v7710 = vld [vmem:[%s26 + $0x218] sm:$0xff]
  %v7711 = vld [vmem:[%s26 + $0x220] sm:$0xff]
  %v7712 = vld [vmem:[%s26 + $0x228] sm:$0xff]
  %v7713 = vld [vmem:[%s26 + $0x230] sm:$0xff]
  %v7714 = vld [vmem:[%s26 + $0x238] sm:$0xff]
  %v7715 = vld [vmem:[%s26 + $0x240] sm:$0xff]
  %v7716 = vld [vmem:[%s26 + $0x248] sm:$0xff]
  %v7717 = vld [vmem:[%s26 + $0x250] sm:$0xff]
  %v7718 = vld [vmem:[%s26 + $0x258] sm:$0xff]
  %v7719 = vld [vmem:[%s26 + $0x260] sm:$0xff]
  %v7720 = vld [vmem:[%s26 + $0x268] sm:$0xff]
  %v7721 = vld [vmem:[%s26 + $0x270] sm:$0xff]
  %v7722 = vld [vmem:[%s26 + $0x278] sm:$0xff]
  %v7723 = vld [vmem:[%s26 + $0x280] sm:$0xff]
  %v7724 = vld [vmem:[%s26 + $0x288] sm:$0xff]
  %v7725 = vld [vmem:[%s26 + $0x290] sm:$0xff]
  %v7726 = vld [vmem:[%s26 + $0x298] sm:$0xff]
  %v7727 = vld [vmem:[%s26 + $0x2a0] sm:$0xff]
  %v7728 = vld [vmem:[%s26 + $0x2a8] sm:$0xff]
  %v7729 = vld [vmem:[%s26 + $0x2b0] sm:$0xff]
  %v7730 = vld [vmem:[%s26 + $0x2b8] sm:$0xff]
  %v7731 = vld [vmem:[%s26 + $0x2c0] sm:$0xff]
  %v7732 = vld [vmem:[%s26 + $0x2c8] sm:$0xff]
  %v7733 = vld [vmem:[%s26 + $0x2d0] sm:$0xff]
  %v7734 = vld [vmem:[%s26 + $0x2d8] sm:$0xff]
  %v7735 = vld [vmem:[%s26 + $0x2e0] sm:$0xff]
  %v7736 = vld [vmem:[%s26 + $0x2e8] sm:$0xff]
  %v7737 = vld [vmem:[%s26 + $0x2f0] sm:$0xff]
  %v7738 = vld [vmem:[%s26 + $0x2f8] sm:$0xff]
  %v7739 = vld [vmem:[%s26 + $0x300] sm:$0xff]
  %v7740 = vld [vmem:[%s26 + $0x308] sm:$0xff]
  %v7741 = vld [vmem:[%s26 + $0x310] sm:$0xff]
  %v7742 = vld [vmem:[%s26 + $0x318] sm:$0xff]
  %v7743 = vld [vmem:[%s26 + $0x320] sm:$0xff]
  %v7744 = vld [vmem:[%s26 + $0x328] sm:$0xff]
  %v7745 = vld [vmem:[%s26 + $0x330] sm:$0xff]
  %v7746 = vld [vmem:[%s26 + $0x338] sm:$0xff]
  %v7747 = vld [vmem:[%s26 + $0x340] sm:$0xff]
  %v7748 = vld [vmem:[%s26 + $0x348] sm:$0xff]
  %v7749 = vld [vmem:[%s26 + $0x350] sm:$0xff]
  %v7750 = vld [vmem:[%s26 + $0x358] sm:$0xff]
  %v7751 = vld [vmem:[%s26 + $0x360] sm:$0xff]
  %v7752 = vld [vmem:[%s26 + $0x368] sm:$0xff]
  %v7753 = vld [vmem:[%s26 + $0x370] sm:$0xff]
  %v7754 = vld [vmem:[%s26 + $0x378] sm:$0xff]
  %v7755 = vld [vmem:[%s26 + $0x380] sm:$0xff]
  %v7756 = vld [vmem:[%s26 + $0x388] sm:$0xff]
  %v7757 = vld [vmem:[%s26 + $0x390] sm:$0xff]
  %v7758 = vld [vmem:[%s26 + $0x398] sm:$0xff]
  %v7759 = vld [vmem:[%s26 + $0x3a0] sm:$0xff]
  %v7760 = vld [vmem:[%s26 + $0x3a8] sm:$0xff]
  %v7761 = vld [vmem:[%s26 + $0x3b0] sm:$0xff]
  %v7762 = vld [vmem:[%s26 + $0x3b8] sm:$0xff]
  %v7763 = vld [vmem:[%s26 + $0x3c0] sm:$0xff]
  %v7764 = vld [vmem:[%s26 + $0x3c8] sm:$0xff]
  %v7765 = vld [vmem:[%s26 + $0x3d0] sm:$0xff]
  %v7766 = vld [vmem:[%s26 + $0x3d8] sm:$0xff]
  %v7767 = vld [vmem:[%s26 + $0x3e0] sm:$0xff]
  %v7768 = vld [vmem:[%s26 + $0x3e8] sm:$0xff]
  %v7769 = vld [vmem:[%s26 + $0x3f0] sm:$0xff]
  %v7770 = vld [vmem:[%s26 + $0x3f8] sm:$0xff]
  %v7771 = vld [vmem:[%s26 + $0x400] sm:$0xff]
  %v7772 = vld [vmem:[%s26 + $0x408] sm:$0xff]
  %v7773 = vld [vmem:[%s26 + $0x410] sm:$0xff]
  %v7774 = vld [vmem:[%s26 + $0x418] sm:$0xff]
  %v7775 = vld [vmem:[%s26 + $0x420] sm:$0xff]
  %v7776 = vld [vmem:[%s26 + $0x428] sm:$0xff]
  %v7777 = vld [vmem:[%s26 + $0x430] sm:$0xff]
  %v7778 = vld [vmem:[%s26 + $0x438] sm:$0xff]
  %v7779 = vld [vmem:[%s26 + $0x440] sm:$0xff]
  %v7780 = vld [vmem:[%s26 + $0x448] sm:$0xff]
  %v7781 = vld [vmem:[%s26 + $0x450] sm:$0xff]
  %v7782 = vld [vmem:[%s26 + $0x458] sm:$0xff]
  %v7783 = vld [vmem:[%s26 + $0x460] sm:$0xff]
  %v7784 = vld [vmem:[%s26 + $0x468] sm:$0xff]
  %v7785 = vld [vmem:[%s26 + $0x470] sm:$0xff]
  %v7786 = vld [vmem:[%s26 + $0x478] sm:$0xff]
  %v7787 = vld [vmem:[%s26 + $0x480] sm:$0xff]
  %v7788 = vld [vmem:[%s26 + $0x488] sm:$0xff]
  %v7789 = vld [vmem:[%s26 + $0x490] sm:$0xff]
  %v7790 = vld [vmem:[%s26 + $0x498] sm:$0xff]
  %v7791 = vld [vmem:[%s26 + $0x4a0] sm:$0xff]
  %v7792 = vld [vmem:[%s26 + $0x4a8] sm:$0xff]
  %v7793 = vld [vmem:[%s26 + $0x4b0] sm:$0xff]
  %v7794 = vld [vmem:[%s26 + $0x4b8] sm:$0xff]
  %v7795 = vld [vmem:[%s26 + $0x4c0] sm:$0xff]
  %v7796 = vld [vmem:[%s26 + $0x4c8] sm:$0xff]
  %v7797 = vld [vmem:[%s26 + $0x4d0] sm:$0xff]
  %v7798 = vld [vmem:[%s26 + $0x4d8] sm:$0xff]
  %v7799 = vld [vmem:[%s26 + $0x4e0] sm:$0xff]
  %v7800 = vld [vmem:[%s26 + $0x4e8] sm:$0xff]
  %v7801 = vld [vmem:[%s26 + $0x4f0] sm:$0xff]
  %v7802 = vld [vmem:[%s26 + $0x4f8] sm:$0xff]
  %v7803 = vld [vmem:[%s26 + $0x500] sm:$0xff]
  %v7804 = vld [vmem:[%s26 + $0x508] sm:$0xff]
  %v7805 = vld [vmem:[%s26 + $0x510] sm:$0xff]
  %v7806 = vld [vmem:[%s26 + $0x518] sm:$0xff]
  %v7807 = vld [vmem:[%s26 + $0x520] sm:$0xff]
  %v7808 = vld [vmem:[%s26 + $0x528] sm:$0xff]
  %v7809 = vld [vmem:[%s26 + $0x530] sm:$0xff]
  %v7810 = vld [vmem:[%s26 + $0x538] sm:$0xff]
  %v7811 = vld [vmem:[%s26 + $0x540] sm:$0xff]
  %v7812 = vld [vmem:[%s26 + $0x548] sm:$0xff]
  %v7813 = vld [vmem:[%s26 + $0x550] sm:$0xff]
  %v7814 = vld [vmem:[%s26 + $0x558] sm:$0xff]
  %v7815 = vld [vmem:[%s26 + $0x560] sm:$0xff]
  %v7816 = vld [vmem:[%s26 + $0x568] sm:$0xff]
  %v7817 = vld [vmem:[%s26 + $0x570] sm:$0xff]
  %v7818 = vld [vmem:[%s26 + $0x578] sm:$0xff]
  %v7819 = vld [vmem:[%s26 + $0x580] sm:$0xff]
  %v7820 = vld [vmem:[%s26 + $0x588] sm:$0xff]
  %v7821 = vld [vmem:[%s26 + $0x590] sm:$0xff]
  %v7822 = vld [vmem:[%s26 + $0x598] sm:$0xff]
  %v7823 = vld [vmem:[%s26 + $0x5a0] sm:$0xff]
  %v7824 = vld [vmem:[%s26 + $0x5a8] sm:$0xff]
  %v7825 = vld [vmem:[%s26 + $0x5b0] sm:$0xff]
  %v7826 = vld [vmem:[%s26 + $0x5b8] sm:$0xff]
  %v7827 = vld [vmem:[%s26 + $0x5c0] sm:$0xff]
  %v7828 = vld [vmem:[%s26 + $0x5c8] sm:$0xff]
  %v7829 = vld [vmem:[%s26 + $0x5d0] sm:$0xff]
  %v7830 = vld [vmem:[%s26 + $0x5d8] sm:$0xff]
  %v7831 = vld [vmem:[%s26 + $0x5e0] sm:$0xff]
  %v7832 = vld [vmem:[%s26 + $0x5e8] sm:$0xff]
  %v7833 = vld [vmem:[%s26 + $0x5f0] sm:$0xff]
  %v7834 = vld [vmem:[%s26 + $0x5f8] sm:$0xff]
  %v7835 = vld [vmem:[%s26 + $0x600] sm:$0xff]
  %v7836 = vld [vmem:[%s26 + $0x608] sm:$0xff]
  %v7837 = vld [vmem:[%s26 + $0x610] sm:$0xff]
  %v7838 = vld [vmem:[%s26 + $0x618] sm:$0xff]
  %v7839 = vld [vmem:[%s26 + $0x620] sm:$0xff]
  %v7840 = vld [vmem:[%s26 + $0x628] sm:$0xff]
  %v7841 = vld [vmem:[%s26 + $0x630] sm:$0xff]
  %v7842 = vld [vmem:[%s26 + $0x638] sm:$0xff]
  %v8043 = vunpack.c.l.b16 %v7643
  %v8044 = vunpack.c.h.b16 %v7643
  %v8045 = vunpack.c.l.b16 %v7644
  %v8046 = vunpack.c.h.b16 %v7644
  %v8047 = vunpack.c.l.b16 %v7645
  %v8048 = vunpack.c.h.b16 %v7645
  %v8049 = vunpack.c.l.b16 %v7646
  %v8050 = vunpack.c.h.b16 %v7646
  %v8051 = vunpack.c.l.b16 %v7647
  %v8052 = vunpack.c.h.b16 %v7647
  %v8053 = vunpack.c.l.b16 %v7648
  %v8054 = vunpack.c.h.b16 %v7648
  %v8055 = vunpack.c.l.b16 %v7649
  %v8056 = vunpack.c.h.b16 %v7649
  %v8057 = vunpack.c.l.b16 %v7650
  %v8058 = vunpack.c.h.b16 %v7650
  %v8059 = vunpack.c.l.b16 %v7651
  %v8060 = vunpack.c.h.b16 %v7651
  %v8061 = vunpack.c.l.b16 %v7652
  %v8062 = vunpack.c.h.b16 %v7652
  %v8063 = vunpack.c.l.b16 %v7653
  %v8064 = vunpack.c.h.b16 %v7653
  %v8065 = vunpack.c.l.b16 %v7654
  %v8066 = vunpack.c.h.b16 %v7654
  %v8067 = vunpack.c.l.b16 %v7655
  %v8068 = vunpack.c.h.b16 %v7655
  %v8069 = vunpack.c.l.b16 %v7656
  %v8070 = vunpack.c.h.b16 %v7656
  %v8071 = vunpack.c.l.b16 %v7657
  %v8072 = vunpack.c.h.b16 %v7657
  %v8073 = vunpack.c.l.b16 %v7658
  %v8074 = vunpack.c.h.b16 %v7658
  %v8075 = vunpack.c.l.b16 %v7659
  %v8076 = vunpack.c.h.b16 %v7659
  %v8077 = vunpack.c.l.b16 %v7660
  %v8078 = vunpack.c.h.b16 %v7660
  %v8079 = vunpack.c.l.b16 %v7661
  %v8080 = vunpack.c.h.b16 %v7661
  %v8081 = vunpack.c.l.b16 %v7662
  %v8082 = vunpack.c.h.b16 %v7662
  %v8083 = vunpack.c.l.b16 %v7663
  %v8084 = vunpack.c.h.b16 %v7663
  %v8085 = vunpack.c.l.b16 %v7664
  %v8086 = vunpack.c.h.b16 %v7664
  %v8087 = vunpack.c.l.b16 %v7665
  %v8088 = vunpack.c.h.b16 %v7665
  %v8089 = vunpack.c.l.b16 %v7666
  %v8090 = vunpack.c.h.b16 %v7666
  %v8091 = vunpack.c.l.b16 %v7667
  %v8092 = vunpack.c.h.b16 %v7667
  %v8093 = vunpack.c.l.b16 %v7668
  %v8094 = vunpack.c.h.b16 %v7668
  %v8095 = vunpack.c.l.b16 %v7669
  %v8096 = vunpack.c.h.b16 %v7669
  %v8097 = vunpack.c.l.b16 %v7670
  %v8098 = vunpack.c.h.b16 %v7670
  %v8099 = vunpack.c.l.b16 %v7671
  %v8100 = vunpack.c.h.b16 %v7671
  %v8101 = vunpack.c.l.b16 %v7672
  %v8102 = vunpack.c.h.b16 %v7672
  %v8103 = vunpack.c.l.b16 %v7673
  %v8104 = vunpack.c.h.b16 %v7673
  %v8105 = vunpack.c.l.b16 %v7674
  %v8106 = vunpack.c.h.b16 %v7674
  %v8107 = vunpack.c.l.b16 %v7675
  %v8108 = vunpack.c.h.b16 %v7675
  %v8109 = vunpack.c.l.b16 %v7676
  %v8110 = vunpack.c.h.b16 %v7676
  %v8111 = vunpack.c.l.b16 %v7677
  %v8112 = vunpack.c.h.b16 %v7677
  %v8113 = vunpack.c.l.b16 %v7678
  %v8114 = vunpack.c.h.b16 %v7678
  %v8115 = vunpack.c.l.b16 %v7679
  %v8116 = vunpack.c.h.b16 %v7679
  %v8117 = vunpack.c.l.b16 %v7680
  %v8118 = vunpack.c.h.b16 %v7680
  %v8119 = vunpack.c.l.b16 %v7681
  %v8120 = vunpack.c.h.b16 %v7681
  %v8121 = vunpack.c.l.b16 %v7682
  %v8122 = vunpack.c.h.b16 %v7682
  %v8123 = vunpack.c.l.b16 %v7683
  %v8124 = vunpack.c.h.b16 %v7683
  %v8125 = vunpack.c.l.b16 %v7684
  %v8126 = vunpack.c.h.b16 %v7684
  %v8127 = vunpack.c.l.b16 %v7685
  %v8128 = vunpack.c.h.b16 %v7685
  %v8129 = vunpack.c.l.b16 %v7686
  %v8130 = vunpack.c.h.b16 %v7686
  %v8131 = vunpack.c.l.b16 %v7687
  %v8132 = vunpack.c.h.b16 %v7687
  %v8133 = vunpack.c.l.b16 %v7688
  %v8134 = vunpack.c.h.b16 %v7688
  %v8135 = vunpack.c.l.b16 %v7689
  %v8136 = vunpack.c.h.b16 %v7689
  %v8137 = vunpack.c.l.b16 %v7690
  %v8138 = vunpack.c.h.b16 %v7690
  %v8139 = vunpack.c.l.b16 %v7691
  %v8140 = vunpack.c.h.b16 %v7691
  %v8141 = vunpack.c.l.b16 %v7692
  %v8142 = vunpack.c.h.b16 %v7692
  %v8143 = vunpack.c.l.b16 %v7693
  %v8144 = vunpack.c.h.b16 %v7693
  %v8145 = vunpack.c.l.b16 %v7694
  %v8146 = vunpack.c.h.b16 %v7694
  %v8147 = vunpack.c.l.b16 %v7695
  %v8148 = vunpack.c.h.b16 %v7695
  %v8149 = vunpack.c.l.b16 %v7696
  %v8150 = vunpack.c.h.b16 %v7696
  %v8151 = vunpack.c.l.b16 %v7697
  %v8152 = vunpack.c.h.b16 %v7697
  %v8153 = vunpack.c.l.b16 %v7698
  %v8154 = vunpack.c.h.b16 %v7698
  %v8155 = vunpack.c.l.b16 %v7699
  %v8156 = vunpack.c.h.b16 %v7699
  %v8157 = vunpack.c.l.b16 %v7700
  %v8158 = vunpack.c.h.b16 %v7700
  %v8159 = vunpack.c.l.b16 %v7701
  %v8160 = vunpack.c.h.b16 %v7701
  %v8161 = vunpack.c.l.b16 %v7702
  %v8162 = vunpack.c.h.b16 %v7702
  %v8163 = vunpack.c.l.b16 %v7703
  %v8164 = vunpack.c.h.b16 %v7703
  %v8165 = vunpack.c.l.b16 %v7704
  %v8166 = vunpack.c.h.b16 %v7704
  %v8167 = vunpack.c.l.b16 %v7705
  %v8168 = vunpack.c.h.b16 %v7705
  %v8169 = vunpack.c.l.b16 %v7706
  %v8170 = vunpack.c.h.b16 %v7706
  %v8171 = vunpack.c.l.b16 %v7707
  %v8172 = vunpack.c.h.b16 %v7707
  %v8173 = vunpack.c.l.b16 %v7708
  %v8174 = vunpack.c.h.b16 %v7708
  %v8175 = vunpack.c.l.b16 %v7709
  %v8176 = vunpack.c.h.b16 %v7709
  %v8177 = vunpack.c.l.b16 %v7710
  %v8178 = vunpack.c.h.b16 %v7710
  %v8179 = vunpack.c.l.b16 %v7711
  %v8180 = vunpack.c.h.b16 %v7711
  %v8181 = vunpack.c.l.b16 %v7712
  %v8182 = vunpack.c.h.b16 %v7712
  %v8183 = vunpack.c.l.b16 %v7713
  %v8184 = vunpack.c.h.b16 %v7713
  %v8185 = vunpack.c.l.b16 %v7714
  %v8186 = vunpack.c.h.b16 %v7714
  %v8187 = vunpack.c.l.b16 %v7715
  %v8188 = vunpack.c.h.b16 %v7715
  %v8189 = vunpack.c.l.b16 %v7716
  %v8190 = vunpack.c.h.b16 %v7716
  %v8191 = vunpack.c.l.b16 %v7717
  %v8192 = vunpack.c.h.b16 %v7717
  %v8193 = vunpack.c.l.b16 %v7718
  %v8194 = vunpack.c.h.b16 %v7718
  %v8195 = vunpack.c.l.b16 %v7719
  %v8196 = vunpack.c.h.b16 %v7719
  %v8197 = vunpack.c.l.b16 %v7720
  %v8198 = vunpack.c.h.b16 %v7720
  %v8199 = vunpack.c.l.b16 %v7721
  %v8200 = vunpack.c.h.b16 %v7721
  %v8201 = vunpack.c.l.b16 %v7722
  %v8202 = vunpack.c.h.b16 %v7722
  %v8203 = vunpack.c.l.b16 %v7723
  %v8204 = vunpack.c.h.b16 %v7723
  %v8205 = vunpack.c.l.b16 %v7724
  %v8206 = vunpack.c.h.b16 %v7724
  %v8207 = vunpack.c.l.b16 %v7725
  %v8208 = vunpack.c.h.b16 %v7725
  %v8209 = vunpack.c.l.b16 %v7726
  %v8210 = vunpack.c.h.b16 %v7726
  %v8211 = vunpack.c.l.b16 %v7727
  %v8212 = vunpack.c.h.b16 %v7727
  %v8213 = vunpack.c.l.b16 %v7728
  %v8214 = vunpack.c.h.b16 %v7728
  %v8215 = vunpack.c.l.b16 %v7729
  %v8216 = vunpack.c.h.b16 %v7729
  %v8217 = vunpack.c.l.b16 %v7730
  %v8218 = vunpack.c.h.b16 %v7730
  %v8219 = vunpack.c.l.b16 %v7731
  %v8220 = vunpack.c.h.b16 %v7731
  %v8221 = vunpack.c.l.b16 %v7732
  %v8222 = vunpack.c.h.b16 %v7732
  %v8223 = vunpack.c.l.b16 %v7733
  %v8224 = vunpack.c.h.b16 %v7733
  %v8225 = vunpack.c.l.b16 %v7734
  %v8226 = vunpack.c.h.b16 %v7734
  %v8227 = vunpack.c.l.b16 %v7735
  %v8228 = vunpack.c.h.b16 %v7735
  %v8229 = vunpack.c.l.b16 %v7736
  %v8230 = vunpack.c.h.b16 %v7736
  %v8231 = vunpack.c.l.b16 %v7737
  %v8232 = vunpack.c.h.b16 %v7737
  %v8233 = vunpack.c.l.b16 %v7738
  %v8234 = vunpack.c.h.b16 %v7738
  %v8235 = vunpack.c.l.b16 %v7739
  %v8236 = vunpack.c.h.b16 %v7739
  %v8237 = vunpack.c.l.b16 %v7740
  %v8238 = vunpack.c.h.b16 %v7740
  %v8239 = vunpack.c.l.b16 %v7741
  %v8240 = vunpack.c.h.b16 %v7741
  %v8241 = vunpack.c.l.b16 %v7742
  %v8242 = vunpack.c.h.b16 %v7742
  %v8243 = vunpack.c.l.b16 %v7743
  %v8244 = vunpack.c.h.b16 %v7743
  %v8245 = vunpack.c.l.b16 %v7744
  %v8246 = vunpack.c.h.b16 %v7744
  %v8247 = vunpack.c.l.b16 %v7745
  %v8248 = vunpack.c.h.b16 %v7745
  %v8249 = vunpack.c.l.b16 %v7746
  %v8250 = vunpack.c.h.b16 %v7746
  %v8251 = vunpack.c.l.b16 %v7747
  %v8252 = vunpack.c.h.b16 %v7747
  %v8253 = vunpack.c.l.b16 %v7748
  %v8254 = vunpack.c.h.b16 %v7748
  %v8255 = vunpack.c.l.b16 %v7749
  %v8256 = vunpack.c.h.b16 %v7749
  %v8257 = vunpack.c.l.b16 %v7750
  %v8258 = vunpack.c.h.b16 %v7750
  %v8259 = vunpack.c.l.b16 %v7751
  %v8260 = vunpack.c.h.b16 %v7751
  %v8261 = vunpack.c.l.b16 %v7752
  %v8262 = vunpack.c.h.b16 %v7752
  %v8263 = vunpack.c.l.b16 %v7753
  %v8264 = vunpack.c.h.b16 %v7753
  %v8265 = vunpack.c.l.b16 %v7754
  %v8266 = vunpack.c.h.b16 %v7754
  %v8267 = vunpack.c.l.b16 %v7755
  %v8268 = vunpack.c.h.b16 %v7755
  %v8269 = vunpack.c.l.b16 %v7756
  %v8270 = vunpack.c.h.b16 %v7756
  %v8271 = vunpack.c.l.b16 %v7757
  %v8272 = vunpack.c.h.b16 %v7757
  %v8273 = vunpack.c.l.b16 %v7758
  %v8274 = vunpack.c.h.b16 %v7758
  %v8275 = vunpack.c.l.b16 %v7759
  %v8276 = vunpack.c.h.b16 %v7759
  %v8277 = vunpack.c.l.b16 %v7760
  %v8278 = vunpack.c.h.b16 %v7760
  %v8279 = vunpack.c.l.b16 %v7761
  %v8280 = vunpack.c.h.b16 %v7761
  %v8281 = vunpack.c.l.b16 %v7762
  %v8282 = vunpack.c.h.b16 %v7762
  %v8283 = vunpack.c.l.b16 %v7763
  %v8284 = vunpack.c.h.b16 %v7763
  %v8285 = vunpack.c.l.b16 %v7764
  %v8286 = vunpack.c.h.b16 %v7764
  %v8287 = vunpack.c.l.b16 %v7765
  %v8288 = vunpack.c.h.b16 %v7765
  %v8289 = vunpack.c.l.b16 %v7766
  %v8290 = vunpack.c.h.b16 %v7766
  %v8291 = vunpack.c.l.b16 %v7767
  %v8292 = vunpack.c.h.b16 %v7767
  %v8293 = vunpack.c.l.b16 %v7768
  %v8294 = vunpack.c.h.b16 %v7768
  %v8295 = vunpack.c.l.b16 %v7769
  %v8296 = vunpack.c.h.b16 %v7769
  %v8297 = vunpack.c.l.b16 %v7770
  %v8298 = vunpack.c.h.b16 %v7770
  %v8299 = vunpack.c.l.b16 %v7771
  %v8300 = vunpack.c.h.b16 %v7771
  %v8301 = vunpack.c.l.b16 %v7772
  %v8302 = vunpack.c.h.b16 %v7772
  %v8303 = vunpack.c.l.b16 %v7773
  %v8304 = vunpack.c.h.b16 %v7773
  %v8305 = vunpack.c.l.b16 %v7774
  %v8306 = vunpack.c.h.b16 %v7774
  %v8307 = vunpack.c.l.b16 %v7775
  %v8308 = vunpack.c.h.b16 %v7775
  %v8309 = vunpack.c.l.b16 %v7776
  %v8310 = vunpack.c.h.b16 %v7776
  %v8311 = vunpack.c.l.b16 %v7777
  %v8312 = vunpack.c.h.b16 %v7777
  %v8313 = vunpack.c.l.b16 %v7778
  %v8314 = vunpack.c.h.b16 %v7778
  %v8315 = vunpack.c.l.b16 %v7779
  %v8316 = vunpack.c.h.b16 %v7779
  %v8317 = vunpack.c.l.b16 %v7780
  %v8318 = vunpack.c.h.b16 %v7780
  %v8319 = vunpack.c.l.b16 %v7781
  %v8320 = vunpack.c.h.b16 %v7781
  %v8321 = vunpack.c.l.b16 %v7782
  %v8322 = vunpack.c.h.b16 %v7782
  %v8323 = vunpack.c.l.b16 %v7783
  %v8324 = vunpack.c.h.b16 %v7783
  %v8325 = vunpack.c.l.b16 %v7784
  %v8326 = vunpack.c.h.b16 %v7784
  %v8327 = vunpack.c.l.b16 %v7785
  %v8328 = vunpack.c.h.b16 %v7785
  %v8329 = vunpack.c.l.b16 %v7786
  %v8330 = vunpack.c.h.b16 %v7786
  %v8331 = vunpack.c.l.b16 %v7787
  %v8332 = vunpack.c.h.b16 %v7787
  %v8333 = vunpack.c.l.b16 %v7788
  %v8334 = vunpack.c.h.b16 %v7788
  %v8335 = vunpack.c.l.b16 %v7789
  %v8336 = vunpack.c.h.b16 %v7789
  %v8337 = vunpack.c.l.b16 %v7790
  %v8338 = vunpack.c.h.b16 %v7790
  %v8339 = vunpack.c.l.b16 %v7791
  %v8340 = vunpack.c.h.b16 %v7791
  %v8341 = vunpack.c.l.b16 %v7792
  %v8342 = vunpack.c.h.b16 %v7792
  %v8343 = vunpack.c.l.b16 %v7793
  %v8344 = vunpack.c.h.b16 %v7793
  %v8345 = vunpack.c.l.b16 %v7794
  %v8346 = vunpack.c.h.b16 %v7794
  %v8347 = vunpack.c.l.b16 %v7795
  %v8348 = vunpack.c.h.b16 %v7795
  %v8349 = vunpack.c.l.b16 %v7796
  %v8350 = vunpack.c.h.b16 %v7796
  %v8351 = vunpack.c.l.b16 %v7797
  %v8352 = vunpack.c.h.b16 %v7797
  %v8353 = vunpack.c.l.b16 %v7798
  %v8354 = vunpack.c.h.b16 %v7798
  %v8355 = vunpack.c.l.b16 %v7799
  %v8356 = vunpack.c.h.b16 %v7799
  %v8357 = vunpack.c.l.b16 %v7800
  %v8358 = vunpack.c.h.b16 %v7800
  %v8359 = vunpack.c.l.b16 %v7801
  %v8360 = vunpack.c.h.b16 %v7801
  %v8361 = vunpack.c.l.b16 %v7802
  %v8362 = vunpack.c.h.b16 %v7802
  %v8363 = vunpack.c.l.b16 %v7803
  %v8364 = vunpack.c.h.b16 %v7803
  %v8365 = vunpack.c.l.b16 %v7804
  %v8366 = vunpack.c.h.b16 %v7804
  %v8367 = vunpack.c.l.b16 %v7805
  %v8368 = vunpack.c.h.b16 %v7805
  %v8369 = vunpack.c.l.b16 %v7806
  %v8370 = vunpack.c.h.b16 %v7806
  %v8371 = vunpack.c.l.b16 %v7807
  %v8372 = vunpack.c.h.b16 %v7807
  %v8373 = vunpack.c.l.b16 %v7808
  %v8374 = vunpack.c.h.b16 %v7808
  %v8375 = vunpack.c.l.b16 %v7809
  %v8376 = vunpack.c.h.b16 %v7809
  %v8377 = vunpack.c.l.b16 %v7810
  %v8378 = vunpack.c.h.b16 %v7810
  %v8379 = vunpack.c.l.b16 %v7811
  %v8380 = vunpack.c.h.b16 %v7811
  %v8381 = vunpack.c.l.b16 %v7812
  %v8382 = vunpack.c.h.b16 %v7812
  %v8383 = vunpack.c.l.b16 %v7813
  %v8384 = vunpack.c.h.b16 %v7813
  %v8385 = vunpack.c.l.b16 %v7814
  %v8386 = vunpack.c.h.b16 %v7814
  %v8387 = vunpack.c.l.b16 %v7815
  %v8388 = vunpack.c.h.b16 %v7815
  %v8389 = vunpack.c.l.b16 %v7816
  %v8390 = vunpack.c.h.b16 %v7816
  %v8391 = vunpack.c.l.b16 %v7817
  %v8392 = vunpack.c.h.b16 %v7817
  %v8393 = vunpack.c.l.b16 %v7818
  %v8394 = vunpack.c.h.b16 %v7818
  %v8395 = vunpack.c.l.b16 %v7819
  %v8396 = vunpack.c.h.b16 %v7819
  %v8397 = vunpack.c.l.b16 %v7820
  %v8398 = vunpack.c.h.b16 %v7820
  %v8399 = vunpack.c.l.b16 %v7821
  %v8400 = vunpack.c.h.b16 %v7821
  %v8401 = vunpack.c.l.b16 %v7822
  %v8402 = vunpack.c.h.b16 %v7822
  %v8403 = vunpack.c.l.b16 %v7823
  %v8404 = vunpack.c.h.b16 %v7823
  %v8405 = vunpack.c.l.b16 %v7824
  %v8406 = vunpack.c.h.b16 %v7824
  %v8407 = vunpack.c.l.b16 %v7825
  %v8408 = vunpack.c.h.b16 %v7825
  %v8409 = vunpack.c.l.b16 %v7826
  %v8410 = vunpack.c.h.b16 %v7826
  %v8411 = vunpack.c.l.b16 %v7827
  %v8412 = vunpack.c.h.b16 %v7827
  %v8413 = vunpack.c.l.b16 %v7828
  %v8414 = vunpack.c.h.b16 %v7828
  %v8415 = vunpack.c.l.b16 %v7829
  %v8416 = vunpack.c.h.b16 %v7829
  %v8417 = vunpack.c.l.b16 %v7830
  %v8418 = vunpack.c.h.b16 %v7830
  %v8419 = vunpack.c.l.b16 %v7831
  %v8420 = vunpack.c.h.b16 %v7831
  %v8421 = vunpack.c.l.b16 %v7832
  %v8422 = vunpack.c.h.b16 %v7832
  %v8423 = vunpack.c.l.b16 %v7833
  %v8424 = vunpack.c.h.b16 %v7833
  %v8425 = vunpack.c.l.b16 %v7834
  %v8426 = vunpack.c.h.b16 %v7834
  %v8427 = vunpack.c.l.b16 %v7835
  %v8428 = vunpack.c.h.b16 %v7835
  %v8429 = vunpack.c.l.b16 %v7836
  %v8430 = vunpack.c.h.b16 %v7836
  %v8431 = vunpack.c.l.b16 %v7837
  %v8432 = vunpack.c.h.b16 %v7837
  %v8433 = vunpack.c.l.b16 %v7838
  %v8434 = vunpack.c.h.b16 %v7838
  %v8435 = vunpack.c.l.b16 %v7839
  %v8436 = vunpack.c.h.b16 %v7839
  %v8437 = vunpack.c.l.b16 %v7840
  %v8438 = vunpack.c.h.b16 %v7840
  %v8439 = vunpack.c.l.b16 %v7841
  %v8440 = vunpack.c.h.b16 %v7841
  %v8441 = vunpack.c.l.b16 %v7842
  %v8442 = vunpack.c.h.b16 %v7842
  %v8443 = vpack.c.b16 %v8047, %v8043
  %v8444 = vpack.c.b16 %v8048, %v8044
  %v8445 = vpack.c.b16 %v8049, %v8045
  %v8446 = vpack.c.b16 %v8050, %v8046
  %v8447 = vpack.c.b16 %v8055, %v8051
  %v8448 = vpack.c.b16 %v8056, %v8052
  %v8449 = vpack.c.b16 %v8057, %v8053
  %v8450 = vpack.c.b16 %v8058, %v8054
  %v8451 = vpack.c.b16 %v8063, %v8059
  %v8452 = vpack.c.b16 %v8064, %v8060
  %v8453 = vpack.c.b16 %v8065, %v8061
  %v8454 = vpack.c.b16 %v8066, %v8062
  %v8455 = vpack.c.b16 %v8071, %v8067
  %v8456 = vpack.c.b16 %v8072, %v8068
  %v8457 = vpack.c.b16 %v8073, %v8069
  %v8458 = vpack.c.b16 %v8074, %v8070
  %v8459 = vpack.c.b16 %v8079, %v8075
  %v8460 = vpack.c.b16 %v8080, %v8076
  %v8461 = vpack.c.b16 %v8081, %v8077
  %v8462 = vpack.c.b16 %v8082, %v8078
  %v8463 = vpack.c.b16 %v8087, %v8083
  %v8464 = vpack.c.b16 %v8088, %v8084
  %v8465 = vpack.c.b16 %v8089, %v8085
  %v8466 = vpack.c.b16 %v8090, %v8086
  %v8467 = vpack.c.b16 %v8095, %v8091
  %v8468 = vpack.c.b16 %v8096, %v8092
  %v8469 = vpack.c.b16 %v8097, %v8093
  %v8470 = vpack.c.b16 %v8098, %v8094
  %v8471 = vpack.c.b16 %v8103, %v8099
  %v8472 = vpack.c.b16 %v8104, %v8100
  %v8473 = vpack.c.b16 %v8105, %v8101
  %v8474 = vpack.c.b16 %v8106, %v8102
  %v8475 = vpack.c.b16 %v8111, %v8107
  %v8476 = vpack.c.b16 %v8112, %v8108
  %v8477 = vpack.c.b16 %v8113, %v8109
  %v8478 = vpack.c.b16 %v8114, %v8110
  %v8479 = vpack.c.b16 %v8119, %v8115
  %v8480 = vpack.c.b16 %v8120, %v8116
  %v8481 = vpack.c.b16 %v8121, %v8117
  %v8482 = vpack.c.b16 %v8122, %v8118
  %v8483 = vpack.c.b16 %v8127, %v8123
  %v8484 = vpack.c.b16 %v8128, %v8124
  %v8485 = vpack.c.b16 %v8129, %v8125
  %v8486 = vpack.c.b16 %v8130, %v8126
  %v8487 = vpack.c.b16 %v8135, %v8131
  %v8488 = vpack.c.b16 %v8136, %v8132
  %v8489 = vpack.c.b16 %v8137, %v8133
  %v8490 = vpack.c.b16 %v8138, %v8134
  %v8491 = vpack.c.b16 %v8143, %v8139
  %v8492 = vpack.c.b16 %v8144, %v8140
  %v8493 = vpack.c.b16 %v8145, %v8141
  %v8494 = vpack.c.b16 %v8146, %v8142
  %v8495 = vpack.c.b16 %v8151, %v8147
  %v8496 = vpack.c.b16 %v8152, %v8148
  %v8497 = vpack.c.b16 %v8153, %v8149
  %v8498 = vpack.c.b16 %v8154, %v8150
  %v8499 = vpack.c.b16 %v8159, %v8155
  %v8500 = vpack.c.b16 %v8160, %v8156
  %v8501 = vpack.c.b16 %v8161, %v8157
  %v8502 = vpack.c.b16 %v8162, %v8158
  %v8503 = vpack.c.b16 %v8167, %v8163
  %v8504 = vpack.c.b16 %v8168, %v8164
  %v8505 = vpack.c.b16 %v8169, %v8165
  %v8506 = vpack.c.b16 %v8170, %v8166
  %v8507 = vpack.c.b16 %v8175, %v8171
  %v8508 = vpack.c.b16 %v8176, %v8172
  %v8509 = vpack.c.b16 %v8177, %v8173
  %v8510 = vpack.c.b16 %v8178, %v8174
  %v8511 = vpack.c.b16 %v8183, %v8179
  %v8512 = vpack.c.b16 %v8184, %v8180
  %v8513 = vpack.c.b16 %v8185, %v8181
  %v8514 = vpack.c.b16 %v8186, %v8182
  %v8515 = vpack.c.b16 %v8191, %v8187
  %v8516 = vpack.c.b16 %v8192, %v8188
  %v8517 = vpack.c.b16 %v8193, %v8189
  %v8518 = vpack.c.b16 %v8194, %v8190
  %v8519 = vpack.c.b16 %v8199, %v8195
  %v8520 = vpack.c.b16 %v8200, %v8196
  %v8521 = vpack.c.b16 %v8201, %v8197
  %v8522 = vpack.c.b16 %v8202, %v8198
  %v8523 = vpack.c.b16 %v8207, %v8203
  %v8524 = vpack.c.b16 %v8208, %v8204
  %v8525 = vpack.c.b16 %v8209, %v8205
  %v8526 = vpack.c.b16 %v8210, %v8206
  %v8527 = vpack.c.b16 %v8215, %v8211
  %v8528 = vpack.c.b16 %v8216, %v8212
  %v8529 = vpack.c.b16 %v8217, %v8213
  %v8530 = vpack.c.b16 %v8218, %v8214
  %v8531 = vpack.c.b16 %v8223, %v8219
  %v8532 = vpack.c.b16 %v8224, %v8220
  %v8533 = vpack.c.b16 %v8225, %v8221
  %v8534 = vpack.c.b16 %v8226, %v8222
  %v8535 = vpack.c.b16 %v8231, %v8227
  %v8536 = vpack.c.b16 %v8232, %v8228
  %v8537 = vpack.c.b16 %v8233, %v8229
  %v8538 = vpack.c.b16 %v8234, %v8230
  %v8539 = vpack.c.b16 %v8239, %v8235
  %v8540 = vpack.c.b16 %v8240, %v8236
  %v8541 = vpack.c.b16 %v8241, %v8237
  %v8542 = vpack.c.b16 %v8242, %v8238
  %v8543 = vpack.c.b16 %v8247, %v8243
  %v8544 = vpack.c.b16 %v8248, %v8244
  %v8545 = vpack.c.b16 %v8249, %v8245
  %v8546 = vpack.c.b16 %v8250, %v8246
  %v8547 = vpack.c.b16 %v8255, %v8251
  %v8548 = vpack.c.b16 %v8256, %v8252
  %v8549 = vpack.c.b16 %v8257, %v8253
  %v8550 = vpack.c.b16 %v8258, %v8254
  %v8551 = vpack.c.b16 %v8263, %v8259
  %v8552 = vpack.c.b16 %v8264, %v8260
  %v8553 = vpack.c.b16 %v8265, %v8261
  %v8554 = vpack.c.b16 %v8266, %v8262
  %v8555 = vpack.c.b16 %v8271, %v8267
  %v8556 = vpack.c.b16 %v8272, %v8268
  %v8557 = vpack.c.b16 %v8273, %v8269
  %v8558 = vpack.c.b16 %v8274, %v8270
  %v8559 = vpack.c.b16 %v8279, %v8275
  %v8560 = vpack.c.b16 %v8280, %v8276
  %v8561 = vpack.c.b16 %v8281, %v8277
  %v8562 = vpack.c.b16 %v8282, %v8278
  %v8563 = vpack.c.b16 %v8287, %v8283
  %v8564 = vpack.c.b16 %v8288, %v8284
  %v8565 = vpack.c.b16 %v8289, %v8285
  %v8566 = vpack.c.b16 %v8290, %v8286
  %v8567 = vpack.c.b16 %v8295, %v8291
  %v8568 = vpack.c.b16 %v8296, %v8292
  %v8569 = vpack.c.b16 %v8297, %v8293
  %v8570 = vpack.c.b16 %v8298, %v8294
  %v8571 = vpack.c.b16 %v8303, %v8299
  %v8572 = vpack.c.b16 %v8304, %v8300
  %v8573 = vpack.c.b16 %v8305, %v8301
  %v8574 = vpack.c.b16 %v8306, %v8302
  %v8575 = vpack.c.b16 %v8311, %v8307
  %v8576 = vpack.c.b16 %v8312, %v8308
  %v8577 = vpack.c.b16 %v8313, %v8309
  %v8578 = vpack.c.b16 %v8314, %v8310
  %v8579 = vpack.c.b16 %v8319, %v8315
  %v8580 = vpack.c.b16 %v8320, %v8316
  %v8581 = vpack.c.b16 %v8321, %v8317
  %v8582 = vpack.c.b16 %v8322, %v8318
  %v8583 = vpack.c.b16 %v8327, %v8323
  %v8584 = vpack.c.b16 %v8328, %v8324
  %v8585 = vpack.c.b16 %v8329, %v8325
  %v8586 = vpack.c.b16 %v8330, %v8326
  %v8587 = vpack.c.b16 %v8335, %v8331
  %v8588 = vpack.c.b16 %v8336, %v8332
  %v8589 = vpack.c.b16 %v8337, %v8333
  %v8590 = vpack.c.b16 %v8338, %v8334
  %v8591 = vpack.c.b16 %v8343, %v8339
  %v8592 = vpack.c.b16 %v8344, %v8340
  %v8593 = vpack.c.b16 %v8345, %v8341
  %v8594 = vpack.c.b16 %v8346, %v8342
  %v8595 = vpack.c.b16 %v8351, %v8347
  %v8596 = vpack.c.b16 %v8352, %v8348
  %v8597 = vpack.c.b16 %v8353, %v8349
  %v8598 = vpack.c.b16 %v8354, %v8350
  %v8599 = vpack.c.b16 %v8359, %v8355
  %v8600 = vpack.c.b16 %v8360, %v8356
  %v8601 = vpack.c.b16 %v8361, %v8357
  %v8602 = vpack.c.b16 %v8362, %v8358
  %v8603 = vpack.c.b16 %v8367, %v8363
  %v8604 = vpack.c.b16 %v8368, %v8364
  %v8605 = vpack.c.b16 %v8369, %v8365
  %v8606 = vpack.c.b16 %v8370, %v8366
  %v8607 = vpack.c.b16 %v8375, %v8371
  %v8608 = vpack.c.b16 %v8376, %v8372
  %v8609 = vpack.c.b16 %v8377, %v8373
  %v8610 = vpack.c.b16 %v8378, %v8374
  %v8611 = vpack.c.b16 %v8383, %v8379
  %v8612 = vpack.c.b16 %v8384, %v8380
  %v8613 = vpack.c.b16 %v8385, %v8381
  %v8614 = vpack.c.b16 %v8386, %v8382
  %v8615 = vpack.c.b16 %v8391, %v8387
  %v8616 = vpack.c.b16 %v8392, %v8388
  %v8617 = vpack.c.b16 %v8393, %v8389
  %v8618 = vpack.c.b16 %v8394, %v8390
  %v8619 = vpack.c.b16 %v8399, %v8395
  %v8620 = vpack.c.b16 %v8400, %v8396
  %v8621 = vpack.c.b16 %v8401, %v8397
  %v8622 = vpack.c.b16 %v8402, %v8398
  %v8623 = vpack.c.b16 %v8407, %v8403
  %v8624 = vpack.c.b16 %v8408, %v8404
  %v8625 = vpack.c.b16 %v8409, %v8405
  %v8626 = vpack.c.b16 %v8410, %v8406
  %v8627 = vpack.c.b16 %v8415, %v8411
  %v8628 = vpack.c.b16 %v8416, %v8412
  %v8629 = vpack.c.b16 %v8417, %v8413
  %v8630 = vpack.c.b16 %v8418, %v8414
  %v8631 = vpack.c.b16 %v8423, %v8419
  %v8632 = vpack.c.b16 %v8424, %v8420
  %v8633 = vpack.c.b16 %v8425, %v8421
  %v8634 = vpack.c.b16 %v8426, %v8422
  %v8635 = vpack.c.b16 %v8431, %v8427
  %v8636 = vpack.c.b16 %v8432, %v8428
  %v8637 = vpack.c.b16 %v8433, %v8429
  %v8638 = vpack.c.b16 %v8434, %v8430
  %v8639 = vpack.c.b16 %v8439, %v8435
  %v8640 = vpack.c.b16 %v8440, %v8436
  %v8641 = vpack.c.b16 %v8441, %v8437
  %v8642 = vpack.c.b16 %v8442, %v8438
  %v8844 = vsel %vm2697, %v7642, 0
  %8846 = vmatprep.subr.bf16.mxu0 %v8444
  %8847 = vmatpush1.bf16.msra.mxu0 %v8443
  %8848 = vmatprep.subr.bf16.mxu0 %v8448
  %8849 = vmatpush1.bf16.msra.mxu0 %v8447
  %8850 = vmatprep.subr.bf16.mxu0 %v8452
  %8851 = vmatpush1.bf16.msra.mxu0 %v8451
  %8852 = vmatprep.subr.bf16.mxu0 %v8456
  %8853 = vmatpush1.bf16.msra.mxu0 %v8455
  %8854 = vmatprep.subr.bf16.mxu0 %v8460
  %8855 = vmatpush1.bf16.msra.mxu0 %v8459
  %8856 = vmatprep.subr.bf16.mxu0 %v8464
  %8857 = vmatpush1.bf16.msra.mxu0 %v8463
  %8858 = vmatprep.subr.bf16.mxu0 %v8468
  %8859 = vmatpush1.bf16.msra.mxu0 %v8467
  %8860 = vmatprep.subr.bf16.mxu0 %v8472
  %8861 = vmatpush1.bf16.msra.mxu0 %v8471
  %8862 = vmatprep.subr.bf16.mxu0 %v8476
  %8863 = vmatpush1.bf16.msra.mxu0 %v8475
  %8864 = vmatprep.subr.bf16.mxu0 %v8480
  %8865 = vmatpush1.bf16.msra.mxu0 %v8479
  %8866 = vmatprep.subr.bf16.mxu0 %v8484
  %8867 = vmatpush1.bf16.msra.mxu0 %v8483
  %8868 = vmatprep.subr.bf16.mxu0 %v8488
  %8869 = vmatpush1.bf16.msra.mxu0 %v8487
  %8870 = vmatprep.subr.bf16.mxu0 %v8492
  %8871 = vmatpush1.bf16.msra.mxu0 %v8491
  %8872 = vmatprep.subr.bf16.mxu0 %v8496
  %8873 = vmatpush1.bf16.msra.mxu0 %v8495
  %8874 = vmatprep.subr.bf16.mxu0 %v8500
  %8875 = vmatpush1.bf16.msra.mxu0 %v8499
  %8876 = vmatprep.subr.bf16.mxu0 %v8504
  %8877 = vmatpush1.bf16.msra.mxu0 %v8503
  %8878 = vmatprep.mubr.bf16.mxu0 %v7637
  %8879 = vmatmul.mubr.bf16.gmra.mrb[0].mxu0 %v7636
  %v8880 = vpop.f32.mrb[0].mxu0
  %v8881 = vadd.f32 0.0, %v8880
  %v8882 = vpop.f32.mrb[0].mxu0
  %v8883 = vadd.f32 0.0, %v8882
  %v8884 = vpop.f32.mrb[0].mxu0
  %v8885 = vpop.f32.mrb[0].mxu0
  %8886 = vdwg.mxu0
  %8887 = vmatprep.subr.bf16.mxu0 %v8508
  %8888 = vmatpush1.bf16.msra.mxu0 %v8507
  %8889 = vmatprep.subr.bf16.mxu0 %v8512
  %8890 = vmatpush1.bf16.msra.mxu0 %v8511
  %8891 = vmatprep.subr.bf16.mxu0 %v8516
  %8892 = vmatpush1.bf16.msra.mxu0 %v8515
  %8893 = vmatprep.subr.bf16.mxu0 %v8520
  %8894 = vmatpush1.bf16.msra.mxu0 %v8519
  %8895 = vmatprep.subr.bf16.mxu0 %v8524
  %8896 = vmatpush1.bf16.msra.mxu0 %v8523
  %8897 = vmatprep.subr.bf16.mxu0 %v8528
  %8898 = vmatpush1.bf16.msra.mxu0 %v8527
  %8899 = vmatprep.subr.bf16.mxu0 %v8532
  %8900 = vmatpush1.bf16.msra.mxu0 %v8531
  %8901 = vmatprep.subr.bf16.mxu0 %v8536
  %8902 = vmatpush1.bf16.msra.mxu0 %v8535
  %8903 = vmatprep.subr.bf16.mxu0 %v8540
  %8904 = vmatpush1.bf16.msra.mxu0 %v8539
  %8905 = vmatprep.subr.bf16.mxu0 %v8544
  %8906 = vmatpush1.bf16.msra.mxu0 %v8543
  %8907 = vmatprep.subr.bf16.mxu0 %v8548
  %8908 = vmatpush1.bf16.msra.mxu0 %v8547
  %8909 = vmatprep.subr.bf16.mxu0 %v8552
  %8910 = vmatpush1.bf16.msra.mxu0 %v8551
  %8911 = vmatprep.subr.bf16.mxu0 %v8556
  %8912 = vmatpush1.bf16.msra.mxu0 %v8555
  %8913 = vmatprep.subr.bf16.mxu0 %v8560
  %8914 = vmatpush1.bf16.msra.mxu0 %v8559
  %8915 = vmatprep.subr.bf16.mxu0 %v8564
  %8916 = vmatpush1.bf16.msra.mxu0 %v8563
  %8917 = vmatprep.subr.bf16.mxu0 %v8568
  %8918 = vmatpush1.bf16.msra.mxu0 %v8567
  %8919 = vmatprep.mubr.bf16.mxu0 %v7639
  %8920 = vmatmul.mubr.bf16.gmra.mrb[0].mxu0 %v7638
  %v8921 = vpop.f32.mrb[0].mxu0
  %v8922 = vadd.f32 %v8881, %v8921
  %v8923 = vpop.f32.mrb[0].mxu0
  %v8924 = vadd.f32 %v8883, %v8923
  %v8925 = vpop.f32.mrb[0].mxu0
  %v8926 = vpop.f32.mrb[0].mxu0
  %8927 = vdwg.mxu0
  %8928 = vmatprep.subr.bf16.mxu0 %v8572
  %8929 = vmatpush1.bf16.msra.mxu0 %v8571
  %8930 = vmatprep.subr.bf16.mxu0 %v8576
  %8931 = vmatpush1.bf16.msra.mxu0 %v8575
  %8932 = vmatprep.subr.bf16.mxu0 %v8580
  %8933 = vmatpush1.bf16.msra.mxu0 %v8579
  %8934 = vmatprep.subr.bf16.mxu0 %v8584
  %8935 = vmatpush1.bf16.msra.mxu0 %v8583
  %8936 = vmatprep.subr.bf16.mxu0 %v8588
  %8937 = vmatpush1.bf16.msra.mxu0 %v8587
  %8938 = vmatprep.subr.bf16.mxu0 %v8592
  %8939 = vmatpush1.bf16.msra.mxu0 %v8591
  %8940 = vmatprep.subr.bf16.mxu0 %v8596
  %8941 = vmatpush1.bf16.msra.mxu0 %v8595
  %8942 = vmatprep.subr.bf16.mxu0 %v8600
  %8943 = vmatpush1.bf16.msra.mxu0 %v8599
  %8944 = vmatprep.subr.bf16.mxu0 %v8604
  %8945 = vmatpush1.bf16.msra.mxu0 %v8603
  %8946 = vmatprep.subr.bf16.mxu0 %v8608
  %8947 = vmatpush1.bf16.msra.mxu0 %v8607
  %8948 = vmatprep.subr.bf16.mxu0 %v8612
  %8949 = vmatpush1.bf16.msra.mxu0 %v8611
  %8950 = vmatprep.subr.bf16.mxu0 %v8616
  %8951 = vmatpush1.bf16.msra.mxu0 %v8615
  %8952 = vmatprep.subr.bf16.mxu0 %v8620
  %8953 = vmatpush1.bf16.msra.mxu0 %v8619
  %8954 = vmatprep.subr.bf16.mxu0 %v8624
  %8955 = vmatpush1.bf16.msra.mxu0 %v8623
  %8956 = vmatprep.subr.bf16.mxu0 %v8628
  %8957 = vmatpush1.bf16.msra.mxu0 %v8627
  %8958 = vmatprep.subr.bf16.mxu0 %v8632
  %8959 = vmatpush1.bf16.msra.mxu0 %v8631
  %8960 = vmatprep.mubr.bf16.mxu0 %v7641
  %8961 = vmatmul.mubr.bf16.gmra.mrb[0].mxu0 %v7640
  %v8962 = vpop.f32.mrb[0].mxu0
  %v8963 = vadd.f32 %v8922, %v8962
  %v8964 = vpop.f32.mrb[0].mxu0
  %v8965 = vadd.f32 %v8924, %v8964
  %v8966 = vpop.f32.mrb[0].mxu0
  %v8967 = vpop.f32.mrb[0].mxu0
  %8968 = vdwg.mxu0
  %8969 = vmatprep.subr.bf16.mxu0 %v8636
  %8970 = vmatpush1.bf16.msra.mxu0 %v8635
  %8971 = vmatprep.subr.bf16.mxu0 %v8640
  %8972 = vmatpush1.bf16.msra.mxu0 %v8639
  %8973 = vmatprep.subr.bf16.mxu0 0
  %8974 = vmatpush1.bf16.msra.mxu0 0
  %8975 = vmatprep.subr.bf16.mxu0 0
  %8976 = vmatpush1.bf16.msra.mxu0 0
  %8977 = vmatprep.subr.bf16.mxu0 0
  %8978 = vmatpush1.bf16.msra.mxu0 0
  %8979 = vmatprep.subr.bf16.mxu0 0
  %8980 = vmatpush1.bf16.msra.mxu0 0
  %8981 = vmatprep.subr.bf16.mxu0 0
  %8982 = vmatpush1.bf16.msra.mxu0 0
  %8983 = vmatprep.subr.bf16.mxu0 0
  %8984 = vmatpush1.bf16.msra.mxu0 0
  %8985 = vmatprep.subr.bf16.mxu0 0
  %8986 = vmatpush1.bf16.msra.mxu0 0
  %8987 = vmatprep.subr.bf16.mxu0 0
  %8988 = vmatpush1.bf16.msra.mxu0 0
  %8989 = vmatprep.subr.bf16.mxu0 0
  %8990 = vmatpush1.bf16.msra.mxu0 0
  %8991 = vmatprep.subr.bf16.mxu0 0
  %8992 = vmatpush1.bf16.msra.mxu0 0
  %8993 = vmatprep.subr.bf16.mxu0 0
  %8994 = vmatpush1.bf16.msra.mxu0 0
  %8995 = vmatprep.subr.bf16.mxu0 0
  %8996 = vmatpush1.bf16.msra.mxu0 0
  %8997 = vmatprep.subr.bf16.mxu0 0
  %8998 = vmatpush1.bf16.msra.mxu0 0
  %8999 = vmatprep.subr.bf16.mxu0 0
  %9000 = vmatpush1.bf16.msra.mxu0 0
  %9001 = vmatprep.mubr.bf16.mxu0 0
  %9002 = vmatmul.mubr.bf16.gmra.mrb[0].mxu0 %v8844
  %v9003 = vpop.f32.mrb[0].mxu0
  %v9004 = vadd.f32 %v8963, %v9003
  %v9005 = vpop.f32.mrb[0].mxu0
  %v9006 = vadd.f32 %v8965, %v9005
  %v9007 = vpop.f32.mrb[0].mxu0
  %v9008 = vpop.f32.mrb[0].mxu0
  %9009 = vdwg.mxu0
  %9010 = vmatprep.subr.bf16.mxu0 %v8446
  %9011 = vmatpush1.bf16.msra.mxu0 %v8445
  %9012 = vmatprep.subr.bf16.mxu0 %v8450
  %9013 = vmatpush1.bf16.msra.mxu0 %v8449
  %9014 = vmatprep.subr.bf16.mxu0 %v8454
  %9015 = vmatpush1.bf16.msra.mxu0 %v8453
  %9016 = vmatprep.subr.bf16.mxu0 %v8458
  %9017 = vmatpush1.bf16.msra.mxu0 %v8457
  %9018 = vmatprep.subr.bf16.mxu0 %v8462
  %9019 = vmatpush1.bf16.msra.mxu0 %v8461
  %9020 = vmatprep.subr.bf16.mxu0 %v8466
  %9021 = vmatpush1.bf16.msra.mxu0 %v8465
  %9022 = vmatprep.subr.bf16.mxu0 %v8470
  %9023 = vmatpush1.bf16.msra.mxu0 %v8469
  %9024 = vmatprep.subr.bf16.mxu0 %v8474
  %9025 = vmatpush1.bf16.msra.mxu0 %v8473
  %9026 = vmatprep.subr.bf16.mxu0 %v8478
  %9027 = vmatpush1.bf16.msra.mxu0 %v8477
  %9028 = vmatprep.subr.bf16.mxu0 %v8482
  %9029 = vmatpush1.bf16.msra.mxu0 %v8481
  %9030 = vmatprep.subr.bf16.mxu0 %v8486
  %9031 = vmatpush1.bf16.msra.mxu0 %v8485
  %9032 = vmatprep.subr.bf16.mxu0 %v8490
  %9033 = vmatpush1.bf16.msra.mxu0 %v8489
  %9034 = vmatprep.subr.bf16.mxu0 %v8494
  %9035 = vmatpush1.bf16.msra.mxu0 %v8493
  %9036 = vmatprep.subr.bf16.mxu0 %v8498
  %9037 = vmatpush1.bf16.msra.mxu0 %v8497
  %9038 = vmatprep.subr.bf16.mxu0 %v8502
  %9039 = vmatpush1.bf16.msra.mxu0 %v8501
  %9040 = vmatprep.subr.bf16.mxu0 %v8506
  %9041 = vmatpush1.bf16.msra.mxu0 %v8505
  %9042 = vmatprep.mubr.bf16.mxu0 %v7637
  %9043 = vmatmul.mubr.bf16.gmra.mrb[0].mxu0 %v7636
  %v9044 = vpop.f32.mrb[0].mxu0
  %v9045 = vadd.f32 0.0, %v9044
  %v9046 = vpop.f32.mrb[0].mxu0
  %v9047 = vadd.f32 0.0, %v9046
  %v9048 = vpop.f32.mrb[0].mxu0
  %v9049 = vpop.f32.mrb[0].mxu0
  %9050 = vdwg.mxu0
  %9051 = vmatprep.subr.bf16.mxu0 %v8510
  %9052 = vmatpush1.bf16.msra.mxu0 %v8509
  %9053 = vmatprep.subr.bf16.mxu0 %v8514
  %9054 = vmatpush1.bf16.msra.mxu0 %v8513
  %9055 = vmatprep.subr.bf16.mxu0 %v8518
  %9056 = vmatpush1.bf16.msra.mxu0 %v8517
  %9057 = vmatprep.subr.bf16.mxu0 %v8522
  %9058 = vmatpush1.bf16.msra.mxu0 %v8521
  %9059 = vmatprep.subr.bf16.mxu0 %v8526
  %9060 = vmatpush1.bf16.msra.mxu0 %v8525
  %9061 = vmatprep.subr.bf16.mxu0 %v8530
  %9062 = vmatpush1.bf16.msra.mxu0 %v8529
  %9063 = vmatprep.subr.bf16.mxu0 %v8534
  %9064 = vmatpush1.bf16.msra.mxu0 %v8533
  %9065 = vmatprep.subr.bf16.mxu0 %v8538
  %9066 = vmatpush1.bf16.msra.mxu0 %v8537
  %9067 = vmatprep.subr.bf16.mxu0 %v8542
  %9068 = vmatpush1.bf16.msra.mxu0 %v8541
  %9069 = vmatprep.subr.bf16.mxu0 %v8546
  %9070 = vmatpush1.bf16.msra.mxu0 %v8545
  %9071 = vmatprep.subr.bf16.mxu0 %v8550
  %9072 = vmatpush1.bf16.msra.mxu0 %v8549
  %9073 = vmatprep.subr.bf16.mxu0 %v8554
  %9074 = vmatpush1.bf16.msra.mxu0 %v8553
  %9075 = vmatprep.subr.bf16.mxu0 %v8558
  %9076 = vmatpush1.bf16.msra.mxu0 %v8557
  %9077 = vmatprep.subr.bf16.mxu0 %v8562
  %9078 = vmatpush1.bf16.msra.mxu0 %v8561
  %9079 = vmatprep.subr.bf16.mxu0 %v8566
  %9080 = vmatpush1.bf16.msra.mxu0 %v8565
  %9081 = vmatprep.subr.bf16.mxu0 %v8570
  %9082 = vmatpush1.bf16.msra.mxu0 %v8569
  %9083 = vmatprep.mubr.bf16.mxu0 %v7639
  %9084 = vmatmul.mubr.bf16.gmra.mrb[0].mxu0 %v7638
  %v9085 = vpop.f32.mrb[0].mxu0
  %v9086 = vadd.f32 %v9045, %v9085
  %v9087 = vpop.f32.mrb[0].mxu0
  %v9088 = vadd.f32 %v9047, %v9087
  %v9089 = vpop.f32.mrb[0].mxu0
  %v9090 = vpop.f32.mrb[0].mxu0
  %9091 = vdwg.mxu0
  %9092 = vmatprep.subr.bf16.mxu0 %v8574
  %9093 = vmatpush1.bf16.msra.mxu0 %v8573
  %9094 = vmatprep.subr.bf16.mxu0 %v8578
  %9095 = vmatpush1.bf16.msra.mxu0 %v8577
  %9096 = vmatprep.subr.bf16.mxu0 %v8582
  %9097 = vmatpush1.bf16.msra.mxu0 %v8581
  %9098 = vmatprep.subr.bf16.mxu0 %v8586
  %9099 = vmatpush1.bf16.msra.mxu0 %v8585
  %9100 = vmatprep.subr.bf16.mxu0 %v8590
  %9101 = vmatpush1.bf16.msra.mxu0 %v8589
  %9102 = vmatprep.subr.bf16.mxu0 %v8594
  %9103 = vmatpush1.bf16.msra.mxu0 %v8593
  %9104 = vmatprep.subr.bf16.mxu0 %v8598
  %9105 = vmatpush1.bf16.msra.mxu0 %v8597
  %9106 = vmatprep.subr.bf16.mxu0 %v8602
  %9107 = vmatpush1.bf16.msra.mxu0 %v8601
  %9108 = vmatprep.subr.bf16.mxu0 %v8606
  %9109 = vmatpush1.bf16.msra.mxu0 %v8605
  %9110 = vmatprep.subr.bf16.mxu0 %v8610
  %9111 = vmatpush1.bf16.msra.mxu0 %v8609
  %9112 = vmatprep.subr.bf16.mxu0 %v8614
  %9113 = vmatpush1.bf16.msra.mxu0 %v8613
  %9114 = vmatprep.subr.bf16.mxu0 %v8618
  %9115 = vmatpush1.bf16.msra.mxu0 %v8617
  %9116 = vmatprep.subr.bf16.mxu0 %v8622
  %9117 = vmatpush1.bf16.msra.mxu0 %v8621
  %9118 = vmatprep.subr.bf16.mxu0 %v8626
  %9119 = vmatpush1.bf16.msra.mxu0 %v8625
  %9120 = vmatprep.subr.bf16.mxu0 %v8630
  %9121 = vmatpush1.bf16.msra.mxu0 %v8629
  %9122 = vmatprep.subr.bf16.mxu0 %v8634
  %9123 = vmatpush1.bf16.msra.mxu0 %v8633
  %9124 = vmatprep.mubr.bf16.mxu0 %v7641
  %9125 = vmatmul.mubr.bf16.gmra.mrb[0].mxu0 %v7640
  %v9126 = vpop.f32.mrb[0].mxu0
  %v9127 = vadd.f32 %v9086, %v9126
  %v9128 = vpop.f32.mrb[0].mxu0
  %v9129 = vadd.f32 %v9088, %v9128
  %v9130 = vpop.f32.mrb[0].mxu0
  %v9131 = vpop.f32.mrb[0].mxu0
  %9132 = vdwg.mxu0
  %9133 = vmatprep.subr.bf16.mxu0 %v8638
  %9134 = vmatpush1.bf16.msra.mxu0 %v8637
  %9135 = vmatprep.subr.bf16.mxu0 %v8642
  %9136 = vmatpush1.bf16.msra.mxu0 %v8641
  %9137 = vmatprep.subr.bf16.mxu0 0
  %9138 = vmatpush1.bf16.msra.mxu0 0
  %9139 = vmatprep.subr.bf16.mxu0 0
  %9140 = vmatpush1.bf16.msra.mxu0 0
  %9141 = vmatprep.subr.bf16.mxu0 0
  %9142 = vmatpush1.bf16.msra.mxu0 0
  %9143 = vmatprep.subr.bf16.mxu0 0
  %9144 = vmatpush1.bf16.msra.mxu0 0
  %9145 = vmatprep.subr.bf16.mxu0 0
  %9146 = vmatpush1.bf16.msra.mxu0 0
  %9147 = vmatprep.subr.bf16.mxu0 0
  %9148 = vmatpush1.bf16.msra.mxu0 0
  %9149 = vmatprep.subr.bf16.mxu0 0
  %9150 = vmatpush1.bf16.msra.mxu0 0
  %9151 = vmatprep.subr.bf16.mxu0 0
  %9152 = vmatpush1.bf16.msra.mxu0 0
  %9153 = vmatprep.subr.bf16.mxu0 0
  %9154 = vmatpush1.bf16.msra.mxu0 0
  %9155 = vmatprep.subr.bf16.mxu0 0
  %9156 = vmatpush1.bf16.msra.mxu0 0
  %9157 = vmatprep.subr.bf16.mxu0 0
  %9158 = vmatpush1.bf16.msra.mxu0 0
  %9159 = vmatprep.subr.bf16.mxu0 0
  %9160 = vmatpush1.bf16.msra.mxu0 0
  %9161 = vmatprep.subr.bf16.mxu0 0
  %9162 = vmatpush1.bf16.msra.mxu0 0
  %9163 = vmatprep.subr.bf16.mxu0 0
  %9164 = vmatpush1.bf16.msra.mxu0 0
  %9165 = vmatprep.mubr.bf16.mxu0 0
  %9166 = vmatmul.mubr.bf16.gmra.mrb[0].mxu0 %v8844
  %v9167 = vpop.f32.mrb[0].mxu0
  %v9168 = vadd.f32 %v9127, %v9167
  %v9169 = vpop.f32.mrb[0].mxu0
  %v9170 = vadd.f32 %v9129, %v9169
  %v9171 = vpop.f32.mrb[0].mxu0
  %v9172 = vpop.f32.mrb[0].mxu0
  %9173 = vdwg.mxu0
  %v9174 = vtanh.pop %v9004
  %v9175 = vtanh.pop %v9006
  %v9176 = vtanh.pop %v9168
  %v9177 = vtanh.pop %v9170
  %v9182 = vcombine.low %v9174, %v9175
  %v9183 = vcombine.low %v9176, %v9177
  %v9185 = vunpack.c.l.s4 1983009808
  %v9186 = vunpack.c.0.s8 %v9185
  %v9187 = vlaneseq
  %v9188 = vshrl.u32 %v9187, 7
  %v9189 = vsub.s32 %v9186, %v9188
  %v9190 = vrot.slane %v9182, %v9189
  %v9192 = vunpack.c.l.s4 1983009808
  %v9193 = vunpack.c.0.s8 %v9192
  %v9194 = vlaneseq
  %v9195 = vshrl.u32 %v9194, 7
  %v9196 = vsub.s32 %v9193, %v9195
  %v9197 = vrot.slane %v9183, %v9196
  %v9198 = vcombine.low %v9190, %v9197
  %vm9200 = vcmask 1043458
  %vm9201 = vmor %vm9200, %vm649
  %vm9202 = vcmask 1045508
  %vm9203 = vmor %vm9202, %vm9201
  %vm9204 = vcmask 130054
  %vm9205 = vmor %vm9204, %vm9203
  %9206 = vst.msk [vmem:[%s27] sm:$0xff] %vm9205, %v9198
  // Predicated region
  $region110: #{generator_forward.1} parent=0 // pred_check
    _
  $region111: #{generator_forward.1} parent=0 // pred_check_branch
    %9208 = sbr.rel (0) target = $region113
  $region112: #{generator_forward.1} parent=0 // pred_region
    _
  $region113: #{generator_forward.1} parent=0 // pred_fallthru
    _
  // Predicated region
  $region114: #{generator_forward.1} parent=0 // pred_check
    _
  $region115: #{generator_forward.1} parent=0 // pred_check_branch
    %9210 = sbr.rel (0) target = $region117
  $region116: #{generator_forward.1} parent=0 // pred_region
    _
  $region117: #{generator_forward.1} parent=0 // pred_fallthru
    _

</llo_original>
